<compile_context>
chip_gen: v6e
topology: v6e:2x2x1
jax: 0.10.0
libtpu: 0.0.40
codegen_flags: <defaults>
</compile_context>

<pallas_src>
import math
import functools

import jax
import jax.numpy as jnp
import numpy as np
from jax.experimental import pallas as pl
from jax.experimental.pallas import tpu as pltpu


def _round_up(x, m):
    return ((x + m - 1) // m) * m


# ----------------------------- fused Pallas kernel ---------------------------

def _probsparse_fused_kernel(u, u_part, scale,
                             q_ref, k_ref, v_ref, cnt_ref, out_ref):
    """Fused ProbSparse spatial attention for one (Bb, H, Tb) block.

    q/k/v_ref : (Bb, H, Tb, N, D)
    cnt_ref   : (N, N) float32, cnt[n, m] = #{s : index_sample[n, s] == m}
    out_ref   : (Bb, N, Tb*H*D)   -- final (B, N, T, H*D) layout, lane dense
    """
    bb, h, tb, n, d = q_ref.shape
    gg = bb * h * tb

    # Leading-dims-only reshapes: layout preserving, zero cost.
    q = q_ref[...].reshape(gg, n, d)
    k = k_ref[...].reshape(gg, n, d)
    v = v_ref[...].reshape(gg, n, d)
    cnt = cnt_ref[...]                                          # (n, n) f32

    # One MXU pass over Q.K^T, reused by the measure AND the softmax.
    s = jnp.einsum('gnd,gmd->gnm', q, k,
                   preferred_element_type=jnp.float32)          # (gg, n, n)

    # --- ProbSparse measure: M = max_sampled(Q.K) - mean_sampled(Q.K) -------
    sampled = jnp.broadcast_to((cnt > 0.0)[None, :, :], s.shape)
    s_samp = jnp.where(sampled, s, -1e30)                       # select, not add
    m_max = jnp.max(s_samp, axis=-1)                            # (gg, n)
    m_sum = jnp.sum(s * cnt[None, :, :], axis=-1)               # multiplicity-weighted
    meas = m_max - m_sum * (1.0 / u_part)                       # (gg, n)

    # --- in-kernel top-u selection via a stable rank (ties -> lower index);
    #     identical selection set to jax.lax.top_k, no XLA top_k round trip.
    mi = meas[:, :, None]                                       # value at row n
    mj = meas[:, None, :]                                       # value at row m
    idx_n = jax.lax.broadcasted_iota(jnp.int32, (n, n), 0)[None, :, :]
    idx_m = jax.lax.broadcasted_iota(jnp.int32, (n, n), 1)[None, :, :]
    beats = jnp.logical_or(mj > mi, jnp.logical_and(mj == mi, idx_m < idx_n))
    rank = jnp.sum(beats.astype(jnp.float32), axis=-1)          # (gg, n)
    member = rank < float(u)                                    # (gg, n) bool

    # --- softmax + attention context (rows are independent, so computing all
    #     N rows and selecting afterwards equals gathering Q_reduce first) ----
    sc = s * scale
    p = jnp.exp(sc - jnp.max(sc, axis=-1, keepdims=True))
    attn = p / jnp.sum(p, axis=-1, keepdims=True)               # exact softmax
    vf = v.astype(jnp.float32)
    ctx = jnp.einsum('gnm,gmd->gnd', attn, vf,
                     preferred_element_type=jnp.float32)        # (gg, n, d)

    # V node-mean fallback for the non-selected rows.
    v_mean = jnp.mean(vf, axis=1, keepdims=True)                # (gg, 1, d)
    res = jnp.where(jnp.broadcast_to(member[:, :, None], ctx.shape),
                    ctx, jnp.broadcast_to(v_mean, ctx.shape))
    res = res.astype(out_ref.dtype).reshape(bb, h, tb, n, d)

    # --- fused output permute: out[b, n, (t*H + h)*D + d] = ctx[b, h, t, n, d]
    # The out block's minor dim (tb*H*D) is lane dense, so the HBM write-back
    # DMA is dense and the former XLA transpose pass disappears; the per-(t,h)
    # slices below are static 32-lane windows (masked vst, but tiny).
    for tt in range(tb):
        for hh in range(h):
            lo = (tt * h + hh) * d
            out_ref[:, :, lo:lo + d] = res[:, hh, tt, :, :]


# ------------------------------ pallas_call glue ----------------------------

def _tpu_vmem_capacity_bytes():
    try:
        return int(pltpu.get_tpu_info().vmem_capacity_bytes)
    except Exception:
        return 64 * 1024 * 1024          # v7x-sized conservative fallback


def _choose_blocks(B, T, H, N, D, itemsize, vmem_budget, min_steps=4):
    """Pick (Bb, Tb) blocks that divide (B, T) exactly (no padding copies),
    fit the double-buffered footprint in `vmem_budget`, and keep >= min_steps
    grid steps so both TensorCores stay busy on 2-TC parts (v7x)."""
    lane, sub = 128, 8
    d_pad = _round_up(D, lane)
    n_sub = _round_up(N, sub)
    n_lane = _round_up(N, lane)

    def cost(bb, tb):
        gg = bb * H * tb
        c = 3 * 2 * gg * n_sub * d_pad * itemsize                      # q,k,v, double buffered
        c += 2 * bb * n_sub * _round_up(tb * H * D, lane) * itemsize   # output, double buffered
        c += 5 * gg * n_sub * n_lane * 4                               # scores/softmax/rank temps (f32)
        c += 3 * gg * n_sub * d_pad * 4                                # ctx / fallback temps (f32)
        return c

    b_divs = [x for x in range(1, B + 1) if B % x == 0]
    # out block minor dim must be a multiple of 128 lanes (or the full axis).
    t_divs = [x for x in range(1, T + 1)
              if T % x == 0 and (x == T or (x * H * D) % lane == 0)]

    best, smallest = None, None
    for bb in b_divs:
        for tb in t_divs:
            if smallest is None or bb * tb < smallest[0]:
                smallest = (bb * tb, bb, tb)
            if cost(bb, tb) > vmem_budget:
                continue
            steps = (B // bb) * (T // tb)
            key = (min(steps, min_steps), bb * tb)
            if best is None or key > best[0]:
                best = (key, bb, tb)
    if best is not None:
        return best[1], best[2]
    return smallest[1], smallest[2]


def s_self_attention_forward(queries, keys, values, factor=5, sample_key=None):
    """JAX/Pallas equivalent of S_SelfAttention.forward.

    queries/keys/values: (B, H, T, N, D), attention over the spatial N axis.
    Returns (B, N, T, H*D).  Dropout is declared but never applied in the
    reference forward, so it is omitted.
    """
    B, H, T, N, D = queries.shape
    U_part = max(min(factor * int(np.ceil(np.log(N))), N), 1)
    u = max(min(factor * int(np.ceil(np.log(N))), N), 1)

    if sample_key is None:
        sample_key = jax.random.PRNGKey(42)
    # torch.randint(N, (N, sample_k)) equivalent -- shared across (B, H, T).
    index_sample = jax.random.randint(sample_key, (N, U_part), 0, N)
    # Tiny (N, N) multiplicity matrix replaces the (B,H,T,N,U,D) K_sample gather.
    cnt = jnp.sum(jax.nn.one_hot(index_sample, N, dtype=jnp.float32), axis=1)

    scale = 1.0 / math.sqrt(D)
    vmem_cap = _tpu_vmem_capacity_bytes()
    vmem_budget = max(8 << 20, int(vmem_cap * 0.30))
    vmem_limit = max(32 << 20, int(vmem_cap * 0.60))
    bb, tb = _choose_blocks(B, T, H, N, D, queries.dtype.itemsize, vmem_budget)

    grid = (B // bb, T // tb)
    kernel = functools.partial(_probsparse_fused_kernel,
                               int(u), float(U_part), float(scale))

    out = pl.pallas_call(
        kernel,
        out_shape=jax.ShapeDtypeStruct((B, N, T * H * D), queries.dtype),
        grid_spec=pltpu.PrefetchScalarGridSpec(
            num_scalar_prefetch=0,
            grid=grid,
            in_specs=[pl.BlockSpec((bb, H, tb, N, D), lambda i, j: (i, 0, j, 0, 0)),
                      pl.BlockSpec((bb, H, tb, N, D), lambda i, j: (i, 0, j, 0, 0)),
                      pl.BlockSpec((bb, H, tb, N, D), lambda i, j: (i, 0, j, 0, 0)),
                      pl.BlockSpec((N, N), lambda i, j: (0, 0))],
            out_specs=pl.BlockSpec((bb, N, tb * H * D), lambda i, j: (i, 0, j))),
        compiler_params=pltpu.CompilerParams(
            dimension_semantics=("parallel", "parallel"),
            vmem_limit_bytes=vmem_limit),
    )(queries, keys, values, cnt)

    # (B, N, T*H*D) -> (B, N, T, H*D): trailing-dim split, no data movement.
    return out.reshape(B, N, T, H * D)


# ------------------------- pure-JAX reference (test) ------------------------

def _reference_forward(queries, keys, values, index_sample, factor=5):
    """Literal JAX transcription of the PyTorch S_SelfAttention.forward."""
    B, H, T, N, D = queries.shape
    U_part = max(min(factor * int(np.ceil(np.log(N))), N), 1)
    u = max(min(factor * int(np.ceil(np.log(N))), N), 1)
    K_sample = keys[:, :, :, index_sample, :]                    # (B,H,T,N,U,D)
    Q_K_sample = jnp.einsum('bhtnd,bhtnsd->bhtns', queries, K_sample)
    M = jnp.max(Q_K_sample, axis=-1) - jnp.sum(Q_K_sample, axis=-1) / U_part
    _, M_top = jax.lax.top_k(M, u)                               # (B,H,T,u)
    Q_reduce = jnp.take_along_axis(queries, M_top[..., None], axis=3)
    scores = jnp.einsum('bhtud,bhtnd->bhtun', Q_reduce, keys) / math.sqrt(D)
    attn = jax.nn.softmax(scores, axis=-1)
    upd = jnp.einsum('bhtun,bhtnd->bhtud', attn, values)
    ctx = jnp.broadcast_to(jnp.mean(values, axis=-2, keepdims=True), values.shape)
    G = B * H * T
    ctx = jax.vmap(lambda c, i, up: c.at[i].set(up))(
        ctx.reshape(G, N, D), M_top.reshape(G, u), upd.reshape(G, u, D))
    ctx = ctx.reshape(B, H, T, N, D)
    return jnp.transpose(ctx, (0, 3, 2, 1, 4)).reshape(B, N, T, H * D)


if __name__ == "__main__":
    # Small shapes consistent with S_SelfAttention's (B, H, T, N, D) inputs:
    # batch=2, heads=4, time=4, nodes=16, head_dim=32 (embed_size = 128, so
    # the fused output store is lane dense).
    B, H, T, N, D = 2, 4, 4, 16, 32
    key = jax.random.PRNGKey(0)
    kq, kk, kv, ks = jax.random.split(key, 4)
    queries = jax.random.normal(kq, (B, H, T, N, D), dtype=jnp.float32)
    keys = jax.random.normal(kk, (B, H, T, N, D), dtype=jnp.float32)
    values = jax.random.normal(kv, (B, H, T, N, D), dtype=jnp.float32)

    out = s_self_attention_forward(queries, keys, values, factor=5, sample_key=ks)
    out = jax.block_until_ready(out)
    assert out.shape == (B, N, T, H * D)

    # Validate against the pure-JAX reference with the same sampled indices.
    U_part = max(min(5 * int(np.ceil(np.log(N))), N), 1)
    index_sample = jax.random.randint(ks, (N, U_part), 0, N)
    ref = _reference_forward(queries, keys, values, index_sample, factor=5)
    np.testing.assert_allclose(np.asarray(out), np.asarray(ref),
                               rtol=1e-2, atol=1e-2)

    print("KERNEL_OK")
</pallas_src>

<mosaic_0001>
module attributes {stable_mosaic.version = 11 : i64} {
  func.func @_probsparse_fused_kernel(%arg0: i32, %arg1: i32, %arg2: memref<1x4x2x16x32xf32, #tpu.memory_space<vmem>>, %arg3: memref<1x4x2x16x32xf32, #tpu.memory_space<vmem>>, %arg4: memref<1x4x2x16x32xf32, #tpu.memory_space<vmem>>, %arg5: memref<16x16xf32, #tpu.memory_space<vmem>>, %arg6: memref<1x16x256xf32, #tpu.memory_space<vmem>>) attributes {dimension_semantics = [#tpu.dimension_semantics<parallel>, #tpu.dimension_semantics<parallel>], iteration_bounds = array<i64: 2, 2>, scalar_prefetch = 0 : i64, scratch_operands = 0 : i64, tpu.core_type = #tpu.core_type<tc>, window_params = [{transform_indices = @transform_0, window_bounds = array<i64: 1, 4, 2, 16, 32>}, {transform_indices = @transform_1, window_bounds = array<i64: 1, 4, 2, 16, 32>}, {transform_indices = @transform_2, window_bounds = array<i64: 1, 4, 2, 16, 32>}, {pipeline_mode = #tpu.pipeline_mode<synchronous>, transform_indices = @transform_3, window_bounds = array<i64: 16, 16>}, {transform_indices = @transform_4, window_bounds = array<i64: 1, 16, 256>}]} {
    %c0 = arith.constant 0 : index
    %c0_0 = arith.constant 0 : index
    %c0_1 = arith.constant 0 : index
    %c0_2 = arith.constant 0 : index
    %c0_3 = arith.constant 0 : index
    %0 = vector.load %arg2[%c0, %c0_0, %c0_1, %c0_2, %c0_3] : memref<1x4x2x16x32xf32, #tpu.memory_space<vmem>>, vector<1x4x2x16x32xf32>
    %1 = vector.shape_cast %0 : vector<1x4x2x16x32xf32> to vector<8x16x32xf32>
    %c0_4 = arith.constant 0 : index
    %c0_5 = arith.constant 0 : index
    %c0_6 = arith.constant 0 : index
    %c0_7 = arith.constant 0 : index
    %c0_8 = arith.constant 0 : index
    %2 = vector.load %arg3[%c0_4, %c0_5, %c0_6, %c0_7, %c0_8] : memref<1x4x2x16x32xf32, #tpu.memory_space<vmem>>, vector<1x4x2x16x32xf32>
    %3 = vector.shape_cast %2 : vector<1x4x2x16x32xf32> to vector<8x16x32xf32>
    %c0_9 = arith.constant 0 : index
    %c0_10 = arith.constant 0 : index
    %c0_11 = arith.constant 0 : index
    %c0_12 = arith.constant 0 : index
    %c0_13 = arith.constant 0 : index
    %4 = vector.load %arg4[%c0_9, %c0_10, %c0_11, %c0_12, %c0_13] : memref<1x4x2x16x32xf32, #tpu.memory_space<vmem>>, vector<1x4x2x16x32xf32>
    %5 = vector.shape_cast %4 : vector<1x4x2x16x32xf32> to vector<8x16x32xf32>
    %c0_14 = arith.constant 0 : index
    %c0_15 = arith.constant 0 : index
    %6 = vector.load %arg5[%c0_14, %c0_15] : memref<16x16xf32, #tpu.memory_space<vmem>>, vector<16x16xf32>
    "tpu.trace_start"() <{level = 10 : i32, message = "gnd,gmd->gnm"}> : () -> ()
    %cst = arith.constant dense<0.000000e+00> : vector<8x16x16xf32>
    %7 = tpu.matmul %1, %3, %cst {dimension_numbers = #tpu.dot_dimension_numbers<[2], [2], [1], [1], [0, 0, 0, 1, 1, 1], [0], [0]>} : vector<8x16x32xf32>, vector<8x16x32xf32>, vector<8x16x16xf32> -> vector<8x16x16xf32>
    %cst_16 = arith.constant 0.000000e+00 : f32
    "tpu.trace_stop"() : () -> ()
    %8 = vector.broadcast %cst_16 : f32 to vector<16x16xf32>
    %9 = arith.cmpf ogt, %6, %8 : vector<16x16xf32>
    %10 = vector.shape_cast %9 : vector<16x16xi1> to vector<1x16x16xi1>
    %11 = vector.shape_cast %10 : vector<1x16x16xi1> to vector<1x16x16xi1>
    %12 = vector.broadcast %11 : vector<1x16x16xi1> to vector<8x16x16xi1>
    %cst_17 = arith.constant -1.000000e+30 : f32
    %13 = vector.broadcast %cst_17 : f32 to vector<8x16x16xf32>
    %14 = arith.select %12, %7, %13 : vector<8x16x16xi1>, vector<8x16x16xf32>
    %cst_18 = arith.constant dense<0xFF800000> : vector<8x16xf32>
    %15 = vector.multi_reduction <maximumf>, %14, %cst_18 [2] : vector<8x16x16xf32> to vector<8x16xf32>
    %16 = vector.shape_cast %6 : vector<16x16xf32> to vector<1x16x16xf32>
    %17 = vector.broadcast %16 : vector<1x16x16xf32> to vector<8x16x16xf32>
    %18 = arith.mulf %7, %17 : vector<8x16x16xf32>
    %cst_19 = arith.constant dense<0.000000e+00> : vector<8x16xf32>
    %19 = vector.multi_reduction <add>, %18, %cst_19 [2] : vector<8x16x16xf32> to vector<8x16xf32>
    %cst_20 = arith.constant 0.0666666701 : f32
    %20 = vector.broadcast %cst_20 : f32 to vector<8x16xf32>
    %21 = arith.mulf %19, %20 : vector<8x16xf32>
    %22 = arith.subf %15, %21 : vector<8x16xf32>
    %23 = vector.shape_cast %22 : vector<8x16xf32> to vector<8x16x1xf32>
    %24 = vector.shape_cast %22 : vector<8x16xf32> to vector<8x1x16xf32>
    %25 = tpu.iota {dimensions = array<i32: 0>} : vector<16x16xi32>
    %26 = vector.shape_cast %25 : vector<16x16xi32> to vector<1x16x16xi32>
    %27 = tpu.iota {dimensions = array<i32: 1>} : vector<16x16xi32>
    %28 = vector.shape_cast %27 : vector<16x16xi32> to vector<1x16x16xi32>
    %29 = vector.broadcast %24 : vector<8x1x16xf32> to vector<8x16x16xf32>
    %30 = vector.broadcast %23 : vector<8x16x1xf32> to vector<8x16x16xf32>
    %31 = arith.cmpf ogt, %29, %30 : vector<8x16x16xf32>
    %32 = vector.broadcast %24 : vector<8x1x16xf32> to vector<8x16x16xf32>
    %33 = vector.broadcast %23 : vector<8x16x1xf32> to vector<8x16x16xf32>
    %34 = arith.cmpf oeq, %32, %33 : vector<8x16x16xf32>
    %35 = arith.cmpi slt, %28, %26 : vector<1x16x16xi32>
    %36 = vector.broadcast %35 : vector<1x16x16xi1> to vector<8x16x16xi1>
    %37 = arith.andi %34, %36 : vector<8x16x16xi1>
    %38 = arith.ori %31, %37 : vector<8x16x16xi1>
    %39 = arith.extui %38 : vector<8x16x16xi1> to vector<8x16x16xi32>
    %40 = arith.sitofp %39 : vector<8x16x16xi32> to vector<8x16x16xf32>
    %cst_21 = arith.constant dense<0.000000e+00> : vector<8x16xf32>
    %41 = vector.multi_reduction <add>, %40, %cst_21 [2] : vector<8x16x16xf32> to vector<8x16xf32>
    %cst_22 = arith.constant 1.500000e+01 : f32
    %42 = vector.broadcast %cst_22 : f32 to vector<8x16xf32>
    %43 = arith.cmpf olt, %41, %42 : vector<8x16xf32>
    %cst_23 = arith.constant 0.176776692 : f32
    %44 = vector.broadcast %cst_23 : f32 to vector<8x16x16xf32>
    %45 = arith.mulf %7, %44 : vector<8x16x16xf32>
    %cst_24 = arith.constant dense<0xFF800000> : vector<8x16xf32>
    %46 = vector.multi_reduction <maximumf>, %45, %cst_24 [2] : vector<8x16x16xf32> to vector<8x16xf32>
    %47 = vector.shape_cast %46 : vector<8x16xf32> to vector<8x16x1xf32>
    %48 = vector.broadcast %47 : vector<8x16x1xf32> to vector<8x16x16xf32>
    %49 = arith.subf %45, %48 : vector<8x16x16xf32>
    %50 = math.exp %49 : vector<8x16x16xf32>
    %cst_25 = arith.constant dense<0.000000e+00> : vector<8x16xf32>
    %51 = vector.multi_reduction <add>, %50, %cst_25 [2] : vector<8x16x16xf32> to vector<8x16xf32>
    %52 = vector.shape_cast %51 : vector<8x16xf32> to vector<8x16x1xf32>
    %53 = vector.broadcast %52 : vector<8x16x1xf32> to vector<8x16x16xf32>
    %54 = arith.divf %50, %53 : vector<8x16x16xf32>
    "tpu.trace_start"() <{level = 10 : i32, message = "gnm,gmd->gnd"}> : () -> ()
    %cst_26 = arith.constant dense<0.000000e+00> : vector<8x16x32xf32>
    %55 = tpu.matmul %54, %5, %cst_26 {dimension_numbers = #tpu.dot_dimension_numbers<[2], [1], [1], [2], [0, 0, 0, 1, 1, 2], [0], [0]>} : vector<8x16x16xf32>, vector<8x16x32xf32>, vector<8x16x32xf32> -> vector<8x16x32xf32>
    "tpu.trace_stop"() : () -> ()
    %cst_27 = arith.constant dense<0.000000e+00> : vector<8x32xf32>
    %56 = vector.multi_reduction <add>, %5, %cst_27 [1] : vector<8x16x32xf32> to vector<8x32xf32>
    %57 = vector.shape_cast %56 : vector<8x32xf32> to vector<8x1x32xf32>
    %cst_28 = arith.constant 1.600000e+01 : f32
    %58 = vector.broadcast %cst_28 : f32 to vector<8x1x32xf32>
    %59 = arith.divf %57, %58 : vector<8x1x32xf32>
    %60 = vector.shape_cast %43 : vector<8x16xi1> to vector<8x16x1xi1>
    %61 = vector.shape_cast %60 : vector<8x16x1xi1> to vector<8x16x1xi1>
    %62 = vector.broadcast %61 : vector<8x16x1xi1> to vector<8x16x32xi1>
    %63 = vector.shape_cast %59 : vector<8x1x32xf32> to vector<8x1x32xf32>
    %64 = vector.broadcast %63 : vector<8x1x32xf32> to vector<8x16x32xf32>
    %65 = arith.select %62, %55, %64 : vector<8x16x32xi1>, vector<8x16x32xf32>
    %66 = vector.shape_cast %65 : vector<8x16x32xf32> to vector<1x4x2x16x32xf32>
    %67 = vector.extract_strided_slice %66 {offsets = [0, 0, 0, 0, 0], sizes = [1, 1, 1, 16, 32], strides = [1, 1, 1, 1, 1]} : vector<1x4x2x16x32xf32> to vector<1x1x1x16x32xf32>
    %68 = vector.shape_cast %67 : vector<1x1x1x16x32xf32> to vector<1x16x32xf32>
    %c0_29 = arith.constant 0 : index
    %c0_30 = arith.constant 0 : index
    %c0_31 = arith.constant 0 : index
    %69 = vector.load %arg6[%c0_29, %c0_30, %c0_31] : memref<1x16x256xf32, #tpu.memory_space<vmem>>, vector<1x16x32xf32>
    tpu.vector_store %arg6[%c0_29, %c0_30, %c0_31], %68 {strides = array<i32>} : memref<1x16x256xf32, #tpu.memory_space<vmem>>, vector<1x16x32xf32>,
    %70 = vector.extract_strided_slice %66 {offsets = [0, 1, 0, 0, 0], sizes = [1, 1, 1, 16, 32], strides = [1, 1, 1, 1, 1]} : vector<1x4x2x16x32xf32> to vector<1x1x1x16x32xf32>
    %71 = vector.shape_cast %70 : vector<1x1x1x16x32xf32> to vector<1x16x32xf32>
    %c0_32 = arith.constant 0 : index
    %c0_33 = arith.constant 0 : index
    %c32 = arith.constant 32 : index
    %72 = vector.load %arg6[%c0_32, %c0_33, %c32] : memref<1x16x256xf32, #tpu.memory_space<vmem>>, vector<1x16x32xf32>
    tpu.vector_store %arg6[%c0_32, %c0_33, %c32], %71 {strides = array<i32>} : memref<1x16x256xf32, #tpu.memory_space<vmem>>, vector<1x16x32xf32>,
    %73 = vector.extract_strided_slice %66 {offsets = [0, 2, 0, 0, 0], sizes = [1, 1, 1, 16, 32], strides = [1, 1, 1, 1, 1]} : vector<1x4x2x16x32xf32> to vector<1x1x1x16x32xf32>
    %74 = vector.shape_cast %73 : vector<1x1x1x16x32xf32> to vector<1x16x32xf32>
    %c0_34 = arith.constant 0 : index
    %c0_35 = arith.constant 0 : index
    %c64 = arith.constant 64 : index
    %75 = vector.load %arg6[%c0_34, %c0_35, %c64] : memref<1x16x256xf32, #tpu.memory_space<vmem>>, vector<1x16x32xf32>
    tpu.vector_store %arg6[%c0_34, %c0_35, %c64], %74 {strides = array<i32>} : memref<1x16x256xf32, #tpu.memory_space<vmem>>, vector<1x16x32xf32>,
    %76 = vector.extract_strided_slice %66 {offsets = [0, 3, 0, 0, 0], sizes = [1, 1, 1, 16, 32], strides = [1, 1, 1, 1, 1]} : vector<1x4x2x16x32xf32> to vector<1x1x1x16x32xf32>
    %77 = vector.shape_cast %76 : vector<1x1x1x16x32xf32> to vector<1x16x32xf32>
    %c0_36 = arith.constant 0 : index
    %c0_37 = arith.constant 0 : index
    %c96 = arith.constant 96 : index
    %78 = vector.load %arg6[%c0_36, %c0_37, %c96] : memref<1x16x256xf32, #tpu.memory_space<vmem>>, vector<1x16x32xf32>
    tpu.vector_store %arg6[%c0_36, %c0_37, %c96], %77 {strides = array<i32>} : memref<1x16x256xf32, #tpu.memory_space<vmem>>, vector<1x16x32xf32>,
    %79 = vector.extract_strided_slice %66 {offsets = [0, 0, 1, 0, 0], sizes = [1, 1, 1, 16, 32], strides = [1, 1, 1, 1, 1]} : vector<1x4x2x16x32xf32> to vector<1x1x1x16x32xf32>
    %80 = vector.shape_cast %79 : vector<1x1x1x16x32xf32> to vector<1x16x32xf32>
    %c0_38 = arith.constant 0 : index
    %c0_39 = arith.constant 0 : index
    %c128 = arith.constant 128 : index
    %81 = vector.load %arg6[%c0_38, %c0_39, %c128] : memref<1x16x256xf32, #tpu.memory_space<vmem>>, vector<1x16x32xf32>
    tpu.vector_store %arg6[%c0_38, %c0_39, %c128], %80 {strides = array<i32>} : memref<1x16x256xf32, #tpu.memory_space<vmem>>, vector<1x16x32xf32>,
    %82 = vector.extract_strided_slice %66 {offsets = [0, 1, 1, 0, 0], sizes = [1, 1, 1, 16, 32], strides = [1, 1, 1, 1, 1]} : vector<1x4x2x16x32xf32> to vector<1x1x1x16x32xf32>
    %83 = vector.shape_cast %82 : vector<1x1x1x16x32xf32> to vector<1x16x32xf32>
    %c0_40 = arith.constant 0 : index
    %c0_41 = arith.constant 0 : index
    %c160 = arith.constant 160 : index
    %84 = vector.load %arg6[%c0_40, %c0_41, %c160] : memref<1x16x256xf32, #tpu.memory_space<vmem>>, vector<1x16x32xf32>
    tpu.vector_store %arg6[%c0_40, %c0_41, %c160], %83 {strides = array<i32>} : memref<1x16x256xf32, #tpu.memory_space<vmem>>, vector<1x16x32xf32>,
    %85 = vector.extract_strided_slice %66 {offsets = [0, 2, 1, 0, 0], sizes = [1, 1, 1, 16, 32], strides = [1, 1, 1, 1, 1]} : vector<1x4x2x16x32xf32> to vector<1x1x1x16x32xf32>
    %86 = vector.shape_cast %85 : vector<1x1x1x16x32xf32> to vector<1x16x32xf32>
    %c0_42 = arith.constant 0 : index
    %c0_43 = arith.constant 0 : index
    %c192 = arith.constant 192 : index
    %87 = vector.load %arg6[%c0_42, %c0_43, %c192] : memref<1x16x256xf32, #tpu.memory_space<vmem>>, vector<1x16x32xf32>
    tpu.vector_store %arg6[%c0_42, %c0_43, %c192], %86 {strides = array<i32>} : memref<1x16x256xf32, #tpu.memory_space<vmem>>, vector<1x16x32xf32>,
    %88 = vector.extract_strided_slice %66 {offsets = [0, 3, 1, 0, 0], sizes = [1, 1, 1, 16, 32], strides = [1, 1, 1, 1, 1]} : vector<1x4x2x16x32xf32> to vector<1x1x1x16x32xf32>
    %89 = vector.shape_cast %88 : vector<1x1x1x16x32xf32> to vector<1x16x32xf32>
    %c0_44 = arith.constant 0 : index
    %c0_45 = arith.constant 0 : index
    %c224 = arith.constant 224 : index
    %90 = vector.load %arg6[%c0_44, %c0_45, %c224] : memref<1x16x256xf32, #tpu.memory_space<vmem>>, vector<1x16x32xf32>
    tpu.vector_store %arg6[%c0_44, %c0_45, %c224], %89 {strides = array<i32>} : memref<1x16x256xf32, #tpu.memory_space<vmem>>, vector<1x16x32xf32>,
    return
  }
  func.func @transform_0(%arg0: i32, %arg1: i32) -> (i32, i32, i32, i32, i32) {
    %c0_i32 = arith.constant 0 : i32
    %c0_i32_0 = arith.constant 0 : i32
    %c0_i32_1 = arith.constant 0 : i32
    %c0_i32_2 = arith.constant 0 : i32
    return %arg0, %c0_i32, %arg1, %c0_i32_0, %c0_i32_1 : i32, i32, i32, i32, i32
  }
  func.func @transform_1(%arg0: i32, %arg1: i32) -> (i32, i32, i32, i32, i32) {
    %c0_i32 = arith.constant 0 : i32
    %c0_i32_0 = arith.constant 0 : i32
    %c0_i32_1 = arith.constant 0 : i32
    %c0_i32_2 = arith.constant 0 : i32
    return %arg0, %c0_i32, %arg1, %c0_i32_0, %c0_i32_1 : i32, i32, i32, i32, i32
  }
  func.func @transform_2(%arg0: i32, %arg1: i32) -> (i32, i32, i32, i32, i32) {
    %c0_i32 = arith.constant 0 : i32
    %c0_i32_0 = arith.constant 0 : i32
    %c0_i32_1 = arith.constant 0 : i32
    %c0_i32_2 = arith.constant 0 : i32
    return %arg0, %c0_i32, %arg1, %c0_i32_0, %c0_i32_1 : i32, i32, i32, i32, i32
  }
  func.func @transform_3(%arg0: i32, %arg1: i32) -> (i32, i32) {
    %c0_i32 = arith.constant 0 : i32
    %c0_i32_0 = arith.constant 0 : i32
    %c0_i32_1 = arith.constant 0 : i32
    return %c0_i32, %c0_i32_0 : i32, i32
  }
  func.func @transform_4(%arg0: i32, %arg1: i32) -> (i32, i32, i32) {
    %c0_i32 = arith.constant 0 : i32
    %c0_i32_0 = arith.constant 0 : i32
    return %arg0, %c0_i32, %arg1 : i32, i32, i32
  }
}

</mosaic_0001>

<llo_original>
// kernel: tpu_custom_call.1
$region0: #{tpu_custom_call.1}
  #allocation0 [shape = 'u32[]', space=smem, size = 0x4, offset = 0x4, fixed_abs, tag = 'smem constant byte address 0x4 - core index']
  #allocation1 [shape = 'u32[144,128]{1,0:T(1,128)}', space=vmem, size = 0x12000, scoped, tag = 'internal scratch']
  #allocation11 [shape = 's32[]', space=sflag, size = 0x4, offset = 0, fixed_abs, tag = 'sflag constant byte address 0x0 - dummy sync flag']
  #allocation13 [shape = 's32[]', space=sflag, size = 0x4, offset = 0, fixed_abs, tag = 'sflag constant byte address 0x0 - dummy sync flag']
  #allocation15 [shape = 's32[]', space=sflag, size = 0x4, offset = 0, fixed_abs, tag = 'sflag constant byte address 0x0 - dummy sync flag']
  %s0 = inlined_call_operand.hbm [shape: f32[2,4,4,16,32], index: 0, kind: input, shape index: {}]
  %s1 = inlined_call_operand.hbm [shape: f32[2,4,4,16,32], index: 1, kind: input, shape index: {}]
  %s2 = inlined_call_operand.hbm [shape: f32[2,4,4,16,32], index: 2, kind: input, shape index: {}]
  %s3 = inlined_call_operand.hbm [shape: f32[16,16], index: 3, kind: input, shape index: {}]
  %s4 = inlined_call_operand.hbm [shape: f32[2,16,512], index: 4, kind: output, shape index: {}]
  %s5 = sld [smem:[#allocation0]]
  $region65: #{tpu_custom_call.1} parent=0
    _
  %s7 = ssub.s32 1, %s5
  %s8 = scalar_select 0, %s7, %s5
  $region1: #{tpu_custom_call.1} parent=0
    #allocation2 [shape = 'u8[131072]{0}', space=vmem, size = 0x20000, scoped, tag = 'input window, operand 0']
    #allocation3 [shape = 's32[2]{0}', space=sflag, size = 0x8, scoped, tag = 'scoped memory for tpu_custom_call.1']
    #allocation4 [shape = 's32[2]{0}', space=sflag, size = 0x8, scoped, tag = 'scoped memory for tpu_custom_call.1']
    #allocation5 [shape = 'u8[131072]{0}', space=vmem, size = 0x20000, scoped, tag = 'input window, operand 1']
    #allocation6 [shape = 's32[2]{0}', space=sflag, size = 0x8, scoped, tag = 'scoped memory for tpu_custom_call.1']
    #allocation7 [shape = 'u8[131072]{0}', space=vmem, size = 0x20000, scoped, tag = 'input window, operand 2']
    #allocation8 [shape = 'u8[8192]{0}', space=vmem, size = 0x2000, scoped, tag = 'input window, operand 3, single buffered']
    #allocation9 [shape = 's32[1]{0}', space=sflag, size = 0x4, scoped, tag = 'scoped memory for tpu_custom_call.1']
    #allocation10 [shape = 'u8[32768]{0}', space=vmem, size = 0x8000, scoped, tag = 'output window, operand 0']
    %9 = vsyncpa [#allocation3], 0
    %s10 = scalar_lea.sflag [#allocation3], 1
    %11 = vsyncpa %s10, 0
    %12 = vsyncpa [#allocation6], 0
    %s13 = scalar_lea.sflag [#allocation6], 1
    %14 = vsyncpa %s13, 0
    %15 = vsyncpa [#allocation9], 0
    %16 = vsyncpa [#allocation4], 0
    %s17 = scalar_lea.sflag [#allocation4], 1
    %18 = vsyncpa %s17, 0
    loop: start=0, step=1, limit=6
    $region2: #{tpu_custom_call.1} parent=1 // loop_pre_header
      _
    $region3: #{tpu_custom_call.1} parent=1 // loop_header
      %s20 = sphi 0, %s24
      %p21 = scmp.ge.s32.totalorder %s20, 6
      %s27 = sphi 0, %s39
      %s28 = sphi 0, %s35
      %s29 = sphi 0, %s27
      %s30 = sphi 0, %s28
      %s31 = sphi 0, %s29
      %s32 = sphi 0, %s30
      %s44 = sphi 0, %s46
      %s47 = sphi 0, %s44
      %s48 = sphi 0, %s47
      %s64 = sphi 0, %s48
      %s72 = sphi 0, %s74
      %s75 = sphi 0, %s72
      %s76 = sphi 0, %s75
      %s92 = sphi 0, %s76
      %s100 = sphi 0, %s102
      %s103 = sphi 0, %s100
      %s104 = sphi 0, %s103
      %s120 = sphi 0, %s104
      %s124 = sphi 0, %s124
      %s126 = sphi 0, %s124
      %s127 = sphi 0, %s126
      %s141 = sphi 0, %s127
      %s149 = sphi 0, %s151
      %s152 = sphi 0, %s149
      %s153 = sphi 0, %s152
      %s169 = sphi 0, %s153
    $region4: #{tpu_custom_call.1} parent=1 // loop_header_branch
      %23 = sbr.rel (%p21) target = $region8
    $region5: #{tpu_custom_call.1} parent=1 // loop_body
      %s25 = ssub.s32 %s20, 1
      %s26 = ssub.s32 %s20, 2
      %s33 = sadd.s32 1, %s28
      %p34 = scmp.ge.s32.totalorder %s33, 2
      %s35 = scalar_select %p34, 0, %s33
      %s36 = sadd.s32 1, %s27
      %s37 = scalar_select %p34, %s36, %s27
      %p38 = scmp.ge.s32.totalorder %s37, 2
      %s39 = scalar_select %p38, 0, %s37
      %s40 = ssub.s32 %s27, %s39
      %s41 = ssub.s32 %s28, %s35
      %s42 = sor.u32 %s40, %s41
      %p43 = scmp.eq.s32.totalorder %s42, 0
      %s45 = sadd.s32 %s44, 1
      %s46 = scalar_select %p43, %s44, %s45
      %p49 = pneg %p43
      %p50 = scmp.eq.s32.totalorder %s20, 3
      %p51 = por %p49, %p50
      %p52 = scmp.ne.s32.totalorder %s44, %s47
      %p53 = scmp.eq.s32.totalorder %s20, 0
      %p54 = por %p52, %p53
      %p55 = scmp.ne.s32.totalorder %s44, %s47
      %p56 = scmp.eq.s32.totalorder %s25, 3
      %p57 = por %p55, %p56
      %p58 = scmp.ne.s32.totalorder %s47, %s48
      %p59 = scmp.eq.s32.totalorder %s25, 0
      %p60 = por %p58, %p59
      %p61 = scmp.ne.s32.totalorder %s47, %s48
      %p62 = scmp.eq.s32.totalorder %s26, 3
      %p63 = por %p61, %p62
      %p65 = scmp.ne.s32.totalorder %s48, %s64
      %p66 = scmp.eq.s32.totalorder %s26, 0
      %p67 = por %p65, %p66
      %s68 = ssub.s32 %s27, %s39
      %s69 = ssub.s32 %s28, %s35
      %s70 = sor.u32 %s68, %s69
      %p71 = scmp.eq.s32.totalorder %s70, 0
      %s73 = sadd.s32 %s72, 1
      %s74 = scalar_select %p71, %s72, %s73
      %p77 = pneg %p71
      %p78 = scmp.eq.s32.totalorder %s20, 3
      %p79 = por %p77, %p78
      %p80 = scmp.ne.s32.totalorder %s72, %s75
      %p81 = scmp.eq.s32.totalorder %s20, 0
      %p82 = por %p80, %p81
      %p83 = scmp.ne.s32.totalorder %s72, %s75
      %p84 = scmp.eq.s32.totalorder %s25, 3
      %p85 = por %p83, %p84
      %p86 = scmp.ne.s32.totalorder %s75, %s76
      %p87 = scmp.eq.s32.totalorder %s25, 0
      %p88 = por %p86, %p87
      %p89 = scmp.ne.s32.totalorder %s75, %s76
      %p90 = scmp.eq.s32.totalorder %s26, 3
      %p91 = por %p89, %p90
      %p93 = scmp.ne.s32.totalorder %s76, %s92
      %p94 = scmp.eq.s32.totalorder %s26, 0
      %p95 = por %p93, %p94
      %s96 = ssub.s32 %s27, %s39
      %s97 = ssub.s32 %s28, %s35
      %s98 = sor.u32 %s96, %s97
      %p99 = scmp.eq.s32.totalorder %s98, 0
      %s101 = sadd.s32 %s100, 1
      %s102 = scalar_select %p99, %s100, %s101
      %p105 = pneg %p99
      %p106 = scmp.eq.s32.totalorder %s20, 3
      %p107 = por %p105, %p106
      %p108 = scmp.ne.s32.totalorder %s100, %s103
      %p109 = scmp.eq.s32.totalorder %s20, 0
      %p110 = por %p108, %p109
      %p111 = scmp.ne.s32.totalorder %s100, %s103
      %p112 = scmp.eq.s32.totalorder %s25, 3
      %p113 = por %p111, %p112
      %p114 = scmp.ne.s32.totalorder %s103, %s104
      %p115 = scmp.eq.s32.totalorder %s25, 0
      %p116 = por %p114, %p115
      %p117 = scmp.ne.s32.totalorder %s103, %s104
      %p118 = scmp.eq.s32.totalorder %s26, 3
      %p119 = por %p117, %p118
      %p121 = scmp.ne.s32.totalorder %s104, %s120
      %p122 = scmp.eq.s32.totalorder %s26, 0
      %p123 = por %p121, %p122
      %s125 = sadd.s32 %s124, 1
      %p128 = scmp.eq.s32.totalorder %s20, 3
      %p129 = scmp.ne.s32.totalorder %s124, %s126
      %p130 = scmp.eq.s32.totalorder %s20, 0
      %p131 = por %p129, %p130
      %p132 = scmp.ne.s32.totalorder %s124, %s126
      %p133 = scmp.eq.s32.totalorder %s25, 3
      %p134 = por %p132, %p133
      %p135 = scmp.ne.s32.totalorder %s126, %s127
      %p136 = scmp.eq.s32.totalorder %s25, 0
      %p137 = por %p135, %p136
      %p138 = scmp.ne.s32.totalorder %s126, %s127
      %p139 = scmp.eq.s32.totalorder %s26, 3
      %p140 = por %p138, %p139
      %p142 = scmp.ne.s32.totalorder %s127, %s141
      %p143 = scmp.eq.s32.totalorder %s26, 0
      %p144 = por %p142, %p143
      %s145 = ssub.s32 %s27, %s39
      %s146 = ssub.s32 %s28, %s35
      %s147 = sor.u32 %s145, %s146
      %p148 = scmp.eq.s32.totalorder %s147, 0
      %s150 = sadd.s32 %s149, 1
      %s151 = scalar_select %p148, %s149, %s150
      %p154 = pneg %p148
      %p155 = scmp.eq.s32.totalorder %s20, 3
      %p156 = por %p154, %p155
      %p157 = scmp.ne.s32.totalorder %s149, %s152
      %p158 = scmp.eq.s32.totalorder %s20, 0
      %p159 = por %p157, %p158
      %p160 = scmp.ne.s32.totalorder %s149, %s152
      %p161 = scmp.eq.s32.totalorder %s25, 3
      %p162 = por %p160, %p161
      %p163 = scmp.ne.s32.totalorder %s152, %s153
      %p164 = scmp.eq.s32.totalorder %s25, 0
      %p165 = por %p163, %p164
      %p166 = scmp.ne.s32.totalorder %s152, %s153
      %p167 = scmp.eq.s32.totalorder %s26, 3
      %p168 = por %p166, %p167
      %p170 = scmp.ne.s32.totalorder %s153, %s169
      %p171 = scmp.eq.s32.totalorder %s26, 0
      %p172 = por %p170, %p171
      %p173 = scmp.le.s32.totalorder 1, %s20
      %p174 = scmp.lt.s32.totalorder %s20, 5
      %p175 = pnand %p173, %p174
      %p176 = pneg %p175
      // Predicated region
      $region9: #{tpu_custom_call.1} parent=5 // pred_check
        _
      $region10: #{tpu_custom_call.1} parent=5 // pred_check_branch
        %178 = sbr.rel (%p175) target = $region12
      $region11: #{tpu_custom_call.1} parent=5 // pred_region
        %s179 = ssub.s32 %s20, 1
        // Predicated region
        $region13: #{tpu_custom_call.1} parent=11 // pred_check
          %p180 = pneg %p137
        $region14: #{tpu_custom_call.1} parent=11 // pred_check_branch
          %182 = sbr.rel (%p180) target = $region16
        $region15: #{tpu_custom_call.1} parent=11 // pred_region
          %s184 = ssub.s32 256, 256
          %185 = vsyncadd [#allocation9], %s184
          %s186 = sshll.u32 [#allocation8], 4
          %s187 = int_to_ptr.vmem [resolvable:$true] %s186
          %192 = dma.hbm_to_vmem [thread:$0]  %s3, 256, %s187, [#allocation9], 128, 128, 8
        $region16: #{tpu_custom_call.1} parent=11 // pred_fallthru
          _
      $region12: #{tpu_custom_call.1} parent=5 // pred_fallthru
        _
      %p193 = scmp.lt.s32.totalorder %s20, 4
      // Predicated region
      $region17: #{tpu_custom_call.1} parent=5 // pred_check
        %p194 = pneg %p193
      $region18: #{tpu_custom_call.1} parent=5 // pred_check_branch
        %196 = sbr.rel (%p194) target = $region20
      $region19: #{tpu_custom_call.1} parent=5 // pred_region
        // Predicated region
        $region21: #{tpu_custom_call.1} parent=19 // pred_check
          %p197 = pneg %p54
        $region22: #{tpu_custom_call.1} parent=19 // pred_check_branch
          %199 = sbr.rel (%p197) target = $region24
        $region23: #{tpu_custom_call.1} parent=19 // pred_region
          #allocation12 [shape = 'u32[6]{0}', space=smem, size = 0x18, scoped, tag = 'DMA stride descriptor']
          %s200 = sand.u32 %s44, 1
          %s201 = scalar_lea.sflag [#allocation3], %s200
          %s202 = sand.u32 %s44, 1
          %s203 = smul.addr %s202, 128
          %s204 = scalar_lea.vmem [#allocation2], %s203
          %s205 = smul.u32 2, %s28
          %s207 = ssub.s32 2048, 2048
          %208 = vsyncadd %s201, %s207
          %s209 = smul.addr %s205, 2
          %s210 = smul.addr %s27, 32
          %s211 = sadd.s32 %s209, %s210
          %s212 = smul.addr %s211, 128
          %s213 = scalar_lea.hbm %s0, %s212
          %s215 = sshll.u32 1, 14
          %s216 = sxor.u32 4294967295, %s215
          %s218 = sld [smem:[#allocation0]]
          %s219 = sadd.s32 2, %s218
          %s221 = sshll.u32 7, 26
          %s222 = sxor.u32 4294967295, %s221
          %s223 = sand.u32 0, %s222
          %s224 = sshll.u32 %s219, 26
          %s225 = sor.u32 %s223, %s224
          %s226 = sshll.u32 %s204, 4
          %s227 = int_to_ptr.vmem [resolvable:$true] %s226
          %233 = sst [smem:[#allocation12]] 1024
          %s234 = scalar_lea.smem [#allocation12], 1
          %235 = sst [smem:[%s234]] 512
          %s236 = scalar_lea.smem [#allocation12], 2
          %237 = sst [smem:[%s236]] 4
          %s238 = scalar_lea.smem [#allocation12], 3
          %239 = sst [smem:[%s238]] 128
          %s240 = scalar_lea.smem [#allocation12], 4
          %241 = sst [smem:[%s240]] 128
          %s242 = scalar_lea.smem [#allocation12], 5
          %243 = sst [smem:[%s242]] 8
          %245 = dma.general %s213, 2048, %s227, %s201, 131072, [#allocation12], %s225, 0
        $region24: #{tpu_custom_call.1} parent=19 // pred_fallthru
          _
        // Predicated region
        $region25: #{tpu_custom_call.1} parent=19 // pred_check
          %p246 = pneg %p82
        $region26: #{tpu_custom_call.1} parent=19 // pred_check_branch
          %248 = sbr.rel (%p246) target = $region28
        $region27: #{tpu_custom_call.1} parent=19 // pred_region
          #allocation14 [shape = 'u32[6]{0}', space=smem, size = 0x18, scoped, tag = 'DMA stride descriptor']
          %s249 = sand.u32 %s20, 1
          %s250 = scalar_lea.sflag [#allocation6], %s249
          %s251 = sand.u32 %s72, 1
          %s252 = smul.addr %s251, 128
          %s253 = scalar_lea.vmem [#allocation5], %s252
          %s254 = smul.u32 2, %s28
          %s256 = ssub.s32 2048, 2048
          %257 = vsyncadd %s250, %s256
          %s258 = smul.addr %s254, 2
          %s259 = smul.addr %s27, 32
          %s260 = sadd.s32 %s258, %s259
          %s261 = smul.addr %s260, 128
          %s262 = scalar_lea.hbm %s1, %s261
          %s264 = sshll.u32 1, 14
          %s265 = sxor.u32 4294967295, %s264
          %s267 = sld [smem:[#allocation0]]
          %s268 = sadd.s32 2, %s267
          %s270 = sshll.u32 7, 26
          %s271 = sxor.u32 4294967295, %s270
          %s272 = sand.u32 0, %s271
          %s273 = sshll.u32 %s268, 26
          %s274 = sor.u32 %s272, %s273
          %s275 = sshll.u32 %s253, 4
          %s276 = int_to_ptr.vmem [resolvable:$true] %s275
          %282 = sst [smem:[#allocation14]] 1024
          %s283 = scalar_lea.smem [#allocation14], 1
          %284 = sst [smem:[%s283]] 512
          %s285 = scalar_lea.smem [#allocation14], 2
          %286 = sst [smem:[%s285]] 4
          %s287 = scalar_lea.smem [#allocation14], 3
          %288 = sst [smem:[%s287]] 128
          %s289 = scalar_lea.smem [#allocation14], 4
          %290 = sst [smem:[%s289]] 128
          %s291 = scalar_lea.smem [#allocation14], 5
          %292 = sst [smem:[%s291]] 8
          %294 = dma.general %s262, 2048, %s276, %s250, 131072, [#allocation14], %s274, 0
        $region28: #{tpu_custom_call.1} parent=19 // pred_fallthru
          _
        // Predicated region
        $region29: #{tpu_custom_call.1} parent=19 // pred_check
          %p295 = pneg %p110
        $region30: #{tpu_custom_call.1} parent=19 // pred_check_branch
          %297 = sbr.rel (%p295) target = $region32
        $region31: #{tpu_custom_call.1} parent=19 // pred_region
          #allocation16 [shape = 'u32[6]{0}', space=smem, size = 0x18, scoped, tag = 'DMA stride descriptor']
          %s298 = sand.u32 %s20, 1
          %s299 = scalar_lea.sflag [#allocation6], %s298
          %s300 = sand.u32 %s100, 1
          %s301 = smul.addr %s300, 128
          %s302 = scalar_lea.vmem [#allocation7], %s301
          %s303 = smul.u32 2, %s28
          %s305 = ssub.s32 2048, 2048
          %306 = vsyncadd %s299, %s305
          %s307 = smul.addr %s303, 2
          %s308 = smul.addr %s27, 32
          %s309 = sadd.s32 %s307, %s308
          %s310 = smul.addr %s309, 128
          %s311 = scalar_lea.hbm %s2, %s310
          %s313 = sshll.u32 1, 14
          %s314 = sxor.u32 4294967295, %s313
          %s316 = sld [smem:[#allocation0]]
          %s317 = sadd.s32 2, %s316
          %s319 = sshll.u32 7, 26
          %s320 = sxor.u32 4294967295, %s319
          %s321 = sand.u32 0, %s320
          %s322 = sshll.u32 %s317, 26
          %s323 = sor.u32 %s321, %s322
          %s324 = sshll.u32 %s302, 4
          %s325 = int_to_ptr.vmem [resolvable:$true] %s324
          %331 = sst [smem:[#allocation16]] 1024
          %s332 = scalar_lea.smem [#allocation16], 1
          %333 = sst [smem:[%s332]] 512
          %s334 = scalar_lea.smem [#allocation16], 2
          %335 = sst [smem:[%s334]] 4
          %s336 = scalar_lea.smem [#allocation16], 3
          %337 = sst [smem:[%s336]] 128
          %s338 = scalar_lea.smem [#allocation16], 4
          %339 = sst [smem:[%s338]] 128
          %s340 = scalar_lea.smem [#allocation16], 5
          %341 = sst [smem:[%s340]] 8
          %343 = dma.general %s311, 2048, %s325, %s299, 131072, [#allocation16], %s323, 0
        $region32: #{tpu_custom_call.1} parent=19 // pred_fallthru
          _
      $region20: #{tpu_custom_call.1} parent=5 // pred_fallthru
        _
      %p344 = scmp.le.s32.totalorder 1, %s20
      %p345 = scmp.lt.s32.totalorder %s20, 5
      %p346 = pnand %p344, %p345
      %p347 = pneg %p346
      // Predicated region
      $region33: #{tpu_custom_call.1} parent=5 // pred_check
        _
      $region34: #{tpu_custom_call.1} parent=5 // pred_check_branch
        %349 = sbr.rel (%p346) target = $region36
      $region35: #{tpu_custom_call.1} parent=5 // pred_region
        %s350 = ssub.s32 %s20, 1
        %s351 = sand.u32 %s47, 1
        %s352 = scalar_lea.sflag [#allocation3], %s351
        %s353 = sand.u32 %s47, 1
        %s354 = smul.addr %s353, 128
        %s355 = scalar_lea.vmem [#allocation2], %s354
        // Predicated region
        $region37: #{tpu_custom_call.1} parent=35 // pred_check
          %p356 = pneg %p60
        $region38: #{tpu_custom_call.1} parent=35 // pred_check_branch
          %358 = sbr.rel (%p356) target = $region40
        $region39: #{tpu_custom_call.1} parent=35 // pred_region
          %359 = dma.done %s352, 2048
        $region40: #{tpu_custom_call.1} parent=35 // pred_fallthru
          _
        %s360 = sand.u32 %s25, 1
        %s361 = scalar_lea.sflag [#allocation6], %s360
        %s362 = sand.u32 %s75, 1
        %s363 = smul.addr %s362, 128
        %s364 = scalar_lea.vmem [#allocation5], %s363
        // Predicated region
        $region41: #{tpu_custom_call.1} parent=35 // pred_check
          %p365 = pneg %p88
        $region42: #{tpu_custom_call.1} parent=35 // pred_check_branch
          %367 = sbr.rel (%p365) target = $region44
        $region43: #{tpu_custom_call.1} parent=35 // pred_region
          %368 = dma.done %s361, 2048
        $region44: #{tpu_custom_call.1} parent=35 // pred_fallthru
          _
        %s369 = sand.u32 %s25, 1
        %s370 = scalar_lea.sflag [#allocation6], %s369
        %s371 = sand.u32 %s103, 1
        %s372 = smul.addr %s371, 128
        %s373 = scalar_lea.vmem [#allocation7], %s372
        // Predicated region
        $region45: #{tpu_custom_call.1} parent=35 // pred_check
          %p374 = pneg %p116
        $region46: #{tpu_custom_call.1} parent=35 // pred_check_branch
          %376 = sbr.rel (%p374) target = $region48
        $region47: #{tpu_custom_call.1} parent=35 // pred_region
          %377 = dma.done %s370, 2048
        $region48: #{tpu_custom_call.1} parent=35 // pred_fallthru
          _
        // Predicated region
        $region49: #{tpu_custom_call.1} parent=35 // pred_check
          %p378 = pneg %p137
        $region50: #{tpu_custom_call.1} parent=35 // pred_check_branch
          %380 = sbr.rel (%p378) target = $region52
        $region51: #{tpu_custom_call.1} parent=35 // pred_region
          %381 = dma.done [#allocation9], 256
        $region52: #{tpu_custom_call.1} parent=35 // pred_fallthru
          _
        %s382 = sand.u32 %s47, 1
        %s383 = scalar_lea.sflag [#allocation3], %s382
        %s384 = sand.u32 %s47, 1
        %s385 = smul.addr %s384, 128
        %s386 = scalar_lea.vmem [#allocation2], %s385
        %p387 = pneg %p60
        %p388 = pneg %p57
        %s389 = sand.u32 %s25, 1
        %s390 = scalar_lea.sflag [#allocation6], %s389
        %s391 = sand.u32 %s75, 1
        %s392 = smul.addr %s391, 128
        %s393 = scalar_lea.vmem [#allocation5], %s392
        %p394 = pneg %p88
        %p395 = pneg %p85
        %s396 = sand.u32 %s25, 1
        %s397 = scalar_lea.sflag [#allocation6], %s396
        %s398 = sand.u32 %s103, 1
        %s399 = smul.addr %s398, 128
        %s400 = scalar_lea.vmem [#allocation7], %s399
        %p401 = pneg %p116
        %p402 = pneg %p113
        %p403 = pneg %p137
        %p404 = pneg %p134
        %p405 = pneg %p165
        %p406 = pneg %p162
        %s407 = sand.u32 %s152, 1
        %s408 = scalar_lea.sflag [#allocation4], %s407
        %s409 = sand.u32 %s152, 1
        %s410 = smul.addr %s409, 32
        %s411 = scalar_lea.vmem [#allocation10], %s410
        %s412 = smul.u32 2, %s30
        %s413 = smul.u32 2, %s30
        %s414 = smul.u32 2, %s30
        %s415 = smul.u32 2, %s30
        %v416 = vld [vmem:[%s355] sm:$0xff]
        %v417 = vld [vmem:[%s355 + $0x8] sm:$0xff]
        %v418 = vld [vmem:[%s355 + $0x10] sm:$0xff]
        %v419 = vld [vmem:[%s355 + $0x18] sm:$0xff]
        %v420 = vld [vmem:[%s355 + $0x20] sm:$0xff]
        %v421 = vld [vmem:[%s355 + $0x28] sm:$0xff]
        %v422 = vld [vmem:[%s355 + $0x30] sm:$0xff]
        %v423 = vld [vmem:[%s355 + $0x38] sm:$0xff]
        %v424 = vld [vmem:[%s355 + $0x40] sm:$0xff]
        %v425 = vld [vmem:[%s355 + $0x48] sm:$0xff]
        %v426 = vld [vmem:[%s355 + $0x50] sm:$0xff]
        %v427 = vld [vmem:[%s355 + $0x58] sm:$0xff]
        %v428 = vld [vmem:[%s355 + $0x60] sm:$0xff]
        %v429 = vld [vmem:[%s355 + $0x68] sm:$0xff]
        %v430 = vld [vmem:[%s355 + $0x70] sm:$0xff]
        %v431 = vld [vmem:[%s355 + $0x78] sm:$0xff]
        %v432 = vld [vmem:[%s364] sm:$0xff]
        %v433 = vld [vmem:[%s364 + $0x8] sm:$0xff]
        %v434 = vld [vmem:[%s364 + $0x10] sm:$0xff]
        %v435 = vld [vmem:[%s364 + $0x18] sm:$0xff]
        %v436 = vld [vmem:[%s364 + $0x20] sm:$0xff]
        %v437 = vld [vmem:[%s364 + $0x28] sm:$0xff]
        %v438 = vld [vmem:[%s364 + $0x30] sm:$0xff]
        %v439 = vld [vmem:[%s364 + $0x38] sm:$0xff]
        %v440 = vld [vmem:[%s364 + $0x40] sm:$0xff]
        %v441 = vld [vmem:[%s364 + $0x48] sm:$0xff]
        %v442 = vld [vmem:[%s364 + $0x50] sm:$0xff]
        %v443 = vld [vmem:[%s364 + $0x58] sm:$0xff]
        %v444 = vld [vmem:[%s364 + $0x60] sm:$0xff]
        %v445 = vld [vmem:[%s364 + $0x68] sm:$0xff]
        %v446 = vld [vmem:[%s364 + $0x70] sm:$0xff]
        %v447 = vld [vmem:[%s364 + $0x78] sm:$0xff]
        %v448 = vld [vmem:[%s373] sm:$0xff]
        %v449 = vld [vmem:[%s373 + $0x8] sm:$0xff]
        %v450 = vld [vmem:[%s373 + $0x10] sm:$0xff]
        %v451 = vld [vmem:[%s373 + $0x18] sm:$0xff]
        %v452 = vld [vmem:[%s373 + $0x20] sm:$0xff]
        %v453 = vld [vmem:[%s373 + $0x28] sm:$0xff]
        %v454 = vld [vmem:[%s373 + $0x30] sm:$0xff]
        %v455 = vld [vmem:[%s373 + $0x38] sm:$0xff]
        %v456 = vld [vmem:[%s373 + $0x40] sm:$0xff]
        %v457 = vld [vmem:[%s373 + $0x48] sm:$0xff]
        %v458 = vld [vmem:[%s373 + $0x50] sm:$0xff]
        %v459 = vld [vmem:[%s373 + $0x58] sm:$0xff]
        %v460 = vld [vmem:[%s373 + $0x60] sm:$0xff]
        %v461 = vld [vmem:[%s373 + $0x68] sm:$0xff]
        %v462 = vld [vmem:[%s373 + $0x70] sm:$0xff]
        %v463 = vld [vmem:[%s373 + $0x78] sm:$0xff]
        %v464 = vld [vmem:[#allocation8] sm:$0xff]
        %v465 = vld [vmem:[#allocation8 + $0x8] sm:$0xff]
        %vm466 = vcmask 261120
        %v468 = vsel %vm466, %v416, 0
        %v471 = vsel %vm466, %v417, 0
        %v474 = vsel %vm466, %v432, 0
        %v477 = vsel %vm466, %v433, 0
        %479 = vmatprep.subr.mxu0 0.0
        %480 = vmatpush1.xpose.msra.mxu0 0.0
        %481 = vmatprep.subr.mxu0 0.0
        %482 = vmatpush1.xpose.msra.mxu0 0.0
        %483 = vmatprep.subr.mxu0 0.0
        %484 = vmatpush1.xpose.msra.mxu0 0.0
        %485 = vmatprep.subr.mxu0 0.0
        %486 = vmatpush1.xpose.msra.mxu0 0.0
        %487 = vmatprep.subr.mxu0 0.0
        %488 = vmatpush1.xpose.msra.mxu0 0.0
        %489 = vmatprep.subr.mxu0 0.0
        %490 = vmatpush1.xpose.msra.mxu0 0.0
        %491 = vmatprep.subr.mxu0 0.0
        %492 = vmatpush1.xpose.msra.mxu0 0.0
        %493 = vmatprep.subr.mxu0 0.0
        %494 = vmatpush1.xpose.msra.mxu0 0.0
        %495 = vmatprep.subr.mxu0 0.0
        %496 = vmatpush1.xpose.msra.mxu0 0.0
        %497 = vmatprep.subr.mxu0 0.0
        %498 = vmatpush1.xpose.msra.mxu0 0.0
        %499 = vmatprep.subr.mxu0 0.0
        %500 = vmatpush1.xpose.msra.mxu0 0.0
        %501 = vmatprep.subr.mxu0 0.0
        %502 = vmatpush1.xpose.msra.mxu0 0.0
        %503 = vmatprep.subr.mxu0 0.0
        %504 = vmatpush1.xpose.msra.mxu0 0.0
        %505 = vmatprep.subr.mxu0 0.0
        %506 = vmatpush1.xpose.msra.mxu0 0.0
        %507 = vmatprep.subr.mxu0 0.0
        %508 = vmatpush1.xpose.msra.mxu0 %v477
        %509 = vmatprep.subr.mxu0 0.0
        %510 = vmatpush1.xpose.msra.mxu0 %v474
        %511 = vmatprep.subr.mxu0 0.0
        %512 = vmatpush2.xpose.msra.mxu0 0.0
        %513 = vmatprep.subr.mxu0 0.0
        %514 = vmatpush2.xpose.msra.mxu0 0.0
        %515 = vmatprep.subr.mxu0 0.0
        %516 = vmatpush2.xpose.msra.mxu0 0.0
        %517 = vmatprep.subr.mxu0 0.0
        %518 = vmatpush2.xpose.msra.mxu0 0.0
        %519 = vmatprep.subr.mxu0 0.0
        %520 = vmatpush2.xpose.msra.mxu0 0.0
        %521 = vmatprep.subr.mxu0 0.0
        %522 = vmatpush2.xpose.msra.mxu0 0.0
        %523 = vmatprep.subr.mxu0 0.0
        %524 = vmatpush2.xpose.msra.mxu0 0.0
        %525 = vmatprep.subr.mxu0 0.0
        %526 = vmatpush2.xpose.msra.mxu0 0.0
        %527 = vmatprep.subr.mxu0 0.0
        %528 = vmatpush2.xpose.msra.mxu0 0.0
        %529 = vmatprep.subr.mxu0 0.0
        %530 = vmatpush2.xpose.msra.mxu0 0.0
        %531 = vmatprep.subr.mxu0 0.0
        %532 = vmatpush2.xpose.msra.mxu0 0.0
        %533 = vmatprep.subr.mxu0 0.0
        %534 = vmatpush2.xpose.msra.mxu0 0.0
        %535 = vmatprep.subr.mxu0 0.0
        %536 = vmatpush2.xpose.msra.mxu0 0.0
        %537 = vmatprep.subr.mxu0 0.0
        %538 = vmatpush2.xpose.msra.mxu0 0.0
        %539 = vmatprep.subr.mxu0 0.0
        %540 = vmatpush2.xpose.msra.mxu0 0.0
        %541 = vmatprep.subr.mxu0 0.0
        %542 = vmatpush2.xpose.msra.mxu0 0.0
        %543 = vmatprep.mubr.f32.mxu0 0.0
        %544 = vmatmul.mubr.f32.gmra.mxu0 %v468
        %v545 = vpop.f32.mrf.mxu0
        %v546 = vadd.f32 0.0, %v545
        %v547 = vpop.f32.mrf.mxu0
        %548 = vmatprep.mubr.f32.mxu0 0.0
        %549 = vmatmul.mubr.f32.gmra.mxu0 %v471
        %v550 = vpop.f32.mrf.mxu0
        %v551 = vadd.f32 0.0, %v550
        %v552 = vpop.f32.mrf.mxu0
        %553 = vdwg.mxu0
        %v555 = vsel %vm466, %v418, 0
        %v558 = vsel %vm466, %v419, 0
        %v561 = vsel %vm466, %v434, 0
        %v564 = vsel %vm466, %v435, 0
        %566 = vmatprep.subr.mxu0 0.0
        %567 = vmatpush1.xpose.msra.mxu0 0.0
        %568 = vmatprep.subr.mxu0 0.0
        %569 = vmatpush1.xpose.msra.mxu0 0.0
        %570 = vmatprep.subr.mxu0 0.0
        %571 = vmatpush1.xpose.msra.mxu0 0.0
        %572 = vmatprep.subr.mxu0 0.0
        %573 = vmatpush1.xpose.msra.mxu0 0.0
        %574 = vmatprep.subr.mxu0 0.0
        %575 = vmatpush1.xpose.msra.mxu0 0.0
        %576 = vmatprep.subr.mxu0 0.0
        %577 = vmatpush1.xpose.msra.mxu0 0.0
        %578 = vmatprep.subr.mxu0 0.0
        %579 = vmatpush1.xpose.msra.mxu0 0.0
        %580 = vmatprep.subr.mxu0 0.0
        %581 = vmatpush1.xpose.msra.mxu0 0.0
        %582 = vmatprep.subr.mxu0 0.0
        %583 = vmatpush1.xpose.msra.mxu0 0.0
        %584 = vmatprep.subr.mxu0 0.0
        %585 = vmatpush1.xpose.msra.mxu0 0.0
        %586 = vmatprep.subr.mxu0 0.0
        %587 = vmatpush1.xpose.msra.mxu0 0.0
        %588 = vmatprep.subr.mxu0 0.0
        %589 = vmatpush1.xpose.msra.mxu0 0.0
        %590 = vmatprep.subr.mxu0 0.0
        %591 = vmatpush1.xpose.msra.mxu0 0.0
        %592 = vmatprep.subr.mxu0 0.0
        %593 = vmatpush1.xpose.msra.mxu0 0.0
        %594 = vmatprep.subr.mxu0 0.0
        %595 = vmatpush1.xpose.msra.mxu0 %v564
        %596 = vmatprep.subr.mxu0 0.0
        %597 = vmatpush1.xpose.msra.mxu0 %v561
        %598 = vmatprep.subr.mxu0 0.0
        %599 = vmatpush2.xpose.msra.mxu0 0.0
        %600 = vmatprep.subr.mxu0 0.0
        %601 = vmatpush2.xpose.msra.mxu0 0.0
        %602 = vmatprep.subr.mxu0 0.0
        %603 = vmatpush2.xpose.msra.mxu0 0.0
        %604 = vmatprep.subr.mxu0 0.0
        %605 = vmatpush2.xpose.msra.mxu0 0.0
        %606 = vmatprep.subr.mxu0 0.0
        %607 = vmatpush2.xpose.msra.mxu0 0.0
        %608 = vmatprep.subr.mxu0 0.0
        %609 = vmatpush2.xpose.msra.mxu0 0.0
        %610 = vmatprep.subr.mxu0 0.0
        %611 = vmatpush2.xpose.msra.mxu0 0.0
        %612 = vmatprep.subr.mxu0 0.0
        %613 = vmatpush2.xpose.msra.mxu0 0.0
        %614 = vmatprep.subr.mxu0 0.0
        %615 = vmatpush2.xpose.msra.mxu0 0.0
        %616 = vmatprep.subr.mxu0 0.0
        %617 = vmatpush2.xpose.msra.mxu0 0.0
        %618 = vmatprep.subr.mxu0 0.0
        %619 = vmatpush2.xpose.msra.mxu0 0.0
        %620 = vmatprep.subr.mxu0 0.0
        %621 = vmatpush2.xpose.msra.mxu0 0.0
        %622 = vmatprep.subr.mxu0 0.0
        %623 = vmatpush2.xpose.msra.mxu0 0.0
        %624 = vmatprep.subr.mxu0 0.0
        %625 = vmatpush2.xpose.msra.mxu0 0.0
        %626 = vmatprep.subr.mxu0 0.0
        %627 = vmatpush2.xpose.msra.mxu0 0.0
        %628 = vmatprep.subr.mxu0 0.0
        %629 = vmatpush2.xpose.msra.mxu0 0.0
        %630 = vmatprep.mubr.f32.mxu0 0.0
        %631 = vmatmul.mubr.f32.gmra.mxu0 %v555
        %v632 = vpop.f32.mrf.mxu0
        %v633 = vadd.f32 0.0, %v632
        %v634 = vpop.f32.mrf.mxu0
        %635 = vmatprep.mubr.f32.mxu0 0.0
        %636 = vmatmul.mubr.f32.gmra.mxu0 %v558
        %v637 = vpop.f32.mrf.mxu0
        %v638 = vadd.f32 0.0, %v637
        %v639 = vpop.f32.mrf.mxu0
        %640 = vdwg.mxu0
        %v642 = vsel %vm466, %v420, 0
        %v645 = vsel %vm466, %v421, 0
        %v648 = vsel %vm466, %v436, 0
        %v651 = vsel %vm466, %v437, 0
        %653 = vmatprep.subr.mxu0 0.0
        %654 = vmatpush1.xpose.msra.mxu0 0.0
        %655 = vmatprep.subr.mxu0 0.0
        %656 = vmatpush1.xpose.msra.mxu0 0.0
        %657 = vmatprep.subr.mxu0 0.0
        %658 = vmatpush1.xpose.msra.mxu0 0.0
        %659 = vmatprep.subr.mxu0 0.0
        %660 = vmatpush1.xpose.msra.mxu0 0.0
        %661 = vmatprep.subr.mxu0 0.0
        %662 = vmatpush1.xpose.msra.mxu0 0.0
        %663 = vmatprep.subr.mxu0 0.0
        %664 = vmatpush1.xpose.msra.mxu0 0.0
        %665 = vmatprep.subr.mxu0 0.0
        %666 = vmatpush1.xpose.msra.mxu0 0.0
        %667 = vmatprep.subr.mxu0 0.0
        %668 = vmatpush1.xpose.msra.mxu0 0.0
        %669 = vmatprep.subr.mxu0 0.0
        %670 = vmatpush1.xpose.msra.mxu0 0.0
        %671 = vmatprep.subr.mxu0 0.0
        %672 = vmatpush1.xpose.msra.mxu0 0.0
        %673 = vmatprep.subr.mxu0 0.0
        %674 = vmatpush1.xpose.msra.mxu0 0.0
        %675 = vmatprep.subr.mxu0 0.0
        %676 = vmatpush1.xpose.msra.mxu0 0.0
        %677 = vmatprep.subr.mxu0 0.0
        %678 = vmatpush1.xpose.msra.mxu0 0.0
        %679 = vmatprep.subr.mxu0 0.0
        %680 = vmatpush1.xpose.msra.mxu0 0.0
        %681 = vmatprep.subr.mxu0 0.0
        %682 = vmatpush1.xpose.msra.mxu0 %v651
        %683 = vmatprep.subr.mxu0 0.0
        %684 = vmatpush1.xpose.msra.mxu0 %v648
        %685 = vmatprep.subr.mxu0 0.0
        %686 = vmatpush2.xpose.msra.mxu0 0.0
        %687 = vmatprep.subr.mxu0 0.0
        %688 = vmatpush2.xpose.msra.mxu0 0.0
        %689 = vmatprep.subr.mxu0 0.0
        %690 = vmatpush2.xpose.msra.mxu0 0.0
        %691 = vmatprep.subr.mxu0 0.0
        %692 = vmatpush2.xpose.msra.mxu0 0.0
        %693 = vmatprep.subr.mxu0 0.0
        %694 = vmatpush2.xpose.msra.mxu0 0.0
        %695 = vmatprep.subr.mxu0 0.0
        %696 = vmatpush2.xpose.msra.mxu0 0.0
        %697 = vmatprep.subr.mxu0 0.0
        %698 = vmatpush2.xpose.msra.mxu0 0.0
        %699 = vmatprep.subr.mxu0 0.0
        %700 = vmatpush2.xpose.msra.mxu0 0.0
        %701 = vmatprep.subr.mxu0 0.0
        %702 = vmatpush2.xpose.msra.mxu0 0.0
        %703 = vmatprep.subr.mxu0 0.0
        %704 = vmatpush2.xpose.msra.mxu0 0.0
        %705 = vmatprep.subr.mxu0 0.0
        %706 = vmatpush2.xpose.msra.mxu0 0.0
        %707 = vmatprep.subr.mxu0 0.0
        %708 = vmatpush2.xpose.msra.mxu0 0.0
        %709 = vmatprep.subr.mxu0 0.0
        %710 = vmatpush2.xpose.msra.mxu0 0.0
        %711 = vmatprep.subr.mxu0 0.0
        %712 = vmatpush2.xpose.msra.mxu0 0.0
        %713 = vmatprep.subr.mxu0 0.0
        %714 = vmatpush2.xpose.msra.mxu0 0.0
        %715 = vmatprep.subr.mxu0 0.0
        %716 = vmatpush2.xpose.msra.mxu0 0.0
        %717 = vmatprep.mubr.f32.mxu0 0.0
        %718 = vmatmul.mubr.f32.gmra.mxu0 %v642
        %v719 = vpop.f32.mrf.mxu0
        %v720 = vadd.f32 0.0, %v719
        %v721 = vpop.f32.mrf.mxu0
        %722 = vmatprep.mubr.f32.mxu0 0.0
        %723 = vmatmul.mubr.f32.gmra.mxu0 %v645
        %v724 = vpop.f32.mrf.mxu0
        %v725 = vadd.f32 0.0, %v724
        %v726 = vpop.f32.mrf.mxu0
        %727 = vdwg.mxu0
        %v729 = vsel %vm466, %v422, 0
        %v732 = vsel %vm466, %v423, 0
        %v735 = vsel %vm466, %v438, 0
        %v738 = vsel %vm466, %v439, 0
        %740 = vmatprep.subr.mxu0 0.0
        %741 = vmatpush1.xpose.msra.mxu0 0.0
        %742 = vmatprep.subr.mxu0 0.0
        %743 = vmatpush1.xpose.msra.mxu0 0.0
        %744 = vmatprep.subr.mxu0 0.0
        %745 = vmatpush1.xpose.msra.mxu0 0.0
        %746 = vmatprep.subr.mxu0 0.0
        %747 = vmatpush1.xpose.msra.mxu0 0.0
        %748 = vmatprep.subr.mxu0 0.0
        %749 = vmatpush1.xpose.msra.mxu0 0.0
        %750 = vmatprep.subr.mxu0 0.0
        %751 = vmatpush1.xpose.msra.mxu0 0.0
        %752 = vmatprep.subr.mxu0 0.0
        %753 = vmatpush1.xpose.msra.mxu0 0.0
        %754 = vmatprep.subr.mxu0 0.0
        %755 = vmatpush1.xpose.msra.mxu0 0.0
        %756 = vmatprep.subr.mxu0 0.0
        %757 = vmatpush1.xpose.msra.mxu0 0.0
        %758 = vmatprep.subr.mxu0 0.0
        %759 = vmatpush1.xpose.msra.mxu0 0.0
        %760 = vmatprep.subr.mxu0 0.0
        %761 = vmatpush1.xpose.msra.mxu0 0.0
        %762 = vmatprep.subr.mxu0 0.0
        %763 = vmatpush1.xpose.msra.mxu0 0.0
        %764 = vmatprep.subr.mxu0 0.0
        %765 = vmatpush1.xpose.msra.mxu0 0.0
        %766 = vmatprep.subr.mxu0 0.0
        %767 = vmatpush1.xpose.msra.mxu0 0.0
        %768 = vmatprep.subr.mxu0 0.0
        %769 = vmatpush1.xpose.msra.mxu0 %v738
        %770 = vmatprep.subr.mxu0 0.0
        %771 = vmatpush1.xpose.msra.mxu0 %v735
        %772 = vmatprep.subr.mxu0 0.0
        %773 = vmatpush2.xpose.msra.mxu0 0.0
        %774 = vmatprep.subr.mxu0 0.0
        %775 = vmatpush2.xpose.msra.mxu0 0.0
        %776 = vmatprep.subr.mxu0 0.0
        %777 = vmatpush2.xpose.msra.mxu0 0.0
        %778 = vmatprep.subr.mxu0 0.0
        %779 = vmatpush2.xpose.msra.mxu0 0.0
        %780 = vmatprep.subr.mxu0 0.0
        %781 = vmatpush2.xpose.msra.mxu0 0.0
        %782 = vmatprep.subr.mxu0 0.0
        %783 = vmatpush2.xpose.msra.mxu0 0.0
        %784 = vmatprep.subr.mxu0 0.0
        %785 = vmatpush2.xpose.msra.mxu0 0.0
        %786 = vmatprep.subr.mxu0 0.0
        %787 = vmatpush2.xpose.msra.mxu0 0.0
        %788 = vmatprep.subr.mxu0 0.0
        %789 = vmatpush2.xpose.msra.mxu0 0.0
        %790 = vmatprep.subr.mxu0 0.0
        %791 = vmatpush2.xpose.msra.mxu0 0.0
        %792 = vmatprep.subr.mxu0 0.0
        %793 = vmatpush2.xpose.msra.mxu0 0.0
        %794 = vmatprep.subr.mxu0 0.0
        %795 = vmatpush2.xpose.msra.mxu0 0.0
        %796 = vmatprep.subr.mxu0 0.0
        %797 = vmatpush2.xpose.msra.mxu0 0.0
        %798 = vmatprep.subr.mxu0 0.0
        %799 = vmatpush2.xpose.msra.mxu0 0.0
        %800 = vmatprep.subr.mxu0 0.0
        %801 = vmatpush2.xpose.msra.mxu0 0.0
        %802 = vmatprep.subr.mxu0 0.0
        %803 = vmatpush2.xpose.msra.mxu0 0.0
        %804 = vmatprep.mubr.f32.mxu0 0.0
        %805 = vmatmul.mubr.f32.gmra.mxu0 %v729
        %v806 = vpop.f32.mrf.mxu0
        %v807 = vadd.f32 0.0, %v806
        %v808 = vpop.f32.mrf.mxu0
        %809 = vmatprep.mubr.f32.mxu0 0.0
        %810 = vmatmul.mubr.f32.gmra.mxu0 %v732
        %v811 = vpop.f32.mrf.mxu0
        %v812 = vadd.f32 0.0, %v811
        %v813 = vpop.f32.mrf.mxu0
        %814 = vdwg.mxu0
        %v816 = vsel %vm466, %v424, 0
        %v819 = vsel %vm466, %v425, 0
        %v822 = vsel %vm466, %v440, 0
        %v825 = vsel %vm466, %v441, 0
        %827 = vmatprep.subr.mxu0 0.0
        %828 = vmatpush1.xpose.msra.mxu0 0.0
        %829 = vmatprep.subr.mxu0 0.0
        %830 = vmatpush1.xpose.msra.mxu0 0.0
        %831 = vmatprep.subr.mxu0 0.0
        %832 = vmatpush1.xpose.msra.mxu0 0.0
        %833 = vmatprep.subr.mxu0 0.0
        %834 = vmatpush1.xpose.msra.mxu0 0.0
        %835 = vmatprep.subr.mxu0 0.0
        %836 = vmatpush1.xpose.msra.mxu0 0.0
        %837 = vmatprep.subr.mxu0 0.0
        %838 = vmatpush1.xpose.msra.mxu0 0.0
        %839 = vmatprep.subr.mxu0 0.0
        %840 = vmatpush1.xpose.msra.mxu0 0.0
        %841 = vmatprep.subr.mxu0 0.0
        %842 = vmatpush1.xpose.msra.mxu0 0.0
        %843 = vmatprep.subr.mxu0 0.0
        %844 = vmatpush1.xpose.msra.mxu0 0.0
        %845 = vmatprep.subr.mxu0 0.0
        %846 = vmatpush1.xpose.msra.mxu0 0.0
        %847 = vmatprep.subr.mxu0 0.0
        %848 = vmatpush1.xpose.msra.mxu0 0.0
        %849 = vmatprep.subr.mxu0 0.0
        %850 = vmatpush1.xpose.msra.mxu0 0.0
        %851 = vmatprep.subr.mxu0 0.0
        %852 = vmatpush1.xpose.msra.mxu0 0.0
        %853 = vmatprep.subr.mxu0 0.0
        %854 = vmatpush1.xpose.msra.mxu0 0.0
        %855 = vmatprep.subr.mxu0 0.0
        %856 = vmatpush1.xpose.msra.mxu0 %v825
        %857 = vmatprep.subr.mxu0 0.0
        %858 = vmatpush1.xpose.msra.mxu0 %v822
        %859 = vmatprep.subr.mxu0 0.0
        %860 = vmatpush2.xpose.msra.mxu0 0.0
        %861 = vmatprep.subr.mxu0 0.0
        %862 = vmatpush2.xpose.msra.mxu0 0.0
        %863 = vmatprep.subr.mxu0 0.0
        %864 = vmatpush2.xpose.msra.mxu0 0.0
        %865 = vmatprep.subr.mxu0 0.0
        %866 = vmatpush2.xpose.msra.mxu0 0.0
        %867 = vmatprep.subr.mxu0 0.0
        %868 = vmatpush2.xpose.msra.mxu0 0.0
        %869 = vmatprep.subr.mxu0 0.0
        %870 = vmatpush2.xpose.msra.mxu0 0.0
        %871 = vmatprep.subr.mxu0 0.0
        %872 = vmatpush2.xpose.msra.mxu0 0.0
        %873 = vmatprep.subr.mxu0 0.0
        %874 = vmatpush2.xpose.msra.mxu0 0.0
        %875 = vmatprep.subr.mxu0 0.0
        %876 = vmatpush2.xpose.msra.mxu0 0.0
        %877 = vmatprep.subr.mxu0 0.0
        %878 = vmatpush2.xpose.msra.mxu0 0.0
        %879 = vmatprep.subr.mxu0 0.0
        %880 = vmatpush2.xpose.msra.mxu0 0.0
        %881 = vmatprep.subr.mxu0 0.0
        %882 = vmatpush2.xpose.msra.mxu0 0.0
        %883 = vmatprep.subr.mxu0 0.0
        %884 = vmatpush2.xpose.msra.mxu0 0.0
        %885 = vmatprep.subr.mxu0 0.0
        %886 = vmatpush2.xpose.msra.mxu0 0.0
        %887 = vmatprep.subr.mxu0 0.0
        %888 = vmatpush2.xpose.msra.mxu0 0.0
        %889 = vmatprep.subr.mxu0 0.0
        %890 = vmatpush2.xpose.msra.mxu0 0.0
        %891 = vmatprep.mubr.f32.mxu0 0.0
        %892 = vmatmul.mubr.f32.gmra.mxu0 %v816
        %v893 = vpop.f32.mrf.mxu0
        %v894 = vadd.f32 0.0, %v893
        %v895 = vpop.f32.mrf.mxu0
        %896 = vmatprep.mubr.f32.mxu0 0.0
        %897 = vmatmul.mubr.f32.gmra.mxu0 %v819
        %v898 = vpop.f32.mrf.mxu0
        %v899 = vadd.f32 0.0, %v898
        %v900 = vpop.f32.mrf.mxu0
        %901 = vdwg.mxu0
        %v903 = vsel %vm466, %v426, 0
        %v906 = vsel %vm466, %v427, 0
        %v909 = vsel %vm466, %v442, 0
        %v912 = vsel %vm466, %v443, 0
        %914 = vmatprep.subr.mxu0 0.0
        %915 = vmatpush1.xpose.msra.mxu0 0.0
        %916 = vmatprep.subr.mxu0 0.0
        %917 = vmatpush1.xpose.msra.mxu0 0.0
        %918 = vmatprep.subr.mxu0 0.0
        %919 = vmatpush1.xpose.msra.mxu0 0.0
        %920 = vmatprep.subr.mxu0 0.0
        %921 = vmatpush1.xpose.msra.mxu0 0.0
        %922 = vmatprep.subr.mxu0 0.0
        %923 = vmatpush1.xpose.msra.mxu0 0.0
        %924 = vmatprep.subr.mxu0 0.0
        %925 = vmatpush1.xpose.msra.mxu0 0.0
        %926 = vmatprep.subr.mxu0 0.0
        %927 = vmatpush1.xpose.msra.mxu0 0.0
        %928 = vmatprep.subr.mxu0 0.0
        %929 = vmatpush1.xpose.msra.mxu0 0.0
        %930 = vmatprep.subr.mxu0 0.0
        %931 = vmatpush1.xpose.msra.mxu0 0.0
        %932 = vmatprep.subr.mxu0 0.0
        %933 = vmatpush1.xpose.msra.mxu0 0.0
        %934 = vmatprep.subr.mxu0 0.0
        %935 = vmatpush1.xpose.msra.mxu0 0.0
        %936 = vmatprep.subr.mxu0 0.0
        %937 = vmatpush1.xpose.msra.mxu0 0.0
        %938 = vmatprep.subr.mxu0 0.0
        %939 = vmatpush1.xpose.msra.mxu0 0.0
        %940 = vmatprep.subr.mxu0 0.0
        %941 = vmatpush1.xpose.msra.mxu0 0.0
        %942 = vmatprep.subr.mxu0 0.0
        %943 = vmatpush1.xpose.msra.mxu0 %v912
        %944 = vmatprep.subr.mxu0 0.0
        %945 = vmatpush1.xpose.msra.mxu0 %v909
        %946 = vmatprep.subr.mxu0 0.0
        %947 = vmatpush2.xpose.msra.mxu0 0.0
        %948 = vmatprep.subr.mxu0 0.0
        %949 = vmatpush2.xpose.msra.mxu0 0.0
        %950 = vmatprep.subr.mxu0 0.0
        %951 = vmatpush2.xpose.msra.mxu0 0.0
        %952 = vmatprep.subr.mxu0 0.0
        %953 = vmatpush2.xpose.msra.mxu0 0.0
        %954 = vmatprep.subr.mxu0 0.0
        %955 = vmatpush2.xpose.msra.mxu0 0.0
        %956 = vmatprep.subr.mxu0 0.0
        %957 = vmatpush2.xpose.msra.mxu0 0.0
        %958 = vmatprep.subr.mxu0 0.0
        %959 = vmatpush2.xpose.msra.mxu0 0.0
        %960 = vmatprep.subr.mxu0 0.0
        %961 = vmatpush2.xpose.msra.mxu0 0.0
        %962 = vmatprep.subr.mxu0 0.0
        %963 = vmatpush2.xpose.msra.mxu0 0.0
        %964 = vmatprep.subr.mxu0 0.0
        %965 = vmatpush2.xpose.msra.mxu0 0.0
        %966 = vmatprep.subr.mxu0 0.0
        %967 = vmatpush2.xpose.msra.mxu0 0.0
        %968 = vmatprep.subr.mxu0 0.0
        %969 = vmatpush2.xpose.msra.mxu0 0.0
        %970 = vmatprep.subr.mxu0 0.0
        %971 = vmatpush2.xpose.msra.mxu0 0.0
        %972 = vmatprep.subr.mxu0 0.0
        %973 = vmatpush2.xpose.msra.mxu0 0.0
        %974 = vmatprep.subr.mxu0 0.0
        %975 = vmatpush2.xpose.msra.mxu0 0.0
        %976 = vmatprep.subr.mxu0 0.0
        %977 = vmatpush2.xpose.msra.mxu0 0.0
        %978 = vmatprep.mubr.f32.mxu0 0.0
        %979 = vmatmul.mubr.f32.gmra.mxu0 %v903
        %v980 = vpop.f32.mrf.mxu0
        %v981 = vadd.f32 0.0, %v980
        %v982 = vpop.f32.mrf.mxu0
        %983 = vmatprep.mubr.f32.mxu0 0.0
        %984 = vmatmul.mubr.f32.gmra.mxu0 %v906
        %v985 = vpop.f32.mrf.mxu0
        %v986 = vadd.f32 0.0, %v985
        %v987 = vpop.f32.mrf.mxu0
        %988 = vdwg.mxu0
        %v990 = vsel %vm466, %v428, 0
        %v993 = vsel %vm466, %v429, 0
        %v996 = vsel %vm466, %v444, 0
        %v999 = vsel %vm466, %v445, 0
        %1001 = vmatprep.subr.mxu0 0.0
        %1002 = vmatpush1.xpose.msra.mxu0 0.0
        %1003 = vmatprep.subr.mxu0 0.0
        %1004 = vmatpush1.xpose.msra.mxu0 0.0
        %1005 = vmatprep.subr.mxu0 0.0
        %1006 = vmatpush1.xpose.msra.mxu0 0.0
        %1007 = vmatprep.subr.mxu0 0.0
        %1008 = vmatpush1.xpose.msra.mxu0 0.0
        %1009 = vmatprep.subr.mxu0 0.0
        %1010 = vmatpush1.xpose.msra.mxu0 0.0
        %1011 = vmatprep.subr.mxu0 0.0
        %1012 = vmatpush1.xpose.msra.mxu0 0.0
        %1013 = vmatprep.subr.mxu0 0.0
        %1014 = vmatpush1.xpose.msra.mxu0 0.0
        %1015 = vmatprep.subr.mxu0 0.0
        %1016 = vmatpush1.xpose.msra.mxu0 0.0
        %1017 = vmatprep.subr.mxu0 0.0
        %1018 = vmatpush1.xpose.msra.mxu0 0.0
        %1019 = vmatprep.subr.mxu0 0.0
        %1020 = vmatpush1.xpose.msra.mxu0 0.0
        %1021 = vmatprep.subr.mxu0 0.0
        %1022 = vmatpush1.xpose.msra.mxu0 0.0
        %1023 = vmatprep.subr.mxu0 0.0
        %1024 = vmatpush1.xpose.msra.mxu0 0.0
        %1025 = vmatprep.subr.mxu0 0.0
        %1026 = vmatpush1.xpose.msra.mxu0 0.0
        %1027 = vmatprep.subr.mxu0 0.0
        %1028 = vmatpush1.xpose.msra.mxu0 0.0
        %1029 = vmatprep.subr.mxu0 0.0
        %1030 = vmatpush1.xpose.msra.mxu0 %v999
        %1031 = vmatprep.subr.mxu0 0.0
        %1032 = vmatpush1.xpose.msra.mxu0 %v996
        %1033 = vmatprep.subr.mxu0 0.0
        %1034 = vmatpush2.xpose.msra.mxu0 0.0
        %1035 = vmatprep.subr.mxu0 0.0
        %1036 = vmatpush2.xpose.msra.mxu0 0.0
        %1037 = vmatprep.subr.mxu0 0.0
        %1038 = vmatpush2.xpose.msra.mxu0 0.0
        %1039 = vmatprep.subr.mxu0 0.0
        %1040 = vmatpush2.xpose.msra.mxu0 0.0
        %1041 = vmatprep.subr.mxu0 0.0
        %1042 = vmatpush2.xpose.msra.mxu0 0.0
        %1043 = vmatprep.subr.mxu0 0.0
        %1044 = vmatpush2.xpose.msra.mxu0 0.0
        %1045 = vmatprep.subr.mxu0 0.0
        %1046 = vmatpush2.xpose.msra.mxu0 0.0
        %1047 = vmatprep.subr.mxu0 0.0
        %1048 = vmatpush2.xpose.msra.mxu0 0.0
        %1049 = vmatprep.subr.mxu0 0.0
        %1050 = vmatpush2.xpose.msra.mxu0 0.0
        %1051 = vmatprep.subr.mxu0 0.0
        %1052 = vmatpush2.xpose.msra.mxu0 0.0
        %1053 = vmatprep.subr.mxu0 0.0
        %1054 = vmatpush2.xpose.msra.mxu0 0.0
        %1055 = vmatprep.subr.mxu0 0.0
        %1056 = vmatpush2.xpose.msra.mxu0 0.0
        %1057 = vmatprep.subr.mxu0 0.0
        %1058 = vmatpush2.xpose.msra.mxu0 0.0
        %1059 = vmatprep.subr.mxu0 0.0
        %1060 = vmatpush2.xpose.msra.mxu0 0.0
        %1061 = vmatprep.subr.mxu0 0.0
        %1062 = vmatpush2.xpose.msra.mxu0 0.0
        %1063 = vmatprep.subr.mxu0 0.0
        %1064 = vmatpush2.xpose.msra.mxu0 0.0
        %1065 = vmatprep.mubr.f32.mxu0 0.0
        %1066 = vmatmul.mubr.f32.gmra.mxu0 %v990
        %v1067 = vpop.f32.mrf.mxu0
        %v1068 = vadd.f32 0.0, %v1067
        %v1069 = vpop.f32.mrf.mxu0
        %1070 = vmatprep.mubr.f32.mxu0 0.0
        %1071 = vmatmul.mubr.f32.gmra.mxu0 %v993
        %v1072 = vpop.f32.mrf.mxu0
        %v1073 = vadd.f32 0.0, %v1072
        %v1074 = vpop.f32.mrf.mxu0
        %1075 = vdwg.mxu0
        %v1077 = vsel %vm466, %v430, 0
        %v1080 = vsel %vm466, %v431, 0
        %v1083 = vsel %vm466, %v446, 0
        %v1086 = vsel %vm466, %v447, 0
        %1088 = vmatprep.subr.mxu0 0.0
        %1089 = vmatpush1.xpose.msra.mxu0 0.0
        %1090 = vmatprep.subr.mxu0 0.0
        %1091 = vmatpush1.xpose.msra.mxu0 0.0
        %1092 = vmatprep.subr.mxu0 0.0
        %1093 = vmatpush1.xpose.msra.mxu0 0.0
        %1094 = vmatprep.subr.mxu0 0.0
        %1095 = vmatpush1.xpose.msra.mxu0 0.0
        %1096 = vmatprep.subr.mxu0 0.0
        %1097 = vmatpush1.xpose.msra.mxu0 0.0
        %1098 = vmatprep.subr.mxu0 0.0
        %1099 = vmatpush1.xpose.msra.mxu0 0.0
        %1100 = vmatprep.subr.mxu0 0.0
        %1101 = vmatpush1.xpose.msra.mxu0 0.0
        %1102 = vmatprep.subr.mxu0 0.0
        %1103 = vmatpush1.xpose.msra.mxu0 0.0
        %1104 = vmatprep.subr.mxu0 0.0
        %1105 = vmatpush1.xpose.msra.mxu0 0.0
        %1106 = vmatprep.subr.mxu0 0.0
        %1107 = vmatpush1.xpose.msra.mxu0 0.0
        %1108 = vmatprep.subr.mxu0 0.0
        %1109 = vmatpush1.xpose.msra.mxu0 0.0
        %1110 = vmatprep.subr.mxu0 0.0
        %1111 = vmatpush1.xpose.msra.mxu0 0.0
        %1112 = vmatprep.subr.mxu0 0.0
        %1113 = vmatpush1.xpose.msra.mxu0 0.0
        %1114 = vmatprep.subr.mxu0 0.0
        %1115 = vmatpush1.xpose.msra.mxu0 0.0
        %1116 = vmatprep.subr.mxu0 0.0
        %1117 = vmatpush1.xpose.msra.mxu0 %v1086
        %1118 = vmatprep.subr.mxu0 0.0
        %1119 = vmatpush1.xpose.msra.mxu0 %v1083
        %1120 = vmatprep.subr.mxu0 0.0
        %1121 = vmatpush2.xpose.msra.mxu0 0.0
        %1122 = vmatprep.subr.mxu0 0.0
        %1123 = vmatpush2.xpose.msra.mxu0 0.0
        %1124 = vmatprep.subr.mxu0 0.0
        %1125 = vmatpush2.xpose.msra.mxu0 0.0
        %1126 = vmatprep.subr.mxu0 0.0
        %1127 = vmatpush2.xpose.msra.mxu0 0.0
        %1128 = vmatprep.subr.mxu0 0.0
        %1129 = vmatpush2.xpose.msra.mxu0 0.0
        %1130 = vmatprep.subr.mxu0 0.0
        %1131 = vmatpush2.xpose.msra.mxu0 0.0
        %1132 = vmatprep.subr.mxu0 0.0
        %1133 = vmatpush2.xpose.msra.mxu0 0.0
        %1134 = vmatprep.subr.mxu0 0.0
        %1135 = vmatpush2.xpose.msra.mxu0 0.0
        %1136 = vmatprep.subr.mxu0 0.0
        %1137 = vmatpush2.xpose.msra.mxu0 0.0
        %1138 = vmatprep.subr.mxu0 0.0
        %1139 = vmatpush2.xpose.msra.mxu0 0.0
        %1140 = vmatprep.subr.mxu0 0.0
        %1141 = vmatpush2.xpose.msra.mxu0 0.0
        %1142 = vmatprep.subr.mxu0 0.0
        %1143 = vmatpush2.xpose.msra.mxu0 0.0
        %1144 = vmatprep.subr.mxu0 0.0
        %1145 = vmatpush2.xpose.msra.mxu0 0.0
        %1146 = vmatprep.subr.mxu0 0.0
        %1147 = vmatpush2.xpose.msra.mxu0 0.0
        %1148 = vmatprep.subr.mxu0 0.0
        %1149 = vmatpush2.xpose.msra.mxu0 0.0
        %1150 = vmatprep.subr.mxu0 0.0
        %1151 = vmatpush2.xpose.msra.mxu0 0.0
        %1152 = vmatprep.mubr.f32.mxu0 0.0
        %1153 = vmatmul.mubr.f32.gmra.mxu0 %v1077
        %v1154 = vpop.f32.mrf.mxu0
        %v1155 = vadd.f32 0.0, %v1154
        %v1156 = vpop.f32.mrf.mxu0
        %1157 = vmatprep.mubr.f32.mxu0 0.0
        %1158 = vmatmul.mubr.f32.gmra.mxu0 %v1080
        %v1159 = vpop.f32.mrf.mxu0
        %v1160 = vadd.f32 0.0, %v1159
        %v1161 = vpop.f32.mrf.mxu0
        %1162 = vdwg.mxu0
        %vm1163 = vcmp.gt.f32.partialorder %v464, 0.0
        %vm1164 = vcmp.gt.f32.partialorder %v465, 0.0
        %v1165 = vsel %vm1163, 1, 0
        %v1166 = vsel %vm1164, 1, 0
        %vm1167 = vcmp.eq.s32.totalorder %v1165, 1
        %vm1168 = vcmp.eq.s32.totalorder %v1166, 1
        %v1169 = vsel %vm1167, %v546, -1e+30
        %v1170 = vsel %vm1168, %v551, -1e+30
        %v1171 = vsel %vm1167, %v633, -1e+30
        %v1172 = vsel %vm1168, %v638, -1e+30
        %v1173 = vsel %vm1167, %v720, -1e+30
        %v1174 = vsel %vm1168, %v725, -1e+30
        %v1175 = vsel %vm1167, %v807, -1e+30
        %v1176 = vsel %vm1168, %v812, -1e+30
        %v1177 = vsel %vm1167, %v894, -1e+30
        %v1178 = vsel %vm1168, %v899, -1e+30
        %v1179 = vsel %vm1167, %v981, -1e+30
        %v1180 = vsel %vm1168, %v986, -1e+30
        %v1181 = vsel %vm1167, %v1068, -1e+30
        %v1182 = vsel %vm1168, %v1073, -1e+30
        %v1183 = vsel %vm1167, %v1155, -1e+30
        %v1184 = vsel %vm1168, %v1160, -1e+30
        %vm1185 = vcmask 130048
        %v1186 = vsel %vm1185, %v1169, -inf
        %1187 = vmax.xlane.f32.xlu0 %v1186
        %v1188 = vpop.xlane.xlu0 %1187
        %v1189 = vsel %vm1185, %v1170, -inf
        %1190 = vmax.xlane.f32.xlu0 %v1189
        %v1191 = vpop.xlane.xlu0 %1190
        %v1192 = vsel %vm1185, %v1171, -inf
        %1193 = vmax.xlane.f32.xlu0 %v1192
        %v1194 = vpop.xlane.xlu0 %1193
        %v1195 = vsel %vm1185, %v1172, -inf
        %1196 = vmax.xlane.f32.xlu0 %v1195
        %v1197 = vpop.xlane.xlu0 %1196
        %v1198 = vsel %vm1185, %v1173, -inf
        %1199 = vmax.xlane.f32.xlu0 %v1198
        %v1200 = vpop.xlane.xlu0 %1199
        %v1201 = vsel %vm1185, %v1174, -inf
        %1202 = vmax.xlane.f32.xlu0 %v1201
        %v1203 = vpop.xlane.xlu0 %1202
        %v1204 = vsel %vm1185, %v1175, -inf
        %1205 = vmax.xlane.f32.xlu0 %v1204
        %v1206 = vpop.xlane.xlu0 %1205
        %v1207 = vsel %vm1185, %v1176, -inf
        %1208 = vmax.xlane.f32.xlu0 %v1207
        %v1209 = vpop.xlane.xlu0 %1208
        %v1210 = vsel %vm1185, %v1177, -inf
        %1211 = vmax.xlane.f32.xlu0 %v1210
        %v1212 = vpop.xlane.xlu0 %1211
        %v1213 = vsel %vm1185, %v1178, -inf
        %1214 = vmax.xlane.f32.xlu0 %v1213
        %v1215 = vpop.xlane.xlu0 %1214
        %v1216 = vsel %vm1185, %v1179, -inf
        %1217 = vmax.xlane.f32.xlu0 %v1216
        %v1218 = vpop.xlane.xlu0 %1217
        %v1219 = vsel %vm1185, %v1180, -inf
        %1220 = vmax.xlane.f32.xlu0 %v1219
        %v1221 = vpop.xlane.xlu0 %1220
        %v1222 = vsel %vm1185, %v1181, -inf
        %1223 = vmax.xlane.f32.xlu0 %v1222
        %v1224 = vpop.xlane.xlu0 %1223
        %v1225 = vsel %vm1185, %v1182, -inf
        %1226 = vmax.xlane.f32.xlu0 %v1225
        %v1227 = vpop.xlane.xlu0 %1226
        %v1228 = vsel %vm1185, %v1183, -inf
        %1229 = vmax.xlane.f32.xlu0 %v1228
        %v1230 = vpop.xlane.xlu0 %1229
        %v1231 = vsel %vm1185, %v1184, -inf
        %1232 = vmax.xlane.f32.xlu0 %v1231
        %v1233 = vpop.xlane.xlu0 %1232
        %v1234 = vmul.f32 %v546, %v464
        %v1235 = vmul.f32 %v551, %v465
        %v1236 = vmul.f32 %v633, %v464
        %v1237 = vmul.f32 %v638, %v465
        %v1238 = vmul.f32 %v720, %v464
        %v1239 = vmul.f32 %v725, %v465
        %v1240 = vmul.f32 %v807, %v464
        %v1241 = vmul.f32 %v812, %v465
        %v1242 = vmul.f32 %v894, %v464
        %v1243 = vmul.f32 %v899, %v465
        %v1244 = vmul.f32 %v981, %v464
        %v1245 = vmul.f32 %v986, %v465
        %v1246 = vmul.f32 %v1068, %v464
        %v1247 = vmul.f32 %v1073, %v465
        %v1248 = vmul.f32 %v1155, %v464
        %v1249 = vmul.f32 %v1160, %v465
        %v1250 = vsel %vm1185, %v1234, 0.0
        %1251 = vadd.xlane.f32.xlu0 %v1250
        %v1252 = vpop.xlane.xlu0 %1251
        %v1253 = vsel %vm1185, %v1235, 0.0
        %1254 = vadd.xlane.f32.xlu0 %v1253
        %v1255 = vpop.xlane.xlu0 %1254
        %v1256 = vsel %vm1185, %v1236, 0.0
        %1257 = vadd.xlane.f32.xlu0 %v1256
        %v1258 = vpop.xlane.xlu0 %1257
        %v1259 = vsel %vm1185, %v1237, 0.0
        %1260 = vadd.xlane.f32.xlu0 %v1259
        %v1261 = vpop.xlane.xlu0 %1260
        %v1262 = vsel %vm1185, %v1238, 0.0
        %1263 = vadd.xlane.f32.xlu0 %v1262
        %v1264 = vpop.xlane.xlu0 %1263
        %v1265 = vsel %vm1185, %v1239, 0.0
        %1266 = vadd.xlane.f32.xlu0 %v1265
        %v1267 = vpop.xlane.xlu0 %1266
        %v1268 = vsel %vm1185, %v1240, 0.0
        %1269 = vadd.xlane.f32.xlu0 %v1268
        %v1270 = vpop.xlane.xlu0 %1269
        %v1271 = vsel %vm1185, %v1241, 0.0
        %1272 = vadd.xlane.f32.xlu0 %v1271
        %v1273 = vpop.xlane.xlu0 %1272
        %v1274 = vsel %vm1185, %v1242, 0.0
        %1275 = vadd.xlane.f32.xlu0 %v1274
        %v1276 = vpop.xlane.xlu0 %1275
        %v1277 = vsel %vm1185, %v1243, 0.0
        %1278 = vadd.xlane.f32.xlu0 %v1277
        %v1279 = vpop.xlane.xlu0 %1278
        %v1280 = vsel %vm1185, %v1244, 0.0
        %1281 = vadd.xlane.f32.xlu0 %v1280
        %v1282 = vpop.xlane.xlu0 %1281
        %v1283 = vsel %vm1185, %v1245, 0.0
        %1284 = vadd.xlane.f32.xlu0 %v1283
        %v1285 = vpop.xlane.xlu0 %1284
        %v1286 = vsel %vm1185, %v1246, 0.0
        %1287 = vadd.xlane.f32.xlu0 %v1286
        %v1288 = vpop.xlane.xlu0 %1287
        %v1289 = vsel %vm1185, %v1247, 0.0
        %1290 = vadd.xlane.f32.xlu0 %v1289
        %v1291 = vpop.xlane.xlu0 %1290
        %v1292 = vsel %vm1185, %v1248, 0.0
        %1293 = vadd.xlane.f32.xlu0 %v1292
        %v1294 = vpop.xlane.xlu0 %1293
        %v1295 = vsel %vm1185, %v1249, 0.0
        %1296 = vadd.xlane.f32.xlu0 %v1295
        %v1297 = vpop.xlane.xlu0 %1296
        %v1298 = vmul.f32 %v1252, 0.06666667
        %v1299 = vmul.f32 %v1255, 0.06666667
        %v1300 = vmul.f32 %v1258, 0.06666667
        %v1301 = vmul.f32 %v1261, 0.06666667
        %v1302 = vmul.f32 %v1264, 0.06666667
        %v1303 = vmul.f32 %v1267, 0.06666667
        %v1304 = vmul.f32 %v1270, 0.06666667
        %v1305 = vmul.f32 %v1273, 0.06666667
        %v1306 = vmul.f32 %v1276, 0.06666667
        %v1307 = vmul.f32 %v1279, 0.06666667
        %v1308 = vmul.f32 %v1282, 0.06666667
        %v1309 = vmul.f32 %v1285, 0.06666667
        %v1310 = vmul.f32 %v1288, 0.06666667
        %v1311 = vmul.f32 %v1291, 0.06666667
        %v1312 = vmul.f32 %v1294, 0.06666667
        %v1313 = vmul.f32 %v1297, 0.06666667
        %v1314 = vsub.f32 %v1188, %v1298
        %v1315 = vsub.f32 %v1191, %v1299
        %v1316 = vsub.f32 %v1194, %v1300
        %v1317 = vsub.f32 %v1197, %v1301
        %v1318 = vsub.f32 %v1200, %v1302
        %v1319 = vsub.f32 %v1203, %v1303
        %v1320 = vsub.f32 %v1206, %v1304
        %v1321 = vsub.f32 %v1209, %v1305
        %v1322 = vsub.f32 %v1212, %v1306
        %v1323 = vsub.f32 %v1215, %v1307
        %v1324 = vsub.f32 %v1218, %v1308
        %v1325 = vsub.f32 %v1221, %v1309
        %v1326 = vsub.f32 %v1224, %v1310
        %v1327 = vsub.f32 %v1227, %v1311
        %v1328 = vsub.f32 %v1230, %v1312
        %v1329 = vsub.f32 %v1233, %v1313
        %v1330 = vlaneseq
        %v1331 = vshrl.u32 %v1330, 7
        %v1332 = vadd.s32 %v1331, 8
        %v1333 = vlaneseq
        %v1334 = vand.u32 %v1333, 127
        %v1351 = vlaneseq
        %v1352 = vshrl.u32 %v1351, 7
        %v1353 = vsub.s32 0, %v1352
        %v1354 = vrot.slane %v1314, %v1353
        %v1355 = vlaneseq
        %v1356 = vshrl.u32 %v1355, 7
        %v1357 = vsub.s32 1, %v1356
        %v1358 = vrot.slane %v1314, %v1357
        %v1359 = vlaneseq
        %v1360 = vshrl.u32 %v1359, 7
        %v1361 = vsub.s32 2, %v1360
        %v1362 = vrot.slane %v1314, %v1361
        %v1363 = vlaneseq
        %v1364 = vshrl.u32 %v1363, 7
        %v1365 = vsub.s32 3, %v1364
        %v1366 = vrot.slane %v1314, %v1365
        %v1367 = vlaneseq
        %v1368 = vshrl.u32 %v1367, 7
        %v1369 = vsub.s32 4, %v1368
        %v1370 = vrot.slane %v1314, %v1369
        %v1371 = vlaneseq
        %v1372 = vshrl.u32 %v1371, 7
        %v1373 = vsub.s32 5, %v1372
        %v1374 = vrot.slane %v1314, %v1373
        %v1375 = vlaneseq
        %v1376 = vshrl.u32 %v1375, 7
        %v1377 = vsub.s32 6, %v1376
        %v1378 = vrot.slane %v1314, %v1377
        %v1379 = vlaneseq
        %v1380 = vshrl.u32 %v1379, 7
        %v1381 = vsub.s32 7, %v1380
        %v1382 = vrot.slane %v1314, %v1381
        %v1383 = vlaneseq
        %v1384 = vshrl.u32 %v1383, 7
        %v1385 = vsub.s32 0, %v1384
        %v1386 = vrot.slane %v1315, %v1385
        %v1387 = vlaneseq
        %v1388 = vshrl.u32 %v1387, 7
        %v1389 = vsub.s32 1, %v1388
        %v1390 = vrot.slane %v1315, %v1389
        %v1391 = vlaneseq
        %v1392 = vshrl.u32 %v1391, 7
        %v1393 = vsub.s32 2, %v1392
        %v1394 = vrot.slane %v1315, %v1393
        %v1395 = vlaneseq
        %v1396 = vshrl.u32 %v1395, 7
        %v1397 = vsub.s32 3, %v1396
        %v1398 = vrot.slane %v1315, %v1397
        %v1399 = vlaneseq
        %v1400 = vshrl.u32 %v1399, 7
        %v1401 = vsub.s32 4, %v1400
        %v1402 = vrot.slane %v1315, %v1401
        %v1403 = vlaneseq
        %v1404 = vshrl.u32 %v1403, 7
        %v1405 = vsub.s32 5, %v1404
        %v1406 = vrot.slane %v1315, %v1405
        %v1407 = vlaneseq
        %v1408 = vshrl.u32 %v1407, 7
        %v1409 = vsub.s32 6, %v1408
        %v1410 = vrot.slane %v1315, %v1409
        %v1411 = vlaneseq
        %v1412 = vshrl.u32 %v1411, 7
        %v1413 = vsub.s32 7, %v1412
        %v1414 = vrot.slane %v1315, %v1413
        %v1415 = vlaneseq
        %v1416 = vshrl.u32 %v1415, 7
        %v1417 = vsub.s32 0, %v1416
        %v1418 = vrot.slane %v1316, %v1417
        %v1419 = vlaneseq
        %v1420 = vshrl.u32 %v1419, 7
        %v1421 = vsub.s32 1, %v1420
        %v1422 = vrot.slane %v1316, %v1421
        %v1423 = vlaneseq
        %v1424 = vshrl.u32 %v1423, 7
        %v1425 = vsub.s32 2, %v1424
        %v1426 = vrot.slane %v1316, %v1425
        %v1427 = vlaneseq
        %v1428 = vshrl.u32 %v1427, 7
        %v1429 = vsub.s32 3, %v1428
        %v1430 = vrot.slane %v1316, %v1429
        %v1431 = vlaneseq
        %v1432 = vshrl.u32 %v1431, 7
        %v1433 = vsub.s32 4, %v1432
        %v1434 = vrot.slane %v1316, %v1433
        %v1435 = vlaneseq
        %v1436 = vshrl.u32 %v1435, 7
        %v1437 = vsub.s32 5, %v1436
        %v1438 = vrot.slane %v1316, %v1437
        %v1439 = vlaneseq
        %v1440 = vshrl.u32 %v1439, 7
        %v1441 = vsub.s32 6, %v1440
        %v1442 = vrot.slane %v1316, %v1441
        %v1443 = vlaneseq
        %v1444 = vshrl.u32 %v1443, 7
        %v1445 = vsub.s32 7, %v1444
        %v1446 = vrot.slane %v1316, %v1445
        %v1447 = vlaneseq
        %v1448 = vshrl.u32 %v1447, 7
        %v1449 = vsub.s32 0, %v1448
        %v1450 = vrot.slane %v1317, %v1449
        %v1451 = vlaneseq
        %v1452 = vshrl.u32 %v1451, 7
        %v1453 = vsub.s32 1, %v1452
        %v1454 = vrot.slane %v1317, %v1453
        %v1455 = vlaneseq
        %v1456 = vshrl.u32 %v1455, 7
        %v1457 = vsub.s32 2, %v1456
        %v1458 = vrot.slane %v1317, %v1457
        %v1459 = vlaneseq
        %v1460 = vshrl.u32 %v1459, 7
        %v1461 = vsub.s32 3, %v1460
        %v1462 = vrot.slane %v1317, %v1461
        %v1463 = vlaneseq
        %v1464 = vshrl.u32 %v1463, 7
        %v1465 = vsub.s32 4, %v1464
        %v1466 = vrot.slane %v1317, %v1465
        %v1467 = vlaneseq
        %v1468 = vshrl.u32 %v1467, 7
        %v1469 = vsub.s32 5, %v1468
        %v1470 = vrot.slane %v1317, %v1469
        %v1471 = vlaneseq
        %v1472 = vshrl.u32 %v1471, 7
        %v1473 = vsub.s32 6, %v1472
        %v1474 = vrot.slane %v1317, %v1473
        %v1475 = vlaneseq
        %v1476 = vshrl.u32 %v1475, 7
        %v1477 = vsub.s32 7, %v1476
        %v1478 = vrot.slane %v1317, %v1477
        %v1479 = vlaneseq
        %v1480 = vshrl.u32 %v1479, 7
        %v1481 = vsub.s32 0, %v1480
        %v1482 = vrot.slane %v1318, %v1481
        %v1483 = vlaneseq
        %v1484 = vshrl.u32 %v1483, 7
        %v1485 = vsub.s32 1, %v1484
        %v1486 = vrot.slane %v1318, %v1485
        %v1487 = vlaneseq
        %v1488 = vshrl.u32 %v1487, 7
        %v1489 = vsub.s32 2, %v1488
        %v1490 = vrot.slane %v1318, %v1489
        %v1491 = vlaneseq
        %v1492 = vshrl.u32 %v1491, 7
        %v1493 = vsub.s32 3, %v1492
        %v1494 = vrot.slane %v1318, %v1493
        %v1495 = vlaneseq
        %v1496 = vshrl.u32 %v1495, 7
        %v1497 = vsub.s32 4, %v1496
        %v1498 = vrot.slane %v1318, %v1497
        %v1499 = vlaneseq
        %v1500 = vshrl.u32 %v1499, 7
        %v1501 = vsub.s32 5, %v1500
        %v1502 = vrot.slane %v1318, %v1501
        %v1503 = vlaneseq
        %v1504 = vshrl.u32 %v1503, 7
        %v1505 = vsub.s32 6, %v1504
        %v1506 = vrot.slane %v1318, %v1505
        %v1507 = vlaneseq
        %v1508 = vshrl.u32 %v1507, 7
        %v1509 = vsub.s32 7, %v1508
        %v1510 = vrot.slane %v1318, %v1509
        %v1511 = vlaneseq
        %v1512 = vshrl.u32 %v1511, 7
        %v1513 = vsub.s32 0, %v1512
        %v1514 = vrot.slane %v1319, %v1513
        %v1515 = vlaneseq
        %v1516 = vshrl.u32 %v1515, 7
        %v1517 = vsub.s32 1, %v1516
        %v1518 = vrot.slane %v1319, %v1517
        %v1519 = vlaneseq
        %v1520 = vshrl.u32 %v1519, 7
        %v1521 = vsub.s32 2, %v1520
        %v1522 = vrot.slane %v1319, %v1521
        %v1523 = vlaneseq
        %v1524 = vshrl.u32 %v1523, 7
        %v1525 = vsub.s32 3, %v1524
        %v1526 = vrot.slane %v1319, %v1525
        %v1527 = vlaneseq
        %v1528 = vshrl.u32 %v1527, 7
        %v1529 = vsub.s32 4, %v1528
        %v1530 = vrot.slane %v1319, %v1529
        %v1531 = vlaneseq
        %v1532 = vshrl.u32 %v1531, 7
        %v1533 = vsub.s32 5, %v1532
        %v1534 = vrot.slane %v1319, %v1533
        %v1535 = vlaneseq
        %v1536 = vshrl.u32 %v1535, 7
        %v1537 = vsub.s32 6, %v1536
        %v1538 = vrot.slane %v1319, %v1537
        %v1539 = vlaneseq
        %v1540 = vshrl.u32 %v1539, 7
        %v1541 = vsub.s32 7, %v1540
        %v1542 = vrot.slane %v1319, %v1541
        %v1543 = vlaneseq
        %v1544 = vshrl.u32 %v1543, 7
        %v1545 = vsub.s32 0, %v1544
        %v1546 = vrot.slane %v1320, %v1545
        %v1547 = vlaneseq
        %v1548 = vshrl.u32 %v1547, 7
        %v1549 = vsub.s32 1, %v1548
        %v1550 = vrot.slane %v1320, %v1549
        %v1551 = vlaneseq
        %v1552 = vshrl.u32 %v1551, 7
        %v1553 = vsub.s32 2, %v1552
        %v1554 = vrot.slane %v1320, %v1553
        %v1555 = vlaneseq
        %v1556 = vshrl.u32 %v1555, 7
        %v1557 = vsub.s32 3, %v1556
        %v1558 = vrot.slane %v1320, %v1557
        %v1559 = vlaneseq
        %v1560 = vshrl.u32 %v1559, 7
        %v1561 = vsub.s32 4, %v1560
        %v1562 = vrot.slane %v1320, %v1561
        %v1563 = vlaneseq
        %v1564 = vshrl.u32 %v1563, 7
        %v1565 = vsub.s32 5, %v1564
        %v1566 = vrot.slane %v1320, %v1565
        %v1567 = vlaneseq
        %v1568 = vshrl.u32 %v1567, 7
        %v1569 = vsub.s32 6, %v1568
        %v1570 = vrot.slane %v1320, %v1569
        %v1571 = vlaneseq
        %v1572 = vshrl.u32 %v1571, 7
        %v1573 = vsub.s32 7, %v1572
        %v1574 = vrot.slane %v1320, %v1573
        %v1575 = vlaneseq
        %v1576 = vshrl.u32 %v1575, 7
        %v1577 = vsub.s32 0, %v1576
        %v1578 = vrot.slane %v1321, %v1577
        %v1579 = vlaneseq
        %v1580 = vshrl.u32 %v1579, 7
        %v1581 = vsub.s32 1, %v1580
        %v1582 = vrot.slane %v1321, %v1581
        %v1583 = vlaneseq
        %v1584 = vshrl.u32 %v1583, 7
        %v1585 = vsub.s32 2, %v1584
        %v1586 = vrot.slane %v1321, %v1585
        %v1587 = vlaneseq
        %v1588 = vshrl.u32 %v1587, 7
        %v1589 = vsub.s32 3, %v1588
        %v1590 = vrot.slane %v1321, %v1589
        %v1591 = vlaneseq
        %v1592 = vshrl.u32 %v1591, 7
        %v1593 = vsub.s32 4, %v1592
        %v1594 = vrot.slane %v1321, %v1593
        %v1595 = vlaneseq
        %v1596 = vshrl.u32 %v1595, 7
        %v1597 = vsub.s32 5, %v1596
        %v1598 = vrot.slane %v1321, %v1597
        %v1599 = vlaneseq
        %v1600 = vshrl.u32 %v1599, 7
        %v1601 = vsub.s32 6, %v1600
        %v1602 = vrot.slane %v1321, %v1601
        %v1603 = vlaneseq
        %v1604 = vshrl.u32 %v1603, 7
        %v1605 = vsub.s32 7, %v1604
        %v1606 = vrot.slane %v1321, %v1605
        %v1607 = vlaneseq
        %v1608 = vshrl.u32 %v1607, 7
        %v1609 = vsub.s32 0, %v1608
        %v1610 = vrot.slane %v1322, %v1609
        %v1611 = vlaneseq
        %v1612 = vshrl.u32 %v1611, 7
        %v1613 = vsub.s32 1, %v1612
        %v1614 = vrot.slane %v1322, %v1613
        %v1615 = vlaneseq
        %v1616 = vshrl.u32 %v1615, 7
        %v1617 = vsub.s32 2, %v1616
        %v1618 = vrot.slane %v1322, %v1617
        %v1619 = vlaneseq
        %v1620 = vshrl.u32 %v1619, 7
        %v1621 = vsub.s32 3, %v1620
        %v1622 = vrot.slane %v1322, %v1621
        %v1623 = vlaneseq
        %v1624 = vshrl.u32 %v1623, 7
        %v1625 = vsub.s32 4, %v1624
        %v1626 = vrot.slane %v1322, %v1625
        %v1627 = vlaneseq
        %v1628 = vshrl.u32 %v1627, 7
        %v1629 = vsub.s32 5, %v1628
        %v1630 = vrot.slane %v1322, %v1629
        %v1631 = vlaneseq
        %v1632 = vshrl.u32 %v1631, 7
        %v1633 = vsub.s32 6, %v1632
        %v1634 = vrot.slane %v1322, %v1633
        %v1635 = vlaneseq
        %v1636 = vshrl.u32 %v1635, 7
        %v1637 = vsub.s32 7, %v1636
        %v1638 = vrot.slane %v1322, %v1637
        %v1639 = vlaneseq
        %v1640 = vshrl.u32 %v1639, 7
        %v1641 = vsub.s32 0, %v1640
        %v1642 = vrot.slane %v1323, %v1641
        %v1643 = vlaneseq
        %v1644 = vshrl.u32 %v1643, 7
        %v1645 = vsub.s32 1, %v1644
        %v1646 = vrot.slane %v1323, %v1645
        %v1647 = vlaneseq
        %v1648 = vshrl.u32 %v1647, 7
        %v1649 = vsub.s32 2, %v1648
        %v1650 = vrot.slane %v1323, %v1649
        %v1651 = vlaneseq
        %v1652 = vshrl.u32 %v1651, 7
        %v1653 = vsub.s32 3, %v1652
        %v1654 = vrot.slane %v1323, %v1653
        %v1655 = vlaneseq
        %v1656 = vshrl.u32 %v1655, 7
        %v1657 = vsub.s32 4, %v1656
        %v1658 = vrot.slane %v1323, %v1657
        %v1659 = vlaneseq
        %v1660 = vshrl.u32 %v1659, 7
        %v1661 = vsub.s32 5, %v1660
        %v1662 = vrot.slane %v1323, %v1661
        %v1663 = vlaneseq
        %v1664 = vshrl.u32 %v1663, 7
        %v1665 = vsub.s32 6, %v1664
        %v1666 = vrot.slane %v1323, %v1665
        %v1667 = vlaneseq
        %v1668 = vshrl.u32 %v1667, 7
        %v1669 = vsub.s32 7, %v1668
        %v1670 = vrot.slane %v1323, %v1669
        %v1671 = vlaneseq
        %v1672 = vshrl.u32 %v1671, 7
        %v1673 = vsub.s32 0, %v1672
        %v1674 = vrot.slane %v1324, %v1673
        %v1675 = vlaneseq
        %v1676 = vshrl.u32 %v1675, 7
        %v1677 = vsub.s32 1, %v1676
        %v1678 = vrot.slane %v1324, %v1677
        %v1679 = vlaneseq
        %v1680 = vshrl.u32 %v1679, 7
        %v1681 = vsub.s32 2, %v1680
        %v1682 = vrot.slane %v1324, %v1681
        %v1683 = vlaneseq
        %v1684 = vshrl.u32 %v1683, 7
        %v1685 = vsub.s32 3, %v1684
        %v1686 = vrot.slane %v1324, %v1685
        %v1687 = vlaneseq
        %v1688 = vshrl.u32 %v1687, 7
        %v1689 = vsub.s32 4, %v1688
        %v1690 = vrot.slane %v1324, %v1689
        %v1691 = vlaneseq
        %v1692 = vshrl.u32 %v1691, 7
        %v1693 = vsub.s32 5, %v1692
        %v1694 = vrot.slane %v1324, %v1693
        %v1695 = vlaneseq
        %v1696 = vshrl.u32 %v1695, 7
        %v1697 = vsub.s32 6, %v1696
        %v1698 = vrot.slane %v1324, %v1697
        %v1699 = vlaneseq
        %v1700 = vshrl.u32 %v1699, 7
        %v1701 = vsub.s32 7, %v1700
        %v1702 = vrot.slane %v1324, %v1701
        %v1703 = vlaneseq
        %v1704 = vshrl.u32 %v1703, 7
        %v1705 = vsub.s32 0, %v1704
        %v1706 = vrot.slane %v1325, %v1705
        %v1707 = vlaneseq
        %v1708 = vshrl.u32 %v1707, 7
        %v1709 = vsub.s32 1, %v1708
        %v1710 = vrot.slane %v1325, %v1709
        %v1711 = vlaneseq
        %v1712 = vshrl.u32 %v1711, 7
        %v1713 = vsub.s32 2, %v1712
        %v1714 = vrot.slane %v1325, %v1713
        %v1715 = vlaneseq
        %v1716 = vshrl.u32 %v1715, 7
        %v1717 = vsub.s32 3, %v1716
        %v1718 = vrot.slane %v1325, %v1717
        %v1719 = vlaneseq
        %v1720 = vshrl.u32 %v1719, 7
        %v1721 = vsub.s32 4, %v1720
        %v1722 = vrot.slane %v1325, %v1721
        %v1723 = vlaneseq
        %v1724 = vshrl.u32 %v1723, 7
        %v1725 = vsub.s32 5, %v1724
        %v1726 = vrot.slane %v1325, %v1725
        %v1727 = vlaneseq
        %v1728 = vshrl.u32 %v1727, 7
        %v1729 = vsub.s32 6, %v1728
        %v1730 = vrot.slane %v1325, %v1729
        %v1731 = vlaneseq
        %v1732 = vshrl.u32 %v1731, 7
        %v1733 = vsub.s32 7, %v1732
        %v1734 = vrot.slane %v1325, %v1733
        %v1735 = vlaneseq
        %v1736 = vshrl.u32 %v1735, 7
        %v1737 = vsub.s32 0, %v1736
        %v1738 = vrot.slane %v1326, %v1737
        %v1739 = vlaneseq
        %v1740 = vshrl.u32 %v1739, 7
        %v1741 = vsub.s32 1, %v1740
        %v1742 = vrot.slane %v1326, %v1741
        %v1743 = vlaneseq
        %v1744 = vshrl.u32 %v1743, 7
        %v1745 = vsub.s32 2, %v1744
        %v1746 = vrot.slane %v1326, %v1745
        %v1747 = vlaneseq
        %v1748 = vshrl.u32 %v1747, 7
        %v1749 = vsub.s32 3, %v1748
        %v1750 = vrot.slane %v1326, %v1749
        %v1751 = vlaneseq
        %v1752 = vshrl.u32 %v1751, 7
        %v1753 = vsub.s32 4, %v1752
        %v1754 = vrot.slane %v1326, %v1753
        %v1755 = vlaneseq
        %v1756 = vshrl.u32 %v1755, 7
        %v1757 = vsub.s32 5, %v1756
        %v1758 = vrot.slane %v1326, %v1757
        %v1759 = vlaneseq
        %v1760 = vshrl.u32 %v1759, 7
        %v1761 = vsub.s32 6, %v1760
        %v1762 = vrot.slane %v1326, %v1761
        %v1763 = vlaneseq
        %v1764 = vshrl.u32 %v1763, 7
        %v1765 = vsub.s32 7, %v1764
        %v1766 = vrot.slane %v1326, %v1765
        %v1767 = vlaneseq
        %v1768 = vshrl.u32 %v1767, 7
        %v1769 = vsub.s32 0, %v1768
        %v1770 = vrot.slane %v1327, %v1769
        %v1771 = vlaneseq
        %v1772 = vshrl.u32 %v1771, 7
        %v1773 = vsub.s32 1, %v1772
        %v1774 = vrot.slane %v1327, %v1773
        %v1775 = vlaneseq
        %v1776 = vshrl.u32 %v1775, 7
        %v1777 = vsub.s32 2, %v1776
        %v1778 = vrot.slane %v1327, %v1777
        %v1779 = vlaneseq
        %v1780 = vshrl.u32 %v1779, 7
        %v1781 = vsub.s32 3, %v1780
        %v1782 = vrot.slane %v1327, %v1781
        %v1783 = vlaneseq
        %v1784 = vshrl.u32 %v1783, 7
        %v1785 = vsub.s32 4, %v1784
        %v1786 = vrot.slane %v1327, %v1785
        %v1787 = vlaneseq
        %v1788 = vshrl.u32 %v1787, 7
        %v1789 = vsub.s32 5, %v1788
        %v1790 = vrot.slane %v1327, %v1789
        %v1791 = vlaneseq
        %v1792 = vshrl.u32 %v1791, 7
        %v1793 = vsub.s32 6, %v1792
        %v1794 = vrot.slane %v1327, %v1793
        %v1795 = vlaneseq
        %v1796 = vshrl.u32 %v1795, 7
        %v1797 = vsub.s32 7, %v1796
        %v1798 = vrot.slane %v1327, %v1797
        %v1799 = vlaneseq
        %v1800 = vshrl.u32 %v1799, 7
        %v1801 = vsub.s32 0, %v1800
        %v1802 = vrot.slane %v1328, %v1801
        %v1803 = vlaneseq
        %v1804 = vshrl.u32 %v1803, 7
        %v1805 = vsub.s32 1, %v1804
        %v1806 = vrot.slane %v1328, %v1805
        %v1807 = vlaneseq
        %v1808 = vshrl.u32 %v1807, 7
        %v1809 = vsub.s32 2, %v1808
        %v1810 = vrot.slane %v1328, %v1809
        %v1811 = vlaneseq
        %v1812 = vshrl.u32 %v1811, 7
        %v1813 = vsub.s32 3, %v1812
        %v1814 = vrot.slane %v1328, %v1813
        %v1815 = vlaneseq
        %v1816 = vshrl.u32 %v1815, 7
        %v1817 = vsub.s32 4, %v1816
        %v1818 = vrot.slane %v1328, %v1817
        %v1819 = vlaneseq
        %v1820 = vshrl.u32 %v1819, 7
        %v1821 = vsub.s32 5, %v1820
        %v1822 = vrot.slane %v1328, %v1821
        %v1823 = vlaneseq
        %v1824 = vshrl.u32 %v1823, 7
        %v1825 = vsub.s32 6, %v1824
        %v1826 = vrot.slane %v1328, %v1825
        %v1827 = vlaneseq
        %v1828 = vshrl.u32 %v1827, 7
        %v1829 = vsub.s32 7, %v1828
        %v1830 = vrot.slane %v1328, %v1829
        %v1831 = vlaneseq
        %v1832 = vshrl.u32 %v1831, 7
        %v1833 = vsub.s32 0, %v1832
        %v1834 = vrot.slane %v1329, %v1833
        %v1835 = vlaneseq
        %v1836 = vshrl.u32 %v1835, 7
        %v1837 = vsub.s32 1, %v1836
        %v1838 = vrot.slane %v1329, %v1837
        %v1839 = vlaneseq
        %v1840 = vshrl.u32 %v1839, 7
        %v1841 = vsub.s32 2, %v1840
        %v1842 = vrot.slane %v1329, %v1841
        %v1843 = vlaneseq
        %v1844 = vshrl.u32 %v1843, 7
        %v1845 = vsub.s32 3, %v1844
        %v1846 = vrot.slane %v1329, %v1845
        %v1847 = vlaneseq
        %v1848 = vshrl.u32 %v1847, 7
        %v1849 = vsub.s32 4, %v1848
        %v1850 = vrot.slane %v1329, %v1849
        %v1851 = vlaneseq
        %v1852 = vshrl.u32 %v1851, 7
        %v1853 = vsub.s32 5, %v1852
        %v1854 = vrot.slane %v1329, %v1853
        %v1855 = vlaneseq
        %v1856 = vshrl.u32 %v1855, 7
        %v1857 = vsub.s32 6, %v1856
        %v1858 = vrot.slane %v1329, %v1857
        %v1859 = vlaneseq
        %v1860 = vshrl.u32 %v1859, 7
        %v1861 = vsub.s32 7, %v1860
        %v1862 = vrot.slane %v1329, %v1861
        %vm1991 = vcmp.gt.f32.partialorder %v1314, %v1354
        %vm1992 = vcmp.gt.f32.partialorder %v1315, %v1354
        %vm1993 = vcmp.gt.f32.partialorder %v1314, %v1358
        %vm1994 = vcmp.gt.f32.partialorder %v1315, %v1358
        %vm1995 = vcmp.gt.f32.partialorder %v1314, %v1362
        %vm1996 = vcmp.gt.f32.partialorder %v1315, %v1362
        %vm1997 = vcmp.gt.f32.partialorder %v1314, %v1366
        %vm1998 = vcmp.gt.f32.partialorder %v1315, %v1366
        %vm1999 = vcmp.gt.f32.partialorder %v1314, %v1370
        %vm2000 = vcmp.gt.f32.partialorder %v1315, %v1370
        %vm2001 = vcmp.gt.f32.partialorder %v1314, %v1374
        %vm2002 = vcmp.gt.f32.partialorder %v1315, %v1374
        %vm2003 = vcmp.gt.f32.partialorder %v1314, %v1378
        %vm2004 = vcmp.gt.f32.partialorder %v1315, %v1378
        %vm2005 = vcmp.gt.f32.partialorder %v1314, %v1382
        %vm2006 = vcmp.gt.f32.partialorder %v1315, %v1382
        %vm2007 = vcmp.gt.f32.partialorder %v1314, %v1386
        %vm2008 = vcmp.gt.f32.partialorder %v1315, %v1386
        %vm2009 = vcmp.gt.f32.partialorder %v1314, %v1390
        %vm2010 = vcmp.gt.f32.partialorder %v1315, %v1390
        %vm2011 = vcmp.gt.f32.partialorder %v1314, %v1394
        %vm2012 = vcmp.gt.f32.partialorder %v1315, %v1394
        %vm2013 = vcmp.gt.f32.partialorder %v1314, %v1398
        %vm2014 = vcmp.gt.f32.partialorder %v1315, %v1398
        %vm2015 = vcmp.gt.f32.partialorder %v1314, %v1402
        %vm2016 = vcmp.gt.f32.partialorder %v1315, %v1402
        %vm2017 = vcmp.gt.f32.partialorder %v1314, %v1406
        %vm2018 = vcmp.gt.f32.partialorder %v1315, %v1406
        %vm2019 = vcmp.gt.f32.partialorder %v1314, %v1410
        %vm2020 = vcmp.gt.f32.partialorder %v1315, %v1410
        %vm2021 = vcmp.gt.f32.partialorder %v1314, %v1414
        %vm2022 = vcmp.gt.f32.partialorder %v1315, %v1414
        %vm2023 = vcmp.gt.f32.partialorder %v1316, %v1418
        %vm2024 = vcmp.gt.f32.partialorder %v1317, %v1418
        %vm2025 = vcmp.gt.f32.partialorder %v1316, %v1422
        %vm2026 = vcmp.gt.f32.partialorder %v1317, %v1422
        %vm2027 = vcmp.gt.f32.partialorder %v1316, %v1426
        %vm2028 = vcmp.gt.f32.partialorder %v1317, %v1426
        %vm2029 = vcmp.gt.f32.partialorder %v1316, %v1430
        %vm2030 = vcmp.gt.f32.partialorder %v1317, %v1430
        %vm2031 = vcmp.gt.f32.partialorder %v1316, %v1434
        %vm2032 = vcmp.gt.f32.partialorder %v1317, %v1434
        %vm2033 = vcmp.gt.f32.partialorder %v1316, %v1438
        %vm2034 = vcmp.gt.f32.partialorder %v1317, %v1438
        %vm2035 = vcmp.gt.f32.partialorder %v1316, %v1442
        %vm2036 = vcmp.gt.f32.partialorder %v1317, %v1442
        %vm2037 = vcmp.gt.f32.partialorder %v1316, %v1446
        %vm2038 = vcmp.gt.f32.partialorder %v1317, %v1446
        %vm2039 = vcmp.gt.f32.partialorder %v1316, %v1450
        %vm2040 = vcmp.gt.f32.partialorder %v1317, %v1450
        %vm2041 = vcmp.gt.f32.partialorder %v1316, %v1454
        %vm2042 = vcmp.gt.f32.partialorder %v1317, %v1454
        %vm2043 = vcmp.gt.f32.partialorder %v1316, %v1458
        %vm2044 = vcmp.gt.f32.partialorder %v1317, %v1458
        %vm2045 = vcmp.gt.f32.partialorder %v1316, %v1462
        %vm2046 = vcmp.gt.f32.partialorder %v1317, %v1462
        %vm2047 = vcmp.gt.f32.partialorder %v1316, %v1466
        %vm2048 = vcmp.gt.f32.partialorder %v1317, %v1466
        %vm2049 = vcmp.gt.f32.partialorder %v1316, %v1470
        %vm2050 = vcmp.gt.f32.partialorder %v1317, %v1470
        %vm2051 = vcmp.gt.f32.partialorder %v1316, %v1474
        %vm2052 = vcmp.gt.f32.partialorder %v1317, %v1474
        %vm2053 = vcmp.gt.f32.partialorder %v1316, %v1478
        %vm2054 = vcmp.gt.f32.partialorder %v1317, %v1478
        %vm2055 = vcmp.gt.f32.partialorder %v1318, %v1482
        %vm2056 = vcmp.gt.f32.partialorder %v1319, %v1482
        %vm2057 = vcmp.gt.f32.partialorder %v1318, %v1486
        %vm2058 = vcmp.gt.f32.partialorder %v1319, %v1486
        %vm2059 = vcmp.gt.f32.partialorder %v1318, %v1490
        %vm2060 = vcmp.gt.f32.partialorder %v1319, %v1490
        %vm2061 = vcmp.gt.f32.partialorder %v1318, %v1494
        %vm2062 = vcmp.gt.f32.partialorder %v1319, %v1494
        %vm2063 = vcmp.gt.f32.partialorder %v1318, %v1498
        %vm2064 = vcmp.gt.f32.partialorder %v1319, %v1498
        %vm2065 = vcmp.gt.f32.partialorder %v1318, %v1502
        %vm2066 = vcmp.gt.f32.partialorder %v1319, %v1502
        %vm2067 = vcmp.gt.f32.partialorder %v1318, %v1506
        %vm2068 = vcmp.gt.f32.partialorder %v1319, %v1506
        %vm2069 = vcmp.gt.f32.partialorder %v1318, %v1510
        %vm2070 = vcmp.gt.f32.partialorder %v1319, %v1510
        %vm2071 = vcmp.gt.f32.partialorder %v1318, %v1514
        %vm2072 = vcmp.gt.f32.partialorder %v1319, %v1514
        %vm2073 = vcmp.gt.f32.partialorder %v1318, %v1518
        %vm2074 = vcmp.gt.f32.partialorder %v1319, %v1518
        %vm2075 = vcmp.gt.f32.partialorder %v1318, %v1522
        %vm2076 = vcmp.gt.f32.partialorder %v1319, %v1522
        %vm2077 = vcmp.gt.f32.partialorder %v1318, %v1526
        %vm2078 = vcmp.gt.f32.partialorder %v1319, %v1526
        %vm2079 = vcmp.gt.f32.partialorder %v1318, %v1530
        %vm2080 = vcmp.gt.f32.partialorder %v1319, %v1530
        %vm2081 = vcmp.gt.f32.partialorder %v1318, %v1534
        %vm2082 = vcmp.gt.f32.partialorder %v1319, %v1534
        %vm2083 = vcmp.gt.f32.partialorder %v1318, %v1538
        %vm2084 = vcmp.gt.f32.partialorder %v1319, %v1538
        %vm2085 = vcmp.gt.f32.partialorder %v1318, %v1542
        %vm2086 = vcmp.gt.f32.partialorder %v1319, %v1542
        %vm2087 = vcmp.gt.f32.partialorder %v1320, %v1546
        %vm2088 = vcmp.gt.f32.partialorder %v1321, %v1546
        %vm2089 = vcmp.gt.f32.partialorder %v1320, %v1550
        %vm2090 = vcmp.gt.f32.partialorder %v1321, %v1550
        %vm2091 = vcmp.gt.f32.partialorder %v1320, %v1554
        %vm2092 = vcmp.gt.f32.partialorder %v1321, %v1554
        %vm2093 = vcmp.gt.f32.partialorder %v1320, %v1558
        %vm2094 = vcmp.gt.f32.partialorder %v1321, %v1558
        %vm2095 = vcmp.gt.f32.partialorder %v1320, %v1562
        %vm2096 = vcmp.gt.f32.partialorder %v1321, %v1562
        %vm2097 = vcmp.gt.f32.partialorder %v1320, %v1566
        %vm2098 = vcmp.gt.f32.partialorder %v1321, %v1566
        %vm2099 = vcmp.gt.f32.partialorder %v1320, %v1570
        %vm2100 = vcmp.gt.f32.partialorder %v1321, %v1570
        %vm2101 = vcmp.gt.f32.partialorder %v1320, %v1574
        %vm2102 = vcmp.gt.f32.partialorder %v1321, %v1574
        %vm2103 = vcmp.gt.f32.partialorder %v1320, %v1578
        %vm2104 = vcmp.gt.f32.partialorder %v1321, %v1578
        %vm2105 = vcmp.gt.f32.partialorder %v1320, %v1582
        %vm2106 = vcmp.gt.f32.partialorder %v1321, %v1582
        %vm2107 = vcmp.gt.f32.partialorder %v1320, %v1586
        %vm2108 = vcmp.gt.f32.partialorder %v1321, %v1586
        %vm2109 = vcmp.gt.f32.partialorder %v1320, %v1590
        %vm2110 = vcmp.gt.f32.partialorder %v1321, %v1590
        %vm2111 = vcmp.gt.f32.partialorder %v1320, %v1594
        %vm2112 = vcmp.gt.f32.partialorder %v1321, %v1594
        %vm2113 = vcmp.gt.f32.partialorder %v1320, %v1598
        %vm2114 = vcmp.gt.f32.partialorder %v1321, %v1598
        %vm2115 = vcmp.gt.f32.partialorder %v1320, %v1602
        %vm2116 = vcmp.gt.f32.partialorder %v1321, %v1602
        %vm2117 = vcmp.gt.f32.partialorder %v1320, %v1606
        %vm2118 = vcmp.gt.f32.partialorder %v1321, %v1606
        %vm2119 = vcmp.gt.f32.partialorder %v1322, %v1610
        %vm2120 = vcmp.gt.f32.partialorder %v1323, %v1610
        %vm2121 = vcmp.gt.f32.partialorder %v1322, %v1614
        %vm2122 = vcmp.gt.f32.partialorder %v1323, %v1614
        %vm2123 = vcmp.gt.f32.partialorder %v1322, %v1618
        %vm2124 = vcmp.gt.f32.partialorder %v1323, %v1618
        %vm2125 = vcmp.gt.f32.partialorder %v1322, %v1622
        %vm2126 = vcmp.gt.f32.partialorder %v1323, %v1622
        %vm2127 = vcmp.gt.f32.partialorder %v1322, %v1626
        %vm2128 = vcmp.gt.f32.partialorder %v1323, %v1626
        %vm2129 = vcmp.gt.f32.partialorder %v1322, %v1630
        %vm2130 = vcmp.gt.f32.partialorder %v1323, %v1630
        %vm2131 = vcmp.gt.f32.partialorder %v1322, %v1634
        %vm2132 = vcmp.gt.f32.partialorder %v1323, %v1634
        %vm2133 = vcmp.gt.f32.partialorder %v1322, %v1638
        %vm2134 = vcmp.gt.f32.partialorder %v1323, %v1638
        %vm2135 = vcmp.gt.f32.partialorder %v1322, %v1642
        %vm2136 = vcmp.gt.f32.partialorder %v1323, %v1642
        %vm2137 = vcmp.gt.f32.partialorder %v1322, %v1646
        %vm2138 = vcmp.gt.f32.partialorder %v1323, %v1646
        %vm2139 = vcmp.gt.f32.partialorder %v1322, %v1650
        %vm2140 = vcmp.gt.f32.partialorder %v1323, %v1650
        %vm2141 = vcmp.gt.f32.partialorder %v1322, %v1654
        %vm2142 = vcmp.gt.f32.partialorder %v1323, %v1654
        %vm2143 = vcmp.gt.f32.partialorder %v1322, %v1658
        %vm2144 = vcmp.gt.f32.partialorder %v1323, %v1658
        %vm2145 = vcmp.gt.f32.partialorder %v1322, %v1662
        %vm2146 = vcmp.gt.f32.partialorder %v1323, %v1662
        %vm2147 = vcmp.gt.f32.partialorder %v1322, %v1666
        %vm2148 = vcmp.gt.f32.partialorder %v1323, %v1666
        %vm2149 = vcmp.gt.f32.partialorder %v1322, %v1670
        %vm2150 = vcmp.gt.f32.partialorder %v1323, %v1670
        %vm2151 = vcmp.gt.f32.partialorder %v1324, %v1674
        %vm2152 = vcmp.gt.f32.partialorder %v1325, %v1674
        %vm2153 = vcmp.gt.f32.partialorder %v1324, %v1678
        %vm2154 = vcmp.gt.f32.partialorder %v1325, %v1678
        %vm2155 = vcmp.gt.f32.partialorder %v1324, %v1682
        %vm2156 = vcmp.gt.f32.partialorder %v1325, %v1682
        %vm2157 = vcmp.gt.f32.partialorder %v1324, %v1686
        %vm2158 = vcmp.gt.f32.partialorder %v1325, %v1686
        %vm2159 = vcmp.gt.f32.partialorder %v1324, %v1690
        %vm2160 = vcmp.gt.f32.partialorder %v1325, %v1690
        %vm2161 = vcmp.gt.f32.partialorder %v1324, %v1694
        %vm2162 = vcmp.gt.f32.partialorder %v1325, %v1694
        %vm2163 = vcmp.gt.f32.partialorder %v1324, %v1698
        %vm2164 = vcmp.gt.f32.partialorder %v1325, %v1698
        %vm2165 = vcmp.gt.f32.partialorder %v1324, %v1702
        %vm2166 = vcmp.gt.f32.partialorder %v1325, %v1702
        %vm2167 = vcmp.gt.f32.partialorder %v1324, %v1706
        %vm2168 = vcmp.gt.f32.partialorder %v1325, %v1706
        %vm2169 = vcmp.gt.f32.partialorder %v1324, %v1710
        %vm2170 = vcmp.gt.f32.partialorder %v1325, %v1710
        %vm2171 = vcmp.gt.f32.partialorder %v1324, %v1714
        %vm2172 = vcmp.gt.f32.partialorder %v1325, %v1714
        %vm2173 = vcmp.gt.f32.partialorder %v1324, %v1718
        %vm2174 = vcmp.gt.f32.partialorder %v1325, %v1718
        %vm2175 = vcmp.gt.f32.partialorder %v1324, %v1722
        %vm2176 = vcmp.gt.f32.partialorder %v1325, %v1722
        %vm2177 = vcmp.gt.f32.partialorder %v1324, %v1726
        %vm2178 = vcmp.gt.f32.partialorder %v1325, %v1726
        %vm2179 = vcmp.gt.f32.partialorder %v1324, %v1730
        %vm2180 = vcmp.gt.f32.partialorder %v1325, %v1730
        %vm2181 = vcmp.gt.f32.partialorder %v1324, %v1734
        %vm2182 = vcmp.gt.f32.partialorder %v1325, %v1734
        %vm2183 = vcmp.gt.f32.partialorder %v1326, %v1738
        %vm2184 = vcmp.gt.f32.partialorder %v1327, %v1738
        %vm2185 = vcmp.gt.f32.partialorder %v1326, %v1742
        %vm2186 = vcmp.gt.f32.partialorder %v1327, %v1742
        %vm2187 = vcmp.gt.f32.partialorder %v1326, %v1746
        %vm2188 = vcmp.gt.f32.partialorder %v1327, %v1746
        %vm2189 = vcmp.gt.f32.partialorder %v1326, %v1750
        %vm2190 = vcmp.gt.f32.partialorder %v1327, %v1750
        %vm2191 = vcmp.gt.f32.partialorder %v1326, %v1754
        %vm2192 = vcmp.gt.f32.partialorder %v1327, %v1754
        %vm2193 = vcmp.gt.f32.partialorder %v1326, %v1758
        %vm2194 = vcmp.gt.f32.partialorder %v1327, %v1758
        %vm2195 = vcmp.gt.f32.partialorder %v1326, %v1762
        %vm2196 = vcmp.gt.f32.partialorder %v1327, %v1762
        %vm2197 = vcmp.gt.f32.partialorder %v1326, %v1766
        %vm2198 = vcmp.gt.f32.partialorder %v1327, %v1766
        %vm2199 = vcmp.gt.f32.partialorder %v1326, %v1770
        %vm2200 = vcmp.gt.f32.partialorder %v1327, %v1770
        %vm2201 = vcmp.gt.f32.partialorder %v1326, %v1774
        %vm2202 = vcmp.gt.f32.partialorder %v1327, %v1774
        %vm2203 = vcmp.gt.f32.partialorder %v1326, %v1778
        %vm2204 = vcmp.gt.f32.partialorder %v1327, %v1778
        %vm2205 = vcmp.gt.f32.partialorder %v1326, %v1782
        %vm2206 = vcmp.gt.f32.partialorder %v1327, %v1782
        %vm2207 = vcmp.gt.f32.partialorder %v1326, %v1786
        %vm2208 = vcmp.gt.f32.partialorder %v1327, %v1786
        %vm2209 = vcmp.gt.f32.partialorder %v1326, %v1790
        %vm2210 = vcmp.gt.f32.partialorder %v1327, %v1790
        %vm2211 = vcmp.gt.f32.partialorder %v1326, %v1794
        %vm2212 = vcmp.gt.f32.partialorder %v1327, %v1794
        %vm2213 = vcmp.gt.f32.partialorder %v1326, %v1798
        %vm2214 = vcmp.gt.f32.partialorder %v1327, %v1798
        %vm2215 = vcmp.gt.f32.partialorder %v1328, %v1802
        %vm2216 = vcmp.gt.f32.partialorder %v1329, %v1802
        %vm2217 = vcmp.gt.f32.partialorder %v1328, %v1806
        %vm2218 = vcmp.gt.f32.partialorder %v1329, %v1806
        %vm2219 = vcmp.gt.f32.partialorder %v1328, %v1810
        %vm2220 = vcmp.gt.f32.partialorder %v1329, %v1810
        %vm2221 = vcmp.gt.f32.partialorder %v1328, %v1814
        %vm2222 = vcmp.gt.f32.partialorder %v1329, %v1814
        %vm2223 = vcmp.gt.f32.partialorder %v1328, %v1818
        %vm2224 = vcmp.gt.f32.partialorder %v1329, %v1818
        %vm2225 = vcmp.gt.f32.partialorder %v1328, %v1822
        %vm2226 = vcmp.gt.f32.partialorder %v1329, %v1822
        %vm2227 = vcmp.gt.f32.partialorder %v1328, %v1826
        %vm2228 = vcmp.gt.f32.partialorder %v1329, %v1826
        %vm2229 = vcmp.gt.f32.partialorder %v1328, %v1830
        %vm2230 = vcmp.gt.f32.partialorder %v1329, %v1830
        %vm2231 = vcmp.gt.f32.partialorder %v1328, %v1834
        %vm2232 = vcmp.gt.f32.partialorder %v1329, %v1834
        %vm2233 = vcmp.gt.f32.partialorder %v1328, %v1838
        %vm2234 = vcmp.gt.f32.partialorder %v1329, %v1838
        %vm2235 = vcmp.gt.f32.partialorder %v1328, %v1842
        %vm2236 = vcmp.gt.f32.partialorder %v1329, %v1842
        %vm2237 = vcmp.gt.f32.partialorder %v1328, %v1846
        %vm2238 = vcmp.gt.f32.partialorder %v1329, %v1846
        %vm2239 = vcmp.gt.f32.partialorder %v1328, %v1850
        %vm2240 = vcmp.gt.f32.partialorder %v1329, %v1850
        %vm2241 = vcmp.gt.f32.partialorder %v1328, %v1854
        %vm2242 = vcmp.gt.f32.partialorder %v1329, %v1854
        %vm2243 = vcmp.gt.f32.partialorder %v1328, %v1858
        %vm2244 = vcmp.gt.f32.partialorder %v1329, %v1858
        %vm2245 = vcmp.gt.f32.partialorder %v1328, %v1862
        %vm2246 = vcmp.gt.f32.partialorder %v1329, %v1862
        %vm2247 = vcmp.eq.f32.partialorder %v1314, %v1354
        %vm2248 = vcmp.eq.f32.partialorder %v1315, %v1354
        %vm2249 = vcmp.eq.f32.partialorder %v1314, %v1358
        %vm2250 = vcmp.eq.f32.partialorder %v1315, %v1358
        %vm2251 = vcmp.eq.f32.partialorder %v1314, %v1362
        %vm2252 = vcmp.eq.f32.partialorder %v1315, %v1362
        %vm2253 = vcmp.eq.f32.partialorder %v1314, %v1366
        %vm2254 = vcmp.eq.f32.partialorder %v1315, %v1366
        %vm2255 = vcmp.eq.f32.partialorder %v1314, %v1370
        %vm2256 = vcmp.eq.f32.partialorder %v1315, %v1370
        %vm2257 = vcmp.eq.f32.partialorder %v1314, %v1374
        %vm2258 = vcmp.eq.f32.partialorder %v1315, %v1374
        %vm2259 = vcmp.eq.f32.partialorder %v1314, %v1378
        %vm2260 = vcmp.eq.f32.partialorder %v1315, %v1378
        %vm2261 = vcmp.eq.f32.partialorder %v1314, %v1382
        %vm2262 = vcmp.eq.f32.partialorder %v1315, %v1382
        %vm2263 = vcmp.eq.f32.partialorder %v1314, %v1386
        %vm2264 = vcmp.eq.f32.partialorder %v1315, %v1386
        %vm2265 = vcmp.eq.f32.partialorder %v1314, %v1390
        %vm2266 = vcmp.eq.f32.partialorder %v1315, %v1390
        %vm2267 = vcmp.eq.f32.partialorder %v1314, %v1394
        %vm2268 = vcmp.eq.f32.partialorder %v1315, %v1394
        %vm2269 = vcmp.eq.f32.partialorder %v1314, %v1398
        %vm2270 = vcmp.eq.f32.partialorder %v1315, %v1398
        %vm2271 = vcmp.eq.f32.partialorder %v1314, %v1402
        %vm2272 = vcmp.eq.f32.partialorder %v1315, %v1402
        %vm2273 = vcmp.eq.f32.partialorder %v1314, %v1406
        %vm2274 = vcmp.eq.f32.partialorder %v1315, %v1406
        %vm2275 = vcmp.eq.f32.partialorder %v1314, %v1410
        %vm2276 = vcmp.eq.f32.partialorder %v1315, %v1410
        %vm2277 = vcmp.eq.f32.partialorder %v1314, %v1414
        %vm2278 = vcmp.eq.f32.partialorder %v1315, %v1414
        %vm2279 = vcmp.eq.f32.partialorder %v1316, %v1418
        %vm2280 = vcmp.eq.f32.partialorder %v1317, %v1418
        %vm2281 = vcmp.eq.f32.partialorder %v1316, %v1422
        %vm2282 = vcmp.eq.f32.partialorder %v1317, %v1422
        %vm2283 = vcmp.eq.f32.partialorder %v1316, %v1426
        %vm2284 = vcmp.eq.f32.partialorder %v1317, %v1426
        %vm2285 = vcmp.eq.f32.partialorder %v1316, %v1430
        %vm2286 = vcmp.eq.f32.partialorder %v1317, %v1430
        %vm2287 = vcmp.eq.f32.partialorder %v1316, %v1434
        %vm2288 = vcmp.eq.f32.partialorder %v1317, %v1434
        %vm2289 = vcmp.eq.f32.partialorder %v1316, %v1438
        %vm2290 = vcmp.eq.f32.partialorder %v1317, %v1438
        %vm2291 = vcmp.eq.f32.partialorder %v1316, %v1442
        %vm2292 = vcmp.eq.f32.partialorder %v1317, %v1442
        %vm2293 = vcmp.eq.f32.partialorder %v1316, %v1446
        %vm2294 = vcmp.eq.f32.partialorder %v1317, %v1446
        %vm2295 = vcmp.eq.f32.partialorder %v1316, %v1450
        %vm2296 = vcmp.eq.f32.partialorder %v1317, %v1450
        %vm2297 = vcmp.eq.f32.partialorder %v1316, %v1454
        %vm2298 = vcmp.eq.f32.partialorder %v1317, %v1454
        %vm2299 = vcmp.eq.f32.partialorder %v1316, %v1458
        %vm2300 = vcmp.eq.f32.partialorder %v1317, %v1458
        %vm2301 = vcmp.eq.f32.partialorder %v1316, %v1462
        %vm2302 = vcmp.eq.f32.partialorder %v1317, %v1462
        %vm2303 = vcmp.eq.f32.partialorder %v1316, %v1466
        %vm2304 = vcmp.eq.f32.partialorder %v1317, %v1466
        %vm2305 = vcmp.eq.f32.partialorder %v1316, %v1470
        %vm2306 = vcmp.eq.f32.partialorder %v1317, %v1470
        %vm2307 = vcmp.eq.f32.partialorder %v1316, %v1474
        %vm2308 = vcmp.eq.f32.partialorder %v1317, %v1474
        %vm2309 = vcmp.eq.f32.partialorder %v1316, %v1478
        %vm2310 = vcmp.eq.f32.partialorder %v1317, %v1478
        %vm2311 = vcmp.eq.f32.partialorder %v1318, %v1482
        %vm2312 = vcmp.eq.f32.partialorder %v1319, %v1482
        %vm2313 = vcmp.eq.f32.partialorder %v1318, %v1486
        %vm2314 = vcmp.eq.f32.partialorder %v1319, %v1486
        %vm2315 = vcmp.eq.f32.partialorder %v1318, %v1490
        %vm2316 = vcmp.eq.f32.partialorder %v1319, %v1490
        %vm2317 = vcmp.eq.f32.partialorder %v1318, %v1494
        %vm2318 = vcmp.eq.f32.partialorder %v1319, %v1494
        %vm2319 = vcmp.eq.f32.partialorder %v1318, %v1498
        %vm2320 = vcmp.eq.f32.partialorder %v1319, %v1498
        %vm2321 = vcmp.eq.f32.partialorder %v1318, %v1502
        %vm2322 = vcmp.eq.f32.partialorder %v1319, %v1502
        %vm2323 = vcmp.eq.f32.partialorder %v1318, %v1506
        %vm2324 = vcmp.eq.f32.partialorder %v1319, %v1506
        %vm2325 = vcmp.eq.f32.partialorder %v1318, %v1510
        %vm2326 = vcmp.eq.f32.partialorder %v1319, %v1510
        %vm2327 = vcmp.eq.f32.partialorder %v1318, %v1514
        %vm2328 = vcmp.eq.f32.partialorder %v1319, %v1514
        %vm2329 = vcmp.eq.f32.partialorder %v1318, %v1518
        %vm2330 = vcmp.eq.f32.partialorder %v1319, %v1518
        %vm2331 = vcmp.eq.f32.partialorder %v1318, %v1522
        %vm2332 = vcmp.eq.f32.partialorder %v1319, %v1522
        %vm2333 = vcmp.eq.f32.partialorder %v1318, %v1526
        %vm2334 = vcmp.eq.f32.partialorder %v1319, %v1526
        %vm2335 = vcmp.eq.f32.partialorder %v1318, %v1530
        %vm2336 = vcmp.eq.f32.partialorder %v1319, %v1530
        %vm2337 = vcmp.eq.f32.partialorder %v1318, %v1534
        %vm2338 = vcmp.eq.f32.partialorder %v1319, %v1534
        %vm2339 = vcmp.eq.f32.partialorder %v1318, %v1538
        %vm2340 = vcmp.eq.f32.partialorder %v1319, %v1538
        %vm2341 = vcmp.eq.f32.partialorder %v1318, %v1542
        %vm2342 = vcmp.eq.f32.partialorder %v1319, %v1542
        %vm2343 = vcmp.eq.f32.partialorder %v1320, %v1546
        %vm2344 = vcmp.eq.f32.partialorder %v1321, %v1546
        %vm2345 = vcmp.eq.f32.partialorder %v1320, %v1550
        %vm2346 = vcmp.eq.f32.partialorder %v1321, %v1550
        %vm2347 = vcmp.eq.f32.partialorder %v1320, %v1554
        %vm2348 = vcmp.eq.f32.partialorder %v1321, %v1554
        %vm2349 = vcmp.eq.f32.partialorder %v1320, %v1558
        %vm2350 = vcmp.eq.f32.partialorder %v1321, %v1558
        %vm2351 = vcmp.eq.f32.partialorder %v1320, %v1562
        %vm2352 = vcmp.eq.f32.partialorder %v1321, %v1562
        %vm2353 = vcmp.eq.f32.partialorder %v1320, %v1566
        %vm2354 = vcmp.eq.f32.partialorder %v1321, %v1566
        %vm2355 = vcmp.eq.f32.partialorder %v1320, %v1570
        %vm2356 = vcmp.eq.f32.partialorder %v1321, %v1570
        %vm2357 = vcmp.eq.f32.partialorder %v1320, %v1574
        %vm2358 = vcmp.eq.f32.partialorder %v1321, %v1574
        %vm2359 = vcmp.eq.f32.partialorder %v1320, %v1578
        %vm2360 = vcmp.eq.f32.partialorder %v1321, %v1578
        %vm2361 = vcmp.eq.f32.partialorder %v1320, %v1582
        %vm2362 = vcmp.eq.f32.partialorder %v1321, %v1582
        %vm2363 = vcmp.eq.f32.partialorder %v1320, %v1586
        %vm2364 = vcmp.eq.f32.partialorder %v1321, %v1586
        %vm2365 = vcmp.eq.f32.partialorder %v1320, %v1590
        %vm2366 = vcmp.eq.f32.partialorder %v1321, %v1590
        %vm2367 = vcmp.eq.f32.partialorder %v1320, %v1594
        %vm2368 = vcmp.eq.f32.partialorder %v1321, %v1594
        %vm2369 = vcmp.eq.f32.partialorder %v1320, %v1598
        %vm2370 = vcmp.eq.f32.partialorder %v1321, %v1598
        %vm2371 = vcmp.eq.f32.partialorder %v1320, %v1602
        %vm2372 = vcmp.eq.f32.partialorder %v1321, %v1602
        %vm2373 = vcmp.eq.f32.partialorder %v1320, %v1606
        %vm2374 = vcmp.eq.f32.partialorder %v1321, %v1606
        %vm2375 = vcmp.eq.f32.partialorder %v1322, %v1610
        %vm2376 = vcmp.eq.f32.partialorder %v1323, %v1610
        %vm2377 = vcmp.eq.f32.partialorder %v1322, %v1614
        %vm2378 = vcmp.eq.f32.partialorder %v1323, %v1614
        %vm2379 = vcmp.eq.f32.partialorder %v1322, %v1618
        %vm2380 = vcmp.eq.f32.partialorder %v1323, %v1618
        %vm2381 = vcmp.eq.f32.partialorder %v1322, %v1622
        %vm2382 = vcmp.eq.f32.partialorder %v1323, %v1622
        %vm2383 = vcmp.eq.f32.partialorder %v1322, %v1626
        %vm2384 = vcmp.eq.f32.partialorder %v1323, %v1626
        %vm2385 = vcmp.eq.f32.partialorder %v1322, %v1630
        %vm2386 = vcmp.eq.f32.partialorder %v1323, %v1630
        %vm2387 = vcmp.eq.f32.partialorder %v1322, %v1634
        %vm2388 = vcmp.eq.f32.partialorder %v1323, %v1634
        %vm2389 = vcmp.eq.f32.partialorder %v1322, %v1638
        %vm2390 = vcmp.eq.f32.partialorder %v1323, %v1638
        %vm2391 = vcmp.eq.f32.partialorder %v1322, %v1642
        %vm2392 = vcmp.eq.f32.partialorder %v1323, %v1642
        %vm2393 = vcmp.eq.f32.partialorder %v1322, %v1646
        %vm2394 = vcmp.eq.f32.partialorder %v1323, %v1646
        %vm2395 = vcmp.eq.f32.partialorder %v1322, %v1650
        %vm2396 = vcmp.eq.f32.partialorder %v1323, %v1650
        %vm2397 = vcmp.eq.f32.partialorder %v1322, %v1654
        %vm2398 = vcmp.eq.f32.partialorder %v1323, %v1654
        %vm2399 = vcmp.eq.f32.partialorder %v1322, %v1658
        %vm2400 = vcmp.eq.f32.partialorder %v1323, %v1658
        %vm2401 = vcmp.eq.f32.partialorder %v1322, %v1662
        %vm2402 = vcmp.eq.f32.partialorder %v1323, %v1662
        %vm2403 = vcmp.eq.f32.partialorder %v1322, %v1666
        %vm2404 = vcmp.eq.f32.partialorder %v1323, %v1666
        %vm2405 = vcmp.eq.f32.partialorder %v1322, %v1670
        %vm2406 = vcmp.eq.f32.partialorder %v1323, %v1670
        %vm2407 = vcmp.eq.f32.partialorder %v1324, %v1674
        %vm2408 = vcmp.eq.f32.partialorder %v1325, %v1674
        %vm2409 = vcmp.eq.f32.partialorder %v1324, %v1678
        %vm2410 = vcmp.eq.f32.partialorder %v1325, %v1678
        %vm2411 = vcmp.eq.f32.partialorder %v1324, %v1682
        %vm2412 = vcmp.eq.f32.partialorder %v1325, %v1682
        %vm2413 = vcmp.eq.f32.partialorder %v1324, %v1686
        %vm2414 = vcmp.eq.f32.partialorder %v1325, %v1686
        %vm2415 = vcmp.eq.f32.partialorder %v1324, %v1690
        %vm2416 = vcmp.eq.f32.partialorder %v1325, %v1690
        %vm2417 = vcmp.eq.f32.partialorder %v1324, %v1694
        %vm2418 = vcmp.eq.f32.partialorder %v1325, %v1694
        %vm2419 = vcmp.eq.f32.partialorder %v1324, %v1698
        %vm2420 = vcmp.eq.f32.partialorder %v1325, %v1698
        %vm2421 = vcmp.eq.f32.partialorder %v1324, %v1702
        %vm2422 = vcmp.eq.f32.partialorder %v1325, %v1702
        %vm2423 = vcmp.eq.f32.partialorder %v1324, %v1706
        %vm2424 = vcmp.eq.f32.partialorder %v1325, %v1706
        %vm2425 = vcmp.eq.f32.partialorder %v1324, %v1710
        %vm2426 = vcmp.eq.f32.partialorder %v1325, %v1710
        %vm2427 = vcmp.eq.f32.partialorder %v1324, %v1714
        %vm2428 = vcmp.eq.f32.partialorder %v1325, %v1714
        %vm2429 = vcmp.eq.f32.partialorder %v1324, %v1718
        %vm2430 = vcmp.eq.f32.partialorder %v1325, %v1718
        %vm2431 = vcmp.eq.f32.partialorder %v1324, %v1722
        %vm2432 = vcmp.eq.f32.partialorder %v1325, %v1722
        %vm2433 = vcmp.eq.f32.partialorder %v1324, %v1726
        %vm2434 = vcmp.eq.f32.partialorder %v1325, %v1726
        %vm2435 = vcmp.eq.f32.partialorder %v1324, %v1730
        %vm2436 = vcmp.eq.f32.partialorder %v1325, %v1730
        %vm2437 = vcmp.eq.f32.partialorder %v1324, %v1734
        %vm2438 = vcmp.eq.f32.partialorder %v1325, %v1734
        %vm2439 = vcmp.eq.f32.partialorder %v1326, %v1738
        %vm2440 = vcmp.eq.f32.partialorder %v1327, %v1738
        %vm2441 = vcmp.eq.f32.partialorder %v1326, %v1742
        %vm2442 = vcmp.eq.f32.partialorder %v1327, %v1742
        %vm2443 = vcmp.eq.f32.partialorder %v1326, %v1746
        %vm2444 = vcmp.eq.f32.partialorder %v1327, %v1746
        %vm2445 = vcmp.eq.f32.partialorder %v1326, %v1750
        %vm2446 = vcmp.eq.f32.partialorder %v1327, %v1750
        %vm2447 = vcmp.eq.f32.partialorder %v1326, %v1754
        %vm2448 = vcmp.eq.f32.partialorder %v1327, %v1754
        %vm2449 = vcmp.eq.f32.partialorder %v1326, %v1758
        %vm2450 = vcmp.eq.f32.partialorder %v1327, %v1758
        %vm2451 = vcmp.eq.f32.partialorder %v1326, %v1762
        %vm2452 = vcmp.eq.f32.partialorder %v1327, %v1762
        %vm2453 = vcmp.eq.f32.partialorder %v1326, %v1766
        %vm2454 = vcmp.eq.f32.partialorder %v1327, %v1766
        %vm2455 = vcmp.eq.f32.partialorder %v1326, %v1770
        %vm2456 = vcmp.eq.f32.partialorder %v1327, %v1770
        %vm2457 = vcmp.eq.f32.partialorder %v1326, %v1774
        %vm2458 = vcmp.eq.f32.partialorder %v1327, %v1774
        %vm2459 = vcmp.eq.f32.partialorder %v1326, %v1778
        %vm2460 = vcmp.eq.f32.partialorder %v1327, %v1778
        %vm2461 = vcmp.eq.f32.partialorder %v1326, %v1782
        %vm2462 = vcmp.eq.f32.partialorder %v1327, %v1782
        %vm2463 = vcmp.eq.f32.partialorder %v1326, %v1786
        %vm2464 = vcmp.eq.f32.partialorder %v1327, %v1786
        %vm2465 = vcmp.eq.f32.partialorder %v1326, %v1790
        %vm2466 = vcmp.eq.f32.partialorder %v1327, %v1790
        %vm2467 = vcmp.eq.f32.partialorder %v1326, %v1794
        %vm2468 = vcmp.eq.f32.partialorder %v1327, %v1794
        %vm2469 = vcmp.eq.f32.partialorder %v1326, %v1798
        %vm2470 = vcmp.eq.f32.partialorder %v1327, %v1798
        %vm2471 = vcmp.eq.f32.partialorder %v1328, %v1802
        %vm2472 = vcmp.eq.f32.partialorder %v1329, %v1802
        %vm2473 = vcmp.eq.f32.partialorder %v1328, %v1806
        %vm2474 = vcmp.eq.f32.partialorder %v1329, %v1806
        %vm2475 = vcmp.eq.f32.partialorder %v1328, %v1810
        %vm2476 = vcmp.eq.f32.partialorder %v1329, %v1810
        %vm2477 = vcmp.eq.f32.partialorder %v1328, %v1814
        %vm2478 = vcmp.eq.f32.partialorder %v1329, %v1814
        %vm2479 = vcmp.eq.f32.partialorder %v1328, %v1818
        %vm2480 = vcmp.eq.f32.partialorder %v1329, %v1818
        %vm2481 = vcmp.eq.f32.partialorder %v1328, %v1822
        %vm2482 = vcmp.eq.f32.partialorder %v1329, %v1822
        %vm2483 = vcmp.eq.f32.partialorder %v1328, %v1826
        %vm2484 = vcmp.eq.f32.partialorder %v1329, %v1826
        %vm2485 = vcmp.eq.f32.partialorder %v1328, %v1830
        %vm2486 = vcmp.eq.f32.partialorder %v1329, %v1830
        %vm2487 = vcmp.eq.f32.partialorder %v1328, %v1834
        %vm2488 = vcmp.eq.f32.partialorder %v1329, %v1834
        %vm2489 = vcmp.eq.f32.partialorder %v1328, %v1838
        %vm2490 = vcmp.eq.f32.partialorder %v1329, %v1838
        %vm2491 = vcmp.eq.f32.partialorder %v1328, %v1842
        %vm2492 = vcmp.eq.f32.partialorder %v1329, %v1842
        %vm2493 = vcmp.eq.f32.partialorder %v1328, %v1846
        %vm2494 = vcmp.eq.f32.partialorder %v1329, %v1846
        %vm2495 = vcmp.eq.f32.partialorder %v1328, %v1850
        %vm2496 = vcmp.eq.f32.partialorder %v1329, %v1850
        %vm2497 = vcmp.eq.f32.partialorder %v1328, %v1854
        %vm2498 = vcmp.eq.f32.partialorder %v1329, %v1854
        %vm2499 = vcmp.eq.f32.partialorder %v1328, %v1858
        %vm2500 = vcmp.eq.f32.partialorder %v1329, %v1858
        %vm2501 = vcmp.eq.f32.partialorder %v1328, %v1862
        %vm2502 = vcmp.eq.f32.partialorder %v1329, %v1862
        %vm2503 = vcmp.lt.s32.totalorder %v1334, %v1331
        %vm2504 = vcmp.lt.s32.totalorder %v1334, %v1332
        %v2505 = vsel %vm2503, 1, 0
        %v2506 = vsel %vm2504, 1, 0
        %vm2507 = vcmp.eq.s32.totalorder %v2505, 1
        %vm2508 = vcmp.eq.s32.totalorder %v2506, 1
        %v2509 = vsel %vm2507, 1, 0
        %v2510 = vsel %vm2508, 1, 0
        %v2511 = vlaneseq
        %v2512 = vshrl.u32 %v2511, 7
        %v2513 = vsub.s32 0, %v2512
        %v2514 = vrot.slane %v2509, %v2513
        %2516 = vbcast.lane.b32.xlu0 %v2514, 256
        %v2517 = vpop.permute.xlu0 %2516
        %s2519 = sor.u32 256, 8
        %2520 = vbcast.lane.b32.xlu0 %v2514, %s2519
        %v2521 = vpop.permute.xlu0 %2520
        %v2522 = vlaneseq
        %v2523 = vshrl.u32 %v2522, 7
        %v2524 = vsub.s32 1, %v2523
        %v2525 = vrot.slane %v2509, %v2524
        %2527 = vbcast.lane.b32.xlu0 %v2525, 256
        %v2528 = vpop.permute.xlu0 %2527
        %s2530 = sor.u32 256, 8
        %2531 = vbcast.lane.b32.xlu0 %v2525, %s2530
        %v2532 = vpop.permute.xlu0 %2531
        %v2533 = vlaneseq
        %v2534 = vshrl.u32 %v2533, 7
        %v2535 = vsub.s32 2, %v2534
        %v2536 = vrot.slane %v2509, %v2535
        %2538 = vbcast.lane.b32.xlu0 %v2536, 256
        %v2539 = vpop.permute.xlu0 %2538
        %s2541 = sor.u32 256, 8
        %2542 = vbcast.lane.b32.xlu0 %v2536, %s2541
        %v2543 = vpop.permute.xlu0 %2542
        %v2544 = vlaneseq
        %v2545 = vshrl.u32 %v2544, 7
        %v2546 = vsub.s32 3, %v2545
        %v2547 = vrot.slane %v2509, %v2546
        %2549 = vbcast.lane.b32.xlu0 %v2547, 256
        %v2550 = vpop.permute.xlu0 %2549
        %s2552 = sor.u32 256, 8
        %2553 = vbcast.lane.b32.xlu0 %v2547, %s2552
        %v2554 = vpop.permute.xlu0 %2553
        %v2555 = vlaneseq
        %v2556 = vshrl.u32 %v2555, 7
        %v2557 = vsub.s32 4, %v2556
        %v2558 = vrot.slane %v2509, %v2557
        %2560 = vbcast.lane.b32.xlu0 %v2558, 256
        %v2561 = vpop.permute.xlu0 %2560
        %s2563 = sor.u32 256, 8
        %2564 = vbcast.lane.b32.xlu0 %v2558, %s2563
        %v2565 = vpop.permute.xlu0 %2564
        %v2566 = vlaneseq
        %v2567 = vshrl.u32 %v2566, 7
        %v2568 = vsub.s32 5, %v2567
        %v2569 = vrot.slane %v2509, %v2568
        %2571 = vbcast.lane.b32.xlu0 %v2569, 256
        %v2572 = vpop.permute.xlu0 %2571
        %s2574 = sor.u32 256, 8
        %2575 = vbcast.lane.b32.xlu0 %v2569, %s2574
        %v2576 = vpop.permute.xlu0 %2575
        %v2577 = vlaneseq
        %v2578 = vshrl.u32 %v2577, 7
        %v2579 = vsub.s32 6, %v2578
        %v2580 = vrot.slane %v2509, %v2579
        %2582 = vbcast.lane.b32.xlu0 %v2580, 256
        %v2583 = vpop.permute.xlu0 %2582
        %s2585 = sor.u32 256, 8
        %2586 = vbcast.lane.b32.xlu0 %v2580, %s2585
        %v2587 = vpop.permute.xlu0 %2586
        %v2588 = vlaneseq
        %v2589 = vshrl.u32 %v2588, 7
        %v2590 = vsub.s32 7, %v2589
        %v2591 = vrot.slane %v2509, %v2590
        %2593 = vbcast.lane.b32.xlu0 %v2591, 256
        %v2594 = vpop.permute.xlu0 %2593
        %s2596 = sor.u32 256, 8
        %2597 = vbcast.lane.b32.xlu0 %v2591, %s2596
        %v2598 = vpop.permute.xlu0 %2597
        %v2599 = vlaneseq
        %v2600 = vshrl.u32 %v2599, 7
        %v2601 = vsub.s32 0, %v2600
        %v2602 = vrot.slane %v2510, %v2601
        %2604 = vbcast.lane.b32.xlu0 %v2602, 256
        %v2605 = vpop.permute.xlu0 %2604
        %s2607 = sor.u32 256, 8
        %2608 = vbcast.lane.b32.xlu0 %v2602, %s2607
        %v2609 = vpop.permute.xlu0 %2608
        %v2610 = vlaneseq
        %v2611 = vshrl.u32 %v2610, 7
        %v2612 = vsub.s32 1, %v2611
        %v2613 = vrot.slane %v2510, %v2612
        %2615 = vbcast.lane.b32.xlu0 %v2613, 256
        %v2616 = vpop.permute.xlu0 %2615
        %s2618 = sor.u32 256, 8
        %2619 = vbcast.lane.b32.xlu0 %v2613, %s2618
        %v2620 = vpop.permute.xlu0 %2619
        %v2621 = vlaneseq
        %v2622 = vshrl.u32 %v2621, 7
        %v2623 = vsub.s32 2, %v2622
        %v2624 = vrot.slane %v2510, %v2623
        %2626 = vbcast.lane.b32.xlu0 %v2624, 256
        %v2627 = vpop.permute.xlu0 %2626
        %s2629 = sor.u32 256, 8
        %2630 = vbcast.lane.b32.xlu0 %v2624, %s2629
        %v2631 = vpop.permute.xlu0 %2630
        %v2632 = vlaneseq
        %v2633 = vshrl.u32 %v2632, 7
        %v2634 = vsub.s32 3, %v2633
        %v2635 = vrot.slane %v2510, %v2634
        %2637 = vbcast.lane.b32.xlu0 %v2635, 256
        %v2638 = vpop.permute.xlu0 %2637
        %s2640 = sor.u32 256, 8
        %2641 = vbcast.lane.b32.xlu0 %v2635, %s2640
        %v2642 = vpop.permute.xlu0 %2641
        %v2643 = vlaneseq
        %v2644 = vshrl.u32 %v2643, 7
        %v2645 = vsub.s32 4, %v2644
        %v2646 = vrot.slane %v2510, %v2645
        %2648 = vbcast.lane.b32.xlu0 %v2646, 256
        %v2649 = vpop.permute.xlu0 %2648
        %s2651 = sor.u32 256, 8
        %2652 = vbcast.lane.b32.xlu0 %v2646, %s2651
        %v2653 = vpop.permute.xlu0 %2652
        %v2654 = vlaneseq
        %v2655 = vshrl.u32 %v2654, 7
        %v2656 = vsub.s32 5, %v2655
        %v2657 = vrot.slane %v2510, %v2656
        %2659 = vbcast.lane.b32.xlu0 %v2657, 256
        %v2660 = vpop.permute.xlu0 %2659
        %s2662 = sor.u32 256, 8
        %2663 = vbcast.lane.b32.xlu0 %v2657, %s2662
        %v2664 = vpop.permute.xlu0 %2663
        %v2665 = vlaneseq
        %v2666 = vshrl.u32 %v2665, 7
        %v2667 = vsub.s32 6, %v2666
        %v2668 = vrot.slane %v2510, %v2667
        %2670 = vbcast.lane.b32.xlu0 %v2668, 256
        %v2671 = vpop.permute.xlu0 %2670
        %s2673 = sor.u32 256, 8
        %2674 = vbcast.lane.b32.xlu0 %v2668, %s2673
        %v2675 = vpop.permute.xlu0 %2674
        %v2676 = vlaneseq
        %v2677 = vshrl.u32 %v2676, 7
        %v2678 = vsub.s32 7, %v2677
        %v2679 = vrot.slane %v2510, %v2678
        %2681 = vbcast.lane.b32.xlu0 %v2679, 256
        %v2682 = vpop.permute.xlu0 %2681
        %s2684 = sor.u32 256, 8
        %2685 = vbcast.lane.b32.xlu0 %v2679, %s2684
        %v2686 = vpop.permute.xlu0 %2685
        %vm2687 = vcmp.ne.s32.totalorder %v2517, 0
        %vm2688 = vcmp.ne.s32.totalorder %v2521, 0
        %vm2689 = vcmp.ne.s32.totalorder %v2528, 0
        %vm2690 = vcmp.ne.s32.totalorder %v2532, 0
        %vm2691 = vcmp.ne.s32.totalorder %v2539, 0
        %vm2692 = vcmp.ne.s32.totalorder %v2543, 0
        %vm2693 = vcmp.ne.s32.totalorder %v2550, 0
        %vm2694 = vcmp.ne.s32.totalorder %v2554, 0
        %vm2695 = vcmp.ne.s32.totalorder %v2561, 0
        %vm2696 = vcmp.ne.s32.totalorder %v2565, 0
        %vm2697 = vcmp.ne.s32.totalorder %v2572, 0
        %vm2698 = vcmp.ne.s32.totalorder %v2576, 0
        %vm2699 = vcmp.ne.s32.totalorder %v2583, 0
        %vm2700 = vcmp.ne.s32.totalorder %v2587, 0
        %vm2701 = vcmp.ne.s32.totalorder %v2594, 0
        %vm2702 = vcmp.ne.s32.totalorder %v2598, 0
        %vm2703 = vcmp.ne.s32.totalorder %v2605, 0
        %vm2704 = vcmp.ne.s32.totalorder %v2609, 0
        %vm2705 = vcmp.ne.s32.totalorder %v2616, 0
        %vm2706 = vcmp.ne.s32.totalorder %v2620, 0
        %vm2707 = vcmp.ne.s32.totalorder %v2627, 0
        %vm2708 = vcmp.ne.s32.totalorder %v2631, 0
        %vm2709 = vcmp.ne.s32.totalorder %v2638, 0
        %vm2710 = vcmp.ne.s32.totalorder %v2642, 0
        %vm2711 = vcmp.ne.s32.totalorder %v2649, 0
        %vm2712 = vcmp.ne.s32.totalorder %v2653, 0
        %vm2713 = vcmp.ne.s32.totalorder %v2660, 0
        %vm2714 = vcmp.ne.s32.totalorder %v2664, 0
        %vm2715 = vcmp.ne.s32.totalorder %v2671, 0
        %vm2716 = vcmp.ne.s32.totalorder %v2675, 0
        %vm2717 = vcmp.ne.s32.totalorder %v2682, 0
        %vm2718 = vcmp.ne.s32.totalorder %v2686, 0
        %vm2719 = vmand %vm2247, %vm2687
        %vm2720 = vmand %vm2248, %vm2688
        %vm2721 = vmand %vm2249, %vm2689
        %vm2722 = vmand %vm2250, %vm2690
        %vm2723 = vmand %vm2251, %vm2691
        %vm2724 = vmand %vm2252, %vm2692
        %vm2725 = vmand %vm2253, %vm2693
        %vm2726 = vmand %vm2254, %vm2694
        %vm2727 = vmand %vm2255, %vm2695
        %vm2728 = vmand %vm2256, %vm2696
        %vm2729 = vmand %vm2257, %vm2697
        %vm2730 = vmand %vm2258, %vm2698
        %vm2731 = vmand %vm2259, %vm2699
        %vm2732 = vmand %vm2260, %vm2700
        %vm2733 = vmand %vm2261, %vm2701
        %vm2734 = vmand %vm2262, %vm2702
        %vm2735 = vmand %vm2263, %vm2703
        %vm2736 = vmand %vm2264, %vm2704
        %vm2737 = vmand %vm2265, %vm2705
        %vm2738 = vmand %vm2266, %vm2706
        %vm2739 = vmand %vm2267, %vm2707
        %vm2740 = vmand %vm2268, %vm2708
        %vm2741 = vmand %vm2269, %vm2709
        %vm2742 = vmand %vm2270, %vm2710
        %vm2743 = vmand %vm2271, %vm2711
        %vm2744 = vmand %vm2272, %vm2712
        %vm2745 = vmand %vm2273, %vm2713
        %vm2746 = vmand %vm2274, %vm2714
        %vm2747 = vmand %vm2275, %vm2715
        %vm2748 = vmand %vm2276, %vm2716
        %vm2749 = vmand %vm2277, %vm2717
        %vm2750 = vmand %vm2278, %vm2718
        %vm2751 = vmand %vm2279, %vm2687
        %vm2752 = vmand %vm2280, %vm2688
        %vm2753 = vmand %vm2281, %vm2689
        %vm2754 = vmand %vm2282, %vm2690
        %vm2755 = vmand %vm2283, %vm2691
        %vm2756 = vmand %vm2284, %vm2692
        %vm2757 = vmand %vm2285, %vm2693
        %vm2758 = vmand %vm2286, %vm2694
        %vm2759 = vmand %vm2287, %vm2695
        %vm2760 = vmand %vm2288, %vm2696
        %vm2761 = vmand %vm2289, %vm2697
        %vm2762 = vmand %vm2290, %vm2698
        %vm2763 = vmand %vm2291, %vm2699
        %vm2764 = vmand %vm2292, %vm2700
        %vm2765 = vmand %vm2293, %vm2701
        %vm2766 = vmand %vm2294, %vm2702
        %vm2767 = vmand %vm2295, %vm2703
        %vm2768 = vmand %vm2296, %vm2704
        %vm2769 = vmand %vm2297, %vm2705
        %vm2770 = vmand %vm2298, %vm2706
        %vm2771 = vmand %vm2299, %vm2707
        %vm2772 = vmand %vm2300, %vm2708
        %vm2773 = vmand %vm2301, %vm2709
        %vm2774 = vmand %vm2302, %vm2710
        %vm2775 = vmand %vm2303, %vm2711
        %vm2776 = vmand %vm2304, %vm2712
        %vm2777 = vmand %vm2305, %vm2713
        %vm2778 = vmand %vm2306, %vm2714
        %vm2779 = vmand %vm2307, %vm2715
        %vm2780 = vmand %vm2308, %vm2716
        %vm2781 = vmand %vm2309, %vm2717
        %vm2782 = vmand %vm2310, %vm2718
        %vm2783 = vmand %vm2311, %vm2687
        %vm2784 = vmand %vm2312, %vm2688
        %vm2785 = vmand %vm2313, %vm2689
        %vm2786 = vmand %vm2314, %vm2690
        %vm2787 = vmand %vm2315, %vm2691
        %vm2788 = vmand %vm2316, %vm2692
        %vm2789 = vmand %vm2317, %vm2693
        %vm2790 = vmand %vm2318, %vm2694
        %vm2791 = vmand %vm2319, %vm2695
        %vm2792 = vmand %vm2320, %vm2696
        %vm2793 = vmand %vm2321, %vm2697
        %vm2794 = vmand %vm2322, %vm2698
        %vm2795 = vmand %vm2323, %vm2699
        %vm2796 = vmand %vm2324, %vm2700
        %vm2797 = vmand %vm2325, %vm2701
        %vm2798 = vmand %vm2326, %vm2702
        %vm2799 = vmand %vm2327, %vm2703
        %vm2800 = vmand %vm2328, %vm2704
        %vm2801 = vmand %vm2329, %vm2705
        %vm2802 = vmand %vm2330, %vm2706
        %vm2803 = vmand %vm2331, %vm2707
        %vm2804 = vmand %vm2332, %vm2708
        %vm2805 = vmand %vm2333, %vm2709
        %vm2806 = vmand %vm2334, %vm2710
        %vm2807 = vmand %vm2335, %vm2711
        %vm2808 = vmand %vm2336, %vm2712
        %vm2809 = vmand %vm2337, %vm2713
        %vm2810 = vmand %vm2338, %vm2714
        %vm2811 = vmand %vm2339, %vm2715
        %vm2812 = vmand %vm2340, %vm2716
        %vm2813 = vmand %vm2341, %vm2717
        %vm2814 = vmand %vm2342, %vm2718
        %vm2815 = vmand %vm2343, %vm2687
        %vm2816 = vmand %vm2344, %vm2688
        %vm2817 = vmand %vm2345, %vm2689
        %vm2818 = vmand %vm2346, %vm2690
        %vm2819 = vmand %vm2347, %vm2691
        %vm2820 = vmand %vm2348, %vm2692
        %vm2821 = vmand %vm2349, %vm2693
        %vm2822 = vmand %vm2350, %vm2694
        %vm2823 = vmand %vm2351, %vm2695
        %vm2824 = vmand %vm2352, %vm2696
        %vm2825 = vmand %vm2353, %vm2697
        %vm2826 = vmand %vm2354, %vm2698
        %vm2827 = vmand %vm2355, %vm2699
        %vm2828 = vmand %vm2356, %vm2700
        %vm2829 = vmand %vm2357, %vm2701
        %vm2830 = vmand %vm2358, %vm2702
        %vm2831 = vmand %vm2359, %vm2703
        %vm2832 = vmand %vm2360, %vm2704
        %vm2833 = vmand %vm2361, %vm2705
        %vm2834 = vmand %vm2362, %vm2706
        %vm2835 = vmand %vm2363, %vm2707
        %vm2836 = vmand %vm2364, %vm2708
        %vm2837 = vmand %vm2365, %vm2709
        %vm2838 = vmand %vm2366, %vm2710
        %vm2839 = vmand %vm2367, %vm2711
        %vm2840 = vmand %vm2368, %vm2712
        %vm2841 = vmand %vm2369, %vm2713
        %vm2842 = vmand %vm2370, %vm2714
        %vm2843 = vmand %vm2371, %vm2715
        %vm2844 = vmand %vm2372, %vm2716
        %vm2845 = vmand %vm2373, %vm2717
        %vm2846 = vmand %vm2374, %vm2718
        %vm2847 = vmand %vm2375, %vm2687
        %vm2848 = vmand %vm2376, %vm2688
        %vm2849 = vmand %vm2377, %vm2689
        %vm2850 = vmand %vm2378, %vm2690
        %vm2851 = vmand %vm2379, %vm2691
        %vm2852 = vmand %vm2380, %vm2692
        %vm2853 = vmand %vm2381, %vm2693
        %vm2854 = vmand %vm2382, %vm2694
        %vm2855 = vmand %vm2383, %vm2695
        %vm2856 = vmand %vm2384, %vm2696
        %vm2857 = vmand %vm2385, %vm2697
        %vm2858 = vmand %vm2386, %vm2698
        %vm2859 = vmand %vm2387, %vm2699
        %vm2860 = vmand %vm2388, %vm2700
        %vm2861 = vmand %vm2389, %vm2701
        %vm2862 = vmand %vm2390, %vm2702
        %vm2863 = vmand %vm2391, %vm2703
        %vm2864 = vmand %vm2392, %vm2704
        %vm2865 = vmand %vm2393, %vm2705
        %vm2866 = vmand %vm2394, %vm2706
        %vm2867 = vmand %vm2395, %vm2707
        %vm2868 = vmand %vm2396, %vm2708
        %vm2869 = vmand %vm2397, %vm2709
        %vm2870 = vmand %vm2398, %vm2710
        %vm2871 = vmand %vm2399, %vm2711
        %vm2872 = vmand %vm2400, %vm2712
        %vm2873 = vmand %vm2401, %vm2713
        %vm2874 = vmand %vm2402, %vm2714
        %vm2875 = vmand %vm2403, %vm2715
        %vm2876 = vmand %vm2404, %vm2716
        %vm2877 = vmand %vm2405, %vm2717
        %vm2878 = vmand %vm2406, %vm2718
        %vm2879 = vmand %vm2407, %vm2687
        %vm2880 = vmand %vm2408, %vm2688
        %vm2881 = vmand %vm2409, %vm2689
        %vm2882 = vmand %vm2410, %vm2690
        %vm2883 = vmand %vm2411, %vm2691
        %vm2884 = vmand %vm2412, %vm2692
        %vm2885 = vmand %vm2413, %vm2693
        %vm2886 = vmand %vm2414, %vm2694
        %vm2887 = vmand %vm2415, %vm2695
        %vm2888 = vmand %vm2416, %vm2696
        %vm2889 = vmand %vm2417, %vm2697
        %vm2890 = vmand %vm2418, %vm2698
        %vm2891 = vmand %vm2419, %vm2699
        %vm2892 = vmand %vm2420, %vm2700
        %vm2893 = vmand %vm2421, %vm2701
        %vm2894 = vmand %vm2422, %vm2702
        %vm2895 = vmand %vm2423, %vm2703
        %vm2896 = vmand %vm2424, %vm2704
        %vm2897 = vmand %vm2425, %vm2705
        %vm2898 = vmand %vm2426, %vm2706
        %vm2899 = vmand %vm2427, %vm2707
        %vm2900 = vmand %vm2428, %vm2708
        %vm2901 = vmand %vm2429, %vm2709
        %vm2902 = vmand %vm2430, %vm2710
        %vm2903 = vmand %vm2431, %vm2711
        %vm2904 = vmand %vm2432, %vm2712
        %vm2905 = vmand %vm2433, %vm2713
        %vm2906 = vmand %vm2434, %vm2714
        %vm2907 = vmand %vm2435, %vm2715
        %vm2908 = vmand %vm2436, %vm2716
        %vm2909 = vmand %vm2437, %vm2717
        %vm2910 = vmand %vm2438, %vm2718
        %vm2911 = vmand %vm2439, %vm2687
        %vm2912 = vmand %vm2440, %vm2688
        %vm2913 = vmand %vm2441, %vm2689
        %vm2914 = vmand %vm2442, %vm2690
        %vm2915 = vmand %vm2443, %vm2691
        %vm2916 = vmand %vm2444, %vm2692
        %vm2917 = vmand %vm2445, %vm2693
        %vm2918 = vmand %vm2446, %vm2694
        %vm2919 = vmand %vm2447, %vm2695
        %vm2920 = vmand %vm2448, %vm2696
        %vm2921 = vmand %vm2449, %vm2697
        %vm2922 = vmand %vm2450, %vm2698
        %vm2923 = vmand %vm2451, %vm2699
        %vm2924 = vmand %vm2452, %vm2700
        %vm2925 = vmand %vm2453, %vm2701
        %vm2926 = vmand %vm2454, %vm2702
        %vm2927 = vmand %vm2455, %vm2703
        %vm2928 = vmand %vm2456, %vm2704
        %vm2929 = vmand %vm2457, %vm2705
        %vm2930 = vmand %vm2458, %vm2706
        %vm2931 = vmand %vm2459, %vm2707
        %vm2932 = vmand %vm2460, %vm2708
        %vm2933 = vmand %vm2461, %vm2709
        %vm2934 = vmand %vm2462, %vm2710
        %vm2935 = vmand %vm2463, %vm2711
        %vm2936 = vmand %vm2464, %vm2712
        %vm2937 = vmand %vm2465, %vm2713
        %vm2938 = vmand %vm2466, %vm2714
        %vm2939 = vmand %vm2467, %vm2715
        %vm2940 = vmand %vm2468, %vm2716
        %vm2941 = vmand %vm2469, %vm2717
        %vm2942 = vmand %vm2470, %vm2718
        %vm2943 = vmand %vm2471, %vm2687
        %vm2944 = vmand %vm2472, %vm2688
        %vm2945 = vmand %vm2473, %vm2689
        %vm2946 = vmand %vm2474, %vm2690
        %vm2947 = vmand %vm2475, %vm2691
        %vm2948 = vmand %vm2476, %vm2692
        %vm2949 = vmand %vm2477, %vm2693
        %vm2950 = vmand %vm2478, %vm2694
        %vm2951 = vmand %vm2479, %vm2695
        %vm2952 = vmand %vm2480, %vm2696
        %vm2953 = vmand %vm2481, %vm2697
        %vm2954 = vmand %vm2482, %vm2698
        %vm2955 = vmand %vm2483, %vm2699
        %vm2956 = vmand %vm2484, %vm2700
        %vm2957 = vmand %vm2485, %vm2701
        %vm2958 = vmand %vm2486, %vm2702
        %vm2959 = vmand %vm2487, %vm2703
        %vm2960 = vmand %vm2488, %vm2704
        %vm2961 = vmand %vm2489, %vm2705
        %vm2962 = vmand %vm2490, %vm2706
        %vm2963 = vmand %vm2491, %vm2707
        %vm2964 = vmand %vm2492, %vm2708
        %vm2965 = vmand %vm2493, %vm2709
        %vm2966 = vmand %vm2494, %vm2710
        %vm2967 = vmand %vm2495, %vm2711
        %vm2968 = vmand %vm2496, %vm2712
        %vm2969 = vmand %vm2497, %vm2713
        %vm2970 = vmand %vm2498, %vm2714
        %vm2971 = vmand %vm2499, %vm2715
        %vm2972 = vmand %vm2500, %vm2716
        %vm2973 = vmand %vm2501, %vm2717
        %vm2974 = vmand %vm2502, %vm2718
        %vm2975 = vmor %vm1991, %vm2719
        %vm2976 = vmor %vm1992, %vm2720
        %vm2977 = vmor %vm1993, %vm2721
        %vm2978 = vmor %vm1994, %vm2722
        %vm2979 = vmor %vm1995, %vm2723
        %vm2980 = vmor %vm1996, %vm2724
        %vm2981 = vmor %vm1997, %vm2725
        %vm2982 = vmor %vm1998, %vm2726
        %vm2983 = vmor %vm1999, %vm2727
        %vm2984 = vmor %vm2000, %vm2728
        %vm2985 = vmor %vm2001, %vm2729
        %vm2986 = vmor %vm2002, %vm2730
        %vm2987 = vmor %vm2003, %vm2731
        %vm2988 = vmor %vm2004, %vm2732
        %vm2989 = vmor %vm2005, %vm2733
        %vm2990 = vmor %vm2006, %vm2734
        %vm2991 = vmor %vm2007, %vm2735
        %vm2992 = vmor %vm2008, %vm2736
        %vm2993 = vmor %vm2009, %vm2737
        %vm2994 = vmor %vm2010, %vm2738
        %vm2995 = vmor %vm2011, %vm2739
        %vm2996 = vmor %vm2012, %vm2740
        %vm2997 = vmor %vm2013, %vm2741
        %vm2998 = vmor %vm2014, %vm2742
        %vm2999 = vmor %vm2015, %vm2743
        %vm3000 = vmor %vm2016, %vm2744
        %vm3001 = vmor %vm2017, %vm2745
        %vm3002 = vmor %vm2018, %vm2746
        %vm3003 = vmor %vm2019, %vm2747
        %vm3004 = vmor %vm2020, %vm2748
        %vm3005 = vmor %vm2021, %vm2749
        %vm3006 = vmor %vm2022, %vm2750
        %vm3007 = vmor %vm2023, %vm2751
        %vm3008 = vmor %vm2024, %vm2752
        %vm3009 = vmor %vm2025, %vm2753
        %vm3010 = vmor %vm2026, %vm2754
        %vm3011 = vmor %vm2027, %vm2755
        %vm3012 = vmor %vm2028, %vm2756
        %vm3013 = vmor %vm2029, %vm2757
        %vm3014 = vmor %vm2030, %vm2758
        %vm3015 = vmor %vm2031, %vm2759
        %vm3016 = vmor %vm2032, %vm2760
        %vm3017 = vmor %vm2033, %vm2761
        %vm3018 = vmor %vm2034, %vm2762
        %vm3019 = vmor %vm2035, %vm2763
        %vm3020 = vmor %vm2036, %vm2764
        %vm3021 = vmor %vm2037, %vm2765
        %vm3022 = vmor %vm2038, %vm2766
        %vm3023 = vmor %vm2039, %vm2767
        %vm3024 = vmor %vm2040, %vm2768
        %vm3025 = vmor %vm2041, %vm2769
        %vm3026 = vmor %vm2042, %vm2770
        %vm3027 = vmor %vm2043, %vm2771
        %vm3028 = vmor %vm2044, %vm2772
        %vm3029 = vmor %vm2045, %vm2773
        %vm3030 = vmor %vm2046, %vm2774
        %vm3031 = vmor %vm2047, %vm2775
        %vm3032 = vmor %vm2048, %vm2776
        %vm3033 = vmor %vm2049, %vm2777
        %vm3034 = vmor %vm2050, %vm2778
        %vm3035 = vmor %vm2051, %vm2779
        %vm3036 = vmor %vm2052, %vm2780
        %vm3037 = vmor %vm2053, %vm2781
        %vm3038 = vmor %vm2054, %vm2782
        %vm3039 = vmor %vm2055, %vm2783
        %vm3040 = vmor %vm2056, %vm2784
        %vm3041 = vmor %vm2057, %vm2785
        %vm3042 = vmor %vm2058, %vm2786
        %vm3043 = vmor %vm2059, %vm2787
        %vm3044 = vmor %vm2060, %vm2788
        %vm3045 = vmor %vm2061, %vm2789
        %vm3046 = vmor %vm2062, %vm2790
        %vm3047 = vmor %vm2063, %vm2791
        %vm3048 = vmor %vm2064, %vm2792
        %vm3049 = vmor %vm2065, %vm2793
        %vm3050 = vmor %vm2066, %vm2794
        %vm3051 = vmor %vm2067, %vm2795
        %vm3052 = vmor %vm2068, %vm2796
        %vm3053 = vmor %vm2069, %vm2797
        %vm3054 = vmor %vm2070, %vm2798
        %vm3055 = vmor %vm2071, %vm2799
        %vm3056 = vmor %vm2072, %vm2800
        %vm3057 = vmor %vm2073, %vm2801
        %vm3058 = vmor %vm2074, %vm2802
        %vm3059 = vmor %vm2075, %vm2803
        %vm3060 = vmor %vm2076, %vm2804
        %vm3061 = vmor %vm2077, %vm2805
        %vm3062 = vmor %vm2078, %vm2806
        %vm3063 = vmor %vm2079, %vm2807
        %vm3064 = vmor %vm2080, %vm2808
        %vm3065 = vmor %vm2081, %vm2809
        %vm3066 = vmor %vm2082, %vm2810
        %vm3067 = vmor %vm2083, %vm2811
        %vm3068 = vmor %vm2084, %vm2812
        %vm3069 = vmor %vm2085, %vm2813
        %vm3070 = vmor %vm2086, %vm2814
        %vm3071 = vmor %vm2087, %vm2815
        %vm3072 = vmor %vm2088, %vm2816
        %vm3073 = vmor %vm2089, %vm2817
        %vm3074 = vmor %vm2090, %vm2818
        %vm3075 = vmor %vm2091, %vm2819
        %vm3076 = vmor %vm2092, %vm2820
        %vm3077 = vmor %vm2093, %vm2821
        %vm3078 = vmor %vm2094, %vm2822
        %vm3079 = vmor %vm2095, %vm2823
        %vm3080 = vmor %vm2096, %vm2824
        %vm3081 = vmor %vm2097, %vm2825
        %vm3082 = vmor %vm2098, %vm2826
        %vm3083 = vmor %vm2099, %vm2827
        %vm3084 = vmor %vm2100, %vm2828
        %vm3085 = vmor %vm2101, %vm2829
        %vm3086 = vmor %vm2102, %vm2830
        %vm3087 = vmor %vm2103, %vm2831
        %vm3088 = vmor %vm2104, %vm2832
        %vm3089 = vmor %vm2105, %vm2833
        %vm3090 = vmor %vm2106, %vm2834
        %vm3091 = vmor %vm2107, %vm2835
        %vm3092 = vmor %vm2108, %vm2836
        %vm3093 = vmor %vm2109, %vm2837
        %vm3094 = vmor %vm2110, %vm2838
        %vm3095 = vmor %vm2111, %vm2839
        %vm3096 = vmor %vm2112, %vm2840
        %vm3097 = vmor %vm2113, %vm2841
        %vm3098 = vmor %vm2114, %vm2842
        %vm3099 = vmor %vm2115, %vm2843
        %vm3100 = vmor %vm2116, %vm2844
        %vm3101 = vmor %vm2117, %vm2845
        %vm3102 = vmor %vm2118, %vm2846
        %vm3103 = vmor %vm2119, %vm2847
        %vm3104 = vmor %vm2120, %vm2848
        %vm3105 = vmor %vm2121, %vm2849
        %vm3106 = vmor %vm2122, %vm2850
        %vm3107 = vmor %vm2123, %vm2851
        %vm3108 = vmor %vm2124, %vm2852
        %vm3109 = vmor %vm2125, %vm2853
        %vm3110 = vmor %vm2126, %vm2854
        %vm3111 = vmor %vm2127, %vm2855
        %vm3112 = vmor %vm2128, %vm2856
        %vm3113 = vmor %vm2129, %vm2857
        %vm3114 = vmor %vm2130, %vm2858
        %vm3115 = vmor %vm2131, %vm2859
        %vm3116 = vmor %vm2132, %vm2860
        %vm3117 = vmor %vm2133, %vm2861
        %vm3118 = vmor %vm2134, %vm2862
        %vm3119 = vmor %vm2135, %vm2863
        %vm3120 = vmor %vm2136, %vm2864
        %vm3121 = vmor %vm2137, %vm2865
        %vm3122 = vmor %vm2138, %vm2866
        %vm3123 = vmor %vm2139, %vm2867
        %vm3124 = vmor %vm2140, %vm2868
        %vm3125 = vmor %vm2141, %vm2869
        %vm3126 = vmor %vm2142, %vm2870
        %vm3127 = vmor %vm2143, %vm2871
        %vm3128 = vmor %vm2144, %vm2872
        %vm3129 = vmor %vm2145, %vm2873
        %vm3130 = vmor %vm2146, %vm2874
        %vm3131 = vmor %vm2147, %vm2875
        %vm3132 = vmor %vm2148, %vm2876
        %vm3133 = vmor %vm2149, %vm2877
        %vm3134 = vmor %vm2150, %vm2878
        %vm3135 = vmor %vm2151, %vm2879
        %vm3136 = vmor %vm2152, %vm2880
        %vm3137 = vmor %vm2153, %vm2881
        %vm3138 = vmor %vm2154, %vm2882
        %vm3139 = vmor %vm2155, %vm2883
        %vm3140 = vmor %vm2156, %vm2884
        %vm3141 = vmor %vm2157, %vm2885
        %vm3142 = vmor %vm2158, %vm2886
        %vm3143 = vmor %vm2159, %vm2887
        %vm3144 = vmor %vm2160, %vm2888
        %vm3145 = vmor %vm2161, %vm2889
        %vm3146 = vmor %vm2162, %vm2890
        %vm3147 = vmor %vm2163, %vm2891
        %vm3148 = vmor %vm2164, %vm2892
        %vm3149 = vmor %vm2165, %vm2893
        %vm3150 = vmor %vm2166, %vm2894
        %vm3151 = vmor %vm2167, %vm2895
        %vm3152 = vmor %vm2168, %vm2896
        %vm3153 = vmor %vm2169, %vm2897
        %vm3154 = vmor %vm2170, %vm2898
        %vm3155 = vmor %vm2171, %vm2899
        %vm3156 = vmor %vm2172, %vm2900
        %vm3157 = vmor %vm2173, %vm2901
        %vm3158 = vmor %vm2174, %vm2902
        %vm3159 = vmor %vm2175, %vm2903
        %vm3160 = vmor %vm2176, %vm2904
        %vm3161 = vmor %vm2177, %vm2905
        %vm3162 = vmor %vm2178, %vm2906
        %vm3163 = vmor %vm2179, %vm2907
        %vm3164 = vmor %vm2180, %vm2908
        %vm3165 = vmor %vm2181, %vm2909
        %vm3166 = vmor %vm2182, %vm2910
        %vm3167 = vmor %vm2183, %vm2911
        %vm3168 = vmor %vm2184, %vm2912
        %vm3169 = vmor %vm2185, %vm2913
        %vm3170 = vmor %vm2186, %vm2914
        %vm3171 = vmor %vm2187, %vm2915
        %vm3172 = vmor %vm2188, %vm2916
        %vm3173 = vmor %vm2189, %vm2917
        %vm3174 = vmor %vm2190, %vm2918
        %vm3175 = vmor %vm2191, %vm2919
        %vm3176 = vmor %vm2192, %vm2920
        %vm3177 = vmor %vm2193, %vm2921
        %vm3178 = vmor %vm2194, %vm2922
        %vm3179 = vmor %vm2195, %vm2923
        %vm3180 = vmor %vm2196, %vm2924
        %vm3181 = vmor %vm2197, %vm2925
        %vm3182 = vmor %vm2198, %vm2926
        %vm3183 = vmor %vm2199, %vm2927
        %vm3184 = vmor %vm2200, %vm2928
        %vm3185 = vmor %vm2201, %vm2929
        %vm3186 = vmor %vm2202, %vm2930
        %vm3187 = vmor %vm2203, %vm2931
        %vm3188 = vmor %vm2204, %vm2932
        %vm3189 = vmor %vm2205, %vm2933
        %vm3190 = vmor %vm2206, %vm2934
        %vm3191 = vmor %vm2207, %vm2935
        %vm3192 = vmor %vm2208, %vm2936
        %vm3193 = vmor %vm2209, %vm2937
        %vm3194 = vmor %vm2210, %vm2938
        %vm3195 = vmor %vm2211, %vm2939
        %vm3196 = vmor %vm2212, %vm2940
        %vm3197 = vmor %vm2213, %vm2941
        %vm3198 = vmor %vm2214, %vm2942
        %vm3199 = vmor %vm2215, %vm2943
        %vm3200 = vmor %vm2216, %vm2944
        %vm3201 = vmor %vm2217, %vm2945
        %vm3202 = vmor %vm2218, %vm2946
        %vm3203 = vmor %vm2219, %vm2947
        %vm3204 = vmor %vm2220, %vm2948
        %vm3205 = vmor %vm2221, %vm2949
        %vm3206 = vmor %vm2222, %vm2950
        %vm3207 = vmor %vm2223, %vm2951
        %vm3208 = vmor %vm2224, %vm2952
        %vm3209 = vmor %vm2225, %vm2953
        %vm3210 = vmor %vm2226, %vm2954
        %vm3211 = vmor %vm2227, %vm2955
        %vm3212 = vmor %vm2228, %vm2956
        %vm3213 = vmor %vm2229, %vm2957
        %vm3214 = vmor %vm2230, %vm2958
        %vm3215 = vmor %vm2231, %vm2959
        %vm3216 = vmor %vm2232, %vm2960
        %vm3217 = vmor %vm2233, %vm2961
        %vm3218 = vmor %vm2234, %vm2962
        %vm3219 = vmor %vm2235, %vm2963
        %vm3220 = vmor %vm2236, %vm2964
        %vm3221 = vmor %vm2237, %vm2965
        %vm3222 = vmor %vm2238, %vm2966
        %vm3223 = vmor %vm2239, %vm2967
        %vm3224 = vmor %vm2240, %vm2968
        %vm3225 = vmor %vm2241, %vm2969
        %vm3226 = vmor %vm2242, %vm2970
        %vm3227 = vmor %vm2243, %vm2971
        %vm3228 = vmor %vm2244, %vm2972
        %vm3229 = vmor %vm2245, %vm2973
        %vm3230 = vmor %vm2246, %vm2974
        %v3231 = vsel %vm2975, 1, 0
        %v3232 = vsel %vm2976, 1, 0
        %v3233 = vsel %vm2977, 1, 0
        %v3234 = vsel %vm2978, 1, 0
        %v3235 = vsel %vm2979, 1, 0
        %v3236 = vsel %vm2980, 1, 0
        %v3237 = vsel %vm2981, 1, 0
        %v3238 = vsel %vm2982, 1, 0
        %v3239 = vsel %vm2983, 1, 0
        %v3240 = vsel %vm2984, 1, 0
        %v3241 = vsel %vm2985, 1, 0
        %v3242 = vsel %vm2986, 1, 0
        %v3243 = vsel %vm2987, 1, 0
        %v3244 = vsel %vm2988, 1, 0
        %v3245 = vsel %vm2989, 1, 0
        %v3246 = vsel %vm2990, 1, 0
        %v3247 = vsel %vm2991, 1, 0
        %v3248 = vsel %vm2992, 1, 0
        %v3249 = vsel %vm2993, 1, 0
        %v3250 = vsel %vm2994, 1, 0
        %v3251 = vsel %vm2995, 1, 0
        %v3252 = vsel %vm2996, 1, 0
        %v3253 = vsel %vm2997, 1, 0
        %v3254 = vsel %vm2998, 1, 0
        %v3255 = vsel %vm2999, 1, 0
        %v3256 = vsel %vm3000, 1, 0
        %v3257 = vsel %vm3001, 1, 0
        %v3258 = vsel %vm3002, 1, 0
        %v3259 = vsel %vm3003, 1, 0
        %v3260 = vsel %vm3004, 1, 0
        %v3261 = vsel %vm3005, 1, 0
        %v3262 = vsel %vm3006, 1, 0
        %v3263 = vsel %vm3007, 1, 0
        %v3264 = vsel %vm3008, 1, 0
        %v3265 = vsel %vm3009, 1, 0
        %v3266 = vsel %vm3010, 1, 0
        %v3267 = vsel %vm3011, 1, 0
        %v3268 = vsel %vm3012, 1, 0
        %v3269 = vsel %vm3013, 1, 0
        %v3270 = vsel %vm3014, 1, 0
        %v3271 = vsel %vm3015, 1, 0
        %v3272 = vsel %vm3016, 1, 0
        %v3273 = vsel %vm3017, 1, 0
        %v3274 = vsel %vm3018, 1, 0
        %v3275 = vsel %vm3019, 1, 0
        %v3276 = vsel %vm3020, 1, 0
        %v3277 = vsel %vm3021, 1, 0
        %v3278 = vsel %vm3022, 1, 0
        %v3279 = vsel %vm3023, 1, 0
        %v3280 = vsel %vm3024, 1, 0
        %v3281 = vsel %vm3025, 1, 0
        %v3282 = vsel %vm3026, 1, 0
        %v3283 = vsel %vm3027, 1, 0
        %v3284 = vsel %vm3028, 1, 0
        %v3285 = vsel %vm3029, 1, 0
        %v3286 = vsel %vm3030, 1, 0
        %v3287 = vsel %vm3031, 1, 0
        %v3288 = vsel %vm3032, 1, 0
        %v3289 = vsel %vm3033, 1, 0
        %v3290 = vsel %vm3034, 1, 0
        %v3291 = vsel %vm3035, 1, 0
        %v3292 = vsel %vm3036, 1, 0
        %v3293 = vsel %vm3037, 1, 0
        %v3294 = vsel %vm3038, 1, 0
        %v3295 = vsel %vm3039, 1, 0
        %v3296 = vsel %vm3040, 1, 0
        %v3297 = vsel %vm3041, 1, 0
        %v3298 = vsel %vm3042, 1, 0
        %v3299 = vsel %vm3043, 1, 0
        %v3300 = vsel %vm3044, 1, 0
        %v3301 = vsel %vm3045, 1, 0
        %v3302 = vsel %vm3046, 1, 0
        %v3303 = vsel %vm3047, 1, 0
        %v3304 = vsel %vm3048, 1, 0
        %v3305 = vsel %vm3049, 1, 0
        %v3306 = vsel %vm3050, 1, 0
        %v3307 = vsel %vm3051, 1, 0
        %v3308 = vsel %vm3052, 1, 0
        %v3309 = vsel %vm3053, 1, 0
        %v3310 = vsel %vm3054, 1, 0
        %v3311 = vsel %vm3055, 1, 0
        %v3312 = vsel %vm3056, 1, 0
        %v3313 = vsel %vm3057, 1, 0
        %v3314 = vsel %vm3058, 1, 0
        %v3315 = vsel %vm3059, 1, 0
        %v3316 = vsel %vm3060, 1, 0
        %v3317 = vsel %vm3061, 1, 0
        %v3318 = vsel %vm3062, 1, 0
        %v3319 = vsel %vm3063, 1, 0
        %v3320 = vsel %vm3064, 1, 0
        %v3321 = vsel %vm3065, 1, 0
        %v3322 = vsel %vm3066, 1, 0
        %v3323 = vsel %vm3067, 1, 0
        %v3324 = vsel %vm3068, 1, 0
        %v3325 = vsel %vm3069, 1, 0
        %v3326 = vsel %vm3070, 1, 0
        %v3327 = vsel %vm3071, 1, 0
        %v3328 = vsel %vm3072, 1, 0
        %v3329 = vsel %vm3073, 1, 0
        %v3330 = vsel %vm3074, 1, 0
        %v3331 = vsel %vm3075, 1, 0
        %v3332 = vsel %vm3076, 1, 0
        %v3333 = vsel %vm3077, 1, 0
        %v3334 = vsel %vm3078, 1, 0
        %v3335 = vsel %vm3079, 1, 0
        %v3336 = vsel %vm3080, 1, 0
        %v3337 = vsel %vm3081, 1, 0
        %v3338 = vsel %vm3082, 1, 0
        %v3339 = vsel %vm3083, 1, 0
        %v3340 = vsel %vm3084, 1, 0
        %v3341 = vsel %vm3085, 1, 0
        %v3342 = vsel %vm3086, 1, 0
        %v3343 = vsel %vm3087, 1, 0
        %v3344 = vsel %vm3088, 1, 0
        %v3345 = vsel %vm3089, 1, 0
        %v3346 = vsel %vm3090, 1, 0
        %v3347 = vsel %vm3091, 1, 0
        %v3348 = vsel %vm3092, 1, 0
        %v3349 = vsel %vm3093, 1, 0
        %v3350 = vsel %vm3094, 1, 0
        %v3351 = vsel %vm3095, 1, 0
        %v3352 = vsel %vm3096, 1, 0
        %v3353 = vsel %vm3097, 1, 0
        %v3354 = vsel %vm3098, 1, 0
        %v3355 = vsel %vm3099, 1, 0
        %v3356 = vsel %vm3100, 1, 0
        %v3357 = vsel %vm3101, 1, 0
        %v3358 = vsel %vm3102, 1, 0
        %v3359 = vsel %vm3103, 1, 0
        %v3360 = vsel %vm3104, 1, 0
        %v3361 = vsel %vm3105, 1, 0
        %v3362 = vsel %vm3106, 1, 0
        %v3363 = vsel %vm3107, 1, 0
        %v3364 = vsel %vm3108, 1, 0
        %v3365 = vsel %vm3109, 1, 0
        %v3366 = vsel %vm3110, 1, 0
        %v3367 = vsel %vm3111, 1, 0
        %v3368 = vsel %vm3112, 1, 0
        %v3369 = vsel %vm3113, 1, 0
        %v3370 = vsel %vm3114, 1, 0
        %v3371 = vsel %vm3115, 1, 0
        %v3372 = vsel %vm3116, 1, 0
        %v3373 = vsel %vm3117, 1, 0
        %v3374 = vsel %vm3118, 1, 0
        %v3375 = vsel %vm3119, 1, 0
        %v3376 = vsel %vm3120, 1, 0
        %v3377 = vsel %vm3121, 1, 0
        %v3378 = vsel %vm3122, 1, 0
        %v3379 = vsel %vm3123, 1, 0
        %v3380 = vsel %vm3124, 1, 0
        %v3381 = vsel %vm3125, 1, 0
        %v3382 = vsel %vm3126, 1, 0
        %v3383 = vsel %vm3127, 1, 0
        %v3384 = vsel %vm3128, 1, 0
        %v3385 = vsel %vm3129, 1, 0
        %v3386 = vsel %vm3130, 1, 0
        %v3387 = vsel %vm3131, 1, 0
        %v3388 = vsel %vm3132, 1, 0
        %v3389 = vsel %vm3133, 1, 0
        %v3390 = vsel %vm3134, 1, 0
        %v3391 = vsel %vm3135, 1, 0
        %v3392 = vsel %vm3136, 1, 0
        %v3393 = vsel %vm3137, 1, 0
        %v3394 = vsel %vm3138, 1, 0
        %v3395 = vsel %vm3139, 1, 0
        %v3396 = vsel %vm3140, 1, 0
        %v3397 = vsel %vm3141, 1, 0
        %v3398 = vsel %vm3142, 1, 0
        %v3399 = vsel %vm3143, 1, 0
        %v3400 = vsel %vm3144, 1, 0
        %v3401 = vsel %vm3145, 1, 0
        %v3402 = vsel %vm3146, 1, 0
        %v3403 = vsel %vm3147, 1, 0
        %v3404 = vsel %vm3148, 1, 0
        %v3405 = vsel %vm3149, 1, 0
        %v3406 = vsel %vm3150, 1, 0
        %v3407 = vsel %vm3151, 1, 0
        %v3408 = vsel %vm3152, 1, 0
        %v3409 = vsel %vm3153, 1, 0
        %v3410 = vsel %vm3154, 1, 0
        %v3411 = vsel %vm3155, 1, 0
        %v3412 = vsel %vm3156, 1, 0
        %v3413 = vsel %vm3157, 1, 0
        %v3414 = vsel %vm3158, 1, 0
        %v3415 = vsel %vm3159, 1, 0
        %v3416 = vsel %vm3160, 1, 0
        %v3417 = vsel %vm3161, 1, 0
        %v3418 = vsel %vm3162, 1, 0
        %v3419 = vsel %vm3163, 1, 0
        %v3420 = vsel %vm3164, 1, 0
        %v3421 = vsel %vm3165, 1, 0
        %v3422 = vsel %vm3166, 1, 0
        %v3423 = vsel %vm3167, 1, 0
        %v3424 = vsel %vm3168, 1, 0
        %v3425 = vsel %vm3169, 1, 0
        %v3426 = vsel %vm3170, 1, 0
        %v3427 = vsel %vm3171, 1, 0
        %v3428 = vsel %vm3172, 1, 0
        %v3429 = vsel %vm3173, 1, 0
        %v3430 = vsel %vm3174, 1, 0
        %v3431 = vsel %vm3175, 1, 0
        %v3432 = vsel %vm3176, 1, 0
        %v3433 = vsel %vm3177, 1, 0
        %v3434 = vsel %vm3178, 1, 0
        %v3435 = vsel %vm3179, 1, 0
        %v3436 = vsel %vm3180, 1, 0
        %v3437 = vsel %vm3181, 1, 0
        %v3438 = vsel %vm3182, 1, 0
        %v3439 = vsel %vm3183, 1, 0
        %v3440 = vsel %vm3184, 1, 0
        %v3441 = vsel %vm3185, 1, 0
        %v3442 = vsel %vm3186, 1, 0
        %v3443 = vsel %vm3187, 1, 0
        %v3444 = vsel %vm3188, 1, 0
        %v3445 = vsel %vm3189, 1, 0
        %v3446 = vsel %vm3190, 1, 0
        %v3447 = vsel %vm3191, 1, 0
        %v3448 = vsel %vm3192, 1, 0
        %v3449 = vsel %vm3193, 1, 0
        %v3450 = vsel %vm3194, 1, 0
        %v3451 = vsel %vm3195, 1, 0
        %v3452 = vsel %vm3196, 1, 0
        %v3453 = vsel %vm3197, 1, 0
        %v3454 = vsel %vm3198, 1, 0
        %v3455 = vsel %vm3199, 1, 0
        %v3456 = vsel %vm3200, 1, 0
        %v3457 = vsel %vm3201, 1, 0
        %v3458 = vsel %vm3202, 1, 0
        %v3459 = vsel %vm3203, 1, 0
        %v3460 = vsel %vm3204, 1, 0
        %v3461 = vsel %vm3205, 1, 0
        %v3462 = vsel %vm3206, 1, 0
        %v3463 = vsel %vm3207, 1, 0
        %v3464 = vsel %vm3208, 1, 0
        %v3465 = vsel %vm3209, 1, 0
        %v3466 = vsel %vm3210, 1, 0
        %v3467 = vsel %vm3211, 1, 0
        %v3468 = vsel %vm3212, 1, 0
        %v3469 = vsel %vm3213, 1, 0
        %v3470 = vsel %vm3214, 1, 0
        %v3471 = vsel %vm3215, 1, 0
        %v3472 = vsel %vm3216, 1, 0
        %v3473 = vsel %vm3217, 1, 0
        %v3474 = vsel %vm3218, 1, 0
        %v3475 = vsel %vm3219, 1, 0
        %v3476 = vsel %vm3220, 1, 0
        %v3477 = vsel %vm3221, 1, 0
        %v3478 = vsel %vm3222, 1, 0
        %v3479 = vsel %vm3223, 1, 0
        %v3480 = vsel %vm3224, 1, 0
        %v3481 = vsel %vm3225, 1, 0
        %v3482 = vsel %vm3226, 1, 0
        %v3483 = vsel %vm3227, 1, 0
        %v3484 = vsel %vm3228, 1, 0
        %v3485 = vsel %vm3229, 1, 0
        %v3486 = vsel %vm3230, 1, 0
        %v3487 = vcvt.s32.f32 %v3231
        %v3488 = vcvt.s32.f32 %v3232
        %v3489 = vcvt.s32.f32 %v3233
        %v3490 = vcvt.s32.f32 %v3234
        %v3491 = vcvt.s32.f32 %v3235
        %v3492 = vcvt.s32.f32 %v3236
        %v3493 = vcvt.s32.f32 %v3237
        %v3494 = vcvt.s32.f32 %v3238
        %v3495 = vcvt.s32.f32 %v3239
        %v3496 = vcvt.s32.f32 %v3240
        %v3497 = vcvt.s32.f32 %v3241
        %v3498 = vcvt.s32.f32 %v3242
        %v3499 = vcvt.s32.f32 %v3243
        %v3500 = vcvt.s32.f32 %v3244
        %v3501 = vcvt.s32.f32 %v3245
        %v3502 = vcvt.s32.f32 %v3246
        %v3503 = vcvt.s32.f32 %v3247
        %v3504 = vcvt.s32.f32 %v3248
        %v3505 = vcvt.s32.f32 %v3249
        %v3506 = vcvt.s32.f32 %v3250
        %v3507 = vcvt.s32.f32 %v3251
        %v3508 = vcvt.s32.f32 %v3252
        %v3509 = vcvt.s32.f32 %v3253
        %v3510 = vcvt.s32.f32 %v3254
        %v3511 = vcvt.s32.f32 %v3255
        %v3512 = vcvt.s32.f32 %v3256
        %v3513 = vcvt.s32.f32 %v3257
        %v3514 = vcvt.s32.f32 %v3258
        %v3515 = vcvt.s32.f32 %v3259
        %v3516 = vcvt.s32.f32 %v3260
        %v3517 = vcvt.s32.f32 %v3261
        %v3518 = vcvt.s32.f32 %v3262
        %v3519 = vcvt.s32.f32 %v3263
        %v3520 = vcvt.s32.f32 %v3264
        %v3521 = vcvt.s32.f32 %v3265
        %v3522 = vcvt.s32.f32 %v3266
        %v3523 = vcvt.s32.f32 %v3267
        %v3524 = vcvt.s32.f32 %v3268
        %v3525 = vcvt.s32.f32 %v3269
        %v3526 = vcvt.s32.f32 %v3270
        %v3527 = vcvt.s32.f32 %v3271
        %v3528 = vcvt.s32.f32 %v3272
        %v3529 = vcvt.s32.f32 %v3273
        %v3530 = vcvt.s32.f32 %v3274
        %v3531 = vcvt.s32.f32 %v3275
        %v3532 = vcvt.s32.f32 %v3276
        %v3533 = vcvt.s32.f32 %v3277
        %v3534 = vcvt.s32.f32 %v3278
        %v3535 = vcvt.s32.f32 %v3279
        %v3536 = vcvt.s32.f32 %v3280
        %v3537 = vcvt.s32.f32 %v3281
        %v3538 = vcvt.s32.f32 %v3282
        %v3539 = vcvt.s32.f32 %v3283
        %v3540 = vcvt.s32.f32 %v3284
        %v3541 = vcvt.s32.f32 %v3285
        %v3542 = vcvt.s32.f32 %v3286
        %v3543 = vcvt.s32.f32 %v3287
        %v3544 = vcvt.s32.f32 %v3288
        %v3545 = vcvt.s32.f32 %v3289
        %v3546 = vcvt.s32.f32 %v3290
        %v3547 = vcvt.s32.f32 %v3291
        %v3548 = vcvt.s32.f32 %v3292
        %v3549 = vcvt.s32.f32 %v3293
        %v3550 = vcvt.s32.f32 %v3294
        %v3551 = vcvt.s32.f32 %v3295
        %v3552 = vcvt.s32.f32 %v3296
        %v3553 = vcvt.s32.f32 %v3297
        %v3554 = vcvt.s32.f32 %v3298
        %v3555 = vcvt.s32.f32 %v3299
        %v3556 = vcvt.s32.f32 %v3300
        %v3557 = vcvt.s32.f32 %v3301
        %v3558 = vcvt.s32.f32 %v3302
        %v3559 = vcvt.s32.f32 %v3303
        %v3560 = vcvt.s32.f32 %v3304
        %v3561 = vcvt.s32.f32 %v3305
        %v3562 = vcvt.s32.f32 %v3306
        %v3563 = vcvt.s32.f32 %v3307
        %v3564 = vcvt.s32.f32 %v3308
        %v3565 = vcvt.s32.f32 %v3309
        %v3566 = vcvt.s32.f32 %v3310
        %v3567 = vcvt.s32.f32 %v3311
        %v3568 = vcvt.s32.f32 %v3312
        %v3569 = vcvt.s32.f32 %v3313
        %v3570 = vcvt.s32.f32 %v3314
        %v3571 = vcvt.s32.f32 %v3315
        %v3572 = vcvt.s32.f32 %v3316
        %v3573 = vcvt.s32.f32 %v3317
        %v3574 = vcvt.s32.f32 %v3318
        %v3575 = vcvt.s32.f32 %v3319
        %v3576 = vcvt.s32.f32 %v3320
        %v3577 = vcvt.s32.f32 %v3321
        %v3578 = vcvt.s32.f32 %v3322
        %v3579 = vcvt.s32.f32 %v3323
        %v3580 = vcvt.s32.f32 %v3324
        %v3581 = vcvt.s32.f32 %v3325
        %v3582 = vcvt.s32.f32 %v3326
        %v3583 = vcvt.s32.f32 %v3327
        %v3584 = vcvt.s32.f32 %v3328
        %v3585 = vcvt.s32.f32 %v3329
        %v3586 = vcvt.s32.f32 %v3330
        %v3587 = vcvt.s32.f32 %v3331
        %v3588 = vcvt.s32.f32 %v3332
        %v3589 = vcvt.s32.f32 %v3333
        %v3590 = vcvt.s32.f32 %v3334
        %v3591 = vcvt.s32.f32 %v3335
        %v3592 = vcvt.s32.f32 %v3336
        %v3593 = vcvt.s32.f32 %v3337
        %v3594 = vcvt.s32.f32 %v3338
        %v3595 = vcvt.s32.f32 %v3339
        %v3596 = vcvt.s32.f32 %v3340
        %v3597 = vcvt.s32.f32 %v3341
        %v3598 = vcvt.s32.f32 %v3342
        %v3599 = vcvt.s32.f32 %v3343
        %v3600 = vcvt.s32.f32 %v3344
        %v3601 = vcvt.s32.f32 %v3345
        %v3602 = vcvt.s32.f32 %v3346
        %v3603 = vcvt.s32.f32 %v3347
        %v3604 = vcvt.s32.f32 %v3348
        %v3605 = vcvt.s32.f32 %v3349
        %v3606 = vcvt.s32.f32 %v3350
        %v3607 = vcvt.s32.f32 %v3351
        %v3608 = vcvt.s32.f32 %v3352
        %v3609 = vcvt.s32.f32 %v3353
        %v3610 = vcvt.s32.f32 %v3354
        %v3611 = vcvt.s32.f32 %v3355
        %v3612 = vcvt.s32.f32 %v3356
        %v3613 = vcvt.s32.f32 %v3357
        %v3614 = vcvt.s32.f32 %v3358
        %v3615 = vcvt.s32.f32 %v3359
        %v3616 = vcvt.s32.f32 %v3360
        %v3617 = vcvt.s32.f32 %v3361
        %v3618 = vcvt.s32.f32 %v3362
        %v3619 = vcvt.s32.f32 %v3363
        %v3620 = vcvt.s32.f32 %v3364
        %v3621 = vcvt.s32.f32 %v3365
        %v3622 = vcvt.s32.f32 %v3366
        %v3623 = vcvt.s32.f32 %v3367
        %v3624 = vcvt.s32.f32 %v3368
        %v3625 = vcvt.s32.f32 %v3369
        %v3626 = vcvt.s32.f32 %v3370
        %v3627 = vcvt.s32.f32 %v3371
        %v3628 = vcvt.s32.f32 %v3372
        %v3629 = vcvt.s32.f32 %v3373
        %v3630 = vcvt.s32.f32 %v3374
        %v3631 = vcvt.s32.f32 %v3375
        %v3632 = vcvt.s32.f32 %v3376
        %v3633 = vcvt.s32.f32 %v3377
        %v3634 = vcvt.s32.f32 %v3378
        %v3635 = vcvt.s32.f32 %v3379
        %v3636 = vcvt.s32.f32 %v3380
        %v3637 = vcvt.s32.f32 %v3381
        %v3638 = vcvt.s32.f32 %v3382
        %v3639 = vcvt.s32.f32 %v3383
        %v3640 = vcvt.s32.f32 %v3384
        %v3641 = vcvt.s32.f32 %v3385
        %v3642 = vcvt.s32.f32 %v3386
        %v3643 = vcvt.s32.f32 %v3387
        %v3644 = vcvt.s32.f32 %v3388
        %v3645 = vcvt.s32.f32 %v3389
        %v3646 = vcvt.s32.f32 %v3390
        %v3647 = vcvt.s32.f32 %v3391
        %v3648 = vcvt.s32.f32 %v3392
        %v3649 = vcvt.s32.f32 %v3393
        %v3650 = vcvt.s32.f32 %v3394
        %v3651 = vcvt.s32.f32 %v3395
        %v3652 = vcvt.s32.f32 %v3396
        %v3653 = vcvt.s32.f32 %v3397
        %v3654 = vcvt.s32.f32 %v3398
        %v3655 = vcvt.s32.f32 %v3399
        %v3656 = vcvt.s32.f32 %v3400
        %v3657 = vcvt.s32.f32 %v3401
        %v3658 = vcvt.s32.f32 %v3402
        %v3659 = vcvt.s32.f32 %v3403
        %v3660 = vcvt.s32.f32 %v3404
        %v3661 = vcvt.s32.f32 %v3405
        %v3662 = vcvt.s32.f32 %v3406
        %v3663 = vcvt.s32.f32 %v3407
        %v3664 = vcvt.s32.f32 %v3408
        %v3665 = vcvt.s32.f32 %v3409
        %v3666 = vcvt.s32.f32 %v3410
        %v3667 = vcvt.s32.f32 %v3411
        %v3668 = vcvt.s32.f32 %v3412
        %v3669 = vcvt.s32.f32 %v3413
        %v3670 = vcvt.s32.f32 %v3414
        %v3671 = vcvt.s32.f32 %v3415
        %v3672 = vcvt.s32.f32 %v3416
        %v3673 = vcvt.s32.f32 %v3417
        %v3674 = vcvt.s32.f32 %v3418
        %v3675 = vcvt.s32.f32 %v3419
        %v3676 = vcvt.s32.f32 %v3420
        %v3677 = vcvt.s32.f32 %v3421
        %v3678 = vcvt.s32.f32 %v3422
        %v3679 = vcvt.s32.f32 %v3423
        %v3680 = vcvt.s32.f32 %v3424
        %v3681 = vcvt.s32.f32 %v3425
        %v3682 = vcvt.s32.f32 %v3426
        %v3683 = vcvt.s32.f32 %v3427
        %v3684 = vcvt.s32.f32 %v3428
        %v3685 = vcvt.s32.f32 %v3429
        %v3686 = vcvt.s32.f32 %v3430
        %v3687 = vcvt.s32.f32 %v3431
        %v3688 = vcvt.s32.f32 %v3432
        %v3689 = vcvt.s32.f32 %v3433
        %v3690 = vcvt.s32.f32 %v3434
        %v3691 = vcvt.s32.f32 %v3435
        %v3692 = vcvt.s32.f32 %v3436
        %v3693 = vcvt.s32.f32 %v3437
        %v3694 = vcvt.s32.f32 %v3438
        %v3695 = vcvt.s32.f32 %v3439
        %v3696 = vcvt.s32.f32 %v3440
        %v3697 = vcvt.s32.f32 %v3441
        %v3698 = vcvt.s32.f32 %v3442
        %v3699 = vcvt.s32.f32 %v3443
        %v3700 = vcvt.s32.f32 %v3444
        %v3701 = vcvt.s32.f32 %v3445
        %v3702 = vcvt.s32.f32 %v3446
        %v3703 = vcvt.s32.f32 %v3447
        %v3704 = vcvt.s32.f32 %v3448
        %v3705 = vcvt.s32.f32 %v3449
        %v3706 = vcvt.s32.f32 %v3450
        %v3707 = vcvt.s32.f32 %v3451
        %v3708 = vcvt.s32.f32 %v3452
        %v3709 = vcvt.s32.f32 %v3453
        %v3710 = vcvt.s32.f32 %v3454
        %v3711 = vcvt.s32.f32 %v3455
        %v3712 = vcvt.s32.f32 %v3456
        %v3713 = vcvt.s32.f32 %v3457
        %v3714 = vcvt.s32.f32 %v3458
        %v3715 = vcvt.s32.f32 %v3459
        %v3716 = vcvt.s32.f32 %v3460
        %v3717 = vcvt.s32.f32 %v3461
        %v3718 = vcvt.s32.f32 %v3462
        %v3719 = vcvt.s32.f32 %v3463
        %v3720 = vcvt.s32.f32 %v3464
        %v3721 = vcvt.s32.f32 %v3465
        %v3722 = vcvt.s32.f32 %v3466
        %v3723 = vcvt.s32.f32 %v3467
        %v3724 = vcvt.s32.f32 %v3468
        %v3725 = vcvt.s32.f32 %v3469
        %v3726 = vcvt.s32.f32 %v3470
        %v3727 = vcvt.s32.f32 %v3471
        %v3728 = vcvt.s32.f32 %v3472
        %v3729 = vcvt.s32.f32 %v3473
        %v3730 = vcvt.s32.f32 %v3474
        %v3731 = vcvt.s32.f32 %v3475
        %v3732 = vcvt.s32.f32 %v3476
        %v3733 = vcvt.s32.f32 %v3477
        %v3734 = vcvt.s32.f32 %v3478
        %v3735 = vcvt.s32.f32 %v3479
        %v3736 = vcvt.s32.f32 %v3480
        %v3737 = vcvt.s32.f32 %v3481
        %v3738 = vcvt.s32.f32 %v3482
        %v3739 = vcvt.s32.f32 %v3483
        %v3740 = vcvt.s32.f32 %v3484
        %v3741 = vcvt.s32.f32 %v3485
        %v3742 = vcvt.s32.f32 %v3486
        %3999 = vset.pattern.permute.xlu0 0
        %4000 = vperm.xlu0 %3999, %v3487
        %v4001 = vpop.permute.xlu0 %4000
        %4002 = vset.pattern.permute.xlu0 0
        %4003 = vperm.xlu0 %4002, %v3488
        %v4004 = vpop.permute.xlu0 %4003
        %4005 = vset.pattern.permute.xlu0 0
        %4006 = vperm.xlu0 %4005, %v3489
        %v4007 = vpop.permute.xlu0 %4006
        %4008 = vset.pattern.permute.xlu0 0
        %4009 = vperm.xlu0 %4008, %v3490
        %v4010 = vpop.permute.xlu0 %4009
        %4011 = vset.pattern.permute.xlu0 0
        %4012 = vperm.xlu0 %4011, %v3491
        %v4013 = vpop.permute.xlu0 %4012
        %4014 = vset.pattern.permute.xlu0 0
        %4015 = vperm.xlu0 %4014, %v3492
        %v4016 = vpop.permute.xlu0 %4015
        %4017 = vset.pattern.permute.xlu0 0
        %4018 = vperm.xlu0 %4017, %v3493
        %v4019 = vpop.permute.xlu0 %4018
        %4020 = vset.pattern.permute.xlu0 0
        %4021 = vperm.xlu0 %4020, %v3494
        %v4022 = vpop.permute.xlu0 %4021
        %4023 = vset.pattern.permute.xlu0 0
        %4024 = vperm.xlu0 %4023, %v3495
        %v4025 = vpop.permute.xlu0 %4024
        %4026 = vset.pattern.permute.xlu0 0
        %4027 = vperm.xlu0 %4026, %v3496
        %v4028 = vpop.permute.xlu0 %4027
        %4029 = vset.pattern.permute.xlu0 0
        %4030 = vperm.xlu0 %4029, %v3497
        %v4031 = vpop.permute.xlu0 %4030
        %4032 = vset.pattern.permute.xlu0 0
        %4033 = vperm.xlu0 %4032, %v3498
        %v4034 = vpop.permute.xlu0 %4033
        %4035 = vset.pattern.permute.xlu0 0
        %4036 = vperm.xlu0 %4035, %v3499
        %v4037 = vpop.permute.xlu0 %4036
        %4038 = vset.pattern.permute.xlu0 0
        %4039 = vperm.xlu0 %4038, %v3500
        %v4040 = vpop.permute.xlu0 %4039
        %4041 = vset.pattern.permute.xlu0 0
        %4042 = vperm.xlu0 %4041, %v3501
        %v4043 = vpop.permute.xlu0 %4042
        %4044 = vset.pattern.permute.xlu0 0
        %4045 = vperm.xlu0 %4044, %v3502
        %v4046 = vpop.permute.xlu0 %4045
        %4047 = vset.pattern.permute.xlu0 0
        %4048 = vperm.xlu0 %4047, %v3503
        %v4049 = vpop.permute.xlu0 %4048
        %4050 = vset.pattern.permute.xlu0 0
        %4051 = vperm.xlu0 %4050, %v3504
        %v4052 = vpop.permute.xlu0 %4051
        %4053 = vset.pattern.permute.xlu0 0
        %4054 = vperm.xlu0 %4053, %v3505
        %v4055 = vpop.permute.xlu0 %4054
        %4056 = vset.pattern.permute.xlu0 0
        %4057 = vperm.xlu0 %4056, %v3506
        %v4058 = vpop.permute.xlu0 %4057
        %4059 = vset.pattern.permute.xlu0 0
        %4060 = vperm.xlu0 %4059, %v3507
        %v4061 = vpop.permute.xlu0 %4060
        %4062 = vset.pattern.permute.xlu0 0
        %4063 = vperm.xlu0 %4062, %v3508
        %v4064 = vpop.permute.xlu0 %4063
        %4065 = vset.pattern.permute.xlu0 0
        %4066 = vperm.xlu0 %4065, %v3509
        %v4067 = vpop.permute.xlu0 %4066
        %4068 = vset.pattern.permute.xlu0 0
        %4069 = vperm.xlu0 %4068, %v3510
        %v4070 = vpop.permute.xlu0 %4069
        %4071 = vset.pattern.permute.xlu0 0
        %4072 = vperm.xlu0 %4071, %v3511
        %v4073 = vpop.permute.xlu0 %4072
        %4074 = vset.pattern.permute.xlu0 0
        %4075 = vperm.xlu0 %4074, %v3512
        %v4076 = vpop.permute.xlu0 %4075
        %4077 = vset.pattern.permute.xlu0 0
        %4078 = vperm.xlu0 %4077, %v3513
        %v4079 = vpop.permute.xlu0 %4078
        %4080 = vset.pattern.permute.xlu0 0
        %4081 = vperm.xlu0 %4080, %v3514
        %v4082 = vpop.permute.xlu0 %4081
        %4083 = vset.pattern.permute.xlu0 0
        %4084 = vperm.xlu0 %4083, %v3515
        %v4085 = vpop.permute.xlu0 %4084
        %4086 = vset.pattern.permute.xlu0 0
        %4087 = vperm.xlu0 %4086, %v3516
        %v4088 = vpop.permute.xlu0 %4087
        %4089 = vset.pattern.permute.xlu0 0
        %4090 = vperm.xlu0 %4089, %v3517
        %v4091 = vpop.permute.xlu0 %4090
        %4092 = vset.pattern.permute.xlu0 0
        %4093 = vperm.xlu0 %4092, %v3518
        %v4094 = vpop.permute.xlu0 %4093
        %4095 = vset.pattern.permute.xlu0 0
        %4096 = vperm.xlu0 %4095, %v3519
        %v4097 = vpop.permute.xlu0 %4096
        %4098 = vset.pattern.permute.xlu0 0
        %4099 = vperm.xlu0 %4098, %v3520
        %v4100 = vpop.permute.xlu0 %4099
        %4101 = vset.pattern.permute.xlu0 0
        %4102 = vperm.xlu0 %4101, %v3521
        %v4103 = vpop.permute.xlu0 %4102
        %4104 = vset.pattern.permute.xlu0 0
        %4105 = vperm.xlu0 %4104, %v3522
        %v4106 = vpop.permute.xlu0 %4105
        %4107 = vset.pattern.permute.xlu0 0
        %4108 = vperm.xlu0 %4107, %v3523
        %v4109 = vpop.permute.xlu0 %4108
        %4110 = vset.pattern.permute.xlu0 0
        %4111 = vperm.xlu0 %4110, %v3524
        %v4112 = vpop.permute.xlu0 %4111
        %4113 = vset.pattern.permute.xlu0 0
        %4114 = vperm.xlu0 %4113, %v3525
        %v4115 = vpop.permute.xlu0 %4114
        %4116 = vset.pattern.permute.xlu0 0
        %4117 = vperm.xlu0 %4116, %v3526
        %v4118 = vpop.permute.xlu0 %4117
        %4119 = vset.pattern.permute.xlu0 0
        %4120 = vperm.xlu0 %4119, %v3527
        %v4121 = vpop.permute.xlu0 %4120
        %4122 = vset.pattern.permute.xlu0 0
        %4123 = vperm.xlu0 %4122, %v3528
        %v4124 = vpop.permute.xlu0 %4123
        %4125 = vset.pattern.permute.xlu0 0
        %4126 = vperm.xlu0 %4125, %v3529
        %v4127 = vpop.permute.xlu0 %4126
        %4128 = vset.pattern.permute.xlu0 0
        %4129 = vperm.xlu0 %4128, %v3530
        %v4130 = vpop.permute.xlu0 %4129
        %4131 = vset.pattern.permute.xlu0 0
        %4132 = vperm.xlu0 %4131, %v3531
        %v4133 = vpop.permute.xlu0 %4132
        %4134 = vset.pattern.permute.xlu0 0
        %4135 = vperm.xlu0 %4134, %v3532
        %v4136 = vpop.permute.xlu0 %4135
        %4137 = vset.pattern.permute.xlu0 0
        %4138 = vperm.xlu0 %4137, %v3533
        %v4139 = vpop.permute.xlu0 %4138
        %4140 = vset.pattern.permute.xlu0 0
        %4141 = vperm.xlu0 %4140, %v3534
        %v4142 = vpop.permute.xlu0 %4141
        %4143 = vset.pattern.permute.xlu0 0
        %4144 = vperm.xlu0 %4143, %v3535
        %v4145 = vpop.permute.xlu0 %4144
        %4146 = vset.pattern.permute.xlu0 0
        %4147 = vperm.xlu0 %4146, %v3536
        %v4148 = vpop.permute.xlu0 %4147
        %4149 = vset.pattern.permute.xlu0 0
        %4150 = vperm.xlu0 %4149, %v3537
        %v4151 = vpop.permute.xlu0 %4150
        %4152 = vset.pattern.permute.xlu0 0
        %4153 = vperm.xlu0 %4152, %v3538
        %v4154 = vpop.permute.xlu0 %4153
        %4155 = vset.pattern.permute.xlu0 0
        %4156 = vperm.xlu0 %4155, %v3539
        %v4157 = vpop.permute.xlu0 %4156
        %4158 = vset.pattern.permute.xlu0 0
        %4159 = vperm.xlu0 %4158, %v3540
        %v4160 = vpop.permute.xlu0 %4159
        %4161 = vset.pattern.permute.xlu0 0
        %4162 = vperm.xlu0 %4161, %v3541
        %v4163 = vpop.permute.xlu0 %4162
        %4164 = vset.pattern.permute.xlu0 0
        %4165 = vperm.xlu0 %4164, %v3542
        %v4166 = vpop.permute.xlu0 %4165
        %4167 = vset.pattern.permute.xlu0 0
        %4168 = vperm.xlu0 %4167, %v3543
        %v4169 = vpop.permute.xlu0 %4168
        %4170 = vset.pattern.permute.xlu0 0
        %4171 = vperm.xlu0 %4170, %v3544
        %v4172 = vpop.permute.xlu0 %4171
        %4173 = vset.pattern.permute.xlu0 0
        %4174 = vperm.xlu0 %4173, %v3545
        %v4175 = vpop.permute.xlu0 %4174
        %4176 = vset.pattern.permute.xlu0 0
        %4177 = vperm.xlu0 %4176, %v3546
        %v4178 = vpop.permute.xlu0 %4177
        %4179 = vset.pattern.permute.xlu0 0
        %4180 = vperm.xlu0 %4179, %v3547
        %v4181 = vpop.permute.xlu0 %4180
        %4182 = vset.pattern.permute.xlu0 0
        %4183 = vperm.xlu0 %4182, %v3548
        %v4184 = vpop.permute.xlu0 %4183
        %4185 = vset.pattern.permute.xlu0 0
        %4186 = vperm.xlu0 %4185, %v3549
        %v4187 = vpop.permute.xlu0 %4186
        %4188 = vset.pattern.permute.xlu0 0
        %4189 = vperm.xlu0 %4188, %v3550
        %v4190 = vpop.permute.xlu0 %4189
        %4191 = vset.pattern.permute.xlu0 0
        %4192 = vperm.xlu0 %4191, %v3551
        %v4193 = vpop.permute.xlu0 %4192
        %4194 = vset.pattern.permute.xlu0 0
        %4195 = vperm.xlu0 %4194, %v3552
        %v4196 = vpop.permute.xlu0 %4195
        %4197 = vset.pattern.permute.xlu0 0
        %4198 = vperm.xlu0 %4197, %v3553
        %v4199 = vpop.permute.xlu0 %4198
        %4200 = vset.pattern.permute.xlu0 0
        %4201 = vperm.xlu0 %4200, %v3554
        %v4202 = vpop.permute.xlu0 %4201
        %4203 = vset.pattern.permute.xlu0 0
        %4204 = vperm.xlu0 %4203, %v3555
        %v4205 = vpop.permute.xlu0 %4204
        %4206 = vset.pattern.permute.xlu0 0
        %4207 = vperm.xlu0 %4206, %v3556
        %v4208 = vpop.permute.xlu0 %4207
        %4209 = vset.pattern.permute.xlu0 0
        %4210 = vperm.xlu0 %4209, %v3557
        %v4211 = vpop.permute.xlu0 %4210
        %4212 = vset.pattern.permute.xlu0 0
        %4213 = vperm.xlu0 %4212, %v3558
        %v4214 = vpop.permute.xlu0 %4213
        %4215 = vset.pattern.permute.xlu0 0
        %4216 = vperm.xlu0 %4215, %v3559
        %v4217 = vpop.permute.xlu0 %4216
        %4218 = vset.pattern.permute.xlu0 0
        %4219 = vperm.xlu0 %4218, %v3560
        %v4220 = vpop.permute.xlu0 %4219
        %4221 = vset.pattern.permute.xlu0 0
        %4222 = vperm.xlu0 %4221, %v3561
        %v4223 = vpop.permute.xlu0 %4222
        %4224 = vset.pattern.permute.xlu0 0
        %4225 = vperm.xlu0 %4224, %v3562
        %v4226 = vpop.permute.xlu0 %4225
        %4227 = vset.pattern.permute.xlu0 0
        %4228 = vperm.xlu0 %4227, %v3563
        %v4229 = vpop.permute.xlu0 %4228
        %4230 = vset.pattern.permute.xlu0 0
        %4231 = vperm.xlu0 %4230, %v3564
        %v4232 = vpop.permute.xlu0 %4231
        %4233 = vset.pattern.permute.xlu0 0
        %4234 = vperm.xlu0 %4233, %v3565
        %v4235 = vpop.permute.xlu0 %4234
        %4236 = vset.pattern.permute.xlu0 0
        %4237 = vperm.xlu0 %4236, %v3566
        %v4238 = vpop.permute.xlu0 %4237
        %4239 = vset.pattern.permute.xlu0 0
        %4240 = vperm.xlu0 %4239, %v3567
        %v4241 = vpop.permute.xlu0 %4240
        %4242 = vset.pattern.permute.xlu0 0
        %4243 = vperm.xlu0 %4242, %v3568
        %v4244 = vpop.permute.xlu0 %4243
        %4245 = vset.pattern.permute.xlu0 0
        %4246 = vperm.xlu0 %4245, %v3569
        %v4247 = vpop.permute.xlu0 %4246
        %4248 = vset.pattern.permute.xlu0 0
        %4249 = vperm.xlu0 %4248, %v3570
        %v4250 = vpop.permute.xlu0 %4249
        %4251 = vset.pattern.permute.xlu0 0
        %4252 = vperm.xlu0 %4251, %v3571
        %v4253 = vpop.permute.xlu0 %4252
        %4254 = vset.pattern.permute.xlu0 0
        %4255 = vperm.xlu0 %4254, %v3572
        %v4256 = vpop.permute.xlu0 %4255
        %4257 = vset.pattern.permute.xlu0 0
        %4258 = vperm.xlu0 %4257, %v3573
        %v4259 = vpop.permute.xlu0 %4258
        %4260 = vset.pattern.permute.xlu0 0
        %4261 = vperm.xlu0 %4260, %v3574
        %v4262 = vpop.permute.xlu0 %4261
        %4263 = vset.pattern.permute.xlu0 0
        %4264 = vperm.xlu0 %4263, %v3575
        %v4265 = vpop.permute.xlu0 %4264
        %4266 = vset.pattern.permute.xlu0 0
        %4267 = vperm.xlu0 %4266, %v3576
        %v4268 = vpop.permute.xlu0 %4267
        %4269 = vset.pattern.permute.xlu0 0
        %4270 = vperm.xlu0 %4269, %v3577
        %v4271 = vpop.permute.xlu0 %4270
        %4272 = vset.pattern.permute.xlu0 0
        %4273 = vperm.xlu0 %4272, %v3578
        %v4274 = vpop.permute.xlu0 %4273
        %4275 = vset.pattern.permute.xlu0 0
        %4276 = vperm.xlu0 %4275, %v3579
        %v4277 = vpop.permute.xlu0 %4276
        %4278 = vset.pattern.permute.xlu0 0
        %4279 = vperm.xlu0 %4278, %v3580
        %v4280 = vpop.permute.xlu0 %4279
        %4281 = vset.pattern.permute.xlu0 0
        %4282 = vperm.xlu0 %4281, %v3581
        %v4283 = vpop.permute.xlu0 %4282
        %4284 = vset.pattern.permute.xlu0 0
        %4285 = vperm.xlu0 %4284, %v3582
        %v4286 = vpop.permute.xlu0 %4285
        %4287 = vset.pattern.permute.xlu0 0
        %4288 = vperm.xlu0 %4287, %v3583
        %v4289 = vpop.permute.xlu0 %4288
        %4290 = vset.pattern.permute.xlu0 0
        %4291 = vperm.xlu0 %4290, %v3584
        %v4292 = vpop.permute.xlu0 %4291
        %4293 = vset.pattern.permute.xlu0 0
        %4294 = vperm.xlu0 %4293, %v3585
        %v4295 = vpop.permute.xlu0 %4294
        %4296 = vset.pattern.permute.xlu0 0
        %4297 = vperm.xlu0 %4296, %v3586
        %v4298 = vpop.permute.xlu0 %4297
        %4299 = vset.pattern.permute.xlu0 0
        %4300 = vperm.xlu0 %4299, %v3587
        %v4301 = vpop.permute.xlu0 %4300
        %4302 = vset.pattern.permute.xlu0 0
        %4303 = vperm.xlu0 %4302, %v3588
        %v4304 = vpop.permute.xlu0 %4303
        %4305 = vset.pattern.permute.xlu0 0
        %4306 = vperm.xlu0 %4305, %v3589
        %v4307 = vpop.permute.xlu0 %4306
        %4308 = vset.pattern.permute.xlu0 0
        %4309 = vperm.xlu0 %4308, %v3590
        %v4310 = vpop.permute.xlu0 %4309
        %4311 = vset.pattern.permute.xlu0 0
        %4312 = vperm.xlu0 %4311, %v3591
        %v4313 = vpop.permute.xlu0 %4312
        %4314 = vset.pattern.permute.xlu0 0
        %4315 = vperm.xlu0 %4314, %v3592
        %v4316 = vpop.permute.xlu0 %4315
        %4317 = vset.pattern.permute.xlu0 0
        %4318 = vperm.xlu0 %4317, %v3593
        %v4319 = vpop.permute.xlu0 %4318
        %4320 = vset.pattern.permute.xlu0 0
        %4321 = vperm.xlu0 %4320, %v3594
        %v4322 = vpop.permute.xlu0 %4321
        %4323 = vset.pattern.permute.xlu0 0
        %4324 = vperm.xlu0 %4323, %v3595
        %v4325 = vpop.permute.xlu0 %4324
        %4326 = vset.pattern.permute.xlu0 0
        %4327 = vperm.xlu0 %4326, %v3596
        %v4328 = vpop.permute.xlu0 %4327
        %4329 = vset.pattern.permute.xlu0 0
        %4330 = vperm.xlu0 %4329, %v3597
        %v4331 = vpop.permute.xlu0 %4330
        %4332 = vset.pattern.permute.xlu0 0
        %4333 = vperm.xlu0 %4332, %v3598
        %v4334 = vpop.permute.xlu0 %4333
        %4335 = vset.pattern.permute.xlu0 0
        %4336 = vperm.xlu0 %4335, %v3599
        %v4337 = vpop.permute.xlu0 %4336
        %4338 = vset.pattern.permute.xlu0 0
        %4339 = vperm.xlu0 %4338, %v3600
        %v4340 = vpop.permute.xlu0 %4339
        %4341 = vset.pattern.permute.xlu0 0
        %4342 = vperm.xlu0 %4341, %v3601
        %v4343 = vpop.permute.xlu0 %4342
        %4344 = vset.pattern.permute.xlu0 0
        %4345 = vperm.xlu0 %4344, %v3602
        %v4346 = vpop.permute.xlu0 %4345
        %4347 = vset.pattern.permute.xlu0 0
        %4348 = vperm.xlu0 %4347, %v3603
        %v4349 = vpop.permute.xlu0 %4348
        %4350 = vset.pattern.permute.xlu0 0
        %4351 = vperm.xlu0 %4350, %v3604
        %v4352 = vpop.permute.xlu0 %4351
        %4353 = vset.pattern.permute.xlu0 0
        %4354 = vperm.xlu0 %4353, %v3605
        %v4355 = vpop.permute.xlu0 %4354
        %4356 = vset.pattern.permute.xlu0 0
        %4357 = vperm.xlu0 %4356, %v3606
        %v4358 = vpop.permute.xlu0 %4357
        %4359 = vset.pattern.permute.xlu0 0
        %4360 = vperm.xlu0 %4359, %v3607
        %v4361 = vpop.permute.xlu0 %4360
        %4362 = vset.pattern.permute.xlu0 0
        %4363 = vperm.xlu0 %4362, %v3608
        %v4364 = vpop.permute.xlu0 %4363
        %4365 = vset.pattern.permute.xlu0 0
        %4366 = vperm.xlu0 %4365, %v3609
        %v4367 = vpop.permute.xlu0 %4366
        %4368 = vset.pattern.permute.xlu0 0
        %4369 = vperm.xlu0 %4368, %v3610
        %v4370 = vpop.permute.xlu0 %4369
        %4371 = vset.pattern.permute.xlu0 0
        %4372 = vperm.xlu0 %4371, %v3611
        %v4373 = vpop.permute.xlu0 %4372
        %4374 = vset.pattern.permute.xlu0 0
        %4375 = vperm.xlu0 %4374, %v3612
        %v4376 = vpop.permute.xlu0 %4375
        %4377 = vset.pattern.permute.xlu0 0
        %4378 = vperm.xlu0 %4377, %v3613
        %v4379 = vpop.permute.xlu0 %4378
        %4380 = vset.pattern.permute.xlu0 0
        %4381 = vperm.xlu0 %4380, %v3614
        %v4382 = vpop.permute.xlu0 %4381
        %4383 = vset.pattern.permute.xlu0 0
        %4384 = vperm.xlu0 %4383, %v3615
        %v4385 = vpop.permute.xlu0 %4384
        %4386 = vset.pattern.permute.xlu0 0
        %4387 = vperm.xlu0 %4386, %v3616
        %v4388 = vpop.permute.xlu0 %4387
        %4389 = vset.pattern.permute.xlu0 0
        %4390 = vperm.xlu0 %4389, %v3617
        %v4391 = vpop.permute.xlu0 %4390
        %4392 = vset.pattern.permute.xlu0 0
        %4393 = vperm.xlu0 %4392, %v3618
        %v4394 = vpop.permute.xlu0 %4393
        %4395 = vset.pattern.permute.xlu0 0
        %4396 = vperm.xlu0 %4395, %v3619
        %v4397 = vpop.permute.xlu0 %4396
        %4398 = vset.pattern.permute.xlu0 0
        %4399 = vperm.xlu0 %4398, %v3620
        %v4400 = vpop.permute.xlu0 %4399
        %4401 = vset.pattern.permute.xlu0 0
        %4402 = vperm.xlu0 %4401, %v3621
        %v4403 = vpop.permute.xlu0 %4402
        %4404 = vset.pattern.permute.xlu0 0
        %4405 = vperm.xlu0 %4404, %v3622
        %v4406 = vpop.permute.xlu0 %4405
        %4407 = vset.pattern.permute.xlu0 0
        %4408 = vperm.xlu0 %4407, %v3623
        %v4409 = vpop.permute.xlu0 %4408
        %4410 = vset.pattern.permute.xlu0 0
        %4411 = vperm.xlu0 %4410, %v3624
        %v4412 = vpop.permute.xlu0 %4411
        %4413 = vset.pattern.permute.xlu0 0
        %4414 = vperm.xlu0 %4413, %v3625
        %v4415 = vpop.permute.xlu0 %4414
        %4416 = vset.pattern.permute.xlu0 0
        %4417 = vperm.xlu0 %4416, %v3626
        %v4418 = vpop.permute.xlu0 %4417
        %4419 = vset.pattern.permute.xlu0 0
        %4420 = vperm.xlu0 %4419, %v3627
        %v4421 = vpop.permute.xlu0 %4420
        %4422 = vset.pattern.permute.xlu0 0
        %4423 = vperm.xlu0 %4422, %v3628
        %v4424 = vpop.permute.xlu0 %4423
        %4425 = vset.pattern.permute.xlu0 0
        %4426 = vperm.xlu0 %4425, %v3629
        %v4427 = vpop.permute.xlu0 %4426
        %4428 = vset.pattern.permute.xlu0 0
        %4429 = vperm.xlu0 %4428, %v3630
        %v4430 = vpop.permute.xlu0 %4429
        %4431 = vset.pattern.permute.xlu0 0
        %4432 = vperm.xlu0 %4431, %v3631
        %v4433 = vpop.permute.xlu0 %4432
        %4434 = vset.pattern.permute.xlu0 0
        %4435 = vperm.xlu0 %4434, %v3632
        %v4436 = vpop.permute.xlu0 %4435
        %4437 = vset.pattern.permute.xlu0 0
        %4438 = vperm.xlu0 %4437, %v3633
        %v4439 = vpop.permute.xlu0 %4438
        %4440 = vset.pattern.permute.xlu0 0
        %4441 = vperm.xlu0 %4440, %v3634
        %v4442 = vpop.permute.xlu0 %4441
        %4443 = vset.pattern.permute.xlu0 0
        %4444 = vperm.xlu0 %4443, %v3635
        %v4445 = vpop.permute.xlu0 %4444
        %4446 = vset.pattern.permute.xlu0 0
        %4447 = vperm.xlu0 %4446, %v3636
        %v4448 = vpop.permute.xlu0 %4447
        %4449 = vset.pattern.permute.xlu0 0
        %4450 = vperm.xlu0 %4449, %v3637
        %v4451 = vpop.permute.xlu0 %4450
        %4452 = vset.pattern.permute.xlu0 0
        %4453 = vperm.xlu0 %4452, %v3638
        %v4454 = vpop.permute.xlu0 %4453
        %4455 = vset.pattern.permute.xlu0 0
        %4456 = vperm.xlu0 %4455, %v3639
        %v4457 = vpop.permute.xlu0 %4456
        %4458 = vset.pattern.permute.xlu0 0
        %4459 = vperm.xlu0 %4458, %v3640
        %v4460 = vpop.permute.xlu0 %4459
        %4461 = vset.pattern.permute.xlu0 0
        %4462 = vperm.xlu0 %4461, %v3641
        %v4463 = vpop.permute.xlu0 %4462
        %4464 = vset.pattern.permute.xlu0 0
        %4465 = vperm.xlu0 %4464, %v3642
        %v4466 = vpop.permute.xlu0 %4465
        %4467 = vset.pattern.permute.xlu0 0
        %4468 = vperm.xlu0 %4467, %v3643
        %v4469 = vpop.permute.xlu0 %4468
        %4470 = vset.pattern.permute.xlu0 0
        %4471 = vperm.xlu0 %4470, %v3644
        %v4472 = vpop.permute.xlu0 %4471
        %4473 = vset.pattern.permute.xlu0 0
        %4474 = vperm.xlu0 %4473, %v3645
        %v4475 = vpop.permute.xlu0 %4474
        %4476 = vset.pattern.permute.xlu0 0
        %4477 = vperm.xlu0 %4476, %v3646
        %v4478 = vpop.permute.xlu0 %4477
        %4479 = vset.pattern.permute.xlu0 0
        %4480 = vperm.xlu0 %4479, %v3647
        %v4481 = vpop.permute.xlu0 %4480
        %4482 = vset.pattern.permute.xlu0 0
        %4483 = vperm.xlu0 %4482, %v3648
        %v4484 = vpop.permute.xlu0 %4483
        %4485 = vset.pattern.permute.xlu0 0
        %4486 = vperm.xlu0 %4485, %v3649
        %v4487 = vpop.permute.xlu0 %4486
        %4488 = vset.pattern.permute.xlu0 0
        %4489 = vperm.xlu0 %4488, %v3650
        %v4490 = vpop.permute.xlu0 %4489
        %4491 = vset.pattern.permute.xlu0 0
        %4492 = vperm.xlu0 %4491, %v3651
        %v4493 = vpop.permute.xlu0 %4492
        %4494 = vset.pattern.permute.xlu0 0
        %4495 = vperm.xlu0 %4494, %v3652
        %v4496 = vpop.permute.xlu0 %4495
        %4497 = vset.pattern.permute.xlu0 0
        %4498 = vperm.xlu0 %4497, %v3653
        %v4499 = vpop.permute.xlu0 %4498
        %4500 = vset.pattern.permute.xlu0 0
        %4501 = vperm.xlu0 %4500, %v3654
        %v4502 = vpop.permute.xlu0 %4501
        %4503 = vset.pattern.permute.xlu0 0
        %4504 = vperm.xlu0 %4503, %v3655
        %v4505 = vpop.permute.xlu0 %4504
        %4506 = vset.pattern.permute.xlu0 0
        %4507 = vperm.xlu0 %4506, %v3656
        %v4508 = vpop.permute.xlu0 %4507
        %4509 = vset.pattern.permute.xlu0 0
        %4510 = vperm.xlu0 %4509, %v3657
        %v4511 = vpop.permute.xlu0 %4510
        %4512 = vset.pattern.permute.xlu0 0
        %4513 = vperm.xlu0 %4512, %v3658
        %v4514 = vpop.permute.xlu0 %4513
        %4515 = vset.pattern.permute.xlu0 0
        %4516 = vperm.xlu0 %4515, %v3659
        %v4517 = vpop.permute.xlu0 %4516
        %4518 = vset.pattern.permute.xlu0 0
        %4519 = vperm.xlu0 %4518, %v3660
        %v4520 = vpop.permute.xlu0 %4519
        %4521 = vset.pattern.permute.xlu0 0
        %4522 = vperm.xlu0 %4521, %v3661
        %v4523 = vpop.permute.xlu0 %4522
        %4524 = vset.pattern.permute.xlu0 0
        %4525 = vperm.xlu0 %4524, %v3662
        %v4526 = vpop.permute.xlu0 %4525
        %4527 = vset.pattern.permute.xlu0 0
        %4528 = vperm.xlu0 %4527, %v3663
        %v4529 = vpop.permute.xlu0 %4528
        %4530 = vset.pattern.permute.xlu0 0
        %4531 = vperm.xlu0 %4530, %v3664
        %v4532 = vpop.permute.xlu0 %4531
        %4533 = vset.pattern.permute.xlu0 0
        %4534 = vperm.xlu0 %4533, %v3665
        %v4535 = vpop.permute.xlu0 %4534
        %4536 = vset.pattern.permute.xlu0 0
        %4537 = vperm.xlu0 %4536, %v3666
        %v4538 = vpop.permute.xlu0 %4537
        %4539 = vset.pattern.permute.xlu0 0
        %4540 = vperm.xlu0 %4539, %v3667
        %v4541 = vpop.permute.xlu0 %4540
        %4542 = vset.pattern.permute.xlu0 0
        %4543 = vperm.xlu0 %4542, %v3668
        %v4544 = vpop.permute.xlu0 %4543
        %4545 = vset.pattern.permute.xlu0 0
        %4546 = vperm.xlu0 %4545, %v3669
        %v4547 = vpop.permute.xlu0 %4546
        %4548 = vset.pattern.permute.xlu0 0
        %4549 = vperm.xlu0 %4548, %v3670
        %v4550 = vpop.permute.xlu0 %4549
        %4551 = vset.pattern.permute.xlu0 0
        %4552 = vperm.xlu0 %4551, %v3671
        %v4553 = vpop.permute.xlu0 %4552
        %4554 = vset.pattern.permute.xlu0 0
        %4555 = vperm.xlu0 %4554, %v3672
        %v4556 = vpop.permute.xlu0 %4555
        %4557 = vset.pattern.permute.xlu0 0
        %4558 = vperm.xlu0 %4557, %v3673
        %v4559 = vpop.permute.xlu0 %4558
        %4560 = vset.pattern.permute.xlu0 0
        %4561 = vperm.xlu0 %4560, %v3674
        %v4562 = vpop.permute.xlu0 %4561
        %4563 = vset.pattern.permute.xlu0 0
        %4564 = vperm.xlu0 %4563, %v3675
        %v4565 = vpop.permute.xlu0 %4564
        %4566 = vset.pattern.permute.xlu0 0
        %4567 = vperm.xlu0 %4566, %v3676
        %v4568 = vpop.permute.xlu0 %4567
        %4569 = vset.pattern.permute.xlu0 0
        %4570 = vperm.xlu0 %4569, %v3677
        %v4571 = vpop.permute.xlu0 %4570
        %4572 = vset.pattern.permute.xlu0 0
        %4573 = vperm.xlu0 %4572, %v3678
        %v4574 = vpop.permute.xlu0 %4573
        %4575 = vset.pattern.permute.xlu0 0
        %4576 = vperm.xlu0 %4575, %v3679
        %v4577 = vpop.permute.xlu0 %4576
        %4578 = vset.pattern.permute.xlu0 0
        %4579 = vperm.xlu0 %4578, %v3680
        %v4580 = vpop.permute.xlu0 %4579
        %4581 = vset.pattern.permute.xlu0 0
        %4582 = vperm.xlu0 %4581, %v3681
        %v4583 = vpop.permute.xlu0 %4582
        %4584 = vset.pattern.permute.xlu0 0
        %4585 = vperm.xlu0 %4584, %v3682
        %v4586 = vpop.permute.xlu0 %4585
        %4587 = vset.pattern.permute.xlu0 0
        %4588 = vperm.xlu0 %4587, %v3683
        %v4589 = vpop.permute.xlu0 %4588
        %4590 = vset.pattern.permute.xlu0 0
        %4591 = vperm.xlu0 %4590, %v3684
        %v4592 = vpop.permute.xlu0 %4591
        %4593 = vset.pattern.permute.xlu0 0
        %4594 = vperm.xlu0 %4593, %v3685
        %v4595 = vpop.permute.xlu0 %4594
        %4596 = vset.pattern.permute.xlu0 0
        %4597 = vperm.xlu0 %4596, %v3686
        %v4598 = vpop.permute.xlu0 %4597
        %4599 = vset.pattern.permute.xlu0 0
        %4600 = vperm.xlu0 %4599, %v3687
        %v4601 = vpop.permute.xlu0 %4600
        %4602 = vset.pattern.permute.xlu0 0
        %4603 = vperm.xlu0 %4602, %v3688
        %v4604 = vpop.permute.xlu0 %4603
        %4605 = vset.pattern.permute.xlu0 0
        %4606 = vperm.xlu0 %4605, %v3689
        %v4607 = vpop.permute.xlu0 %4606
        %4608 = vset.pattern.permute.xlu0 0
        %4609 = vperm.xlu0 %4608, %v3690
        %v4610 = vpop.permute.xlu0 %4609
        %4611 = vset.pattern.permute.xlu0 0
        %4612 = vperm.xlu0 %4611, %v3691
        %v4613 = vpop.permute.xlu0 %4612
        %4614 = vset.pattern.permute.xlu0 0
        %4615 = vperm.xlu0 %4614, %v3692
        %v4616 = vpop.permute.xlu0 %4615
        %4617 = vset.pattern.permute.xlu0 0
        %4618 = vperm.xlu0 %4617, %v3693
        %v4619 = vpop.permute.xlu0 %4618
        %4620 = vset.pattern.permute.xlu0 0
        %4621 = vperm.xlu0 %4620, %v3694
        %v4622 = vpop.permute.xlu0 %4621
        %4623 = vset.pattern.permute.xlu0 0
        %4624 = vperm.xlu0 %4623, %v3695
        %v4625 = vpop.permute.xlu0 %4624
        %4626 = vset.pattern.permute.xlu0 0
        %4627 = vperm.xlu0 %4626, %v3696
        %v4628 = vpop.permute.xlu0 %4627
        %4629 = vset.pattern.permute.xlu0 0
        %4630 = vperm.xlu0 %4629, %v3697
        %v4631 = vpop.permute.xlu0 %4630
        %4632 = vset.pattern.permute.xlu0 0
        %4633 = vperm.xlu0 %4632, %v3698
        %v4634 = vpop.permute.xlu0 %4633
        %4635 = vset.pattern.permute.xlu0 0
        %4636 = vperm.xlu0 %4635, %v3699
        %v4637 = vpop.permute.xlu0 %4636
        %4638 = vset.pattern.permute.xlu0 0
        %4639 = vperm.xlu0 %4638, %v3700
        %v4640 = vpop.permute.xlu0 %4639
        %4641 = vset.pattern.permute.xlu0 0
        %4642 = vperm.xlu0 %4641, %v3701
        %v4643 = vpop.permute.xlu0 %4642
        %4644 = vset.pattern.permute.xlu0 0
        %4645 = vperm.xlu0 %4644, %v3702
        %v4646 = vpop.permute.xlu0 %4645
        %4647 = vset.pattern.permute.xlu0 0
        %4648 = vperm.xlu0 %4647, %v3703
        %v4649 = vpop.permute.xlu0 %4648
        %4650 = vset.pattern.permute.xlu0 0
        %4651 = vperm.xlu0 %4650, %v3704
        %v4652 = vpop.permute.xlu0 %4651
        %4653 = vset.pattern.permute.xlu0 0
        %4654 = vperm.xlu0 %4653, %v3705
        %v4655 = vpop.permute.xlu0 %4654
        %4656 = vset.pattern.permute.xlu0 0
        %4657 = vperm.xlu0 %4656, %v3706
        %v4658 = vpop.permute.xlu0 %4657
        %4659 = vset.pattern.permute.xlu0 0
        %4660 = vperm.xlu0 %4659, %v3707
        %v4661 = vpop.permute.xlu0 %4660
        %4662 = vset.pattern.permute.xlu0 0
        %4663 = vperm.xlu0 %4662, %v3708
        %v4664 = vpop.permute.xlu0 %4663
        %4665 = vset.pattern.permute.xlu0 0
        %4666 = vperm.xlu0 %4665, %v3709
        %v4667 = vpop.permute.xlu0 %4666
        %4668 = vset.pattern.permute.xlu0 0
        %4669 = vperm.xlu0 %4668, %v3710
        %v4670 = vpop.permute.xlu0 %4669
        %4671 = vset.pattern.permute.xlu0 0
        %4672 = vperm.xlu0 %4671, %v3711
        %v4673 = vpop.permute.xlu0 %4672
        %4674 = vset.pattern.permute.xlu0 0
        %4675 = vperm.xlu0 %4674, %v3712
        %v4676 = vpop.permute.xlu0 %4675
        %4677 = vset.pattern.permute.xlu0 0
        %4678 = vperm.xlu0 %4677, %v3713
        %v4679 = vpop.permute.xlu0 %4678
        %4680 = vset.pattern.permute.xlu0 0
        %4681 = vperm.xlu0 %4680, %v3714
        %v4682 = vpop.permute.xlu0 %4681
        %4683 = vset.pattern.permute.xlu0 0
        %4684 = vperm.xlu0 %4683, %v3715
        %v4685 = vpop.permute.xlu0 %4684
        %4686 = vset.pattern.permute.xlu0 0
        %4687 = vperm.xlu0 %4686, %v3716
        %v4688 = vpop.permute.xlu0 %4687
        %4689 = vset.pattern.permute.xlu0 0
        %4690 = vperm.xlu0 %4689, %v3717
        %v4691 = vpop.permute.xlu0 %4690
        %4692 = vset.pattern.permute.xlu0 0
        %4693 = vperm.xlu0 %4692, %v3718
        %v4694 = vpop.permute.xlu0 %4693
        %4695 = vset.pattern.permute.xlu0 0
        %4696 = vperm.xlu0 %4695, %v3719
        %v4697 = vpop.permute.xlu0 %4696
        %4698 = vset.pattern.permute.xlu0 0
        %4699 = vperm.xlu0 %4698, %v3720
        %v4700 = vpop.permute.xlu0 %4699
        %4701 = vset.pattern.permute.xlu0 0
        %4702 = vperm.xlu0 %4701, %v3721
        %v4703 = vpop.permute.xlu0 %4702
        %4704 = vset.pattern.permute.xlu0 0
        %4705 = vperm.xlu0 %4704, %v3722
        %v4706 = vpop.permute.xlu0 %4705
        %4707 = vset.pattern.permute.xlu0 0
        %4708 = vperm.xlu0 %4707, %v3723
        %v4709 = vpop.permute.xlu0 %4708
        %4710 = vset.pattern.permute.xlu0 0
        %4711 = vperm.xlu0 %4710, %v3724
        %v4712 = vpop.permute.xlu0 %4711
        %4713 = vset.pattern.permute.xlu0 0
        %4714 = vperm.xlu0 %4713, %v3725
        %v4715 = vpop.permute.xlu0 %4714
        %4716 = vset.pattern.permute.xlu0 0
        %4717 = vperm.xlu0 %4716, %v3726
        %v4718 = vpop.permute.xlu0 %4717
        %4719 = vset.pattern.permute.xlu0 0
        %4720 = vperm.xlu0 %4719, %v3727
        %v4721 = vpop.permute.xlu0 %4720
        %4722 = vset.pattern.permute.xlu0 0
        %4723 = vperm.xlu0 %4722, %v3728
        %v4724 = vpop.permute.xlu0 %4723
        %4725 = vset.pattern.permute.xlu0 0
        %4726 = vperm.xlu0 %4725, %v3729
        %v4727 = vpop.permute.xlu0 %4726
        %4728 = vset.pattern.permute.xlu0 0
        %4729 = vperm.xlu0 %4728, %v3730
        %v4730 = vpop.permute.xlu0 %4729
        %4731 = vset.pattern.permute.xlu0 0
        %4732 = vperm.xlu0 %4731, %v3731
        %v4733 = vpop.permute.xlu0 %4732
        %4734 = vset.pattern.permute.xlu0 0
        %4735 = vperm.xlu0 %4734, %v3732
        %v4736 = vpop.permute.xlu0 %4735
        %4737 = vset.pattern.permute.xlu0 0
        %4738 = vperm.xlu0 %4737, %v3733
        %v4739 = vpop.permute.xlu0 %4738
        %4740 = vset.pattern.permute.xlu0 0
        %4741 = vperm.xlu0 %4740, %v3734
        %v4742 = vpop.permute.xlu0 %4741
        %4743 = vset.pattern.permute.xlu0 0
        %4744 = vperm.xlu0 %4743, %v3735
        %v4745 = vpop.permute.xlu0 %4744
        %4746 = vset.pattern.permute.xlu0 0
        %4747 = vperm.xlu0 %4746, %v3736
        %v4748 = vpop.permute.xlu0 %4747
        %4749 = vset.pattern.permute.xlu0 0
        %4750 = vperm.xlu0 %4749, %v3737
        %v4751 = vpop.permute.xlu0 %4750
        %4752 = vset.pattern.permute.xlu0 0
        %4753 = vperm.xlu0 %4752, %v3738
        %v4754 = vpop.permute.xlu0 %4753
        %4755 = vset.pattern.permute.xlu0 0
        %4756 = vperm.xlu0 %4755, %v3739
        %v4757 = vpop.permute.xlu0 %4756
        %4758 = vset.pattern.permute.xlu0 0
        %4759 = vperm.xlu0 %4758, %v3740
        %v4760 = vpop.permute.xlu0 %4759
        %4761 = vset.pattern.permute.xlu0 0
        %4762 = vperm.xlu0 %4761, %v3741
        %v4763 = vpop.permute.xlu0 %4762
        %4764 = vset.pattern.permute.xlu0 0
        %4765 = vperm.xlu0 %4764, %v3742
        %v4766 = vpop.permute.xlu0 %4765
        %v4767 = vlaneseq
        %v4768 = vshrl.u32 %v4767, 7
        %v4769 = vsub.s32 %v1334, %v4768
        %v4770 = vrot.slane %v4001, %v4769
        %v4771 = vadd.s32 %v1334, 4294967288
        %v4772 = vlaneseq
        %v4773 = vshrl.u32 %v4772, 7
        %v4774 = vsub.s32 %v4771, %v4773
        %v4775 = vrot.slane %v4004, %v4774
        %vm4776 = vcmask 130112
        %v4777 = vsel %vm4776, %v4775, %v4770
        %v4778 = vlaneseq
        %v4779 = vshrl.u32 %v4778, 7
        %v4780 = vsub.s32 %v1334, %v4779
        %v4781 = vrot.slane %v4007, %v4780
        %v4782 = vlaneseq
        %v4783 = vshrl.u32 %v4782, 7
        %v4784 = vsub.s32 %v4771, %v4783
        %v4785 = vrot.slane %v4010, %v4784
        %v4786 = vsel %vm4776, %v4785, %v4781
        %v4787 = vlaneseq
        %v4788 = vshrl.u32 %v4787, 7
        %v4789 = vsub.s32 %v1334, %v4788
        %v4790 = vrot.slane %v4013, %v4789
        %v4791 = vlaneseq
        %v4792 = vshrl.u32 %v4791, 7
        %v4793 = vsub.s32 %v4771, %v4792
        %v4794 = vrot.slane %v4016, %v4793
        %v4795 = vsel %vm4776, %v4794, %v4790
        %v4796 = vlaneseq
        %v4797 = vshrl.u32 %v4796, 7
        %v4798 = vsub.s32 %v1334, %v4797
        %v4799 = vrot.slane %v4019, %v4798
        %v4800 = vlaneseq
        %v4801 = vshrl.u32 %v4800, 7
        %v4802 = vsub.s32 %v4771, %v4801
        %v4803 = vrot.slane %v4022, %v4802
        %v4804 = vsel %vm4776, %v4803, %v4799
        %v4805 = vlaneseq
        %v4806 = vshrl.u32 %v4805, 7
        %v4807 = vsub.s32 %v1334, %v4806
        %v4808 = vrot.slane %v4025, %v4807
        %v4809 = vlaneseq
        %v4810 = vshrl.u32 %v4809, 7
        %v4811 = vsub.s32 %v4771, %v4810
        %v4812 = vrot.slane %v4028, %v4811
        %v4813 = vsel %vm4776, %v4812, %v4808
        %v4814 = vlaneseq
        %v4815 = vshrl.u32 %v4814, 7
        %v4816 = vsub.s32 %v1334, %v4815
        %v4817 = vrot.slane %v4031, %v4816
        %v4818 = vlaneseq
        %v4819 = vshrl.u32 %v4818, 7
        %v4820 = vsub.s32 %v4771, %v4819
        %v4821 = vrot.slane %v4034, %v4820
        %v4822 = vsel %vm4776, %v4821, %v4817
        %v4823 = vlaneseq
        %v4824 = vshrl.u32 %v4823, 7
        %v4825 = vsub.s32 %v1334, %v4824
        %v4826 = vrot.slane %v4037, %v4825
        %v4827 = vlaneseq
        %v4828 = vshrl.u32 %v4827, 7
        %v4829 = vsub.s32 %v4771, %v4828
        %v4830 = vrot.slane %v4040, %v4829
        %v4831 = vsel %vm4776, %v4830, %v4826
        %v4832 = vlaneseq
        %v4833 = vshrl.u32 %v4832, 7
        %v4834 = vsub.s32 %v1334, %v4833
        %v4835 = vrot.slane %v4043, %v4834
        %v4836 = vlaneseq
        %v4837 = vshrl.u32 %v4836, 7
        %v4838 = vsub.s32 %v4771, %v4837
        %v4839 = vrot.slane %v4046, %v4838
        %v4840 = vsel %vm4776, %v4839, %v4835
        %v4841 = vlaneseq
        %v4842 = vshrl.u32 %v4841, 7
        %v4843 = vsub.s32 %v1334, %v4842
        %v4844 = vrot.slane %v4049, %v4843
        %v4845 = vlaneseq
        %v4846 = vshrl.u32 %v4845, 7
        %v4847 = vsub.s32 %v4771, %v4846
        %v4848 = vrot.slane %v4052, %v4847
        %v4849 = vsel %vm4776, %v4848, %v4844
        %v4850 = vlaneseq
        %v4851 = vshrl.u32 %v4850, 7
        %v4852 = vsub.s32 %v1334, %v4851
        %v4853 = vrot.slane %v4055, %v4852
        %v4854 = vlaneseq
        %v4855 = vshrl.u32 %v4854, 7
        %v4856 = vsub.s32 %v4771, %v4855
        %v4857 = vrot.slane %v4058, %v4856
        %v4858 = vsel %vm4776, %v4857, %v4853
        %v4859 = vlaneseq
        %v4860 = vshrl.u32 %v4859, 7
        %v4861 = vsub.s32 %v1334, %v4860
        %v4862 = vrot.slane %v4061, %v4861
        %v4863 = vlaneseq
        %v4864 = vshrl.u32 %v4863, 7
        %v4865 = vsub.s32 %v4771, %v4864
        %v4866 = vrot.slane %v4064, %v4865
        %v4867 = vsel %vm4776, %v4866, %v4862
        %v4868 = vlaneseq
        %v4869 = vshrl.u32 %v4868, 7
        %v4870 = vsub.s32 %v1334, %v4869
        %v4871 = vrot.slane %v4067, %v4870
        %v4872 = vlaneseq
        %v4873 = vshrl.u32 %v4872, 7
        %v4874 = vsub.s32 %v4771, %v4873
        %v4875 = vrot.slane %v4070, %v4874
        %v4876 = vsel %vm4776, %v4875, %v4871
        %v4877 = vlaneseq
        %v4878 = vshrl.u32 %v4877, 7
        %v4879 = vsub.s32 %v1334, %v4878
        %v4880 = vrot.slane %v4073, %v4879
        %v4881 = vlaneseq
        %v4882 = vshrl.u32 %v4881, 7
        %v4883 = vsub.s32 %v4771, %v4882
        %v4884 = vrot.slane %v4076, %v4883
        %v4885 = vsel %vm4776, %v4884, %v4880
        %v4886 = vlaneseq
        %v4887 = vshrl.u32 %v4886, 7
        %v4888 = vsub.s32 %v1334, %v4887
        %v4889 = vrot.slane %v4079, %v4888
        %v4890 = vlaneseq
        %v4891 = vshrl.u32 %v4890, 7
        %v4892 = vsub.s32 %v4771, %v4891
        %v4893 = vrot.slane %v4082, %v4892
        %v4894 = vsel %vm4776, %v4893, %v4889
        %v4895 = vlaneseq
        %v4896 = vshrl.u32 %v4895, 7
        %v4897 = vsub.s32 %v1334, %v4896
        %v4898 = vrot.slane %v4085, %v4897
        %v4899 = vlaneseq
        %v4900 = vshrl.u32 %v4899, 7
        %v4901 = vsub.s32 %v4771, %v4900
        %v4902 = vrot.slane %v4088, %v4901
        %v4903 = vsel %vm4776, %v4902, %v4898
        %v4904 = vlaneseq
        %v4905 = vshrl.u32 %v4904, 7
        %v4906 = vsub.s32 %v1334, %v4905
        %v4907 = vrot.slane %v4091, %v4906
        %v4908 = vlaneseq
        %v4909 = vshrl.u32 %v4908, 7
        %v4910 = vsub.s32 %v4771, %v4909
        %v4911 = vrot.slane %v4094, %v4910
        %v4912 = vsel %vm4776, %v4911, %v4907
        %v4913 = vlaneseq
        %v4914 = vshrl.u32 %v4913, 7
        %v4915 = vsub.s32 %v1334, %v4914
        %v4916 = vrot.slane %v4097, %v4915
        %v4917 = vlaneseq
        %v4918 = vshrl.u32 %v4917, 7
        %v4919 = vsub.s32 %v4771, %v4918
        %v4920 = vrot.slane %v4100, %v4919
        %v4921 = vsel %vm4776, %v4920, %v4916
        %v4922 = vlaneseq
        %v4923 = vshrl.u32 %v4922, 7
        %v4924 = vsub.s32 %v1334, %v4923
        %v4925 = vrot.slane %v4103, %v4924
        %v4926 = vlaneseq
        %v4927 = vshrl.u32 %v4926, 7
        %v4928 = vsub.s32 %v4771, %v4927
        %v4929 = vrot.slane %v4106, %v4928
        %v4930 = vsel %vm4776, %v4929, %v4925
        %v4931 = vlaneseq
        %v4932 = vshrl.u32 %v4931, 7
        %v4933 = vsub.s32 %v1334, %v4932
        %v4934 = vrot.slane %v4109, %v4933
        %v4935 = vlaneseq
        %v4936 = vshrl.u32 %v4935, 7
        %v4937 = vsub.s32 %v4771, %v4936
        %v4938 = vrot.slane %v4112, %v4937
        %v4939 = vsel %vm4776, %v4938, %v4934
        %v4940 = vlaneseq
        %v4941 = vshrl.u32 %v4940, 7
        %v4942 = vsub.s32 %v1334, %v4941
        %v4943 = vrot.slane %v4115, %v4942
        %v4944 = vlaneseq
        %v4945 = vshrl.u32 %v4944, 7
        %v4946 = vsub.s32 %v4771, %v4945
        %v4947 = vrot.slane %v4118, %v4946
        %v4948 = vsel %vm4776, %v4947, %v4943
        %v4949 = vlaneseq
        %v4950 = vshrl.u32 %v4949, 7
        %v4951 = vsub.s32 %v1334, %v4950
        %v4952 = vrot.slane %v4121, %v4951
        %v4953 = vlaneseq
        %v4954 = vshrl.u32 %v4953, 7
        %v4955 = vsub.s32 %v4771, %v4954
        %v4956 = vrot.slane %v4124, %v4955
        %v4957 = vsel %vm4776, %v4956, %v4952
        %v4958 = vlaneseq
        %v4959 = vshrl.u32 %v4958, 7
        %v4960 = vsub.s32 %v1334, %v4959
        %v4961 = vrot.slane %v4127, %v4960
        %v4962 = vlaneseq
        %v4963 = vshrl.u32 %v4962, 7
        %v4964 = vsub.s32 %v4771, %v4963
        %v4965 = vrot.slane %v4130, %v4964
        %v4966 = vsel %vm4776, %v4965, %v4961
        %v4967 = vlaneseq
        %v4968 = vshrl.u32 %v4967, 7
        %v4969 = vsub.s32 %v1334, %v4968
        %v4970 = vrot.slane %v4133, %v4969
        %v4971 = vlaneseq
        %v4972 = vshrl.u32 %v4971, 7
        %v4973 = vsub.s32 %v4771, %v4972
        %v4974 = vrot.slane %v4136, %v4973
        %v4975 = vsel %vm4776, %v4974, %v4970
        %v4976 = vlaneseq
        %v4977 = vshrl.u32 %v4976, 7
        %v4978 = vsub.s32 %v1334, %v4977
        %v4979 = vrot.slane %v4139, %v4978
        %v4980 = vlaneseq
        %v4981 = vshrl.u32 %v4980, 7
        %v4982 = vsub.s32 %v4771, %v4981
        %v4983 = vrot.slane %v4142, %v4982
        %v4984 = vsel %vm4776, %v4983, %v4979
        %v4985 = vlaneseq
        %v4986 = vshrl.u32 %v4985, 7
        %v4987 = vsub.s32 %v1334, %v4986
        %v4988 = vrot.slane %v4145, %v4987
        %v4989 = vlaneseq
        %v4990 = vshrl.u32 %v4989, 7
        %v4991 = vsub.s32 %v4771, %v4990
        %v4992 = vrot.slane %v4148, %v4991
        %v4993 = vsel %vm4776, %v4992, %v4988
        %v4994 = vlaneseq
        %v4995 = vshrl.u32 %v4994, 7
        %v4996 = vsub.s32 %v1334, %v4995
        %v4997 = vrot.slane %v4151, %v4996
        %v4998 = vlaneseq
        %v4999 = vshrl.u32 %v4998, 7
        %v5000 = vsub.s32 %v4771, %v4999
        %v5001 = vrot.slane %v4154, %v5000
        %v5002 = vsel %vm4776, %v5001, %v4997
        %v5003 = vlaneseq
        %v5004 = vshrl.u32 %v5003, 7
        %v5005 = vsub.s32 %v1334, %v5004
        %v5006 = vrot.slane %v4157, %v5005
        %v5007 = vlaneseq
        %v5008 = vshrl.u32 %v5007, 7
        %v5009 = vsub.s32 %v4771, %v5008
        %v5010 = vrot.slane %v4160, %v5009
        %v5011 = vsel %vm4776, %v5010, %v5006
        %v5012 = vlaneseq
        %v5013 = vshrl.u32 %v5012, 7
        %v5014 = vsub.s32 %v1334, %v5013
        %v5015 = vrot.slane %v4163, %v5014
        %v5016 = vlaneseq
        %v5017 = vshrl.u32 %v5016, 7
        %v5018 = vsub.s32 %v4771, %v5017
        %v5019 = vrot.slane %v4166, %v5018
        %v5020 = vsel %vm4776, %v5019, %v5015
        %v5021 = vlaneseq
        %v5022 = vshrl.u32 %v5021, 7
        %v5023 = vsub.s32 %v1334, %v5022
        %v5024 = vrot.slane %v4169, %v5023
        %v5025 = vlaneseq
        %v5026 = vshrl.u32 %v5025, 7
        %v5027 = vsub.s32 %v4771, %v5026
        %v5028 = vrot.slane %v4172, %v5027
        %v5029 = vsel %vm4776, %v5028, %v5024
        %v5030 = vlaneseq
        %v5031 = vshrl.u32 %v5030, 7
        %v5032 = vsub.s32 %v1334, %v5031
        %v5033 = vrot.slane %v4175, %v5032
        %v5034 = vlaneseq
        %v5035 = vshrl.u32 %v5034, 7
        %v5036 = vsub.s32 %v4771, %v5035
        %v5037 = vrot.slane %v4178, %v5036
        %v5038 = vsel %vm4776, %v5037, %v5033
        %v5039 = vlaneseq
        %v5040 = vshrl.u32 %v5039, 7
        %v5041 = vsub.s32 %v1334, %v5040
        %v5042 = vrot.slane %v4181, %v5041
        %v5043 = vlaneseq
        %v5044 = vshrl.u32 %v5043, 7
        %v5045 = vsub.s32 %v4771, %v5044
        %v5046 = vrot.slane %v4184, %v5045
        %v5047 = vsel %vm4776, %v5046, %v5042
        %v5048 = vlaneseq
        %v5049 = vshrl.u32 %v5048, 7
        %v5050 = vsub.s32 %v1334, %v5049
        %v5051 = vrot.slane %v4187, %v5050
        %v5052 = vlaneseq
        %v5053 = vshrl.u32 %v5052, 7
        %v5054 = vsub.s32 %v4771, %v5053
        %v5055 = vrot.slane %v4190, %v5054
        %v5056 = vsel %vm4776, %v5055, %v5051
        %v5057 = vlaneseq
        %v5058 = vshrl.u32 %v5057, 7
        %v5059 = vsub.s32 %v1334, %v5058
        %v5060 = vrot.slane %v4193, %v5059
        %v5061 = vlaneseq
        %v5062 = vshrl.u32 %v5061, 7
        %v5063 = vsub.s32 %v4771, %v5062
        %v5064 = vrot.slane %v4196, %v5063
        %v5065 = vsel %vm4776, %v5064, %v5060
        %v5066 = vlaneseq
        %v5067 = vshrl.u32 %v5066, 7
        %v5068 = vsub.s32 %v1334, %v5067
        %v5069 = vrot.slane %v4199, %v5068
        %v5070 = vlaneseq
        %v5071 = vshrl.u32 %v5070, 7
        %v5072 = vsub.s32 %v4771, %v5071
        %v5073 = vrot.slane %v4202, %v5072
        %v5074 = vsel %vm4776, %v5073, %v5069
        %v5075 = vlaneseq
        %v5076 = vshrl.u32 %v5075, 7
        %v5077 = vsub.s32 %v1334, %v5076
        %v5078 = vrot.slane %v4205, %v5077
        %v5079 = vlaneseq
        %v5080 = vshrl.u32 %v5079, 7
        %v5081 = vsub.s32 %v4771, %v5080
        %v5082 = vrot.slane %v4208, %v5081
        %v5083 = vsel %vm4776, %v5082, %v5078
        %v5084 = vlaneseq
        %v5085 = vshrl.u32 %v5084, 7
        %v5086 = vsub.s32 %v1334, %v5085
        %v5087 = vrot.slane %v4211, %v5086
        %v5088 = vlaneseq
        %v5089 = vshrl.u32 %v5088, 7
        %v5090 = vsub.s32 %v4771, %v5089
        %v5091 = vrot.slane %v4214, %v5090
        %v5092 = vsel %vm4776, %v5091, %v5087
        %v5093 = vlaneseq
        %v5094 = vshrl.u32 %v5093, 7
        %v5095 = vsub.s32 %v1334, %v5094
        %v5096 = vrot.slane %v4217, %v5095
        %v5097 = vlaneseq
        %v5098 = vshrl.u32 %v5097, 7
        %v5099 = vsub.s32 %v4771, %v5098
        %v5100 = vrot.slane %v4220, %v5099
        %v5101 = vsel %vm4776, %v5100, %v5096
        %v5102 = vlaneseq
        %v5103 = vshrl.u32 %v5102, 7
        %v5104 = vsub.s32 %v1334, %v5103
        %v5105 = vrot.slane %v4223, %v5104
        %v5106 = vlaneseq
        %v5107 = vshrl.u32 %v5106, 7
        %v5108 = vsub.s32 %v4771, %v5107
        %v5109 = vrot.slane %v4226, %v5108
        %v5110 = vsel %vm4776, %v5109, %v5105
        %v5111 = vlaneseq
        %v5112 = vshrl.u32 %v5111, 7
        %v5113 = vsub.s32 %v1334, %v5112
        %v5114 = vrot.slane %v4229, %v5113
        %v5115 = vlaneseq
        %v5116 = vshrl.u32 %v5115, 7
        %v5117 = vsub.s32 %v4771, %v5116
        %v5118 = vrot.slane %v4232, %v5117
        %v5119 = vsel %vm4776, %v5118, %v5114
        %v5120 = vlaneseq
        %v5121 = vshrl.u32 %v5120, 7
        %v5122 = vsub.s32 %v1334, %v5121
        %v5123 = vrot.slane %v4235, %v5122
        %v5124 = vlaneseq
        %v5125 = vshrl.u32 %v5124, 7
        %v5126 = vsub.s32 %v4771, %v5125
        %v5127 = vrot.slane %v4238, %v5126
        %v5128 = vsel %vm4776, %v5127, %v5123
        %v5129 = vlaneseq
        %v5130 = vshrl.u32 %v5129, 7
        %v5131 = vsub.s32 %v1334, %v5130
        %v5132 = vrot.slane %v4241, %v5131
        %v5133 = vlaneseq
        %v5134 = vshrl.u32 %v5133, 7
        %v5135 = vsub.s32 %v4771, %v5134
        %v5136 = vrot.slane %v4244, %v5135
        %v5137 = vsel %vm4776, %v5136, %v5132
        %v5138 = vlaneseq
        %v5139 = vshrl.u32 %v5138, 7
        %v5140 = vsub.s32 %v1334, %v5139
        %v5141 = vrot.slane %v4247, %v5140
        %v5142 = vlaneseq
        %v5143 = vshrl.u32 %v5142, 7
        %v5144 = vsub.s32 %v4771, %v5143
        %v5145 = vrot.slane %v4250, %v5144
        %v5146 = vsel %vm4776, %v5145, %v5141
        %v5147 = vlaneseq
        %v5148 = vshrl.u32 %v5147, 7
        %v5149 = vsub.s32 %v1334, %v5148
        %v5150 = vrot.slane %v4253, %v5149
        %v5151 = vlaneseq
        %v5152 = vshrl.u32 %v5151, 7
        %v5153 = vsub.s32 %v4771, %v5152
        %v5154 = vrot.slane %v4256, %v5153
        %v5155 = vsel %vm4776, %v5154, %v5150
        %v5156 = vlaneseq
        %v5157 = vshrl.u32 %v5156, 7
        %v5158 = vsub.s32 %v1334, %v5157
        %v5159 = vrot.slane %v4259, %v5158
        %v5160 = vlaneseq
        %v5161 = vshrl.u32 %v5160, 7
        %v5162 = vsub.s32 %v4771, %v5161
        %v5163 = vrot.slane %v4262, %v5162
        %v5164 = vsel %vm4776, %v5163, %v5159
        %v5165 = vlaneseq
        %v5166 = vshrl.u32 %v5165, 7
        %v5167 = vsub.s32 %v1334, %v5166
        %v5168 = vrot.slane %v4265, %v5167
        %v5169 = vlaneseq
        %v5170 = vshrl.u32 %v5169, 7
        %v5171 = vsub.s32 %v4771, %v5170
        %v5172 = vrot.slane %v4268, %v5171
        %v5173 = vsel %vm4776, %v5172, %v5168
        %v5174 = vlaneseq
        %v5175 = vshrl.u32 %v5174, 7
        %v5176 = vsub.s32 %v1334, %v5175
        %v5177 = vrot.slane %v4271, %v5176
        %v5178 = vlaneseq
        %v5179 = vshrl.u32 %v5178, 7
        %v5180 = vsub.s32 %v4771, %v5179
        %v5181 = vrot.slane %v4274, %v5180
        %v5182 = vsel %vm4776, %v5181, %v5177
        %v5183 = vlaneseq
        %v5184 = vshrl.u32 %v5183, 7
        %v5185 = vsub.s32 %v1334, %v5184
        %v5186 = vrot.slane %v4277, %v5185
        %v5187 = vlaneseq
        %v5188 = vshrl.u32 %v5187, 7
        %v5189 = vsub.s32 %v4771, %v5188
        %v5190 = vrot.slane %v4280, %v5189
        %v5191 = vsel %vm4776, %v5190, %v5186
        %v5192 = vlaneseq
        %v5193 = vshrl.u32 %v5192, 7
        %v5194 = vsub.s32 %v1334, %v5193
        %v5195 = vrot.slane %v4283, %v5194
        %v5196 = vlaneseq
        %v5197 = vshrl.u32 %v5196, 7
        %v5198 = vsub.s32 %v4771, %v5197
        %v5199 = vrot.slane %v4286, %v5198
        %v5200 = vsel %vm4776, %v5199, %v5195
        %v5201 = vlaneseq
        %v5202 = vshrl.u32 %v5201, 7
        %v5203 = vsub.s32 %v1334, %v5202
        %v5204 = vrot.slane %v4289, %v5203
        %v5205 = vlaneseq
        %v5206 = vshrl.u32 %v5205, 7
        %v5207 = vsub.s32 %v4771, %v5206
        %v5208 = vrot.slane %v4292, %v5207
        %v5209 = vsel %vm4776, %v5208, %v5204
        %v5210 = vlaneseq
        %v5211 = vshrl.u32 %v5210, 7
        %v5212 = vsub.s32 %v1334, %v5211
        %v5213 = vrot.slane %v4295, %v5212
        %v5214 = vlaneseq
        %v5215 = vshrl.u32 %v5214, 7
        %v5216 = vsub.s32 %v4771, %v5215
        %v5217 = vrot.slane %v4298, %v5216
        %v5218 = vsel %vm4776, %v5217, %v5213
        %v5219 = vlaneseq
        %v5220 = vshrl.u32 %v5219, 7
        %v5221 = vsub.s32 %v1334, %v5220
        %v5222 = vrot.slane %v4301, %v5221
        %v5223 = vlaneseq
        %v5224 = vshrl.u32 %v5223, 7
        %v5225 = vsub.s32 %v4771, %v5224
        %v5226 = vrot.slane %v4304, %v5225
        %v5227 = vsel %vm4776, %v5226, %v5222
        %v5228 = vlaneseq
        %v5229 = vshrl.u32 %v5228, 7
        %v5230 = vsub.s32 %v1334, %v5229
        %v5231 = vrot.slane %v4307, %v5230
        %v5232 = vlaneseq
        %v5233 = vshrl.u32 %v5232, 7
        %v5234 = vsub.s32 %v4771, %v5233
        %v5235 = vrot.slane %v4310, %v5234
        %v5236 = vsel %vm4776, %v5235, %v5231
        %v5237 = vlaneseq
        %v5238 = vshrl.u32 %v5237, 7
        %v5239 = vsub.s32 %v1334, %v5238
        %v5240 = vrot.slane %v4313, %v5239
        %v5241 = vlaneseq
        %v5242 = vshrl.u32 %v5241, 7
        %v5243 = vsub.s32 %v4771, %v5242
        %v5244 = vrot.slane %v4316, %v5243
        %v5245 = vsel %vm4776, %v5244, %v5240
        %v5246 = vlaneseq
        %v5247 = vshrl.u32 %v5246, 7
        %v5248 = vsub.s32 %v1334, %v5247
        %v5249 = vrot.slane %v4319, %v5248
        %v5250 = vlaneseq
        %v5251 = vshrl.u32 %v5250, 7
        %v5252 = vsub.s32 %v4771, %v5251
        %v5253 = vrot.slane %v4322, %v5252
        %v5254 = vsel %vm4776, %v5253, %v5249
        %v5255 = vlaneseq
        %v5256 = vshrl.u32 %v5255, 7
        %v5257 = vsub.s32 %v1334, %v5256
        %v5258 = vrot.slane %v4325, %v5257
        %v5259 = vlaneseq
        %v5260 = vshrl.u32 %v5259, 7
        %v5261 = vsub.s32 %v4771, %v5260
        %v5262 = vrot.slane %v4328, %v5261
        %v5263 = vsel %vm4776, %v5262, %v5258
        %v5264 = vlaneseq
        %v5265 = vshrl.u32 %v5264, 7
        %v5266 = vsub.s32 %v1334, %v5265
        %v5267 = vrot.slane %v4331, %v5266
        %v5268 = vlaneseq
        %v5269 = vshrl.u32 %v5268, 7
        %v5270 = vsub.s32 %v4771, %v5269
        %v5271 = vrot.slane %v4334, %v5270
        %v5272 = vsel %vm4776, %v5271, %v5267
        %v5273 = vlaneseq
        %v5274 = vshrl.u32 %v5273, 7
        %v5275 = vsub.s32 %v1334, %v5274
        %v5276 = vrot.slane %v4337, %v5275
        %v5277 = vlaneseq
        %v5278 = vshrl.u32 %v5277, 7
        %v5279 = vsub.s32 %v4771, %v5278
        %v5280 = vrot.slane %v4340, %v5279
        %v5281 = vsel %vm4776, %v5280, %v5276
        %v5282 = vlaneseq
        %v5283 = vshrl.u32 %v5282, 7
        %v5284 = vsub.s32 %v1334, %v5283
        %v5285 = vrot.slane %v4343, %v5284
        %v5286 = vlaneseq
        %v5287 = vshrl.u32 %v5286, 7
        %v5288 = vsub.s32 %v4771, %v5287
        %v5289 = vrot.slane %v4346, %v5288
        %v5290 = vsel %vm4776, %v5289, %v5285
        %v5291 = vlaneseq
        %v5292 = vshrl.u32 %v5291, 7
        %v5293 = vsub.s32 %v1334, %v5292
        %v5294 = vrot.slane %v4349, %v5293
        %v5295 = vlaneseq
        %v5296 = vshrl.u32 %v5295, 7
        %v5297 = vsub.s32 %v4771, %v5296
        %v5298 = vrot.slane %v4352, %v5297
        %v5299 = vsel %vm4776, %v5298, %v5294
        %v5300 = vlaneseq
        %v5301 = vshrl.u32 %v5300, 7
        %v5302 = vsub.s32 %v1334, %v5301
        %v5303 = vrot.slane %v4355, %v5302
        %v5304 = vlaneseq
        %v5305 = vshrl.u32 %v5304, 7
        %v5306 = vsub.s32 %v4771, %v5305
        %v5307 = vrot.slane %v4358, %v5306
        %v5308 = vsel %vm4776, %v5307, %v5303
        %v5309 = vlaneseq
        %v5310 = vshrl.u32 %v5309, 7
        %v5311 = vsub.s32 %v1334, %v5310
        %v5312 = vrot.slane %v4361, %v5311
        %v5313 = vlaneseq
        %v5314 = vshrl.u32 %v5313, 7
        %v5315 = vsub.s32 %v4771, %v5314
        %v5316 = vrot.slane %v4364, %v5315
        %v5317 = vsel %vm4776, %v5316, %v5312
        %v5318 = vlaneseq
        %v5319 = vshrl.u32 %v5318, 7
        %v5320 = vsub.s32 %v1334, %v5319
        %v5321 = vrot.slane %v4367, %v5320
        %v5322 = vlaneseq
        %v5323 = vshrl.u32 %v5322, 7
        %v5324 = vsub.s32 %v4771, %v5323
        %v5325 = vrot.slane %v4370, %v5324
        %v5326 = vsel %vm4776, %v5325, %v5321
        %v5327 = vlaneseq
        %v5328 = vshrl.u32 %v5327, 7
        %v5329 = vsub.s32 %v1334, %v5328
        %v5330 = vrot.slane %v4373, %v5329
        %v5331 = vlaneseq
        %v5332 = vshrl.u32 %v5331, 7
        %v5333 = vsub.s32 %v4771, %v5332
        %v5334 = vrot.slane %v4376, %v5333
        %v5335 = vsel %vm4776, %v5334, %v5330
        %v5336 = vlaneseq
        %v5337 = vshrl.u32 %v5336, 7
        %v5338 = vsub.s32 %v1334, %v5337
        %v5339 = vrot.slane %v4379, %v5338
        %v5340 = vlaneseq
        %v5341 = vshrl.u32 %v5340, 7
        %v5342 = vsub.s32 %v4771, %v5341
        %v5343 = vrot.slane %v4382, %v5342
        %v5344 = vsel %vm4776, %v5343, %v5339
        %v5345 = vlaneseq
        %v5346 = vshrl.u32 %v5345, 7
        %v5347 = vsub.s32 %v1334, %v5346
        %v5348 = vrot.slane %v4385, %v5347
        %v5349 = vlaneseq
        %v5350 = vshrl.u32 %v5349, 7
        %v5351 = vsub.s32 %v4771, %v5350
        %v5352 = vrot.slane %v4388, %v5351
        %v5353 = vsel %vm4776, %v5352, %v5348
        %v5354 = vlaneseq
        %v5355 = vshrl.u32 %v5354, 7
        %v5356 = vsub.s32 %v1334, %v5355
        %v5357 = vrot.slane %v4391, %v5356
        %v5358 = vlaneseq
        %v5359 = vshrl.u32 %v5358, 7
        %v5360 = vsub.s32 %v4771, %v5359
        %v5361 = vrot.slane %v4394, %v5360
        %v5362 = vsel %vm4776, %v5361, %v5357
        %v5363 = vlaneseq
        %v5364 = vshrl.u32 %v5363, 7
        %v5365 = vsub.s32 %v1334, %v5364
        %v5366 = vrot.slane %v4397, %v5365
        %v5367 = vlaneseq
        %v5368 = vshrl.u32 %v5367, 7
        %v5369 = vsub.s32 %v4771, %v5368
        %v5370 = vrot.slane %v4400, %v5369
        %v5371 = vsel %vm4776, %v5370, %v5366
        %v5372 = vlaneseq
        %v5373 = vshrl.u32 %v5372, 7
        %v5374 = vsub.s32 %v1334, %v5373
        %v5375 = vrot.slane %v4403, %v5374
        %v5376 = vlaneseq
        %v5377 = vshrl.u32 %v5376, 7
        %v5378 = vsub.s32 %v4771, %v5377
        %v5379 = vrot.slane %v4406, %v5378
        %v5380 = vsel %vm4776, %v5379, %v5375
        %v5381 = vlaneseq
        %v5382 = vshrl.u32 %v5381, 7
        %v5383 = vsub.s32 %v1334, %v5382
        %v5384 = vrot.slane %v4409, %v5383
        %v5385 = vlaneseq
        %v5386 = vshrl.u32 %v5385, 7
        %v5387 = vsub.s32 %v4771, %v5386
        %v5388 = vrot.slane %v4412, %v5387
        %v5389 = vsel %vm4776, %v5388, %v5384
        %v5390 = vlaneseq
        %v5391 = vshrl.u32 %v5390, 7
        %v5392 = vsub.s32 %v1334, %v5391
        %v5393 = vrot.slane %v4415, %v5392
        %v5394 = vlaneseq
        %v5395 = vshrl.u32 %v5394, 7
        %v5396 = vsub.s32 %v4771, %v5395
        %v5397 = vrot.slane %v4418, %v5396
        %v5398 = vsel %vm4776, %v5397, %v5393
        %v5399 = vlaneseq
        %v5400 = vshrl.u32 %v5399, 7
        %v5401 = vsub.s32 %v1334, %v5400
        %v5402 = vrot.slane %v4421, %v5401
        %v5403 = vlaneseq
        %v5404 = vshrl.u32 %v5403, 7
        %v5405 = vsub.s32 %v4771, %v5404
        %v5406 = vrot.slane %v4424, %v5405
        %v5407 = vsel %vm4776, %v5406, %v5402
        %v5408 = vlaneseq
        %v5409 = vshrl.u32 %v5408, 7
        %v5410 = vsub.s32 %v1334, %v5409
        %v5411 = vrot.slane %v4427, %v5410
        %v5412 = vlaneseq
        %v5413 = vshrl.u32 %v5412, 7
        %v5414 = vsub.s32 %v4771, %v5413
        %v5415 = vrot.slane %v4430, %v5414
        %v5416 = vsel %vm4776, %v5415, %v5411
        %v5417 = vlaneseq
        %v5418 = vshrl.u32 %v5417, 7
        %v5419 = vsub.s32 %v1334, %v5418
        %v5420 = vrot.slane %v4433, %v5419
        %v5421 = vlaneseq
        %v5422 = vshrl.u32 %v5421, 7
        %v5423 = vsub.s32 %v4771, %v5422
        %v5424 = vrot.slane %v4436, %v5423
        %v5425 = vsel %vm4776, %v5424, %v5420
        %v5426 = vlaneseq
        %v5427 = vshrl.u32 %v5426, 7
        %v5428 = vsub.s32 %v1334, %v5427
        %v5429 = vrot.slane %v4439, %v5428
        %v5430 = vlaneseq
        %v5431 = vshrl.u32 %v5430, 7
        %v5432 = vsub.s32 %v4771, %v5431
        %v5433 = vrot.slane %v4442, %v5432
        %v5434 = vsel %vm4776, %v5433, %v5429
        %v5435 = vlaneseq
        %v5436 = vshrl.u32 %v5435, 7
        %v5437 = vsub.s32 %v1334, %v5436
        %v5438 = vrot.slane %v4445, %v5437
        %v5439 = vlaneseq
        %v5440 = vshrl.u32 %v5439, 7
        %v5441 = vsub.s32 %v4771, %v5440
        %v5442 = vrot.slane %v4448, %v5441
        %v5443 = vsel %vm4776, %v5442, %v5438
        %v5444 = vlaneseq
        %v5445 = vshrl.u32 %v5444, 7
        %v5446 = vsub.s32 %v1334, %v5445
        %v5447 = vrot.slane %v4451, %v5446
        %v5448 = vlaneseq
        %v5449 = vshrl.u32 %v5448, 7
        %v5450 = vsub.s32 %v4771, %v5449
        %v5451 = vrot.slane %v4454, %v5450
        %v5452 = vsel %vm4776, %v5451, %v5447
        %v5453 = vlaneseq
        %v5454 = vshrl.u32 %v5453, 7
        %v5455 = vsub.s32 %v1334, %v5454
        %v5456 = vrot.slane %v4457, %v5455
        %v5457 = vlaneseq
        %v5458 = vshrl.u32 %v5457, 7
        %v5459 = vsub.s32 %v4771, %v5458
        %v5460 = vrot.slane %v4460, %v5459
        %v5461 = vsel %vm4776, %v5460, %v5456
        %v5462 = vlaneseq
        %v5463 = vshrl.u32 %v5462, 7
        %v5464 = vsub.s32 %v1334, %v5463
        %v5465 = vrot.slane %v4463, %v5464
        %v5466 = vlaneseq
        %v5467 = vshrl.u32 %v5466, 7
        %v5468 = vsub.s32 %v4771, %v5467
        %v5469 = vrot.slane %v4466, %v5468
        %v5470 = vsel %vm4776, %v5469, %v5465
        %v5471 = vlaneseq
        %v5472 = vshrl.u32 %v5471, 7
        %v5473 = vsub.s32 %v1334, %v5472
        %v5474 = vrot.slane %v4469, %v5473
        %v5475 = vlaneseq
        %v5476 = vshrl.u32 %v5475, 7
        %v5477 = vsub.s32 %v4771, %v5476
        %v5478 = vrot.slane %v4472, %v5477
        %v5479 = vsel %vm4776, %v5478, %v5474
        %v5480 = vlaneseq
        %v5481 = vshrl.u32 %v5480, 7
        %v5482 = vsub.s32 %v1334, %v5481
        %v5483 = vrot.slane %v4475, %v5482
        %v5484 = vlaneseq
        %v5485 = vshrl.u32 %v5484, 7
        %v5486 = vsub.s32 %v4771, %v5485
        %v5487 = vrot.slane %v4478, %v5486
        %v5488 = vsel %vm4776, %v5487, %v5483
        %v5489 = vlaneseq
        %v5490 = vshrl.u32 %v5489, 7
        %v5491 = vsub.s32 %v1334, %v5490
        %v5492 = vrot.slane %v4481, %v5491
        %v5493 = vlaneseq
        %v5494 = vshrl.u32 %v5493, 7
        %v5495 = vsub.s32 %v4771, %v5494
        %v5496 = vrot.slane %v4484, %v5495
        %v5497 = vsel %vm4776, %v5496, %v5492
        %v5498 = vlaneseq
        %v5499 = vshrl.u32 %v5498, 7
        %v5500 = vsub.s32 %v1334, %v5499
        %v5501 = vrot.slane %v4487, %v5500
        %v5502 = vlaneseq
        %v5503 = vshrl.u32 %v5502, 7
        %v5504 = vsub.s32 %v4771, %v5503
        %v5505 = vrot.slane %v4490, %v5504
        %v5506 = vsel %vm4776, %v5505, %v5501
        %v5507 = vlaneseq
        %v5508 = vshrl.u32 %v5507, 7
        %v5509 = vsub.s32 %v1334, %v5508
        %v5510 = vrot.slane %v4493, %v5509
        %v5511 = vlaneseq
        %v5512 = vshrl.u32 %v5511, 7
        %v5513 = vsub.s32 %v4771, %v5512
        %v5514 = vrot.slane %v4496, %v5513
        %v5515 = vsel %vm4776, %v5514, %v5510
        %v5516 = vlaneseq
        %v5517 = vshrl.u32 %v5516, 7
        %v5518 = vsub.s32 %v1334, %v5517
        %v5519 = vrot.slane %v4499, %v5518
        %v5520 = vlaneseq
        %v5521 = vshrl.u32 %v5520, 7
        %v5522 = vsub.s32 %v4771, %v5521
        %v5523 = vrot.slane %v4502, %v5522
        %v5524 = vsel %vm4776, %v5523, %v5519
        %v5525 = vlaneseq
        %v5526 = vshrl.u32 %v5525, 7
        %v5527 = vsub.s32 %v1334, %v5526
        %v5528 = vrot.slane %v4505, %v5527
        %v5529 = vlaneseq
        %v5530 = vshrl.u32 %v5529, 7
        %v5531 = vsub.s32 %v4771, %v5530
        %v5532 = vrot.slane %v4508, %v5531
        %v5533 = vsel %vm4776, %v5532, %v5528
        %v5534 = vlaneseq
        %v5535 = vshrl.u32 %v5534, 7
        %v5536 = vsub.s32 %v1334, %v5535
        %v5537 = vrot.slane %v4511, %v5536
        %v5538 = vlaneseq
        %v5539 = vshrl.u32 %v5538, 7
        %v5540 = vsub.s32 %v4771, %v5539
        %v5541 = vrot.slane %v4514, %v5540
        %v5542 = vsel %vm4776, %v5541, %v5537
        %v5543 = vlaneseq
        %v5544 = vshrl.u32 %v5543, 7
        %v5545 = vsub.s32 %v1334, %v5544
        %v5546 = vrot.slane %v4517, %v5545
        %v5547 = vlaneseq
        %v5548 = vshrl.u32 %v5547, 7
        %v5549 = vsub.s32 %v4771, %v5548
        %v5550 = vrot.slane %v4520, %v5549
        %v5551 = vsel %vm4776, %v5550, %v5546
        %v5552 = vlaneseq
        %v5553 = vshrl.u32 %v5552, 7
        %v5554 = vsub.s32 %v1334, %v5553
        %v5555 = vrot.slane %v4523, %v5554
        %v5556 = vlaneseq
        %v5557 = vshrl.u32 %v5556, 7
        %v5558 = vsub.s32 %v4771, %v5557
        %v5559 = vrot.slane %v4526, %v5558
        %v5560 = vsel %vm4776, %v5559, %v5555
        %v5561 = vlaneseq
        %v5562 = vshrl.u32 %v5561, 7
        %v5563 = vsub.s32 %v1334, %v5562
        %v5564 = vrot.slane %v4529, %v5563
        %v5565 = vlaneseq
        %v5566 = vshrl.u32 %v5565, 7
        %v5567 = vsub.s32 %v4771, %v5566
        %v5568 = vrot.slane %v4532, %v5567
        %v5569 = vsel %vm4776, %v5568, %v5564
        %v5570 = vlaneseq
        %v5571 = vshrl.u32 %v5570, 7
        %v5572 = vsub.s32 %v1334, %v5571
        %v5573 = vrot.slane %v4535, %v5572
        %v5574 = vlaneseq
        %v5575 = vshrl.u32 %v5574, 7
        %v5576 = vsub.s32 %v4771, %v5575
        %v5577 = vrot.slane %v4538, %v5576
        %v5578 = vsel %vm4776, %v5577, %v5573
        %v5579 = vlaneseq
        %v5580 = vshrl.u32 %v5579, 7
        %v5581 = vsub.s32 %v1334, %v5580
        %v5582 = vrot.slane %v4541, %v5581
        %v5583 = vlaneseq
        %v5584 = vshrl.u32 %v5583, 7
        %v5585 = vsub.s32 %v4771, %v5584
        %v5586 = vrot.slane %v4544, %v5585
        %v5587 = vsel %vm4776, %v5586, %v5582
        %v5588 = vlaneseq
        %v5589 = vshrl.u32 %v5588, 7
        %v5590 = vsub.s32 %v1334, %v5589
        %v5591 = vrot.slane %v4547, %v5590
        %v5592 = vlaneseq
        %v5593 = vshrl.u32 %v5592, 7
        %v5594 = vsub.s32 %v4771, %v5593
        %v5595 = vrot.slane %v4550, %v5594
        %v5596 = vsel %vm4776, %v5595, %v5591
        %v5597 = vlaneseq
        %v5598 = vshrl.u32 %v5597, 7
        %v5599 = vsub.s32 %v1334, %v5598
        %v5600 = vrot.slane %v4553, %v5599
        %v5601 = vlaneseq
        %v5602 = vshrl.u32 %v5601, 7
        %v5603 = vsub.s32 %v4771, %v5602
        %v5604 = vrot.slane %v4556, %v5603
        %v5605 = vsel %vm4776, %v5604, %v5600
        %v5606 = vlaneseq
        %v5607 = vshrl.u32 %v5606, 7
        %v5608 = vsub.s32 %v1334, %v5607
        %v5609 = vrot.slane %v4559, %v5608
        %v5610 = vlaneseq
        %v5611 = vshrl.u32 %v5610, 7
        %v5612 = vsub.s32 %v4771, %v5611
        %v5613 = vrot.slane %v4562, %v5612
        %v5614 = vsel %vm4776, %v5613, %v5609
        %v5615 = vlaneseq
        %v5616 = vshrl.u32 %v5615, 7
        %v5617 = vsub.s32 %v1334, %v5616
        %v5618 = vrot.slane %v4565, %v5617
        %v5619 = vlaneseq
        %v5620 = vshrl.u32 %v5619, 7
        %v5621 = vsub.s32 %v4771, %v5620
        %v5622 = vrot.slane %v4568, %v5621
        %v5623 = vsel %vm4776, %v5622, %v5618
        %v5624 = vlaneseq
        %v5625 = vshrl.u32 %v5624, 7
        %v5626 = vsub.s32 %v1334, %v5625
        %v5627 = vrot.slane %v4571, %v5626
        %v5628 = vlaneseq
        %v5629 = vshrl.u32 %v5628, 7
        %v5630 = vsub.s32 %v4771, %v5629
        %v5631 = vrot.slane %v4574, %v5630
        %v5632 = vsel %vm4776, %v5631, %v5627
        %v5633 = vlaneseq
        %v5634 = vshrl.u32 %v5633, 7
        %v5635 = vsub.s32 %v1334, %v5634
        %v5636 = vrot.slane %v4577, %v5635
        %v5637 = vlaneseq
        %v5638 = vshrl.u32 %v5637, 7
        %v5639 = vsub.s32 %v4771, %v5638
        %v5640 = vrot.slane %v4580, %v5639
        %v5641 = vsel %vm4776, %v5640, %v5636
        %v5642 = vlaneseq
        %v5643 = vshrl.u32 %v5642, 7
        %v5644 = vsub.s32 %v1334, %v5643
        %v5645 = vrot.slane %v4583, %v5644
        %v5646 = vlaneseq
        %v5647 = vshrl.u32 %v5646, 7
        %v5648 = vsub.s32 %v4771, %v5647
        %v5649 = vrot.slane %v4586, %v5648
        %v5650 = vsel %vm4776, %v5649, %v5645
        %v5651 = vlaneseq
        %v5652 = vshrl.u32 %v5651, 7
        %v5653 = vsub.s32 %v1334, %v5652
        %v5654 = vrot.slane %v4589, %v5653
        %v5655 = vlaneseq
        %v5656 = vshrl.u32 %v5655, 7
        %v5657 = vsub.s32 %v4771, %v5656
        %v5658 = vrot.slane %v4592, %v5657
        %v5659 = vsel %vm4776, %v5658, %v5654
        %v5660 = vlaneseq
        %v5661 = vshrl.u32 %v5660, 7
        %v5662 = vsub.s32 %v1334, %v5661
        %v5663 = vrot.slane %v4595, %v5662
        %v5664 = vlaneseq
        %v5665 = vshrl.u32 %v5664, 7
        %v5666 = vsub.s32 %v4771, %v5665
        %v5667 = vrot.slane %v4598, %v5666
        %v5668 = vsel %vm4776, %v5667, %v5663
        %v5669 = vlaneseq
        %v5670 = vshrl.u32 %v5669, 7
        %v5671 = vsub.s32 %v1334, %v5670
        %v5672 = vrot.slane %v4601, %v5671
        %v5673 = vlaneseq
        %v5674 = vshrl.u32 %v5673, 7
        %v5675 = vsub.s32 %v4771, %v5674
        %v5676 = vrot.slane %v4604, %v5675
        %v5677 = vsel %vm4776, %v5676, %v5672
        %v5678 = vlaneseq
        %v5679 = vshrl.u32 %v5678, 7
        %v5680 = vsub.s32 %v1334, %v5679
        %v5681 = vrot.slane %v4607, %v5680
        %v5682 = vlaneseq
        %v5683 = vshrl.u32 %v5682, 7
        %v5684 = vsub.s32 %v4771, %v5683
        %v5685 = vrot.slane %v4610, %v5684
        %v5686 = vsel %vm4776, %v5685, %v5681
        %v5687 = vlaneseq
        %v5688 = vshrl.u32 %v5687, 7
        %v5689 = vsub.s32 %v1334, %v5688
        %v5690 = vrot.slane %v4613, %v5689
        %v5691 = vlaneseq
        %v5692 = vshrl.u32 %v5691, 7
        %v5693 = vsub.s32 %v4771, %v5692
        %v5694 = vrot.slane %v4616, %v5693
        %v5695 = vsel %vm4776, %v5694, %v5690
        %v5696 = vlaneseq
        %v5697 = vshrl.u32 %v5696, 7
        %v5698 = vsub.s32 %v1334, %v5697
        %v5699 = vrot.slane %v4619, %v5698
        %v5700 = vlaneseq
        %v5701 = vshrl.u32 %v5700, 7
        %v5702 = vsub.s32 %v4771, %v5701
        %v5703 = vrot.slane %v4622, %v5702
        %v5704 = vsel %vm4776, %v5703, %v5699
        %v5705 = vlaneseq
        %v5706 = vshrl.u32 %v5705, 7
        %v5707 = vsub.s32 %v1334, %v5706
        %v5708 = vrot.slane %v4625, %v5707
        %v5709 = vlaneseq
        %v5710 = vshrl.u32 %v5709, 7
        %v5711 = vsub.s32 %v4771, %v5710
        %v5712 = vrot.slane %v4628, %v5711
        %v5713 = vsel %vm4776, %v5712, %v5708
        %v5714 = vlaneseq
        %v5715 = vshrl.u32 %v5714, 7
        %v5716 = vsub.s32 %v1334, %v5715
        %v5717 = vrot.slane %v4631, %v5716
        %v5718 = vlaneseq
        %v5719 = vshrl.u32 %v5718, 7
        %v5720 = vsub.s32 %v4771, %v5719
        %v5721 = vrot.slane %v4634, %v5720
        %v5722 = vsel %vm4776, %v5721, %v5717
        %v5723 = vlaneseq
        %v5724 = vshrl.u32 %v5723, 7
        %v5725 = vsub.s32 %v1334, %v5724
        %v5726 = vrot.slane %v4637, %v5725
        %v5727 = vlaneseq
        %v5728 = vshrl.u32 %v5727, 7
        %v5729 = vsub.s32 %v4771, %v5728
        %v5730 = vrot.slane %v4640, %v5729
        %v5731 = vsel %vm4776, %v5730, %v5726
        %v5732 = vlaneseq
        %v5733 = vshrl.u32 %v5732, 7
        %v5734 = vsub.s32 %v1334, %v5733
        %v5735 = vrot.slane %v4643, %v5734
        %v5736 = vlaneseq
        %v5737 = vshrl.u32 %v5736, 7
        %v5738 = vsub.s32 %v4771, %v5737
        %v5739 = vrot.slane %v4646, %v5738
        %v5740 = vsel %vm4776, %v5739, %v5735
        %v5741 = vlaneseq
        %v5742 = vshrl.u32 %v5741, 7
        %v5743 = vsub.s32 %v1334, %v5742
        %v5744 = vrot.slane %v4649, %v5743
        %v5745 = vlaneseq
        %v5746 = vshrl.u32 %v5745, 7
        %v5747 = vsub.s32 %v4771, %v5746
        %v5748 = vrot.slane %v4652, %v5747
        %v5749 = vsel %vm4776, %v5748, %v5744
        %v5750 = vlaneseq
        %v5751 = vshrl.u32 %v5750, 7
        %v5752 = vsub.s32 %v1334, %v5751
        %v5753 = vrot.slane %v4655, %v5752
        %v5754 = vlaneseq
        %v5755 = vshrl.u32 %v5754, 7
        %v5756 = vsub.s32 %v4771, %v5755
        %v5757 = vrot.slane %v4658, %v5756
        %v5758 = vsel %vm4776, %v5757, %v5753
        %v5759 = vlaneseq
        %v5760 = vshrl.u32 %v5759, 7
        %v5761 = vsub.s32 %v1334, %v5760
        %v5762 = vrot.slane %v4661, %v5761
        %v5763 = vlaneseq
        %v5764 = vshrl.u32 %v5763, 7
        %v5765 = vsub.s32 %v4771, %v5764
        %v5766 = vrot.slane %v4664, %v5765
        %v5767 = vsel %vm4776, %v5766, %v5762
        %v5768 = vlaneseq
        %v5769 = vshrl.u32 %v5768, 7
        %v5770 = vsub.s32 %v1334, %v5769
        %v5771 = vrot.slane %v4667, %v5770
        %v5772 = vlaneseq
        %v5773 = vshrl.u32 %v5772, 7
        %v5774 = vsub.s32 %v4771, %v5773
        %v5775 = vrot.slane %v4670, %v5774
        %v5776 = vsel %vm4776, %v5775, %v5771
        %v5777 = vlaneseq
        %v5778 = vshrl.u32 %v5777, 7
        %v5779 = vsub.s32 %v1334, %v5778
        %v5780 = vrot.slane %v4673, %v5779
        %v5781 = vlaneseq
        %v5782 = vshrl.u32 %v5781, 7
        %v5783 = vsub.s32 %v4771, %v5782
        %v5784 = vrot.slane %v4676, %v5783
        %v5785 = vsel %vm4776, %v5784, %v5780
        %v5786 = vlaneseq
        %v5787 = vshrl.u32 %v5786, 7
        %v5788 = vsub.s32 %v1334, %v5787
        %v5789 = vrot.slane %v4679, %v5788
        %v5790 = vlaneseq
        %v5791 = vshrl.u32 %v5790, 7
        %v5792 = vsub.s32 %v4771, %v5791
        %v5793 = vrot.slane %v4682, %v5792
        %v5794 = vsel %vm4776, %v5793, %v5789
        %v5795 = vlaneseq
        %v5796 = vshrl.u32 %v5795, 7
        %v5797 = vsub.s32 %v1334, %v5796
        %v5798 = vrot.slane %v4685, %v5797
        %v5799 = vlaneseq
        %v5800 = vshrl.u32 %v5799, 7
        %v5801 = vsub.s32 %v4771, %v5800
        %v5802 = vrot.slane %v4688, %v5801
        %v5803 = vsel %vm4776, %v5802, %v5798
        %v5804 = vlaneseq
        %v5805 = vshrl.u32 %v5804, 7
        %v5806 = vsub.s32 %v1334, %v5805
        %v5807 = vrot.slane %v4691, %v5806
        %v5808 = vlaneseq
        %v5809 = vshrl.u32 %v5808, 7
        %v5810 = vsub.s32 %v4771, %v5809
        %v5811 = vrot.slane %v4694, %v5810
        %v5812 = vsel %vm4776, %v5811, %v5807
        %v5813 = vlaneseq
        %v5814 = vshrl.u32 %v5813, 7
        %v5815 = vsub.s32 %v1334, %v5814
        %v5816 = vrot.slane %v4697, %v5815
        %v5817 = vlaneseq
        %v5818 = vshrl.u32 %v5817, 7
        %v5819 = vsub.s32 %v4771, %v5818
        %v5820 = vrot.slane %v4700, %v5819
        %v5821 = vsel %vm4776, %v5820, %v5816
        %v5822 = vlaneseq
        %v5823 = vshrl.u32 %v5822, 7
        %v5824 = vsub.s32 %v1334, %v5823
        %v5825 = vrot.slane %v4703, %v5824
        %v5826 = vlaneseq
        %v5827 = vshrl.u32 %v5826, 7
        %v5828 = vsub.s32 %v4771, %v5827
        %v5829 = vrot.slane %v4706, %v5828
        %v5830 = vsel %vm4776, %v5829, %v5825
        %v5831 = vlaneseq
        %v5832 = vshrl.u32 %v5831, 7
        %v5833 = vsub.s32 %v1334, %v5832
        %v5834 = vrot.slane %v4709, %v5833
        %v5835 = vlaneseq
        %v5836 = vshrl.u32 %v5835, 7
        %v5837 = vsub.s32 %v4771, %v5836
        %v5838 = vrot.slane %v4712, %v5837
        %v5839 = vsel %vm4776, %v5838, %v5834
        %v5840 = vlaneseq
        %v5841 = vshrl.u32 %v5840, 7
        %v5842 = vsub.s32 %v1334, %v5841
        %v5843 = vrot.slane %v4715, %v5842
        %v5844 = vlaneseq
        %v5845 = vshrl.u32 %v5844, 7
        %v5846 = vsub.s32 %v4771, %v5845
        %v5847 = vrot.slane %v4718, %v5846
        %v5848 = vsel %vm4776, %v5847, %v5843
        %v5849 = vlaneseq
        %v5850 = vshrl.u32 %v5849, 7
        %v5851 = vsub.s32 %v1334, %v5850
        %v5852 = vrot.slane %v4721, %v5851
        %v5853 = vlaneseq
        %v5854 = vshrl.u32 %v5853, 7
        %v5855 = vsub.s32 %v4771, %v5854
        %v5856 = vrot.slane %v4724, %v5855
        %v5857 = vsel %vm4776, %v5856, %v5852
        %v5858 = vlaneseq
        %v5859 = vshrl.u32 %v5858, 7
        %v5860 = vsub.s32 %v1334, %v5859
        %v5861 = vrot.slane %v4727, %v5860
        %v5862 = vlaneseq
        %v5863 = vshrl.u32 %v5862, 7
        %v5864 = vsub.s32 %v4771, %v5863
        %v5865 = vrot.slane %v4730, %v5864
        %v5866 = vsel %vm4776, %v5865, %v5861
        %v5867 = vlaneseq
        %v5868 = vshrl.u32 %v5867, 7
        %v5869 = vsub.s32 %v1334, %v5868
        %v5870 = vrot.slane %v4733, %v5869
        %v5871 = vlaneseq
        %v5872 = vshrl.u32 %v5871, 7
        %v5873 = vsub.s32 %v4771, %v5872
        %v5874 = vrot.slane %v4736, %v5873
        %v5875 = vsel %vm4776, %v5874, %v5870
        %v5876 = vlaneseq
        %v5877 = vshrl.u32 %v5876, 7
        %v5878 = vsub.s32 %v1334, %v5877
        %v5879 = vrot.slane %v4739, %v5878
        %v5880 = vlaneseq
        %v5881 = vshrl.u32 %v5880, 7
        %v5882 = vsub.s32 %v4771, %v5881
        %v5883 = vrot.slane %v4742, %v5882
        %v5884 = vsel %vm4776, %v5883, %v5879
        %v5885 = vlaneseq
        %v5886 = vshrl.u32 %v5885, 7
        %v5887 = vsub.s32 %v1334, %v5886
        %v5888 = vrot.slane %v4745, %v5887
        %v5889 = vlaneseq
        %v5890 = vshrl.u32 %v5889, 7
        %v5891 = vsub.s32 %v4771, %v5890
        %v5892 = vrot.slane %v4748, %v5891
        %v5893 = vsel %vm4776, %v5892, %v5888
        %v5894 = vlaneseq
        %v5895 = vshrl.u32 %v5894, 7
        %v5896 = vsub.s32 %v1334, %v5895
        %v5897 = vrot.slane %v4751, %v5896
        %v5898 = vlaneseq
        %v5899 = vshrl.u32 %v5898, 7
        %v5900 = vsub.s32 %v4771, %v5899
        %v5901 = vrot.slane %v4754, %v5900
        %v5902 = vsel %vm4776, %v5901, %v5897
        %v5903 = vlaneseq
        %v5904 = vshrl.u32 %v5903, 7
        %v5905 = vsub.s32 %v1334, %v5904
        %v5906 = vrot.slane %v4757, %v5905
        %v5907 = vlaneseq
        %v5908 = vshrl.u32 %v5907, 7
        %v5909 = vsub.s32 %v4771, %v5908
        %v5910 = vrot.slane %v4760, %v5909
        %v5911 = vsel %vm4776, %v5910, %v5906
        %v5912 = vlaneseq
        %v5913 = vshrl.u32 %v5912, 7
        %v5914 = vsub.s32 %v1334, %v5913
        %v5915 = vrot.slane %v4763, %v5914
        %v5916 = vlaneseq
        %v5917 = vshrl.u32 %v5916, 7
        %v5918 = vsub.s32 %v4771, %v5917
        %v5919 = vrot.slane %v4766, %v5918
        %v5920 = vsel %vm4776, %v5919, %v5915
        %vm5921 = vcmask 1041409
        %v5922 = vsel %vm5921, %v4786, %v4777
        %vm5923 = vcmask 1042434
        %v5924 = vsel %vm5923, %v4795, %v5922
        %vm5925 = vcmask 1043459
        %v5926 = vsel %vm5925, %v4804, %v5924
        %vm5927 = vcmask 1044484
        %v5928 = vsel %vm5927, %v4813, %v5926
        %vm5929 = vcmask 1045509
        %v5930 = vsel %vm5929, %v4822, %v5928
        %vm5931 = vcmask 1046534
        %v5932 = vsel %vm5931, %v4831, %v5930
        %vm5933 = vcmask 1047559
        %v5934 = vsel %vm5933, %v4840, %v5932
        %v5935 = vsel %vm5921, %v4858, %v4849
        %v5936 = vsel %vm5923, %v4867, %v5935
        %v5937 = vsel %vm5925, %v4876, %v5936
        %v5938 = vsel %vm5927, %v4885, %v5937
        %v5939 = vsel %vm5929, %v4894, %v5938
        %v5940 = vsel %vm5931, %v4903, %v5939
        %v5941 = vsel %vm5933, %v4912, %v5940
        %v5942 = vsel %vm5921, %v4930, %v4921
        %v5943 = vsel %vm5923, %v4939, %v5942
        %v5944 = vsel %vm5925, %v4948, %v5943
        %v5945 = vsel %vm5927, %v4957, %v5944
        %v5946 = vsel %vm5929, %v4966, %v5945
        %v5947 = vsel %vm5931, %v4975, %v5946
        %v5948 = vsel %vm5933, %v4984, %v5947
        %v5949 = vsel %vm5921, %v5002, %v4993
        %v5950 = vsel %vm5923, %v5011, %v5949
        %v5951 = vsel %vm5925, %v5020, %v5950
        %v5952 = vsel %vm5927, %v5029, %v5951
        %v5953 = vsel %vm5929, %v5038, %v5952
        %v5954 = vsel %vm5931, %v5047, %v5953
        %v5955 = vsel %vm5933, %v5056, %v5954
        %v5956 = vsel %vm5921, %v5074, %v5065
        %v5957 = vsel %vm5923, %v5083, %v5956
        %v5958 = vsel %vm5925, %v5092, %v5957
        %v5959 = vsel %vm5927, %v5101, %v5958
        %v5960 = vsel %vm5929, %v5110, %v5959
        %v5961 = vsel %vm5931, %v5119, %v5960
        %v5962 = vsel %vm5933, %v5128, %v5961
        %v5963 = vsel %vm5921, %v5146, %v5137
        %v5964 = vsel %vm5923, %v5155, %v5963
        %v5965 = vsel %vm5925, %v5164, %v5964
        %v5966 = vsel %vm5927, %v5173, %v5965
        %v5967 = vsel %vm5929, %v5182, %v5966
        %v5968 = vsel %vm5931, %v5191, %v5967
        %v5969 = vsel %vm5933, %v5200, %v5968
        %v5970 = vsel %vm5921, %v5218, %v5209
        %v5971 = vsel %vm5923, %v5227, %v5970
        %v5972 = vsel %vm5925, %v5236, %v5971
        %v5973 = vsel %vm5927, %v5245, %v5972
        %v5974 = vsel %vm5929, %v5254, %v5973
        %v5975 = vsel %vm5931, %v5263, %v5974
        %v5976 = vsel %vm5933, %v5272, %v5975
        %v5977 = vsel %vm5921, %v5290, %v5281
        %v5978 = vsel %vm5923, %v5299, %v5977
        %v5979 = vsel %vm5925, %v5308, %v5978
        %v5980 = vsel %vm5927, %v5317, %v5979
        %v5981 = vsel %vm5929, %v5326, %v5980
        %v5982 = vsel %vm5931, %v5335, %v5981
        %v5983 = vsel %vm5933, %v5344, %v5982
        %v5984 = vsel %vm5921, %v5362, %v5353
        %v5985 = vsel %vm5923, %v5371, %v5984
        %v5986 = vsel %vm5925, %v5380, %v5985
        %v5987 = vsel %vm5927, %v5389, %v5986
        %v5988 = vsel %vm5929, %v5398, %v5987
        %v5989 = vsel %vm5931, %v5407, %v5988
        %v5990 = vsel %vm5933, %v5416, %v5989
        %v5991 = vsel %vm5921, %v5434, %v5425
        %v5992 = vsel %vm5923, %v5443, %v5991
        %v5993 = vsel %vm5925, %v5452, %v5992
        %v5994 = vsel %vm5927, %v5461, %v5993
        %v5995 = vsel %vm5929, %v5470, %v5994
        %v5996 = vsel %vm5931, %v5479, %v5995
        %v5997 = vsel %vm5933, %v5488, %v5996
        %v5998 = vsel %vm5921, %v5506, %v5497
        %v5999 = vsel %vm5923, %v5515, %v5998
        %v6000 = vsel %vm5925, %v5524, %v5999
        %v6001 = vsel %vm5927, %v5533, %v6000
        %v6002 = vsel %vm5929, %v5542, %v6001
        %v6003 = vsel %vm5931, %v5551, %v6002
        %v6004 = vsel %vm5933, %v5560, %v6003
        %v6005 = vsel %vm5921, %v5578, %v5569
        %v6006 = vsel %vm5923, %v5587, %v6005
        %v6007 = vsel %vm5925, %v5596, %v6006
        %v6008 = vsel %vm5927, %v5605, %v6007
        %v6009 = vsel %vm5929, %v5614, %v6008
        %v6010 = vsel %vm5931, %v5623, %v6009
        %v6011 = vsel %vm5933, %v5632, %v6010
        %v6012 = vsel %vm5921, %v5650, %v5641
        %v6013 = vsel %vm5923, %v5659, %v6012
        %v6014 = vsel %vm5925, %v5668, %v6013
        %v6015 = vsel %vm5927, %v5677, %v6014
        %v6016 = vsel %vm5929, %v5686, %v6015
        %v6017 = vsel %vm5931, %v5695, %v6016
        %v6018 = vsel %vm5933, %v5704, %v6017
        %v6019 = vsel %vm5921, %v5722, %v5713
        %v6020 = vsel %vm5923, %v5731, %v6019
        %v6021 = vsel %vm5925, %v5740, %v6020
        %v6022 = vsel %vm5927, %v5749, %v6021
        %v6023 = vsel %vm5929, %v5758, %v6022
        %v6024 = vsel %vm5931, %v5767, %v6023
        %v6025 = vsel %vm5933, %v5776, %v6024
        %v6026 = vsel %vm5921, %v5794, %v5785
        %v6027 = vsel %vm5923, %v5803, %v6026
        %v6028 = vsel %vm5925, %v5812, %v6027
        %v6029 = vsel %vm5927, %v5821, %v6028
        %v6030 = vsel %vm5929, %v5830, %v6029
        %v6031 = vsel %vm5931, %v5839, %v6030
        %v6032 = vsel %vm5933, %v5848, %v6031
        %v6033 = vsel %vm5921, %v5866, %v5857
        %v6034 = vsel %vm5923, %v5875, %v6033
        %v6035 = vsel %vm5925, %v5884, %v6034
        %v6036 = vsel %vm5927, %v5893, %v6035
        %v6037 = vsel %vm5929, %v5902, %v6036
        %v6038 = vsel %vm5931, %v5911, %v6037
        %v6039 = vsel %vm5933, %v5920, %v6038
        %v6056 = vsel %vm1185, %v5934, 0.0
        %6057 = vadd.xlane.f32.xlu0 %v6056
        %v6058 = vpop.xlane.xlu0 %6057
        %v6059 = vsel %vm1185, %v5941, 0.0
        %6060 = vadd.xlane.f32.xlu0 %v6059
        %v6061 = vpop.xlane.xlu0 %6060
        %v6062 = vsel %vm1185, %v5948, 0.0
        %6063 = vadd.xlane.f32.xlu0 %v6062
        %v6064 = vpop.xlane.xlu0 %6063
        %v6065 = vsel %vm1185, %v5955, 0.0
        %6066 = vadd.xlane.f32.xlu0 %v6065
        %v6067 = vpop.xlane.xlu0 %6066
        %v6068 = vsel %vm1185, %v5962, 0.0
        %6069 = vadd.xlane.f32.xlu0 %v6068
        %v6070 = vpop.xlane.xlu0 %6069
        %v6071 = vsel %vm1185, %v5969, 0.0
        %6072 = vadd.xlane.f32.xlu0 %v6071
        %v6073 = vpop.xlane.xlu0 %6072
        %v6074 = vsel %vm1185, %v5976, 0.0
        %6075 = vadd.xlane.f32.xlu0 %v6074
        %v6076 = vpop.xlane.xlu0 %6075
        %v6077 = vsel %vm1185, %v5983, 0.0
        %6078 = vadd.xlane.f32.xlu0 %v6077
        %v6079 = vpop.xlane.xlu0 %6078
        %v6080 = vsel %vm1185, %v5990, 0.0
        %6081 = vadd.xlane.f32.xlu0 %v6080
        %v6082 = vpop.xlane.xlu0 %6081
        %v6083 = vsel %vm1185, %v5997, 0.0
        %6084 = vadd.xlane.f32.xlu0 %v6083
        %v6085 = vpop.xlane.xlu0 %6084
        %v6086 = vsel %vm1185, %v6004, 0.0
        %6087 = vadd.xlane.f32.xlu0 %v6086
        %v6088 = vpop.xlane.xlu0 %6087
        %v6089 = vsel %vm1185, %v6011, 0.0
        %6090 = vadd.xlane.f32.xlu0 %v6089
        %v6091 = vpop.xlane.xlu0 %6090
        %v6092 = vsel %vm1185, %v6018, 0.0
        %6093 = vadd.xlane.f32.xlu0 %v6092
        %v6094 = vpop.xlane.xlu0 %6093
        %v6095 = vsel %vm1185, %v6025, 0.0
        %6096 = vadd.xlane.f32.xlu0 %v6095
        %v6097 = vpop.xlane.xlu0 %6096
        %v6098 = vsel %vm1185, %v6032, 0.0
        %6099 = vadd.xlane.f32.xlu0 %v6098
        %v6100 = vpop.xlane.xlu0 %6099
        %v6101 = vsel %vm1185, %v6039, 0.0
        %6102 = vadd.xlane.f32.xlu0 %v6101
        %v6103 = vpop.xlane.xlu0 %6102
        %vm6104 = vcmp.lt.f32.partialorder %v6058, 15.0
        %vm6105 = vcmp.lt.f32.partialorder %v6061, 15.0
        %vm6106 = vcmp.lt.f32.partialorder %v6064, 15.0
        %vm6107 = vcmp.lt.f32.partialorder %v6067, 15.0
        %vm6108 = vcmp.lt.f32.partialorder %v6070, 15.0
        %vm6109 = vcmp.lt.f32.partialorder %v6073, 15.0
        %vm6110 = vcmp.lt.f32.partialorder %v6076, 15.0
        %vm6111 = vcmp.lt.f32.partialorder %v6079, 15.0
        %vm6112 = vcmp.lt.f32.partialorder %v6082, 15.0
        %vm6113 = vcmp.lt.f32.partialorder %v6085, 15.0
        %vm6114 = vcmp.lt.f32.partialorder %v6088, 15.0
        %vm6115 = vcmp.lt.f32.partialorder %v6091, 15.0
        %vm6116 = vcmp.lt.f32.partialorder %v6094, 15.0
        %vm6117 = vcmp.lt.f32.partialorder %v6097, 15.0
        %vm6118 = vcmp.lt.f32.partialorder %v6100, 15.0
        %vm6119 = vcmp.lt.f32.partialorder %v6103, 15.0
        %v6120 = vmul.f32 %v546, 0.17677669
        %v6121 = vmul.f32 %v551, 0.17677669
        %v6122 = vmul.f32 %v633, 0.17677669
        %v6123 = vmul.f32 %v638, 0.17677669
        %v6124 = vmul.f32 %v720, 0.17677669
        %v6125 = vmul.f32 %v725, 0.17677669
        %v6126 = vmul.f32 %v807, 0.17677669
        %v6127 = vmul.f32 %v812, 0.17677669
        %v6128 = vmul.f32 %v894, 0.17677669
        %v6129 = vmul.f32 %v899, 0.17677669
        %v6130 = vmul.f32 %v981, 0.17677669
        %v6131 = vmul.f32 %v986, 0.17677669
        %v6132 = vmul.f32 %v1068, 0.17677669
        %v6133 = vmul.f32 %v1073, 0.17677669
        %v6134 = vmul.f32 %v1155, 0.17677669
        %v6135 = vmul.f32 %v1160, 0.17677669
        %v6136 = vsel %vm1185, %v6120, -inf
        %6137 = vmax.xlane.f32.xlu0 %v6136
        %v6138 = vpop.xlane.xlu0 %6137
        %v6139 = vsel %vm1185, %v6121, -inf
        %6140 = vmax.xlane.f32.xlu0 %v6139
        %v6141 = vpop.xlane.xlu0 %6140
        %v6142 = vsel %vm1185, %v6122, -inf
        %6143 = vmax.xlane.f32.xlu0 %v6142
        %v6144 = vpop.xlane.xlu0 %6143
        %v6145 = vsel %vm1185, %v6123, -inf
        %6146 = vmax.xlane.f32.xlu0 %v6145
        %v6147 = vpop.xlane.xlu0 %6146
        %v6148 = vsel %vm1185, %v6124, -inf
        %6149 = vmax.xlane.f32.xlu0 %v6148
        %v6150 = vpop.xlane.xlu0 %6149
        %v6151 = vsel %vm1185, %v6125, -inf
        %6152 = vmax.xlane.f32.xlu0 %v6151
        %v6153 = vpop.xlane.xlu0 %6152
        %v6154 = vsel %vm1185, %v6126, -inf
        %6155 = vmax.xlane.f32.xlu0 %v6154
        %v6156 = vpop.xlane.xlu0 %6155
        %v6157 = vsel %vm1185, %v6127, -inf
        %6158 = vmax.xlane.f32.xlu0 %v6157
        %v6159 = vpop.xlane.xlu0 %6158
        %v6160 = vsel %vm1185, %v6128, -inf
        %6161 = vmax.xlane.f32.xlu0 %v6160
        %v6162 = vpop.xlane.xlu0 %6161
        %v6163 = vsel %vm1185, %v6129, -inf
        %6164 = vmax.xlane.f32.xlu0 %v6163
        %v6165 = vpop.xlane.xlu0 %6164
        %v6166 = vsel %vm1185, %v6130, -inf
        %6167 = vmax.xlane.f32.xlu0 %v6166
        %v6168 = vpop.xlane.xlu0 %6167
        %v6169 = vsel %vm1185, %v6131, -inf
        %6170 = vmax.xlane.f32.xlu0 %v6169
        %v6171 = vpop.xlane.xlu0 %6170
        %v6172 = vsel %vm1185, %v6132, -inf
        %6173 = vmax.xlane.f32.xlu0 %v6172
        %v6174 = vpop.xlane.xlu0 %6173
        %v6175 = vsel %vm1185, %v6133, -inf
        %6176 = vmax.xlane.f32.xlu0 %v6175
        %v6177 = vpop.xlane.xlu0 %6176
        %v6178 = vsel %vm1185, %v6134, -inf
        %6179 = vmax.xlane.f32.xlu0 %v6178
        %v6180 = vpop.xlane.xlu0 %6179
        %v6181 = vsel %vm1185, %v6135, -inf
        %6182 = vmax.xlane.f32.xlu0 %v6181
        %v6183 = vpop.xlane.xlu0 %6182
        %v6184 = vsub.f32 %v6120, %v6138
        %v6185 = vsub.f32 %v6121, %v6141
        %v6186 = vsub.f32 %v6122, %v6144
        %v6187 = vsub.f32 %v6123, %v6147
        %v6188 = vsub.f32 %v6124, %v6150
        %v6189 = vsub.f32 %v6125, %v6153
        %v6190 = vsub.f32 %v6126, %v6156
        %v6191 = vsub.f32 %v6127, %v6159
        %v6192 = vsub.f32 %v6128, %v6162
        %v6193 = vsub.f32 %v6129, %v6165
        %v6194 = vsub.f32 %v6130, %v6168
        %v6195 = vsub.f32 %v6131, %v6171
        %v6196 = vsub.f32 %v6132, %v6174
        %v6197 = vsub.f32 %v6133, %v6177
        %v6198 = vsub.f32 %v6134, %v6180
        %v6199 = vsub.f32 %v6135, %v6183
        %v6200 = vmul.f32 %v6184, 1.442695
        %v6201 = vpow.pop %v6200
        %v6202 = vmul.f32 %v6185, 1.442695
        %v6203 = vpow.pop %v6202
        %v6204 = vmul.f32 %v6186, 1.442695
        %v6205 = vpow.pop %v6204
        %v6206 = vmul.f32 %v6187, 1.442695
        %v6207 = vpow.pop %v6206
        %v6208 = vmul.f32 %v6188, 1.442695
        %v6209 = vpow.pop %v6208
        %v6210 = vmul.f32 %v6189, 1.442695
        %v6211 = vpow.pop %v6210
        %v6212 = vmul.f32 %v6190, 1.442695
        %v6213 = vpow.pop %v6212
        %v6214 = vmul.f32 %v6191, 1.442695
        %v6215 = vpow.pop %v6214
        %v6216 = vmul.f32 %v6192, 1.442695
        %v6217 = vpow.pop %v6216
        %v6218 = vmul.f32 %v6193, 1.442695
        %v6219 = vpow.pop %v6218
        %v6220 = vmul.f32 %v6194, 1.442695
        %v6221 = vpow.pop %v6220
        %v6222 = vmul.f32 %v6195, 1.442695
        %v6223 = vpow.pop %v6222
        %v6224 = vmul.f32 %v6196, 1.442695
        %v6225 = vpow.pop %v6224
        %v6226 = vmul.f32 %v6197, 1.442695
        %v6227 = vpow.pop %v6226
        %v6228 = vmul.f32 %v6198, 1.442695
        %v6229 = vpow.pop %v6228
        %v6230 = vmul.f32 %v6199, 1.442695
        %v6231 = vpow.pop %v6230
        %v6232 = vsel %vm1185, %v6201, 0.0
        %6233 = vadd.xlane.f32.xlu0 %v6232
        %v6234 = vpop.xlane.xlu0 %6233
        %v6235 = vsel %vm1185, %v6203, 0.0
        %6236 = vadd.xlane.f32.xlu0 %v6235
        %v6237 = vpop.xlane.xlu0 %6236
        %v6238 = vsel %vm1185, %v6205, 0.0
        %6239 = vadd.xlane.f32.xlu0 %v6238
        %v6240 = vpop.xlane.xlu0 %6239
        %v6241 = vsel %vm1185, %v6207, 0.0
        %6242 = vadd.xlane.f32.xlu0 %v6241
        %v6243 = vpop.xlane.xlu0 %6242
        %v6244 = vsel %vm1185, %v6209, 0.0
        %6245 = vadd.xlane.f32.xlu0 %v6244
        %v6246 = vpop.xlane.xlu0 %6245
        %v6247 = vsel %vm1185, %v6211, 0.0
        %6248 = vadd.xlane.f32.xlu0 %v6247
        %v6249 = vpop.xlane.xlu0 %6248
        %v6250 = vsel %vm1185, %v6213, 0.0
        %6251 = vadd.xlane.f32.xlu0 %v6250
        %v6252 = vpop.xlane.xlu0 %6251
        %v6253 = vsel %vm1185, %v6215, 0.0
        %6254 = vadd.xlane.f32.xlu0 %v6253
        %v6255 = vpop.xlane.xlu0 %6254
        %v6256 = vsel %vm1185, %v6217, 0.0
        %6257 = vadd.xlane.f32.xlu0 %v6256
        %v6258 = vpop.xlane.xlu0 %6257
        %v6259 = vsel %vm1185, %v6219, 0.0
        %6260 = vadd.xlane.f32.xlu0 %v6259
        %v6261 = vpop.xlane.xlu0 %6260
        %v6262 = vsel %vm1185, %v6221, 0.0
        %6263 = vadd.xlane.f32.xlu0 %v6262
        %v6264 = vpop.xlane.xlu0 %6263
        %v6265 = vsel %vm1185, %v6223, 0.0
        %6266 = vadd.xlane.f32.xlu0 %v6265
        %v6267 = vpop.xlane.xlu0 %6266
        %v6268 = vsel %vm1185, %v6225, 0.0
        %6269 = vadd.xlane.f32.xlu0 %v6268
        %v6270 = vpop.xlane.xlu0 %6269
        %v6271 = vsel %vm1185, %v6227, 0.0
        %6272 = vadd.xlane.f32.xlu0 %v6271
        %v6273 = vpop.xlane.xlu0 %6272
        %v6274 = vsel %vm1185, %v6229, 0.0
        %6275 = vadd.xlane.f32.xlu0 %v6274
        %v6276 = vpop.xlane.xlu0 %6275
        %v6277 = vsel %vm1185, %v6231, 0.0
        %6278 = vadd.xlane.f32.xlu0 %v6277
        %v6279 = vpop.xlane.xlu0 %6278
        %v6280 = vrcp.pop %v6234
        %v6281 = vmul.f32 %v6201, %v6280
        %v6282 = vrcp.pop %v6237
        %v6283 = vmul.f32 %v6203, %v6282
        %v6284 = vrcp.pop %v6240
        %v6285 = vmul.f32 %v6205, %v6284
        %v6286 = vrcp.pop %v6243
        %v6287 = vmul.f32 %v6207, %v6286
        %v6288 = vrcp.pop %v6246
        %v6289 = vmul.f32 %v6209, %v6288
        %v6290 = vrcp.pop %v6249
        %v6291 = vmul.f32 %v6211, %v6290
        %v6292 = vrcp.pop %v6252
        %v6293 = vmul.f32 %v6213, %v6292
        %v6294 = vrcp.pop %v6255
        %v6295 = vmul.f32 %v6215, %v6294
        %v6296 = vrcp.pop %v6258
        %v6297 = vmul.f32 %v6217, %v6296
        %v6298 = vrcp.pop %v6261
        %v6299 = vmul.f32 %v6219, %v6298
        %v6300 = vrcp.pop %v6264
        %v6301 = vmul.f32 %v6221, %v6300
        %v6302 = vrcp.pop %v6267
        %v6303 = vmul.f32 %v6223, %v6302
        %v6304 = vrcp.pop %v6270
        %v6305 = vmul.f32 %v6225, %v6304
        %v6306 = vrcp.pop %v6273
        %v6307 = vmul.f32 %v6227, %v6306
        %v6308 = vrcp.pop %v6276
        %v6309 = vmul.f32 %v6229, %v6308
        %v6310 = vrcp.pop %v6279
        %v6311 = vmul.f32 %v6231, %v6310
        %v6313 = vsel %vm1185, %v6281, 0
        %v6316 = vsel %vm1185, %v6283, 0
        %6318 = vmatprep.subr.mxu0 0.0
        %6319 = vmatpush1.msra.mxu0 0.0
        %6320 = vmatprep.subr.mxu0 0.0
        %6321 = vmatpush1.msra.mxu0 0.0
        %6322 = vmatprep.subr.mxu0 0.0
        %6323 = vmatpush1.msra.mxu0 0.0
        %6324 = vmatprep.subr.mxu0 0.0
        %6325 = vmatpush1.msra.mxu0 0.0
        %6326 = vmatprep.subr.mxu0 0.0
        %6327 = vmatpush1.msra.mxu0 0.0
        %6328 = vmatprep.subr.mxu0 0.0
        %6329 = vmatpush1.msra.mxu0 0.0
        %6330 = vmatprep.subr.mxu0 0.0
        %6331 = vmatpush1.msra.mxu0 0.0
        %6332 = vmatprep.subr.mxu0 0.0
        %6333 = vmatpush1.msra.mxu0 0.0
        %6334 = vmatprep.subr.mxu0 0.0
        %6335 = vmatpush1.msra.mxu0 0.0
        %6336 = vmatprep.subr.mxu0 0.0
        %6337 = vmatpush1.msra.mxu0 0.0
        %6338 = vmatprep.subr.mxu0 0.0
        %6339 = vmatpush1.msra.mxu0 0.0
        %6340 = vmatprep.subr.mxu0 0.0
        %6341 = vmatpush1.msra.mxu0 0.0
        %6342 = vmatprep.subr.mxu0 0.0
        %6343 = vmatpush1.msra.mxu0 0.0
        %6344 = vmatprep.subr.mxu0 0.0
        %6345 = vmatpush1.msra.mxu0 0.0
        %6346 = vmatprep.subr.mxu0 0.0
        %6347 = vmatpush1.msra.mxu0 %v449
        %6348 = vmatprep.subr.mxu0 0.0
        %6349 = vmatpush1.msra.mxu0 %v448
        %6350 = vmatprep.subr.mxu0 0.0
        %6351 = vmatpush2.msra.mxu0 0.0
        %6352 = vmatprep.subr.mxu0 0.0
        %6353 = vmatpush2.msra.mxu0 0.0
        %6354 = vmatprep.subr.mxu0 0.0
        %6355 = vmatpush2.msra.mxu0 0.0
        %6356 = vmatprep.subr.mxu0 0.0
        %6357 = vmatpush2.msra.mxu0 0.0
        %6358 = vmatprep.subr.mxu0 0.0
        %6359 = vmatpush2.msra.mxu0 0.0
        %6360 = vmatprep.subr.mxu0 0.0
        %6361 = vmatpush2.msra.mxu0 0.0
        %6362 = vmatprep.subr.mxu0 0.0
        %6363 = vmatpush2.msra.mxu0 0.0
        %6364 = vmatprep.subr.mxu0 0.0
        %6365 = vmatpush2.msra.mxu0 0.0
        %6366 = vmatprep.subr.mxu0 0.0
        %6367 = vmatpush2.msra.mxu0 0.0
        %6368 = vmatprep.subr.mxu0 0.0
        %6369 = vmatpush2.msra.mxu0 0.0
        %6370 = vmatprep.subr.mxu0 0.0
        %6371 = vmatpush2.msra.mxu0 0.0
        %6372 = vmatprep.subr.mxu0 0.0
        %6373 = vmatpush2.msra.mxu0 0.0
        %6374 = vmatprep.subr.mxu0 0.0
        %6375 = vmatpush2.msra.mxu0 0.0
        %6376 = vmatprep.subr.mxu0 0.0
        %6377 = vmatpush2.msra.mxu0 0.0
        %6378 = vmatprep.subr.mxu0 0.0
        %6379 = vmatpush2.msra.mxu0 0.0
        %6380 = vmatprep.subr.mxu0 0.0
        %6381 = vmatpush2.msra.mxu0 0.0
        %6382 = vmatprep.mubr.f32.mxu0 0.0
        %6383 = vmatmul.mubr.f32.gmra.mxu0 %v6313
        %v6384 = vpop.f32.mrf.mxu0
        %v6385 = vadd.f32 0.0, %v6384
        %v6386 = vpop.f32.mrf.mxu0
        %6387 = vmatprep.mubr.f32.mxu0 0.0
        %6388 = vmatmul.mubr.f32.gmra.mxu0 %v6316
        %v6389 = vpop.f32.mrf.mxu0
        %v6390 = vadd.f32 0.0, %v6389
        %v6391 = vpop.f32.mrf.mxu0
        %6392 = vdwg.mxu0
        %v6394 = vsel %vm1185, %v6285, 0
        %v6397 = vsel %vm1185, %v6287, 0
        %6399 = vmatprep.subr.mxu0 0.0
        %6400 = vmatpush1.msra.mxu0 0.0
        %6401 = vmatprep.subr.mxu0 0.0
        %6402 = vmatpush1.msra.mxu0 0.0
        %6403 = vmatprep.subr.mxu0 0.0
        %6404 = vmatpush1.msra.mxu0 0.0
        %6405 = vmatprep.subr.mxu0 0.0
        %6406 = vmatpush1.msra.mxu0 0.0
        %6407 = vmatprep.subr.mxu0 0.0
        %6408 = vmatpush1.msra.mxu0 0.0
        %6409 = vmatprep.subr.mxu0 0.0
        %6410 = vmatpush1.msra.mxu0 0.0
        %6411 = vmatprep.subr.mxu0 0.0
        %6412 = vmatpush1.msra.mxu0 0.0
        %6413 = vmatprep.subr.mxu0 0.0
        %6414 = vmatpush1.msra.mxu0 0.0
        %6415 = vmatprep.subr.mxu0 0.0
        %6416 = vmatpush1.msra.mxu0 0.0
        %6417 = vmatprep.subr.mxu0 0.0
        %6418 = vmatpush1.msra.mxu0 0.0
        %6419 = vmatprep.subr.mxu0 0.0
        %6420 = vmatpush1.msra.mxu0 0.0
        %6421 = vmatprep.subr.mxu0 0.0
        %6422 = vmatpush1.msra.mxu0 0.0
        %6423 = vmatprep.subr.mxu0 0.0
        %6424 = vmatpush1.msra.mxu0 0.0
        %6425 = vmatprep.subr.mxu0 0.0
        %6426 = vmatpush1.msra.mxu0 0.0
        %6427 = vmatprep.subr.mxu0 0.0
        %6428 = vmatpush1.msra.mxu0 %v451
        %6429 = vmatprep.subr.mxu0 0.0
        %6430 = vmatpush1.msra.mxu0 %v450
        %6431 = vmatprep.subr.mxu0 0.0
        %6432 = vmatpush2.msra.mxu0 0.0
        %6433 = vmatprep.subr.mxu0 0.0
        %6434 = vmatpush2.msra.mxu0 0.0
        %6435 = vmatprep.subr.mxu0 0.0
        %6436 = vmatpush2.msra.mxu0 0.0
        %6437 = vmatprep.subr.mxu0 0.0
        %6438 = vmatpush2.msra.mxu0 0.0
        %6439 = vmatprep.subr.mxu0 0.0
        %6440 = vmatpush2.msra.mxu0 0.0
        %6441 = vmatprep.subr.mxu0 0.0
        %6442 = vmatpush2.msra.mxu0 0.0
        %6443 = vmatprep.subr.mxu0 0.0
        %6444 = vmatpush2.msra.mxu0 0.0
        %6445 = vmatprep.subr.mxu0 0.0
        %6446 = vmatpush2.msra.mxu0 0.0
        %6447 = vmatprep.subr.mxu0 0.0
        %6448 = vmatpush2.msra.mxu0 0.0
        %6449 = vmatprep.subr.mxu0 0.0
        %6450 = vmatpush2.msra.mxu0 0.0
        %6451 = vmatprep.subr.mxu0 0.0
        %6452 = vmatpush2.msra.mxu0 0.0
        %6453 = vmatprep.subr.mxu0 0.0
        %6454 = vmatpush2.msra.mxu0 0.0
        %6455 = vmatprep.subr.mxu0 0.0
        %6456 = vmatpush2.msra.mxu0 0.0
        %6457 = vmatprep.subr.mxu0 0.0
        %6458 = vmatpush2.msra.mxu0 0.0
        %6459 = vmatprep.subr.mxu0 0.0
        %6460 = vmatpush2.msra.mxu0 0.0
        %6461 = vmatprep.subr.mxu0 0.0
        %6462 = vmatpush2.msra.mxu0 0.0
        %6463 = vmatprep.mubr.f32.mxu0 0.0
        %6464 = vmatmul.mubr.f32.gmra.mxu0 %v6394
        %v6465 = vpop.f32.mrf.mxu0
        %v6466 = vadd.f32 0.0, %v6465
        %v6467 = vpop.f32.mrf.mxu0
        %6468 = vmatprep.mubr.f32.mxu0 0.0
        %6469 = vmatmul.mubr.f32.gmra.mxu0 %v6397
        %v6470 = vpop.f32.mrf.mxu0
        %v6471 = vadd.f32 0.0, %v6470
        %v6472 = vpop.f32.mrf.mxu0
        %6473 = vdwg.mxu0
        %v6475 = vsel %vm1185, %v6289, 0
        %v6478 = vsel %vm1185, %v6291, 0
        %6480 = vmatprep.subr.mxu0 0.0
        %6481 = vmatpush1.msra.mxu0 0.0
        %6482 = vmatprep.subr.mxu0 0.0
        %6483 = vmatpush1.msra.mxu0 0.0
        %6484 = vmatprep.subr.mxu0 0.0
        %6485 = vmatpush1.msra.mxu0 0.0
        %6486 = vmatprep.subr.mxu0 0.0
        %6487 = vmatpush1.msra.mxu0 0.0
        %6488 = vmatprep.subr.mxu0 0.0
        %6489 = vmatpush1.msra.mxu0 0.0
        %6490 = vmatprep.subr.mxu0 0.0
        %6491 = vmatpush1.msra.mxu0 0.0
        %6492 = vmatprep.subr.mxu0 0.0
        %6493 = vmatpush1.msra.mxu0 0.0
        %6494 = vmatprep.subr.mxu0 0.0
        %6495 = vmatpush1.msra.mxu0 0.0
        %6496 = vmatprep.subr.mxu0 0.0
        %6497 = vmatpush1.msra.mxu0 0.0
        %6498 = vmatprep.subr.mxu0 0.0
        %6499 = vmatpush1.msra.mxu0 0.0
        %6500 = vmatprep.subr.mxu0 0.0
        %6501 = vmatpush1.msra.mxu0 0.0
        %6502 = vmatprep.subr.mxu0 0.0
        %6503 = vmatpush1.msra.mxu0 0.0
        %6504 = vmatprep.subr.mxu0 0.0
        %6505 = vmatpush1.msra.mxu0 0.0
        %6506 = vmatprep.subr.mxu0 0.0
        %6507 = vmatpush1.msra.mxu0 0.0
        %6508 = vmatprep.subr.mxu0 0.0
        %6509 = vmatpush1.msra.mxu0 %v453
        %6510 = vmatprep.subr.mxu0 0.0
        %6511 = vmatpush1.msra.mxu0 %v452
        %6512 = vmatprep.subr.mxu0 0.0
        %6513 = vmatpush2.msra.mxu0 0.0
        %6514 = vmatprep.subr.mxu0 0.0
        %6515 = vmatpush2.msra.mxu0 0.0
        %6516 = vmatprep.subr.mxu0 0.0
        %6517 = vmatpush2.msra.mxu0 0.0
        %6518 = vmatprep.subr.mxu0 0.0
        %6519 = vmatpush2.msra.mxu0 0.0
        %6520 = vmatprep.subr.mxu0 0.0
        %6521 = vmatpush2.msra.mxu0 0.0
        %6522 = vmatprep.subr.mxu0 0.0
        %6523 = vmatpush2.msra.mxu0 0.0
        %6524 = vmatprep.subr.mxu0 0.0
        %6525 = vmatpush2.msra.mxu0 0.0
        %6526 = vmatprep.subr.mxu0 0.0
        %6527 = vmatpush2.msra.mxu0 0.0
        %6528 = vmatprep.subr.mxu0 0.0
        %6529 = vmatpush2.msra.mxu0 0.0
        %6530 = vmatprep.subr.mxu0 0.0
        %6531 = vmatpush2.msra.mxu0 0.0
        %6532 = vmatprep.subr.mxu0 0.0
        %6533 = vmatpush2.msra.mxu0 0.0
        %6534 = vmatprep.subr.mxu0 0.0
        %6535 = vmatpush2.msra.mxu0 0.0
        %6536 = vmatprep.subr.mxu0 0.0
        %6537 = vmatpush2.msra.mxu0 0.0
        %6538 = vmatprep.subr.mxu0 0.0
        %6539 = vmatpush2.msra.mxu0 0.0
        %6540 = vmatprep.subr.mxu0 0.0
        %6541 = vmatpush2.msra.mxu0 0.0
        %6542 = vmatprep.subr.mxu0 0.0
        %6543 = vmatpush2.msra.mxu0 0.0
        %6544 = vmatprep.mubr.f32.mxu0 0.0
        %6545 = vmatmul.mubr.f32.gmra.mxu0 %v6475
        %v6546 = vpop.f32.mrf.mxu0
        %v6547 = vadd.f32 0.0, %v6546
        %v6548 = vpop.f32.mrf.mxu0
        %6549 = vmatprep.mubr.f32.mxu0 0.0
        %6550 = vmatmul.mubr.f32.gmra.mxu0 %v6478
        %v6551 = vpop.f32.mrf.mxu0
        %v6552 = vadd.f32 0.0, %v6551
        %v6553 = vpop.f32.mrf.mxu0
        %6554 = vdwg.mxu0
        %v6556 = vsel %vm1185, %v6293, 0
        %v6559 = vsel %vm1185, %v6295, 0
        %6561 = vmatprep.subr.mxu0 0.0
        %6562 = vmatpush1.msra.mxu0 0.0
        %6563 = vmatprep.subr.mxu0 0.0
        %6564 = vmatpush1.msra.mxu0 0.0
        %6565 = vmatprep.subr.mxu0 0.0
        %6566 = vmatpush1.msra.mxu0 0.0
        %6567 = vmatprep.subr.mxu0 0.0
        %6568 = vmatpush1.msra.mxu0 0.0
        %6569 = vmatprep.subr.mxu0 0.0
        %6570 = vmatpush1.msra.mxu0 0.0
        %6571 = vmatprep.subr.mxu0 0.0
        %6572 = vmatpush1.msra.mxu0 0.0
        %6573 = vmatprep.subr.mxu0 0.0
        %6574 = vmatpush1.msra.mxu0 0.0
        %6575 = vmatprep.subr.mxu0 0.0
        %6576 = vmatpush1.msra.mxu0 0.0
        %6577 = vmatprep.subr.mxu0 0.0
        %6578 = vmatpush1.msra.mxu0 0.0
        %6579 = vmatprep.subr.mxu0 0.0
        %6580 = vmatpush1.msra.mxu0 0.0
        %6581 = vmatprep.subr.mxu0 0.0
        %6582 = vmatpush1.msra.mxu0 0.0
        %6583 = vmatprep.subr.mxu0 0.0
        %6584 = vmatpush1.msra.mxu0 0.0
        %6585 = vmatprep.subr.mxu0 0.0
        %6586 = vmatpush1.msra.mxu0 0.0
        %6587 = vmatprep.subr.mxu0 0.0
        %6588 = vmatpush1.msra.mxu0 0.0
        %6589 = vmatprep.subr.mxu0 0.0
        %6590 = vmatpush1.msra.mxu0 %v455
        %6591 = vmatprep.subr.mxu0 0.0
        %6592 = vmatpush1.msra.mxu0 %v454
        %6593 = vmatprep.subr.mxu0 0.0
        %6594 = vmatpush2.msra.mxu0 0.0
        %6595 = vmatprep.subr.mxu0 0.0
        %6596 = vmatpush2.msra.mxu0 0.0
        %6597 = vmatprep.subr.mxu0 0.0
        %6598 = vmatpush2.msra.mxu0 0.0
        %6599 = vmatprep.subr.mxu0 0.0
        %6600 = vmatpush2.msra.mxu0 0.0
        %6601 = vmatprep.subr.mxu0 0.0
        %6602 = vmatpush2.msra.mxu0 0.0
        %6603 = vmatprep.subr.mxu0 0.0
        %6604 = vmatpush2.msra.mxu0 0.0
        %6605 = vmatprep.subr.mxu0 0.0
        %6606 = vmatpush2.msra.mxu0 0.0
        %6607 = vmatprep.subr.mxu0 0.0
        %6608 = vmatpush2.msra.mxu0 0.0
        %6609 = vmatprep.subr.mxu0 0.0
        %6610 = vmatpush2.msra.mxu0 0.0
        %6611 = vmatprep.subr.mxu0 0.0
        %6612 = vmatpush2.msra.mxu0 0.0
        %6613 = vmatprep.subr.mxu0 0.0
        %6614 = vmatpush2.msra.mxu0 0.0
        %6615 = vmatprep.subr.mxu0 0.0
        %6616 = vmatpush2.msra.mxu0 0.0
        %6617 = vmatprep.subr.mxu0 0.0
        %6618 = vmatpush2.msra.mxu0 0.0
        %6619 = vmatprep.subr.mxu0 0.0
        %6620 = vmatpush2.msra.mxu0 0.0
        %6621 = vmatprep.subr.mxu0 0.0
        %6622 = vmatpush2.msra.mxu0 0.0
        %6623 = vmatprep.subr.mxu0 0.0
        %6624 = vmatpush2.msra.mxu0 0.0
        %6625 = vmatprep.mubr.f32.mxu0 0.0
        %6626 = vmatmul.mubr.f32.gmra.mxu0 %v6556
        %v6627 = vpop.f32.mrf.mxu0
        %v6628 = vadd.f32 0.0, %v6627
        %v6629 = vpop.f32.mrf.mxu0
        %6630 = vmatprep.mubr.f32.mxu0 0.0
        %6631 = vmatmul.mubr.f32.gmra.mxu0 %v6559
        %v6632 = vpop.f32.mrf.mxu0
        %v6633 = vadd.f32 0.0, %v6632
        %v6634 = vpop.f32.mrf.mxu0
        %6635 = vdwg.mxu0
        %v6637 = vsel %vm1185, %v6297, 0
        %v6640 = vsel %vm1185, %v6299, 0
        %6642 = vmatprep.subr.mxu0 0.0
        %6643 = vmatpush1.msra.mxu0 0.0
        %6644 = vmatprep.subr.mxu0 0.0
        %6645 = vmatpush1.msra.mxu0 0.0
        %6646 = vmatprep.subr.mxu0 0.0
        %6647 = vmatpush1.msra.mxu0 0.0
        %6648 = vmatprep.subr.mxu0 0.0
        %6649 = vmatpush1.msra.mxu0 0.0
        %6650 = vmatprep.subr.mxu0 0.0
        %6651 = vmatpush1.msra.mxu0 0.0
        %6652 = vmatprep.subr.mxu0 0.0
        %6653 = vmatpush1.msra.mxu0 0.0
        %6654 = vmatprep.subr.mxu0 0.0
        %6655 = vmatpush1.msra.mxu0 0.0
        %6656 = vmatprep.subr.mxu0 0.0
        %6657 = vmatpush1.msra.mxu0 0.0
        %6658 = vmatprep.subr.mxu0 0.0
        %6659 = vmatpush1.msra.mxu0 0.0
        %6660 = vmatprep.subr.mxu0 0.0
        %6661 = vmatpush1.msra.mxu0 0.0
        %6662 = vmatprep.subr.mxu0 0.0
        %6663 = vmatpush1.msra.mxu0 0.0
        %6664 = vmatprep.subr.mxu0 0.0
        %6665 = vmatpush1.msra.mxu0 0.0
        %6666 = vmatprep.subr.mxu0 0.0
        %6667 = vmatpush1.msra.mxu0 0.0
        %6668 = vmatprep.subr.mxu0 0.0
        %6669 = vmatpush1.msra.mxu0 0.0
        %6670 = vmatprep.subr.mxu0 0.0
        %6671 = vmatpush1.msra.mxu0 %v457
        %6672 = vmatprep.subr.mxu0 0.0
        %6673 = vmatpush1.msra.mxu0 %v456
        %6674 = vmatprep.subr.mxu0 0.0
        %6675 = vmatpush2.msra.mxu0 0.0
        %6676 = vmatprep.subr.mxu0 0.0
        %6677 = vmatpush2.msra.mxu0 0.0
        %6678 = vmatprep.subr.mxu0 0.0
        %6679 = vmatpush2.msra.mxu0 0.0
        %6680 = vmatprep.subr.mxu0 0.0
        %6681 = vmatpush2.msra.mxu0 0.0
        %6682 = vmatprep.subr.mxu0 0.0
        %6683 = vmatpush2.msra.mxu0 0.0
        %6684 = vmatprep.subr.mxu0 0.0
        %6685 = vmatpush2.msra.mxu0 0.0
        %6686 = vmatprep.subr.mxu0 0.0
        %6687 = vmatpush2.msra.mxu0 0.0
        %6688 = vmatprep.subr.mxu0 0.0
        %6689 = vmatpush2.msra.mxu0 0.0
        %6690 = vmatprep.subr.mxu0 0.0
        %6691 = vmatpush2.msra.mxu0 0.0
        %6692 = vmatprep.subr.mxu0 0.0
        %6693 = vmatpush2.msra.mxu0 0.0
        %6694 = vmatprep.subr.mxu0 0.0
        %6695 = vmatpush2.msra.mxu0 0.0
        %6696 = vmatprep.subr.mxu0 0.0
        %6697 = vmatpush2.msra.mxu0 0.0
        %6698 = vmatprep.subr.mxu0 0.0
        %6699 = vmatpush2.msra.mxu0 0.0
        %6700 = vmatprep.subr.mxu0 0.0
        %6701 = vmatpush2.msra.mxu0 0.0
        %6702 = vmatprep.subr.mxu0 0.0
        %6703 = vmatpush2.msra.mxu0 0.0
        %6704 = vmatprep.subr.mxu0 0.0
        %6705 = vmatpush2.msra.mxu0 0.0
        %6706 = vmatprep.mubr.f32.mxu0 0.0
        %6707 = vmatmul.mubr.f32.gmra.mxu0 %v6637
        %v6708 = vpop.f32.mrf.mxu0
        %v6709 = vadd.f32 0.0, %v6708
        %v6710 = vpop.f32.mrf.mxu0
        %6711 = vmatprep.mubr.f32.mxu0 0.0
        %6712 = vmatmul.mubr.f32.gmra.mxu0 %v6640
        %v6713 = vpop.f32.mrf.mxu0
        %v6714 = vadd.f32 0.0, %v6713
        %v6715 = vpop.f32.mrf.mxu0
        %6716 = vdwg.mxu0
        %v6718 = vsel %vm1185, %v6301, 0
        %v6721 = vsel %vm1185, %v6303, 0
        %6723 = vmatprep.subr.mxu0 0.0
        %6724 = vmatpush1.msra.mxu0 0.0
        %6725 = vmatprep.subr.mxu0 0.0
        %6726 = vmatpush1.msra.mxu0 0.0
        %6727 = vmatprep.subr.mxu0 0.0
        %6728 = vmatpush1.msra.mxu0 0.0
        %6729 = vmatprep.subr.mxu0 0.0
        %6730 = vmatpush1.msra.mxu0 0.0
        %6731 = vmatprep.subr.mxu0 0.0
        %6732 = vmatpush1.msra.mxu0 0.0
        %6733 = vmatprep.subr.mxu0 0.0
        %6734 = vmatpush1.msra.mxu0 0.0
        %6735 = vmatprep.subr.mxu0 0.0
        %6736 = vmatpush1.msra.mxu0 0.0
        %6737 = vmatprep.subr.mxu0 0.0
        %6738 = vmatpush1.msra.mxu0 0.0
        %6739 = vmatprep.subr.mxu0 0.0
        %6740 = vmatpush1.msra.mxu0 0.0
        %6741 = vmatprep.subr.mxu0 0.0
        %6742 = vmatpush1.msra.mxu0 0.0
        %6743 = vmatprep.subr.mxu0 0.0
        %6744 = vmatpush1.msra.mxu0 0.0
        %6745 = vmatprep.subr.mxu0 0.0
        %6746 = vmatpush1.msra.mxu0 0.0
        %6747 = vmatprep.subr.mxu0 0.0
        %6748 = vmatpush1.msra.mxu0 0.0
        %6749 = vmatprep.subr.mxu0 0.0
        %6750 = vmatpush1.msra.mxu0 0.0
        %6751 = vmatprep.subr.mxu0 0.0
        %6752 = vmatpush1.msra.mxu0 %v459
        %6753 = vmatprep.subr.mxu0 0.0
        %6754 = vmatpush1.msra.mxu0 %v458
        %6755 = vmatprep.subr.mxu0 0.0
        %6756 = vmatpush2.msra.mxu0 0.0
        %6757 = vmatprep.subr.mxu0 0.0
        %6758 = vmatpush2.msra.mxu0 0.0
        %6759 = vmatprep.subr.mxu0 0.0
        %6760 = vmatpush2.msra.mxu0 0.0
        %6761 = vmatprep.subr.mxu0 0.0
        %6762 = vmatpush2.msra.mxu0 0.0
        %6763 = vmatprep.subr.mxu0 0.0
        %6764 = vmatpush2.msra.mxu0 0.0
        %6765 = vmatprep.subr.mxu0 0.0
        %6766 = vmatpush2.msra.mxu0 0.0
        %6767 = vmatprep.subr.mxu0 0.0
        %6768 = vmatpush2.msra.mxu0 0.0
        %6769 = vmatprep.subr.mxu0 0.0
        %6770 = vmatpush2.msra.mxu0 0.0
        %6771 = vmatprep.subr.mxu0 0.0
        %6772 = vmatpush2.msra.mxu0 0.0
        %6773 = vmatprep.subr.mxu0 0.0
        %6774 = vmatpush2.msra.mxu0 0.0
        %6775 = vmatprep.subr.mxu0 0.0
        %6776 = vmatpush2.msra.mxu0 0.0
        %6777 = vmatprep.subr.mxu0 0.0
        %6778 = vmatpush2.msra.mxu0 0.0
        %6779 = vmatprep.subr.mxu0 0.0
        %6780 = vmatpush2.msra.mxu0 0.0
        %6781 = vmatprep.subr.mxu0 0.0
        %6782 = vmatpush2.msra.mxu0 0.0
        %6783 = vmatprep.subr.mxu0 0.0
        %6784 = vmatpush2.msra.mxu0 0.0
        %6785 = vmatprep.subr.mxu0 0.0
        %6786 = vmatpush2.msra.mxu0 0.0
        %6787 = vmatprep.mubr.f32.mxu0 0.0
        %6788 = vmatmul.mubr.f32.gmra.mxu0 %v6718
        %v6789 = vpop.f32.mrf.mxu0
        %v6790 = vadd.f32 0.0, %v6789
        %v6791 = vpop.f32.mrf.mxu0
        %6792 = vmatprep.mubr.f32.mxu0 0.0
        %6793 = vmatmul.mubr.f32.gmra.mxu0 %v6721
        %v6794 = vpop.f32.mrf.mxu0
        %v6795 = vadd.f32 0.0, %v6794
        %v6796 = vpop.f32.mrf.mxu0
        %6797 = vdwg.mxu0
        %v6799 = vsel %vm1185, %v6305, 0
        %v6802 = vsel %vm1185, %v6307, 0
        %6804 = vmatprep.subr.mxu0 0.0
        %6805 = vmatpush1.msra.mxu0 0.0
        %6806 = vmatprep.subr.mxu0 0.0
        %6807 = vmatpush1.msra.mxu0 0.0
        %6808 = vmatprep.subr.mxu0 0.0
        %6809 = vmatpush1.msra.mxu0 0.0
        %6810 = vmatprep.subr.mxu0 0.0
        %6811 = vmatpush1.msra.mxu0 0.0
        %6812 = vmatprep.subr.mxu0 0.0
        %6813 = vmatpush1.msra.mxu0 0.0
        %6814 = vmatprep.subr.mxu0 0.0
        %6815 = vmatpush1.msra.mxu0 0.0
        %6816 = vmatprep.subr.mxu0 0.0
        %6817 = vmatpush1.msra.mxu0 0.0
        %6818 = vmatprep.subr.mxu0 0.0
        %6819 = vmatpush1.msra.mxu0 0.0
        %6820 = vmatprep.subr.mxu0 0.0
        %6821 = vmatpush1.msra.mxu0 0.0
        %6822 = vmatprep.subr.mxu0 0.0
        %6823 = vmatpush1.msra.mxu0 0.0
        %6824 = vmatprep.subr.mxu0 0.0
        %6825 = vmatpush1.msra.mxu0 0.0
        %6826 = vmatprep.subr.mxu0 0.0
        %6827 = vmatpush1.msra.mxu0 0.0
        %6828 = vmatprep.subr.mxu0 0.0
        %6829 = vmatpush1.msra.mxu0 0.0
        %6830 = vmatprep.subr.mxu0 0.0
        %6831 = vmatpush1.msra.mxu0 0.0
        %6832 = vmatprep.subr.mxu0 0.0
        %6833 = vmatpush1.msra.mxu0 %v461
        %6834 = vmatprep.subr.mxu0 0.0
        %6835 = vmatpush1.msra.mxu0 %v460
        %6836 = vmatprep.subr.mxu0 0.0
        %6837 = vmatpush2.msra.mxu0 0.0
        %6838 = vmatprep.subr.mxu0 0.0
        %6839 = vmatpush2.msra.mxu0 0.0
        %6840 = vmatprep.subr.mxu0 0.0
        %6841 = vmatpush2.msra.mxu0 0.0
        %6842 = vmatprep.subr.mxu0 0.0
        %6843 = vmatpush2.msra.mxu0 0.0
        %6844 = vmatprep.subr.mxu0 0.0
        %6845 = vmatpush2.msra.mxu0 0.0
        %6846 = vmatprep.subr.mxu0 0.0
        %6847 = vmatpush2.msra.mxu0 0.0
        %6848 = vmatprep.subr.mxu0 0.0
        %6849 = vmatpush2.msra.mxu0 0.0
        %6850 = vmatprep.subr.mxu0 0.0
        %6851 = vmatpush2.msra.mxu0 0.0
        %6852 = vmatprep.subr.mxu0 0.0
        %6853 = vmatpush2.msra.mxu0 0.0
        %6854 = vmatprep.subr.mxu0 0.0
        %6855 = vmatpush2.msra.mxu0 0.0
        %6856 = vmatprep.subr.mxu0 0.0
        %6857 = vmatpush2.msra.mxu0 0.0
        %6858 = vmatprep.subr.mxu0 0.0
        %6859 = vmatpush2.msra.mxu0 0.0
        %6860 = vmatprep.subr.mxu0 0.0
        %6861 = vmatpush2.msra.mxu0 0.0
        %6862 = vmatprep.subr.mxu0 0.0
        %6863 = vmatpush2.msra.mxu0 0.0
        %6864 = vmatprep.subr.mxu0 0.0
        %6865 = vmatpush2.msra.mxu0 0.0
        %6866 = vmatprep.subr.mxu0 0.0
        %6867 = vmatpush2.msra.mxu0 0.0
        %6868 = vmatprep.mubr.f32.mxu0 0.0
        %6869 = vmatmul.mubr.f32.gmra.mxu0 %v6799
        %v6870 = vpop.f32.mrf.mxu0
        %v6871 = vadd.f32 0.0, %v6870
        %v6872 = vpop.f32.mrf.mxu0
        %6873 = vmatprep.mubr.f32.mxu0 0.0
        %6874 = vmatmul.mubr.f32.gmra.mxu0 %v6802
        %v6875 = vpop.f32.mrf.mxu0
        %v6876 = vadd.f32 0.0, %v6875
        %v6877 = vpop.f32.mrf.mxu0
        %6878 = vdwg.mxu0
        %v6880 = vsel %vm1185, %v6309, 0
        %v6883 = vsel %vm1185, %v6311, 0
        %6885 = vmatprep.subr.mxu0 0.0
        %6886 = vmatpush1.msra.mxu0 0.0
        %6887 = vmatprep.subr.mxu0 0.0
        %6888 = vmatpush1.msra.mxu0 0.0
        %6889 = vmatprep.subr.mxu0 0.0
        %6890 = vmatpush1.msra.mxu0 0.0
        %6891 = vmatprep.subr.mxu0 0.0
        %6892 = vmatpush1.msra.mxu0 0.0
        %6893 = vmatprep.subr.mxu0 0.0
        %6894 = vmatpush1.msra.mxu0 0.0
        %6895 = vmatprep.subr.mxu0 0.0
        %6896 = vmatpush1.msra.mxu0 0.0
        %6897 = vmatprep.subr.mxu0 0.0
        %6898 = vmatpush1.msra.mxu0 0.0
        %6899 = vmatprep.subr.mxu0 0.0
        %6900 = vmatpush1.msra.mxu0 0.0
        %6901 = vmatprep.subr.mxu0 0.0
        %6902 = vmatpush1.msra.mxu0 0.0
        %6903 = vmatprep.subr.mxu0 0.0
        %6904 = vmatpush1.msra.mxu0 0.0
        %6905 = vmatprep.subr.mxu0 0.0
        %6906 = vmatpush1.msra.mxu0 0.0
        %6907 = vmatprep.subr.mxu0 0.0
        %6908 = vmatpush1.msra.mxu0 0.0
        %6909 = vmatprep.subr.mxu0 0.0
        %6910 = vmatpush1.msra.mxu0 0.0
        %6911 = vmatprep.subr.mxu0 0.0
        %6912 = vmatpush1.msra.mxu0 0.0
        %6913 = vmatprep.subr.mxu0 0.0
        %6914 = vmatpush1.msra.mxu0 %v463
        %6915 = vmatprep.subr.mxu0 0.0
        %6916 = vmatpush1.msra.mxu0 %v462
        %6917 = vmatprep.subr.mxu0 0.0
        %6918 = vmatpush2.msra.mxu0 0.0
        %6919 = vmatprep.subr.mxu0 0.0
        %6920 = vmatpush2.msra.mxu0 0.0
        %6921 = vmatprep.subr.mxu0 0.0
        %6922 = vmatpush2.msra.mxu0 0.0
        %6923 = vmatprep.subr.mxu0 0.0
        %6924 = vmatpush2.msra.mxu0 0.0
        %6925 = vmatprep.subr.mxu0 0.0
        %6926 = vmatpush2.msra.mxu0 0.0
        %6927 = vmatprep.subr.mxu0 0.0
        %6928 = vmatpush2.msra.mxu0 0.0
        %6929 = vmatprep.subr.mxu0 0.0
        %6930 = vmatpush2.msra.mxu0 0.0
        %6931 = vmatprep.subr.mxu0 0.0
        %6932 = vmatpush2.msra.mxu0 0.0
        %6933 = vmatprep.subr.mxu0 0.0
        %6934 = vmatpush2.msra.mxu0 0.0
        %6935 = vmatprep.subr.mxu0 0.0
        %6936 = vmatpush2.msra.mxu0 0.0
        %6937 = vmatprep.subr.mxu0 0.0
        %6938 = vmatpush2.msra.mxu0 0.0
        %6939 = vmatprep.subr.mxu0 0.0
        %6940 = vmatpush2.msra.mxu0 0.0
        %6941 = vmatprep.subr.mxu0 0.0
        %6942 = vmatpush2.msra.mxu0 0.0
        %6943 = vmatprep.subr.mxu0 0.0
        %6944 = vmatpush2.msra.mxu0 0.0
        %6945 = vmatprep.subr.mxu0 0.0
        %6946 = vmatpush2.msra.mxu0 0.0
        %6947 = vmatprep.subr.mxu0 0.0
        %6948 = vmatpush2.msra.mxu0 0.0
        %6949 = vmatprep.mubr.f32.mxu0 0.0
        %6950 = vmatmul.mubr.f32.gmra.mxu0 %v6880
        %v6951 = vpop.f32.mrf.mxu0
        %v6952 = vadd.f32 0.0, %v6951
        %v6953 = vpop.f32.mrf.mxu0
        %6954 = vmatprep.mubr.f32.mxu0 0.0
        %6955 = vmatmul.mubr.f32.gmra.mxu0 %v6883
        %v6956 = vpop.f32.mrf.mxu0
        %v6957 = vadd.f32 0.0, %v6956
        %v6958 = vpop.f32.mrf.mxu0
        %6959 = vdwg.mxu0
        %v6960 = vsel %vm466, %v448, 0.0
        %v6961 = vsel %vm466, %v449, 0.0
        %v6962 = vadd.f32 %v6960, %v6961
        %v6963 = vrot.slane %v6962, 4
        %v6964 = vadd.f32 %v6962, %v6963
        %v6965 = vrot.slane %v6964, 2
        %v6966 = vadd.f32 %v6964, %v6965
        %v6967 = vrot.slane %v6966, 1
        %v6968 = vadd.f32 %v6966, %v6967
        %v6969 = vsel %vm466, %v450, 0.0
        %v6970 = vsel %vm466, %v451, 0.0
        %v6971 = vadd.f32 %v6969, %v6970
        %v6972 = vrot.slane %v6971, 4
        %v6973 = vadd.f32 %v6971, %v6972
        %v6974 = vrot.slane %v6973, 2
        %v6975 = vadd.f32 %v6973, %v6974
        %v6976 = vrot.slane %v6975, 1
        %v6977 = vadd.f32 %v6975, %v6976
        %v6978 = vsel %vm466, %v452, 0.0
        %v6979 = vsel %vm466, %v453, 0.0
        %v6980 = vadd.f32 %v6978, %v6979
        %v6981 = vrot.slane %v6980, 4
        %v6982 = vadd.f32 %v6980, %v6981
        %v6983 = vrot.slane %v6982, 2
        %v6984 = vadd.f32 %v6982, %v6983
        %v6985 = vrot.slane %v6984, 1
        %v6986 = vadd.f32 %v6984, %v6985
        %v6987 = vsel %vm466, %v454, 0.0
        %v6988 = vsel %vm466, %v455, 0.0
        %v6989 = vadd.f32 %v6987, %v6988
        %v6990 = vrot.slane %v6989, 4
        %v6991 = vadd.f32 %v6989, %v6990
        %v6992 = vrot.slane %v6991, 2
        %v6993 = vadd.f32 %v6991, %v6992
        %v6994 = vrot.slane %v6993, 1
        %v6995 = vadd.f32 %v6993, %v6994
        %v6996 = vsel %vm466, %v456, 0.0
        %v6997 = vsel %vm466, %v457, 0.0
        %v6998 = vadd.f32 %v6996, %v6997
        %v6999 = vrot.slane %v6998, 4
        %v7000 = vadd.f32 %v6998, %v6999
        %v7001 = vrot.slane %v7000, 2
        %v7002 = vadd.f32 %v7000, %v7001
        %v7003 = vrot.slane %v7002, 1
        %v7004 = vadd.f32 %v7002, %v7003
        %v7005 = vsel %vm466, %v458, 0.0
        %v7006 = vsel %vm466, %v459, 0.0
        %v7007 = vadd.f32 %v7005, %v7006
        %v7008 = vrot.slane %v7007, 4
        %v7009 = vadd.f32 %v7007, %v7008
        %v7010 = vrot.slane %v7009, 2
        %v7011 = vadd.f32 %v7009, %v7010
        %v7012 = vrot.slane %v7011, 1
        %v7013 = vadd.f32 %v7011, %v7012
        %v7014 = vsel %vm466, %v460, 0.0
        %v7015 = vsel %vm466, %v461, 0.0
        %v7016 = vadd.f32 %v7014, %v7015
        %v7017 = vrot.slane %v7016, 4
        %v7018 = vadd.f32 %v7016, %v7017
        %v7019 = vrot.slane %v7018, 2
        %v7020 = vadd.f32 %v7018, %v7019
        %v7021 = vrot.slane %v7020, 1
        %v7022 = vadd.f32 %v7020, %v7021
        %v7023 = vsel %vm466, %v462, 0.0
        %v7024 = vsel %vm466, %v463, 0.0
        %v7025 = vadd.f32 %v7023, %v7024
        %v7026 = vrot.slane %v7025, 4
        %v7027 = vadd.f32 %v7025, %v7026
        %v7028 = vrot.slane %v7027, 2
        %v7029 = vadd.f32 %v7027, %v7028
        %v7030 = vrot.slane %v7029, 1
        %v7031 = vadd.f32 %v7029, %v7030
        %v7032 = vrcp.pop 16.0
        %v7033 = vmul.f32 %v6968, %v7032
        %v7034 = vmul.f32 %v6977, %v7032
        %v7035 = vmul.f32 %v6986, %v7032
        %v7036 = vmul.f32 %v6995, %v7032
        %v7037 = vmul.f32 %v7004, %v7032
        %v7038 = vmul.f32 %v7013, %v7032
        %v7039 = vmul.f32 %v7022, %v7032
        %v7040 = vmul.f32 %v7031, %v7032
        %v7041 = vsel %vm6104, 1, 0
        %v7042 = vsel %vm6105, 1, 0
        %v7043 = vsel %vm6106, 1, 0
        %v7044 = vsel %vm6107, 1, 0
        %v7045 = vsel %vm6108, 1, 0
        %v7046 = vsel %vm6109, 1, 0
        %v7047 = vsel %vm6110, 1, 0
        %v7048 = vsel %vm6111, 1, 0
        %v7049 = vsel %vm6112, 1, 0
        %v7050 = vsel %vm6113, 1, 0
        %v7051 = vsel %vm6114, 1, 0
        %v7052 = vsel %vm6115, 1, 0
        %v7053 = vsel %vm6116, 1, 0
        %v7054 = vsel %vm6117, 1, 0
        %v7055 = vsel %vm6118, 1, 0
        %v7056 = vsel %vm6119, 1, 0
        %vm7057 = vcmp.eq.s32.totalorder %v7041, 1
        %vm7058 = vcmp.eq.s32.totalorder %v7042, 1
        %vm7059 = vcmp.eq.s32.totalorder %v7043, 1
        %vm7060 = vcmp.eq.s32.totalorder %v7044, 1
        %vm7061 = vcmp.eq.s32.totalorder %v7045, 1
        %vm7062 = vcmp.eq.s32.totalorder %v7046, 1
        %vm7063 = vcmp.eq.s32.totalorder %v7047, 1
        %vm7064 = vcmp.eq.s32.totalorder %v7048, 1
        %vm7065 = vcmp.eq.s32.totalorder %v7049, 1
        %vm7066 = vcmp.eq.s32.totalorder %v7050, 1
        %vm7067 = vcmp.eq.s32.totalorder %v7051, 1
        %vm7068 = vcmp.eq.s32.totalorder %v7052, 1
        %vm7069 = vcmp.eq.s32.totalorder %v7053, 1
        %vm7070 = vcmp.eq.s32.totalorder %v7054, 1
        %vm7071 = vcmp.eq.s32.totalorder %v7055, 1
        %vm7072 = vcmp.eq.s32.totalorder %v7056, 1
        %v7073 = vsel %vm7057, %v6385, %v7033
        %v7074 = vsel %vm7058, %v6390, %v7033
        %v7075 = vsel %vm7059, %v6466, %v7034
        %v7076 = vsel %vm7060, %v6471, %v7034
        %v7077 = vsel %vm7061, %v6547, %v7035
        %v7078 = vsel %vm7062, %v6552, %v7035
        %v7079 = vsel %vm7063, %v6628, %v7036
        %v7080 = vsel %vm7064, %v6633, %v7036
        %v7081 = vsel %vm7065, %v6709, %v7037
        %v7082 = vsel %vm7066, %v6714, %v7037
        %v7083 = vsel %vm7067, %v6790, %v7038
        %v7084 = vsel %vm7068, %v6795, %v7038
        %v7085 = vsel %vm7069, %v6871, %v7039
        %v7086 = vsel %vm7070, %v6876, %v7039
        %v7087 = vsel %vm7071, %v6952, %v7040
        %v7088 = vsel %vm7072, %v6957, %v7040
        %7089 = vst.msk [vmem:[%s411] sm:$0xff] %vm466, %v7073
        %7090 = vst.msk [vmem:[%s411 + $0x10] sm:$0xff] %vm466, %v7074
        %7093 = vrot.lane.b32.xlu0 %v7077, 32
        %v7094 = vpop.permute.xlu0 %7093
        %7095 = vrot.lane.b32.xlu0 %v7078, 32
        %v7096 = vpop.permute.xlu0 %7095
        %vm7099 = vcmask 523520
        %7100 = vst.msk [vmem:[%s411] sm:$0xff] %vm7099, %v7094
        %7101 = vst.msk [vmem:[%s411 + $0x10] sm:$0xff] %vm7099, %v7096
        %7104 = vrot.lane.b32.xlu0 %v7081, 64
        %v7105 = vpop.permute.xlu0 %7104
        %7106 = vrot.lane.b32.xlu0 %v7082, 64
        %v7107 = vpop.permute.xlu0 %7106
        %vm7110 = vcmask 785920
        %7111 = vst.msk [vmem:[%s411] sm:$0xff] %vm7110, %v7105
        %7112 = vst.msk [vmem:[%s411 + $0x10] sm:$0xff] %vm7110, %v7107
        %7115 = vrot.lane.b32.xlu0 %v7085, 96
        %v7116 = vpop.permute.xlu0 %7115
        %7117 = vrot.lane.b32.xlu0 %v7086, 96
        %v7118 = vpop.permute.xlu0 %7117
        %vm7121 = vcmask 1048320
        %7122 = vst.msk [vmem:[%s411] sm:$0xff] %vm7121, %v7116
        %7123 = vst.msk [vmem:[%s411 + $0x10] sm:$0xff] %vm7121, %v7118
        %7124 = vst.msk [vmem:[%s411 + $0x8] sm:$0xff] %vm466, %v7075
        %7125 = vst.msk [vmem:[%s411 + $0x18] sm:$0xff] %vm466, %v7076
        %7128 = vrot.lane.b32.xlu0 %v7079, 32
        %v7129 = vpop.permute.xlu0 %7128
        %7130 = vrot.lane.b32.xlu0 %v7080, 32
        %v7131 = vpop.permute.xlu0 %7130
        %7134 = vst.msk [vmem:[%s411 + $0x8] sm:$0xff] %vm7099, %v7129
        %7135 = vst.msk [vmem:[%s411 + $0x18] sm:$0xff] %vm7099, %v7131
        %7138 = vrot.lane.b32.xlu0 %v7083, 64
        %v7139 = vpop.permute.xlu0 %7138
        %7140 = vrot.lane.b32.xlu0 %v7084, 64
        %v7141 = vpop.permute.xlu0 %7140
        %7144 = vst.msk [vmem:[%s411 + $0x8] sm:$0xff] %vm7110, %v7139
        %7145 = vst.msk [vmem:[%s411 + $0x18] sm:$0xff] %vm7110, %v7141
        %7148 = vrot.lane.b32.xlu0 %v7087, 96
        %v7149 = vpop.permute.xlu0 %7148
        %7150 = vrot.lane.b32.xlu0 %v7088, 96
        %v7151 = vpop.permute.xlu0 %7150
        %7154 = vst.msk [vmem:[%s411 + $0x8] sm:$0xff] %vm7121, %v7149
        %7155 = vst.msk [vmem:[%s411 + $0x18] sm:$0xff] %vm7121, %v7151
        %s7156 = sand.u32 %s152, 1
        %s7157 = scalar_lea.sflag [#allocation4], %s7156
        %s7158 = sand.u32 %s152, 1
        %s7159 = smul.addr %s7158, 32
        %s7160 = scalar_lea.vmem [#allocation10], %s7159
        // Predicated region
        $region53: #{tpu_custom_call.1} parent=35 // pred_check
          %p7161 = pneg %p162
        $region54: #{tpu_custom_call.1} parent=35 // pred_check_branch
          %7163 = sbr.rel (%p7161) target = $region56
        $region55: #{tpu_custom_call.1} parent=35 // pred_region
          %s7164 = smul.u32 2, %s30
          %s7166 = ssub.s32 512, 512
          %7167 = vsyncadd %s7157, %s7166
          %s7168 = smul.addr %s29, 8
          %s7169 = sadd.s32 %s7164, %s7168
          %s7170 = smul.addr %s7169, 128
          %s7171 = scalar_lea.hbm %s4, %s7170
          %s7172 = sshll.u32 %s7160, 4
          %s7173 = int_to_ptr.vmem [resolvable:$true] %s7172
          %7178 = dma.vmem_to_hbm [thread:$0]  %s7173, 512, %s7171, %s7157, 256, 512, 16
        $region56: #{tpu_custom_call.1} parent=35 // pred_fallthru
          _
      $region36: #{tpu_custom_call.1} parent=5 // pred_fallthru
        _
      %p7179 = scmp.le.s32.totalorder 2, %s20
      // Predicated region
      $region57: #{tpu_custom_call.1} parent=5 // pred_check
        %p7180 = pneg %p7179
      $region58: #{tpu_custom_call.1} parent=5 // pred_check_branch
        %7182 = sbr.rel (%p7180) target = $region60
      $region59: #{tpu_custom_call.1} parent=5 // pred_region
        %s7183 = ssub.s32 %s20, 2
        // Predicated region
        $region61: #{tpu_custom_call.1} parent=59 // pred_check
          %p7184 = pneg %p168
        $region62: #{tpu_custom_call.1} parent=59 // pred_check_branch
          %7186 = sbr.rel (%p7184) target = $region64
        $region63: #{tpu_custom_call.1} parent=59 // pred_region
          %s7187 = sand.u32 %s153, 1
          %s7188 = scalar_lea.sflag [#allocation4], %s7187
          %s7189 = sand.u32 %s153, 1
          %s7190 = smul.addr %s7189, 32
          %s7191 = scalar_lea.vmem [#allocation10], %s7190
          %7192 = dma.done %s7188, 512
        $region64: #{tpu_custom_call.1} parent=59 // pred_fallthru
          _
      $region60: #{tpu_custom_call.1} parent=5 // pred_fallthru
        _
    $region6: #{tpu_custom_call.1} parent=1 // loop_footer
      %s24 = sadd.s32 1, %s20
    $region7: #{tpu_custom_call.1} parent=1 // loop_footer_branch
      %19 = sbr.rel target = $region3
    $region8: #{tpu_custom_call.1} parent=1 // loop_exit
      _
    %7193 = vsyncpa [#allocation3], 1
    %s7194 = scalar_lea.sflag [#allocation3], 1
    %7195 = vsyncpa %s7194, 1
    %7196 = vsyncpa [#allocation6], 1
    %s7197 = scalar_lea.sflag [#allocation6], 1
    %7198 = vsyncpa %s7197, 1
    %7199 = vsyncpa [#allocation9], 1
    %7200 = vsyncpa [#allocation4], 1
    %s7201 = scalar_lea.sflag [#allocation4], 1
    %7202 = vsyncpa %s7201, 1

</llo_original>
